<compile_context>
chip_gen: v5e
topology: v5e:2x2
jax: 0.10.0
libtpu: 0.0.40
codegen_flags: <defaults>
</compile_context>

<pallas_src>
import functools

import jax
import jax.numpy as jnp
from jax import lax
from jax.experimental import pallas as pl
from jax.experimental.pallas import tpu as pltpu


# ------------------------------ configuration -------------------------------

def _round_up(x, m):
    return ((x + m - 1) // m) * m


def _detect_vmem_limit():
    # ~75% of physical VMEM (128 MiB on v5e/v6e, 64 MiB on v7x); safe fallback.
    try:
        info = pltpu.get_tpu_info()
        cap = getattr(info, "vmem_capacity_bytes", None)
        if cap:
            return int(cap) * 3 // 4
    except Exception:
        pass
    return 48 * 1024 * 1024


_VMEM_LIMIT = _detect_vmem_limit()


# ------------------------------ in-kernel math ------------------------------

def _mish(y):
    """mish(y) = y*tanh(softplus(y)) = y*u/(u+2) with u = e^y*(e^y+2) (f32)."""
    t = jnp.exp(jnp.minimum(y, 20.0))           # clamp to avoid overflow
    u = t * (t + 2.0)
    d = u + 2.0
    r = pl.reciprocal(d, approx=True)
    r = r * (2.0 - d * r)                       # one Newton step on the VPU
    return jnp.where(y > 20.0, y, y * u * r)


# ------------------------------ Pallas kernels ------------------------------

def _conv12_kernel(x_ref, w1_ref, b1_ref, wa_ref, wb_ref, b2_ref, o_ref,
                   s4_ref):
    # Fused conv1 (1x1, Cin->mid) + conv2 (3x3 stride-2 'same', mid->Cout).
    #   x_ref : (1, H, W, Cin) f32        w1_ref: (Cin, mid) bf16
    #   wa_ref: (3, 2*mid, Cout) bf16     taps (dh, dw=1|2) folded on K
    #   wb_ref: (3,   mid, Cout) bf16     taps (dh, dw=0)
    #   s4_ref: (Ho+1, 2, Wo+1, 2*mid) bf16 space-to-depth scratch where
    #           s4[p, a, q, 0:mid]     = y1[2p+a-1, 2q-2]  (even column)
    #           s4[p, a, q, mid:2mid]  = y1[2p+a-1, 2q-1]  (odd  column)
    _, H, W, Cin = x_ref.shape
    _, Ho, Wo, Cout = o_ref.shape
    mid = w1_ref.shape[1]

    # conv1: 1x1 matmul + Mish (input cast to bf16 in-kernel, f32 accum)
    x2 = x_ref[0].astype(jnp.bfloat16).reshape(H * W, Cin)
    y1 = _mish(jnp.dot(x2, w1_ref[...], preferred_element_type=jnp.float32)
               + b1_ref[...])
    y1r = y1.reshape(Ho, 2, Wo, 2 * mid).astype(jnp.bfloat16)

    # scatter y1 into the space-to-depth scratch; only halo strips re-zeroed
    s4_ref[0:1, 0:1, :, :] = jnp.zeros((1, 1, Wo + 1, 2 * mid), jnp.bfloat16)
    s4_ref[:, :, 0:1, :] = jnp.zeros((Ho + 1, 2, 1, 2 * mid), jnp.bfloat16)
    s4_ref[0:Ho, 1:2, 1:Wo + 1, :] = y1r[:, 0:1, :, :]       # even y1 rows
    s4_ref[1:Ho + 1, 0:1, 1:Wo + 1, :] = y1r[:, 1:2, :, :]   # odd  y1 rows

    # conv2: 3 dh-taps; dw taps folded into the MXU contraction dimension
    acc = None
    for dh, (p0, a) in enumerate(((0, 0), (0, 1), (1, 0))):
        pa = s4_ref[p0:p0 + Ho, a, 1:Wo + 1, :].reshape(Ho * Wo, 2 * mid)
        pb = s4_ref[p0:p0 + Ho, a, 0:Wo, mid:2 * mid].reshape(Ho * Wo, mid)
        c = (jnp.dot(pa, wa_ref[dh], preferred_element_type=jnp.float32)
             + jnp.dot(pb, wb_ref[dh], preferred_element_type=jnp.float32))
        acc = c if acc is None else acc + c
    y2 = _mish(acc + b2_ref[...])
    o_ref[...] = y2.reshape(1, Ho, Wo, Cout).astype(o_ref.dtype)


def _smallblock_kernel(x_ref, w1_ref, b1_ref, w3_ref, b2_ref, o_ref, tcat_ref):
    # Fused SmallBlock:  t = mish(x @ w1 + b1)
    #                    y = mish(conv3x3_same(t, w2) + b2) + x
    # tcat_ref (H+2, W, 3C) bf16 holds the three dw-shifted copies of the
    # zero-padded t packed on channels: tcat[r, w, kC:(k+1)C] = t_pad[r, w+k].
    # The 3x3 conv is then 3 matmuls (K = 3C) over free leading-axis slices.
    _, H, W, C = x_ref.shape

    t = _mish(jnp.dot(x_ref[0].reshape(H * W, C), w1_ref[...],
                      preferred_element_type=jnp.float32) + b1_ref[...])
    t3 = t.reshape(H, W, C).astype(jnp.bfloat16)

    # halo: top/bottom padded rows + the two out-of-range column strips
    zrow = jnp.zeros((1, W, 3 * C), jnp.bfloat16)
    zcol = jnp.zeros((H, 1, C), jnp.bfloat16)
    tcat_ref[0:1, :, :] = zrow
    tcat_ref[H + 1:H + 2, :, :] = zrow
    tcat_ref[1:H + 1, 0:1, 0:C] = zcol
    tcat_ref[1:H + 1, W - 1:W, 2 * C:3 * C] = zcol
    # three W-shifted copies of t packed on channels (dw = -1, 0, +1)
    tcat_ref[1:H + 1, 1:W, 0:C] = t3[:, 0:W - 1, :]
    tcat_ref[1:H + 1, 0:W, C:2 * C] = t3
    tcat_ref[1:H + 1, 0:W - 1, 2 * C:3 * C] = t3[:, 1:W, :]

    acc = None
    for dh in range(3):                          # leading-axis slices are free
        p = tcat_ref[dh:dh + H].reshape(H * W, 3 * C)
        c = jnp.dot(p, w3_ref[dh], preferred_element_type=jnp.float32)
        acc = c if acc is None else acc + c
    # residual is read late (bf16 -> f32) to keep live ranges short
    y = _mish(acc + b2_ref[...]) + x_ref[0].astype(jnp.float32).reshape(H * W, C)
    o_ref[...] = y.reshape(1, H, W, C).astype(o_ref.dtype)


def _mm_mish_split2_kernel(x_ref, w_ref, b_ref, o0_ref, o1_ref):
    # split0 + split1 as one matmul (weights concatenated on Cout), written as
    # two lane-dense outputs (no XLA slice copies afterwards).
    acc = jnp.dot(x_ref[...], w_ref[...], preferred_element_type=jnp.float32)
    y = _mish(acc + b_ref[...])
    half = o0_ref.shape[1]
    o0_ref[...] = y[:, :half].astype(o0_ref.dtype)
    o1_ref[...] = y[:, half:].astype(o1_ref.dtype)


def _mm_mish_concat_kernel(x_ref, w_ref, b_ref, c_ref, o_ref, *, mid):
    # out = [split0 passthrough | mish(x @ w + b)]   (route concat fused)
    acc = jnp.dot(x_ref[...], w_ref[...], preferred_element_type=jnp.float32)
    y = _mish(acc + b_ref[...])
    s0 = c_ref[...][:, :mid].astype(jnp.float32)
    o_ref[...] = jnp.concatenate([s0, y[:, :mid]], axis=-1).astype(o_ref.dtype)


# ------------------------------ kernel wrappers ------------------------------

def _choose_tm(m, bytes_per_row, fixed_bytes, limit):
    budget = int(limit * 0.6)
    for t in (2048, 1024, 512, 256, 128):
        if m >= t and 2 * t * bytes_per_row + fixed_bytes <= budget:
            return t
    return min(128, _round_up(m, 8))


def conv12_fused(x, w1, b1, wa, wb, b2, *, vmem_limit=_VMEM_LIMIT):
    """Fused conv1 (1x1) + conv2 (3x3 stride 2); conv1 output stays in VMEM."""
    # TODO(synk): for large H,W tile rows (with halo) instead of whole images
    # and mark the row axis 'parallel' so both v7x TensorCores stay busy.
    N, H, W, Cin = x.shape
    Ho, Wo = H // 2, W // 2
    midp = w1.shape[1]
    coutp = wa.shape[2]
    return pl.pallas_call(
        _conv12_kernel,
        out_shape=jax.ShapeDtypeStruct((N, Ho, Wo, coutp), jnp.bfloat16),
        grid_spec=pltpu.PrefetchScalarGridSpec(
            num_scalar_prefetch=0,
            grid=(N,),
            in_specs=[pl.BlockSpec((1, H, W, Cin), lambda n: (n, 0, 0, 0)),
                      pl.BlockSpec((Cin, midp), lambda n: (0, 0)),
                      pl.BlockSpec((1, midp), lambda n: (0, 0)),
                      pl.BlockSpec((3, 2 * midp, coutp), lambda n: (0, 0, 0)),
                      pl.BlockSpec((3, midp, coutp), lambda n: (0, 0, 0)),
                      pl.BlockSpec((1, coutp), lambda n: (0, 0))],
            out_specs=pl.BlockSpec((1, Ho, Wo, coutp), lambda n: (n, 0, 0, 0)),
            scratch_shapes=[pltpu.VMEM((Ho + 1, 2, Wo + 1, 2 * midp),
                                       jnp.bfloat16)]),
        compiler_params=pltpu.CompilerParams(
            dimension_semantics=("parallel",),
            vmem_limit_bytes=vmem_limit),
        cost_estimate=pl.CostEstimate(
            flops=int(2 * N * H * W * Cin * midp
                      + 2 * N * Ho * Wo * 9 * midp * coutp),
            transcendentals=int(N * H * W * midp + N * Ho * Wo * coutp),
            bytes_accessed=int(x.size * 4 + (w1.size + wa.size + wb.size) * 2
                               + N * Ho * Wo * coutp * 2)),
    )(x, w1, b1, wa, wb, b2)


def smallblock_fused(x, blk, *, vmem_limit=_VMEM_LIMIT):
    """One pallas_call per SmallBlock: 1x1 -> 3x3('same') -> +residual."""
    # TODO(synk): tile rows (with a 1-row halo) when H*W is large / on v7x.
    N, H, W, C = x.shape
    w1, b1, w3, b2 = blk['w1'], blk['b1'], blk['w3'], blk['b2']
    return pl.pallas_call(
        _smallblock_kernel,
        out_shape=jax.ShapeDtypeStruct((N, H, W, C), jnp.bfloat16),
        grid_spec=pltpu.PrefetchScalarGridSpec(
            num_scalar_prefetch=0,
            grid=(N,),
            in_specs=[pl.BlockSpec((1, H, W, C), lambda n: (n, 0, 0, 0)),
                      pl.BlockSpec((C, C), lambda n: (0, 0)),
                      pl.BlockSpec((1, C), lambda n: (0, 0)),
                      pl.BlockSpec((3, 3 * C, C), lambda n: (0, 0, 0)),
                      pl.BlockSpec((1, C), lambda n: (0, 0))],
            out_specs=pl.BlockSpec((1, H, W, C), lambda n: (n, 0, 0, 0)),
            scratch_shapes=[pltpu.VMEM((H + 2, W, 3 * C), jnp.bfloat16)]),
        compiler_params=pltpu.CompilerParams(
            dimension_semantics=("parallel",),
            vmem_limit_bytes=vmem_limit),
        cost_estimate=pl.CostEstimate(
            flops=int(2 * N * H * W * C * C * 10),
            transcendentals=int(2 * N * H * W * C),
            bytes_accessed=int(2 * x.size * 2 + (w1.size + w3.size) * 2
                               + 2 * C * 4)),
    )(x, w1, b1, w3, b2)


def split_conv_fused(x2d, w, b, *, vmem_limit=_VMEM_LIMIT):
    """split0/split1 (two 1x1 convs on the same input) as one matmul with two
    lane-dense outputs."""
    M, K = x2d.shape
    n_out = w.shape[1]
    midp = n_out // 2
    tm = _choose_tm(M, K * 2 + n_out * 2, w.size * 2 + n_out * 4, vmem_limit)
    Mp = pl.cdiv(M, tm) * tm
    xin = x2d if Mp == M else jnp.pad(x2d, ((0, Mp - M), (0, 0)))
    s0, s1 = pl.pallas_call(
        _mm_mish_split2_kernel,
        out_shape=(jax.ShapeDtypeStruct((Mp, midp), jnp.bfloat16),
                   jax.ShapeDtypeStruct((Mp, midp), jnp.bfloat16)),
        grid_spec=pltpu.PrefetchScalarGridSpec(
            num_scalar_prefetch=0,
            grid=(Mp // tm,),
            in_specs=[pl.BlockSpec((tm, K), lambda i: (i, 0)),
                      pl.BlockSpec((K, n_out), lambda i: (0, 0)),
                      pl.BlockSpec((1, n_out), lambda i: (0, 0))],
            out_specs=(pl.BlockSpec((tm, midp), lambda i: (i, 0)),
                       pl.BlockSpec((tm, midp), lambda i: (i, 0)))),
        compiler_params=pltpu.CompilerParams(
            dimension_semantics=("parallel",),
            vmem_limit_bytes=vmem_limit),
        cost_estimate=pl.CostEstimate(
            flops=int(2 * Mp * K * n_out),
            transcendentals=int(Mp * n_out),
            bytes_accessed=int(Mp * K * 2 + w.size * 2 + Mp * n_out * 2)),
    )(xin, w, b)
    return s0[:M], s1[:M]


def conv3_concat_fused(x2d, w, b, s0, mid, *, vmem_limit=_VMEM_LIMIT):
    """Final 1x1 conv + Mish with torch.cat([split0, conv3]) fused into the
    store: out = [split0[:, :mid] | mish(x @ w + b)[:, :mid]]  (float32)."""
    M, K = x2d.shape
    coutp = w.shape[1]
    cch = s0.shape[1]
    n_out = 2 * mid
    tm = _choose_tm(M, K * 2 + cch * 2 + n_out * 4,
                    w.size * 2 + coutp * 4, vmem_limit)
    Mp = pl.cdiv(M, tm) * tm
    xin, c = x2d, s0
    if Mp != M:
        xin = jnp.pad(x2d, ((0, Mp - M), (0, 0)))
        c = jnp.pad(s0, ((0, Mp - M), (0, 0)))
    out = pl.pallas_call(
        functools.partial(_mm_mish_concat_kernel, mid=mid),
        out_shape=jax.ShapeDtypeStruct((Mp, n_out), jnp.float32),
        grid_spec=pltpu.PrefetchScalarGridSpec(
            num_scalar_prefetch=0,
            grid=(Mp // tm,),
            in_specs=[pl.BlockSpec((tm, K), lambda i: (i, 0)),
                      pl.BlockSpec((K, coutp), lambda i: (0, 0)),
                      pl.BlockSpec((1, coutp), lambda i: (0, 0)),
                      pl.BlockSpec((tm, cch), lambda i: (i, 0))],
            out_specs=pl.BlockSpec((tm, n_out), lambda i: (i, 0))),
        compiler_params=pltpu.CompilerParams(
            dimension_semantics=("parallel",),
            vmem_limit_bytes=vmem_limit),
        cost_estimate=pl.CostEstimate(
            flops=int(2 * Mp * K * coutp),
            transcendentals=int(Mp * coutp),
            bytes_accessed=int(Mp * (K + cch) * 2 + w.size * 2
                               + Mp * n_out * 4)),
    )(xin, w, b, c)
    return out[:M]


# ------------------------------ Stage3 forward -------------------------------

def stage3_forward(x, P, *, nchannels):
    """Stage3.forward.  x: NHWC float32.  Returns NHWC (N, H/2, W/2, C)."""
    N, H, W, Cin = x.shape
    assert Cin == nchannels and H % 2 == 0 and W % 2 == 0
    mid = nchannels // 2
    Ho, Wo = H // 2, W // 2

    # conv1 (1x1, C -> C/2) + conv2 (3x3 stride 2, C/2 -> C), fully fused
    y2 = conv12_fused(x, P['conv1_w'], P['conv1_b'],
                      P['conv2_wa'], P['conv2_wb'], P['conv2_b'])
    cp = y2.shape[-1]
    M = N * Ho * Wo

    # split0 + split1: one matmul, two lane-dense outputs
    s0, s1 = split_conv_fused(y2.reshape(M, cp), P['split_w'], P['split_b'])
    midp = s0.shape[1]

    # two SmallBlocks, each fully fused (1x1 -> 3x3 -> +residual) per image
    b = s1.reshape(N, Ho, Wo, midp)
    b = smallblock_fused(b, P['block1'])
    b = smallblock_fused(b, P['block2'])

    # conv3 (1x1) with the route-concat fused into its store
    # TODO(synk): emit bf16 here if the downstream consumer accepts it.
    out2d = conv3_concat_fused(b.reshape(M, midp), P['conv3_w'], P['conv3_b'],
                               s0, mid)
    return out2d.reshape(N, Ho, Wo, 2 * mid)


# ---------------------------- parameter building -----------------------------

def _make_cbm_params(key, cin, cout, k):
    k1, k2, k3, k4, k5 = jax.random.split(key, 5)
    w = jax.random.normal(k1, (k, k, cin, cout), jnp.float32) * 0.1   # HWIO
    gamma = jax.random.uniform(k2, (cout,), jnp.float32, 0.5, 1.5)
    beta = jax.random.normal(k3, (cout,), jnp.float32) * 0.1
    mean = jax.random.normal(k4, (cout,), jnp.float32) * 0.1
    var = jax.random.uniform(k5, (cout,), jnp.float32, 0.5, 1.5)
    scale = gamma / jnp.sqrt(var + 1e-5)
    bias = beta - mean * scale
    wq = (w * scale).astype(jnp.bfloat16)        # BN scale folded into weights
    return {'wq': wq, 'bias': bias}


def _pad_axis(a, axis, size):
    pad = [(0, 0)] * a.ndim
    pad[axis] = (0, size - a.shape[axis])
    return jnp.pad(a, pad)


def make_stage3_params(key, nchannels):
    mid = nchannels // 2
    midp = _round_up(mid, 128)                   # lane-dense internal channels
    cp = _round_up(nchannels, 128)
    keys = jax.random.split(key, 9)
    raw = {
        'conv1': _make_cbm_params(keys[0], nchannels, mid, 1),
        'conv2': _make_cbm_params(keys[1], mid, nchannels, 3),
        'split0': _make_cbm_params(keys[2], nchannels, mid, 1),
        'split1': _make_cbm_params(keys[3], nchannels, mid, 1),
        'block1': (_make_cbm_params(keys[4], mid, mid, 1),
                   _make_cbm_params(keys[5], mid, mid, 3)),
        'block2': (_make_cbm_params(keys[6], mid, mid, 1),
                   _make_cbm_params(keys[7], mid, mid, 3)),
        'conv3': _make_cbm_params(keys[8], mid, mid, 1),
    }
    P = {'raw': raw}

    # conv1: (1,1,C,mid) -> (C, midp)
    P['conv1_w'] = _pad_axis(raw['conv1']['wq'].reshape(nchannels, mid), 1, midp)
    P['conv1_b'] = _pad_axis(raw['conv1']['bias'], 0, midp).reshape(1, midp)

    # conv2: (3,3,mid,C) -> dh-major tap weights with dw folded onto K
    w2 = _pad_axis(_pad_axis(raw['conv2']['wq'], 2, midp), 3, cp)  # (3,3,midp,cp)
    P['conv2_wa'] = jnp.concatenate([w2[:, 1], w2[:, 2]], axis=1)  # (3,2*midp,cp)
    P['conv2_wb'] = w2[:, 0]                                       # (3,  midp,cp)
    P['conv2_b'] = _pad_axis(raw['conv2']['bias'], 0, cp).reshape(1, cp)

    # split0 + split1 share one matmul: weights concatenated on Cout
    sw, sb = [], []
    for name in ('split0', 'split1'):
        sw.append(_pad_axis(_pad_axis(raw[name]['wq'].reshape(nchannels, mid),
                                      0, cp), 1, midp))
        sb.append(_pad_axis(raw[name]['bias'], 0, midp))
    P['split_w'] = jnp.concatenate(sw, axis=1)                     # (cp, 2*midp)
    P['split_b'] = jnp.concatenate(sb).reshape(1, 2 * midp)

    for name in ('block1', 'block2'):
        p1, p2 = raw[name]
        w33 = _pad_axis(_pad_axis(p2['wq'], 2, midp), 3, midp)     # (3,3,midp,midp)
        P[name] = {
            'w1': _pad_axis(_pad_axis(p1['wq'].reshape(mid, mid), 0, midp),
                            1, midp),
            'b1': _pad_axis(p1['bias'], 0, midp).reshape(1, midp),
            'w3': w33.reshape(3, 3 * midp, midp),
            'b2': _pad_axis(p2['bias'], 0, midp).reshape(1, midp),
        }

    P['conv3_w'] = _pad_axis(_pad_axis(raw['conv3']['wq'].reshape(mid, mid),
                                       0, midp), 1, midp)
    P['conv3_b'] = _pad_axis(raw['conv3']['bias'], 0, midp).reshape(1, midp)
    return P


# -------------------------- pure-JAX reference check -------------------------

def _ref_mish(y):
    sp = jnp.maximum(y, 0.0) + jnp.log1p(jnp.exp(-jnp.abs(y)))
    return y * jnp.tanh(sp)


def _ref_cbm(x, wq, bias, stride, out_bf16=True):
    pad = wq.shape[0] // 2
    y = lax.conv_general_dilated(
        x, wq, window_strides=(stride, stride),
        padding=[(pad, pad), (pad, pad)],
        dimension_numbers=('NHWC', 'HWIO', 'NHWC'),
        preferred_element_type=jnp.float32)
    y = _ref_mish(y + bias)
    return y.astype(jnp.bfloat16) if out_bf16 else y


def stage3_ref(x, P):
    R = P['raw']
    xb = x.astype(jnp.bfloat16)
    y1 = _ref_cbm(xb, R['conv1']['wq'], R['conv1']['bias'], 1)
    y2 = _ref_cbm(y1, R['conv2']['wq'], R['conv2']['bias'], 2)
    s0 = _ref_cbm(y2, R['split0']['wq'], R['split0']['bias'], 1)
    s1 = _ref_cbm(y2, R['split1']['wq'], R['split1']['bias'], 1)
    b = s1
    for name in ('block1', 'block2'):
        p1, p2 = R[name]
        t = _ref_cbm(b, p1['wq'], p1['bias'], 1)
        y = _ref_cbm(t, p2['wq'], p2['bias'], 1, out_bf16=False)
        b = (y + b.astype(jnp.float32)).astype(jnp.bfloat16)
    c3 = _ref_cbm(b, R['conv3']['wq'], R['conv3']['bias'], 1, out_bf16=False)
    return jnp.concatenate([s0.astype(jnp.float32), c3], axis=-1)


# ----------------------------------- main ------------------------------------

if __name__ == "__main__":
    key = jax.random.PRNGKey(0)
    kx, kp = jax.random.split(key)

    N, C, H, W = 2, 8, 16, 16            # Stage3(nchannels=8), PyTorch NCHW
    x_nchw = jax.random.normal(kx, (N, C, H, W), jnp.float32)
    x = jnp.transpose(x_nchw, (0, 2, 3, 1))          # NCHW -> NHWC

    params = make_stage3_params(kp, C)

    fwd = jax.jit(functools.partial(stage3_forward, nchannels=C))
    out = jax.block_until_ready(fwd(x, params))
    assert out.shape == (N, H // 2, W // 2, C), out.shape

    ref = jax.block_until_ready(jax.jit(stage3_ref)(x, params))
    err = float(jnp.max(jnp.abs(out - ref)))
    assert jnp.allclose(out, ref, atol=1e-2, rtol=1e-2), f"max abs err {err}"

    print("KERNEL_OK")
</pallas_src>

<mosaic_0001>
module attributes {stable_mosaic.version = 11 : i64} {
  func.func @_smallblock_kernel(%arg0: i32, %arg1: memref<1x8x8x128xbf16, #tpu.memory_space<vmem>>, %arg2: memref<128x128xbf16, #tpu.memory_space<vmem>>, %arg3: memref<1x128xf32, #tpu.memory_space<vmem>>, %arg4: memref<3x384x128xbf16, #tpu.memory_space<vmem>>, %arg5: memref<1x128xf32, #tpu.memory_space<vmem>>, %arg6: memref<1x8x8x128xbf16, #tpu.memory_space<vmem>>, %arg7: memref<10x8x384xbf16, #tpu.memory_space<vmem>>) attributes {dimension_semantics = [#tpu.dimension_semantics<parallel>], iteration_bounds = array<i64: 2>, scalar_prefetch = 0 : i64, scratch_operands = 1 : i64, tpu.core_type = #tpu.core_type<tc>, window_params = [{transform_indices = @transform_0, window_bounds = array<i64: 1, 8, 8, 128>}, {pipeline_mode = #tpu.pipeline_mode<synchronous>, transform_indices = @transform_1, window_bounds = array<i64: 128, 128>}, {pipeline_mode = #tpu.pipeline_mode<synchronous>, transform_indices = @transform_2, window_bounds = array<i64: 1, 128>}, {pipeline_mode = #tpu.pipeline_mode<synchronous>, transform_indices = @transform_3, window_bounds = array<i64: 3, 384, 128>}, {pipeline_mode = #tpu.pipeline_mode<synchronous>, transform_indices = @transform_4, window_bounds = array<i64: 1, 128>}, {transform_indices = @transform_5, window_bounds = array<i64: 1, 8, 8, 128>}]} {
    %c0 = arith.constant 0 : index
    %c0_0 = arith.constant 0 : index
    %c0_1 = arith.constant 0 : index
    %c0_2 = arith.constant 0 : index
    %0 = vector.load %arg1[%c0, %c0_0, %c0_1, %c0_2] : memref<1x8x8x128xbf16, #tpu.memory_space<vmem>>, vector<1x8x8x128xbf16>
    %1 = vector.shape_cast %0 : vector<1x8x8x128xbf16> to vector<8x8x128xbf16>
    %2 = vector.shape_cast %1 : vector<8x8x128xbf16> to vector<64x128xbf16>
    %c0_3 = arith.constant 0 : index
    %c0_4 = arith.constant 0 : index
    %3 = vector.load %arg2[%c0_3, %c0_4] : memref<128x128xbf16, #tpu.memory_space<vmem>>, vector<128x128xbf16>
    %cst = arith.constant dense<0.000000e+00> : vector<64x128xf32>
    %4 = tpu.matmul %2, %3, %cst {dimension_numbers = #tpu.dot_dimension_numbers<[1], [0], [0], [1], [0, 0, 1, 1], [], []>} : vector<64x128xbf16>, vector<128x128xbf16>, vector<64x128xf32> -> vector<64x128xf32>
    %c0_5 = arith.constant 0 : index
    %c0_6 = arith.constant 0 : index
    %5 = vector.load %arg3[%c0_5, %c0_6] : memref<1x128xf32, #tpu.memory_space<vmem>>, vector<1x128xf32>
    %6 = vector.broadcast %5 : vector<1x128xf32> to vector<64x128xf32>
    %7 = arith.addf %4, %6 : vector<64x128xf32>
    %cst_7 = arith.constant 2.000000e+01 : f32
    %8 = vector.broadcast %cst_7 : f32 to vector<64x128xf32>
    %9 = arith.minimumf %7, %8 : vector<64x128xf32>
    %10 = math.exp %9 : vector<64x128xf32>
    %cst_8 = arith.constant 2.000000e+00 : f32
    %11 = vector.broadcast %cst_8 : f32 to vector<64x128xf32>
    %12 = arith.addf %10, %11 : vector<64x128xf32>
    %13 = arith.mulf %10, %12 : vector<64x128xf32>
    %cst_9 = arith.constant 2.000000e+00 : f32
    %14 = vector.broadcast %cst_9 : f32 to vector<64x128xf32>
    %15 = arith.addf %13, %14 : vector<64x128xf32>
    %16 = tpu.reciprocal %15 {approx = true} : vector<64x128xf32> -> vector<64x128xf32>
    %17 = arith.mulf %15, %16 : vector<64x128xf32>
    %cst_10 = arith.constant 2.000000e+00 : f32
    %18 = vector.broadcast %cst_10 : f32 to vector<64x128xf32>
    %19 = arith.subf %18, %17 : vector<64x128xf32>
    %20 = arith.mulf %16, %19 : vector<64x128xf32>
    %cst_11 = arith.constant 2.000000e+01 : f32
    %21 = vector.broadcast %cst_11 : f32 to vector<64x128xf32>
    %22 = arith.cmpf ogt, %7, %21 : vector<64x128xf32>
    %23 = arith.mulf %7, %13 : vector<64x128xf32>
    %24 = arith.mulf %23, %20 : vector<64x128xf32>
    %25 = arith.select %22, %7, %24 : vector<64x128xi1>, vector<64x128xf32>
    %26 = vector.shape_cast %25 : vector<64x128xf32> to vector<8x8x128xf32>
    %27 = arith.truncf %26 : vector<8x8x128xf32> to vector<8x8x128xbf16>
    %cst_12 = arith.constant 0.000000e+00 : bf16
    %28 = vector.broadcast %cst_12 : bf16 to vector<1x8x384xbf16>
    %cst_13 = arith.constant 0.000000e+00 : bf16
    %29 = vector.broadcast %cst_13 : bf16 to vector<8x1x128xbf16>
    %c0_14 = arith.constant 0 : index
    %c0_15 = arith.constant 0 : index
    %c0_16 = arith.constant 0 : index
    %30 = vector.load %arg7[%c0_14, %c0_15, %c0_16] : memref<10x8x384xbf16, #tpu.memory_space<vmem>>, vector<1x8x384xbf16>
    tpu.vector_store %arg7[%c0_14, %c0_15, %c0_16], %28 {strides = array<i32>} : memref<10x8x384xbf16, #tpu.memory_space<vmem>>, vector<1x8x384xbf16>,
    %c9 = arith.constant 9 : index
    %c0_17 = arith.constant 0 : index
    %c0_18 = arith.constant 0 : index
    %31 = vector.load %arg7[%c9, %c0_17, %c0_18] : memref<10x8x384xbf16, #tpu.memory_space<vmem>>, vector<1x8x384xbf16>
    tpu.vector_store %arg7[%c9, %c0_17, %c0_18], %28 {strides = array<i32>} : memref<10x8x384xbf16, #tpu.memory_space<vmem>>, vector<1x8x384xbf16>,
    %c1 = arith.constant 1 : index
    %c0_19 = arith.constant 0 : index
    %c0_20 = arith.constant 0 : index
    %32 = vector.load %arg7[%c1, %c0_19, %c0_20] : memref<10x8x384xbf16, #tpu.memory_space<vmem>>, vector<8x1x128xbf16>
    tpu.vector_store %arg7[%c1, %c0_19, %c0_20], %29 {strides = array<i32>} : memref<10x8x384xbf16, #tpu.memory_space<vmem>>, vector<8x1x128xbf16>,
    %c1_21 = arith.constant 1 : index
    %c7 = arith.constant 7 : index
    %c256 = arith.constant 256 : index
    %33 = vector.load %arg7[%c1_21, %c7, %c256] : memref<10x8x384xbf16, #tpu.memory_space<vmem>>, vector<8x1x128xbf16>
    tpu.vector_store %arg7[%c1_21, %c7, %c256], %29 {strides = array<i32>} : memref<10x8x384xbf16, #tpu.memory_space<vmem>>, vector<8x1x128xbf16>,
    %34 = vector.extract_strided_slice %27 {offsets = [0, 0, 0], sizes = [8, 7, 128], strides = [1, 1, 1]} : vector<8x8x128xbf16> to vector<8x7x128xbf16>
    %c1_22 = arith.constant 1 : index
    %c1_23 = arith.constant 1 : index
    %c0_24 = arith.constant 0 : index
    %35 = vector.load %arg7[%c1_22, %c1_23, %c0_24] : memref<10x8x384xbf16, #tpu.memory_space<vmem>>, vector<8x7x128xbf16>
    tpu.vector_store %arg7[%c1_22, %c1_23, %c0_24], %34 {strides = array<i32>} : memref<10x8x384xbf16, #tpu.memory_space<vmem>>, vector<8x7x128xbf16>,
    %c1_25 = arith.constant 1 : index
    %c0_26 = arith.constant 0 : index
    %c128 = arith.constant 128 : index
    %36 = vector.load %arg7[%c1_25, %c0_26, %c128] : memref<10x8x384xbf16, #tpu.memory_space<vmem>>, vector<8x8x128xbf16>
    tpu.vector_store %arg7[%c1_25, %c0_26, %c128], %27 {strides = array<i32>} : memref<10x8x384xbf16, #tpu.memory_space<vmem>>, vector<8x8x128xbf16>,
    %37 = vector.extract_strided_slice %27 {offsets = [0, 1, 0], sizes = [8, 7, 128], strides = [1, 1, 1]} : vector<8x8x128xbf16> to vector<8x7x128xbf16>
    %c1_27 = arith.constant 1 : index
    %c0_28 = arith.constant 0 : index
    %c256_29 = arith.constant 256 : index
    %38 = vector.load %arg7[%c1_27, %c0_28, %c256_29] : memref<10x8x384xbf16, #tpu.memory_space<vmem>>, vector<8x7x128xbf16>
    tpu.vector_store %arg7[%c1_27, %c0_28, %c256_29], %37 {strides = array<i32>} : memref<10x8x384xbf16, #tpu.memory_space<vmem>>, vector<8x7x128xbf16>,
    %c0_30 = arith.constant 0 : index
    %c0_31 = arith.constant 0 : index
    %c0_32 = arith.constant 0 : index
    %39 = vector.load %arg7[%c0_30, %c0_31, %c0_32] : memref<10x8x384xbf16, #tpu.memory_space<vmem>>, vector<8x8x384xbf16>
    %40 = vector.shape_cast %39 : vector<8x8x384xbf16> to vector<64x384xbf16>
    %c0_33 = arith.constant 0 : index
    %c0_34 = arith.constant 0 : index
    %c0_35 = arith.constant 0 : index
    %41 = vector.load %arg4[%c0_33, %c0_34, %c0_35] : memref<3x384x128xbf16, #tpu.memory_space<vmem>>, vector<1x384x128xbf16>
    %42 = vector.shape_cast %41 : vector<1x384x128xbf16> to vector<384x128xbf16>
    %cst_36 = arith.constant dense<0.000000e+00> : vector<64x128xf32>
    %43 = tpu.matmul %40, %42, %cst_36 {dimension_numbers = #tpu.dot_dimension_numbers<[1], [0], [0], [1], [0, 0, 1, 1], [], []>} : vector<64x384xbf16>, vector<384x128xbf16>, vector<64x128xf32> -> vector<64x128xf32>
    %c1_37 = arith.constant 1 : index
    %c0_38 = arith.constant 0 : index
    %c0_39 = arith.constant 0 : index
    %44 = vector.load %arg7[%c1_37, %c0_38, %c0_39] : memref<10x8x384xbf16, #tpu.memory_space<vmem>>, vector<8x8x384xbf16>
    %45 = vector.shape_cast %44 : vector<8x8x384xbf16> to vector<64x384xbf16>
    %c1_40 = arith.constant 1 : index
    %c0_41 = arith.constant 0 : index
    %c0_42 = arith.constant 0 : index
    %46 = vector.load %arg4[%c1_40, %c0_41, %c0_42] : memref<3x384x128xbf16, #tpu.memory_space<vmem>>, vector<1x384x128xbf16>
    %47 = vector.shape_cast %46 : vector<1x384x128xbf16> to vector<384x128xbf16>
    %cst_43 = arith.constant dense<0.000000e+00> : vector<64x128xf32>
    %48 = tpu.matmul %45, %47, %cst_43 {dimension_numbers = #tpu.dot_dimension_numbers<[1], [0], [0], [1], [0, 0, 1, 1], [], []>} : vector<64x384xbf16>, vector<384x128xbf16>, vector<64x128xf32> -> vector<64x128xf32>
    %49 = arith.addf %43, %48 : vector<64x128xf32>
    %c2 = arith.constant 2 : index
    %c0_44 = arith.constant 0 : index
    %c0_45 = arith.constant 0 : index
    %50 = vector.load %arg7[%c2, %c0_44, %c0_45] : memref<10x8x384xbf16, #tpu.memory_space<vmem>>, vector<8x8x384xbf16>
    %51 = vector.shape_cast %50 : vector<8x8x384xbf16> to vector<64x384xbf16>
    %c2_46 = arith.constant 2 : index
    %c0_47 = arith.constant 0 : index
    %c0_48 = arith.constant 0 : index
    %52 = vector.load %arg4[%c2_46, %c0_47, %c0_48] : memref<3x384x128xbf16, #tpu.memory_space<vmem>>, vector<1x384x128xbf16>
    %53 = vector.shape_cast %52 : vector<1x384x128xbf16> to vector<384x128xbf16>
    %cst_49 = arith.constant dense<0.000000e+00> : vector<64x128xf32>
    %54 = tpu.matmul %51, %53, %cst_49 {dimension_numbers = #tpu.dot_dimension_numbers<[1], [0], [0], [1], [0, 0, 1, 1], [], []>} : vector<64x384xbf16>, vector<384x128xbf16>, vector<64x128xf32> -> vector<64x128xf32>
    %55 = arith.addf %49, %54 : vector<64x128xf32>
    %c0_50 = arith.constant 0 : index
    %c0_51 = arith.constant 0 : index
    %56 = vector.load %arg5[%c0_50, %c0_51] : memref<1x128xf32, #tpu.memory_space<vmem>>, vector<1x128xf32>
    %57 = vector.broadcast %56 : vector<1x128xf32> to vector<64x128xf32>
    %58 = arith.addf %55, %57 : vector<64x128xf32>
    %cst_52 = arith.constant 2.000000e+01 : f32
    %59 = vector.broadcast %cst_52 : f32 to vector<64x128xf32>
    %60 = arith.minimumf %58, %59 : vector<64x128xf32>
    %61 = math.exp %60 : vector<64x128xf32>
    %cst_53 = arith.constant 2.000000e+00 : f32
    %62 = vector.broadcast %cst_53 : f32 to vector<64x128xf32>
    %63 = arith.addf %61, %62 : vector<64x128xf32>
    %64 = arith.mulf %61, %63 : vector<64x128xf32>
    %cst_54 = arith.constant 2.000000e+00 : f32
    %65 = vector.broadcast %cst_54 : f32 to vector<64x128xf32>
    %66 = arith.addf %64, %65 : vector<64x128xf32>
    %67 = tpu.reciprocal %66 {approx = true} : vector<64x128xf32> -> vector<64x128xf32>
    %68 = arith.mulf %66, %67 : vector<64x128xf32>
    %cst_55 = arith.constant 2.000000e+00 : f32
    %69 = vector.broadcast %cst_55 : f32 to vector<64x128xf32>
    %70 = arith.subf %69, %68 : vector<64x128xf32>
    %71 = arith.mulf %67, %70 : vector<64x128xf32>
    %cst_56 = arith.constant 2.000000e+01 : f32
    %72 = vector.broadcast %cst_56 : f32 to vector<64x128xf32>
    %73 = arith.cmpf ogt, %58, %72 : vector<64x128xf32>
    %74 = arith.mulf %58, %64 : vector<64x128xf32>
    %75 = arith.mulf %74, %71 : vector<64x128xf32>
    %76 = arith.select %73, %58, %75 : vector<64x128xi1>, vector<64x128xf32>
    %c0_57 = arith.constant 0 : index
    %c0_58 = arith.constant 0 : index
    %c0_59 = arith.constant 0 : index
    %c0_60 = arith.constant 0 : index
    %77 = vector.load %arg1[%c0_57, %c0_58, %c0_59, %c0_60] : memref<1x8x8x128xbf16, #tpu.memory_space<vmem>>, vector<1x8x8x128xbf16>
    %78 = vector.shape_cast %77 : vector<1x8x8x128xbf16> to vector<8x8x128xbf16>
    %79 = arith.extf %78 : vector<8x8x128xbf16> to vector<8x8x128xf32>
    %80 = vector.shape_cast %79 : vector<8x8x128xf32> to vector<64x128xf32>
    %81 = arith.addf %76, %80 : vector<64x128xf32>
    %82 = vector.shape_cast %81 : vector<64x128xf32> to vector<1x8x8x128xf32>
    %83 = arith.truncf %82 : vector<1x8x8x128xf32> to vector<1x8x8x128xbf16>
    %c0_61 = arith.constant 0 : index
    %c0_62 = arith.constant 0 : index
    %c0_63 = arith.constant 0 : index
    %c0_64 = arith.constant 0 : index
    %84 = vector.load %arg6[%c0_61, %c0_62, %c0_63, %c0_64] : memref<1x8x8x128xbf16, #tpu.memory_space<vmem>>, vector<1x8x8x128xbf16>
    tpu.vector_store %arg6[%c0_61, %c0_62, %c0_63, %c0_64], %83 {strides = array<i32>} : memref<1x8x8x128xbf16, #tpu.memory_space<vmem>>, vector<1x8x8x128xbf16>,
    return
  }
  func.func @transform_0(%arg0: i32) -> (i32, i32, i32, i32) {
    %c0_i32 = arith.constant 0 : i32
    %c0_i32_0 = arith.constant 0 : i32
    %c0_i32_1 = arith.constant 0 : i32
    %c0_i32_2 = arith.constant 0 : i32
    return %arg0, %c0_i32, %c0_i32_0, %c0_i32_1 : i32, i32, i32, i32
  }
  func.func @transform_1(%arg0: i32) -> (i32, i32) {
    %c0_i32 = arith.constant 0 : i32
    %c0_i32_0 = arith.constant 0 : i32
    %c0_i32_1 = arith.constant 0 : i32
    return %c0_i32, %c0_i32_0 : i32, i32
  }
  func.func @transform_2(%arg0: i32) -> (i32, i32) {
    %c0_i32 = arith.constant 0 : i32
    %c0_i32_0 = arith.constant 0 : i32
    %c0_i32_1 = arith.constant 0 : i32
    return %c0_i32, %c0_i32_0 : i32, i32
  }
  func.func @transform_3(%arg0: i32) -> (i32, i32, i32) {
    %c0_i32 = arith.constant 0 : i32
    %c0_i32_0 = arith.constant 0 : i32
    %c0_i32_1 = arith.constant 0 : i32
    %c0_i32_2 = arith.constant 0 : i32
    return %c0_i32, %c0_i32_0, %c0_i32_1 : i32, i32, i32
  }
  func.func @transform_4(%arg0: i32) -> (i32, i32) {
    %c0_i32 = arith.constant 0 : i32
    %c0_i32_0 = arith.constant 0 : i32
    %c0_i32_1 = arith.constant 0 : i32
    return %c0_i32, %c0_i32_0 : i32, i32
  }
  func.func @transform_5(%arg0: i32) -> (i32, i32, i32, i32) {
    %c0_i32 = arith.constant 0 : i32
    %c0_i32_0 = arith.constant 0 : i32
    %c0_i32_1 = arith.constant 0 : i32
    %c0_i32_2 = arith.constant 0 : i32
    return %arg0, %c0_i32, %c0_i32_0, %c0_i32_1 : i32, i32, i32, i32
  }
}

module attributes {stable_mosaic.version = 11 : i64} {
  func.func @_conv12_kernel(%arg0: i32, %arg1: memref<1x16x16x8xf32, #tpu.memory_space<vmem>>, %arg2: memref<8x128xbf16, #tpu.memory_space<vmem>>, %arg3: memref<1x128xf32, #tpu.memory_space<vmem>>, %arg4: memref<3x256x128xbf16, #tpu.memory_space<vmem>>, %arg5: memref<3x128x128xbf16, #tpu.memory_space<vmem>>, %arg6: memref<1x128xf32, #tpu.memory_space<vmem>>, %arg7: memref<1x8x8x128xbf16, #tpu.memory_space<vmem>>, %arg8: memref<9x2x9x256xbf16, #tpu.memory_space<vmem>>) attributes {dimension_semantics = [#tpu.dimension_semantics<parallel>], iteration_bounds = array<i64: 2>, scalar_prefetch = 0 : i64, scratch_operands = 1 : i64, tpu.core_type = #tpu.core_type<tc>, window_params = [{transform_indices = @transform_0, window_bounds = array<i64: 1, 16, 16, 8>}, {pipeline_mode = #tpu.pipeline_mode<synchronous>, transform_indices = @transform_1, window_bounds = array<i64: 8, 128>}, {pipeline_mode = #tpu.pipeline_mode<synchronous>, transform_indices = @transform_2, window_bounds = array<i64: 1, 128>}, {pipeline_mode = #tpu.pipeline_mode<synchronous>, transform_indices = @transform_3, window_bounds = array<i64: 3, 256, 128>}, {pipeline_mode = #tpu.pipeline_mode<synchronous>, transform_indices = @transform_4, window_bounds = array<i64: 3, 128, 128>}, {pipeline_mode = #tpu.pipeline_mode<synchronous>, transform_indices = @transform_5, window_bounds = array<i64: 1, 128>}, {transform_indices = @transform_6, window_bounds = array<i64: 1, 8, 8, 128>}]} {
    %c0 = arith.constant 0 : index
    %c0_0 = arith.constant 0 : index
    %c0_1 = arith.constant 0 : index
    %c0_2 = arith.constant 0 : index
    %0 = vector.load %arg1[%c0, %c0_0, %c0_1, %c0_2] : memref<1x16x16x8xf32, #tpu.memory_space<vmem>>, vector<1x16x16x8xf32>
    %1 = vector.shape_cast %0 : vector<1x16x16x8xf32> to vector<16x16x8xf32>
    %2 = arith.truncf %1 : vector<16x16x8xf32> to vector<16x16x8xbf16>
    %3 = vector.shape_cast %2 : vector<16x16x8xbf16> to vector<256x8xbf16>
    %c0_3 = arith.constant 0 : index
    %c0_4 = arith.constant 0 : index
    %4 = vector.load %arg2[%c0_3, %c0_4] : memref<8x128xbf16, #tpu.memory_space<vmem>>, vector<8x128xbf16>
    %cst = arith.constant dense<0.000000e+00> : vector<256x128xf32>
    %5 = tpu.matmul %3, %4, %cst {dimension_numbers = #tpu.dot_dimension_numbers<[1], [0], [0], [1], [0, 0, 1, 1], [], []>} : vector<256x8xbf16>, vector<8x128xbf16>, vector<256x128xf32> -> vector<256x128xf32>
    %c0_5 = arith.constant 0 : index
    %c0_6 = arith.constant 0 : index
    %6 = vector.load %arg3[%c0_5, %c0_6] : memref<1x128xf32, #tpu.memory_space<vmem>>, vector<1x128xf32>
    %7 = vector.broadcast %6 : vector<1x128xf32> to vector<256x128xf32>
    %8 = arith.addf %5, %7 : vector<256x128xf32>
    %cst_7 = arith.constant 2.000000e+01 : f32
    %9 = vector.broadcast %cst_7 : f32 to vector<256x128xf32>
    %10 = arith.minimumf %8, %9 : vector<256x128xf32>
    %11 = math.exp %10 : vector<256x128xf32>
    %cst_8 = arith.constant 2.000000e+00 : f32
    %12 = vector.broadcast %cst_8 : f32 to vector<256x128xf32>
    %13 = arith.addf %11, %12 : vector<256x128xf32>
    %14 = arith.mulf %11, %13 : vector<256x128xf32>
    %cst_9 = arith.constant 2.000000e+00 : f32
    %15 = vector.broadcast %cst_9 : f32 to vector<256x128xf32>
    %16 = arith.addf %14, %15 : vector<256x128xf32>
    %17 = tpu.reciprocal %16 {approx = true} : vector<256x128xf32> -> vector<256x128xf32>
    %18 = arith.mulf %16, %17 : vector<256x128xf32>
    %cst_10 = arith.constant 2.000000e+00 : f32
    %19 = vector.broadcast %cst_10 : f32 to vector<256x128xf32>
    %20 = arith.subf %19, %18 : vector<256x128xf32>
    %21 = arith.mulf %17, %20 : vector<256x128xf32>
    %cst_11 = arith.constant 2.000000e+01 : f32
    %22 = vector.broadcast %cst_11 : f32 to vector<256x128xf32>
    %23 = arith.cmpf ogt, %8, %22 : vector<256x128xf32>
    %24 = arith.mulf %8, %14 : vector<256x128xf32>
    %25 = arith.mulf %24, %21 : vector<256x128xf32>
    %26 = arith.select %23, %8, %25 : vector<256x128xi1>, vector<256x128xf32>
    %27 = vector.shape_cast %26 : vector<256x128xf32> to vector<8x2x8x256xf32>
    %28 = arith.truncf %27 : vector<8x2x8x256xf32> to vector<8x2x8x256xbf16>
    %cst_12 = arith.constant 0.000000e+00 : bf16
    %29 = vector.broadcast %cst_12 : bf16 to vector<1x1x9x256xbf16>
    %c0_13 = arith.constant 0 : index
    %c0_14 = arith.constant 0 : index
    %c0_15 = arith.constant 0 : index
    %c0_16 = arith.constant 0 : index
    %30 = vector.load %arg8[%c0_13, %c0_14, %c0_15, %c0_16] : memref<9x2x9x256xbf16, #tpu.memory_space<vmem>>, vector<1x1x9x256xbf16>
    tpu.vector_store %arg8[%c0_13, %c0_14, %c0_15, %c0_16], %29 {strides = array<i32>} : memref<9x2x9x256xbf16, #tpu.memory_space<vmem>>, vector<1x1x9x256xbf16>,
    %cst_17 = arith.constant 0.000000e+00 : bf16
    %31 = vector.broadcast %cst_17 : bf16 to vector<9x2x1x256xbf16>
    %c0_18 = arith.constant 0 : index
    %c0_19 = arith.constant 0 : index
    %c0_20 = arith.constant 0 : index
    %c0_21 = arith.constant 0 : index
    %32 = vector.load %arg8[%c0_18, %c0_19, %c0_20, %c0_21] : memref<9x2x9x256xbf16, #tpu.memory_space<vmem>>, vector<9x2x1x256xbf16>
    tpu.vector_store %arg8[%c0_18, %c0_19, %c0_20, %c0_21], %31 {strides = array<i32>} : memref<9x2x9x256xbf16, #tpu.memory_space<vmem>>, vector<9x2x1x256xbf16>,
    %33 = vector.extract_strided_slice %28 {offsets = [0, 0, 0, 0], sizes = [8, 1, 8, 256], strides = [1, 1, 1, 1]} : vector<8x2x8x256xbf16> to vector<8x1x8x256xbf16>
    %c0_22 = arith.constant 0 : index
    %c1 = arith.constant 1 : index
    %c1_23 = arith.constant 1 : index
    %c0_24 = arith.constant 0 : index
    %34 = vector.load %arg8[%c0_22, %c1, %c1_23, %c0_24] : memref<9x2x9x256xbf16, #tpu.memory_space<vmem>>, vector<8x1x8x256xbf16>
    tpu.vector_store %arg8[%c0_22, %c1, %c1_23, %c0_24], %33 {strides = array<i32>} : memref<9x2x9x256xbf16, #tpu.memory_space<vmem>>, vector<8x1x8x256xbf16>,
    %35 = vector.extract_strided_slice %28 {offsets = [0, 1, 0, 0], sizes = [8, 1, 8, 256], strides = [1, 1, 1, 1]} : vector<8x2x8x256xbf16> to vector<8x1x8x256xbf16>
    %c1_25 = arith.constant 1 : index
    %c0_26 = arith.constant 0 : index
    %c1_27 = arith.constant 1 : index
    %c0_28 = arith.constant 0 : index
    %36 = vector.load %arg8[%c1_25, %c0_26, %c1_27, %c0_28] : memref<9x2x9x256xbf16, #tpu.memory_space<vmem>>, vector<8x1x8x256xbf16>
    tpu.vector_store %arg8[%c1_25, %c0_26, %c1_27, %c0_28], %35 {strides = array<i32>} : memref<9x2x9x256xbf16, #tpu.memory_space<vmem>>, vector<8x1x8x256xbf16>,
    %c0_29 = arith.constant 0 : index
    %c0_30 = arith.constant 0 : index
    %c1_31 = arith.constant 1 : index
    %c0_32 = arith.constant 0 : index
    %37 = vector.load %arg8[%c0_29, %c0_30, %c1_31, %c0_32] : memref<9x2x9x256xbf16, #tpu.memory_space<vmem>>, vector<8x1x8x256xbf16>
    %38 = vector.shape_cast %37 : vector<8x1x8x256xbf16> to vector<8x8x256xbf16>
    %39 = vector.shape_cast %38 : vector<8x8x256xbf16> to vector<64x256xbf16>
    %c0_33 = arith.constant 0 : index
    %c0_34 = arith.constant 0 : index
    %c0_35 = arith.constant 0 : index
    %c128 = arith.constant 128 : index
    %40 = vector.load %arg8[%c0_33, %c0_34, %c0_35, %c128] : memref<9x2x9x256xbf16, #tpu.memory_space<vmem>>, vector<8x1x8x128xbf16>
    %41 = vector.shape_cast %40 : vector<8x1x8x128xbf16> to vector<8x8x128xbf16>
    %42 = vector.shape_cast %41 : vector<8x8x128xbf16> to vector<64x128xbf16>
    %c0_36 = arith.constant 0 : index
    %c0_37 = arith.constant 0 : index
    %c0_38 = arith.constant 0 : index
    %43 = vector.load %arg4[%c0_36, %c0_37, %c0_38] : memref<3x256x128xbf16, #tpu.memory_space<vmem>>, vector<1x256x128xbf16>
    %44 = vector.shape_cast %43 : vector<1x256x128xbf16> to vector<256x128xbf16>
    %cst_39 = arith.constant dense<0.000000e+00> : vector<64x128xf32>
    %45 = tpu.matmul %39, %44, %cst_39 {dimension_numbers = #tpu.dot_dimension_numbers<[1], [0], [0], [1], [0, 0, 1, 1], [], []>} : vector<64x256xbf16>, vector<256x128xbf16>, vector<64x128xf32> -> vector<64x128xf32>
    %c0_40 = arith.constant 0 : index
    %c0_41 = arith.constant 0 : index
    %c0_42 = arith.constant 0 : index
    %46 = vector.load %arg5[%c0_40, %c0_41, %c0_42] : memref<3x128x128xbf16, #tpu.memory_space<vmem>>, vector<1x128x128xbf16>
    %47 = vector.shape_cast %46 : vector<1x128x128xbf16> to vector<128x128xbf16>
    %cst_43 = arith.constant dense<0.000000e+00> : vector<64x128xf32>
    %48 = tpu.matmul %42, %47, %cst_43 {dimension_numbers = #tpu.dot_dimension_numbers<[1], [0], [0], [1], [0, 0, 1, 1], [], []>} : vector<64x128xbf16>, vector<128x128xbf16>, vector<64x128xf32> -> vector<64x128xf32>
    %49 = arith.addf %45, %48 : vector<64x128xf32>
    %c0_44 = arith.constant 0 : index
    %c1_45 = arith.constant 1 : index
    %c1_46 = arith.constant 1 : index
    %c0_47 = arith.constant 0 : index
    %50 = vector.load %arg8[%c0_44, %c1_45, %c1_46, %c0_47] : memref<9x2x9x256xbf16, #tpu.memory_space<vmem>>, vector<8x1x8x256xbf16>
    %51 = vector.shape_cast %50 : vector<8x1x8x256xbf16> to vector<8x8x256xbf16>
    %52 = vector.shape_cast %51 : vector<8x8x256xbf16> to vector<64x256xbf16>
    %c0_48 = arith.constant 0 : index
    %c1_49 = arith.constant 1 : index
    %c0_50 = arith.constant 0 : index
    %c128_51 = arith.constant 128 : index
    %53 = vector.load %arg8[%c0_48, %c1_49, %c0_50, %c128_51] : memref<9x2x9x256xbf16, #tpu.memory_space<vmem>>, vector<8x1x8x128xbf16>
    %54 = vector.shape_cast %53 : vector<8x1x8x128xbf16> to vector<8x8x128xbf16>
    %55 = vector.shape_cast %54 : vector<8x8x128xbf16> to vector<64x128xbf16>
    %c1_52 = arith.constant 1 : index
    %c0_53 = arith.constant 0 : index
    %c0_54 = arith.constant 0 : index
    %56 = vector.load %arg4[%c1_52, %c0_53, %c0_54] : memref<3x256x128xbf16, #tpu.memory_space<vmem>>, vector<1x256x128xbf16>
    %57 = vector.shape_cast %56 : vector<1x256x128xbf16> to vector<256x128xbf16>
    %cst_55 = arith.constant dense<0.000000e+00> : vector<64x128xf32>
    %58 = tpu.matmul %52, %57, %cst_55 {dimension_numbers = #tpu.dot_dimension_numbers<[1], [0], [0], [1], [0, 0, 1, 1], [], []>} : vector<64x256xbf16>, vector<256x128xbf16>, vector<64x128xf32> -> vector<64x128xf32>
    %c1_56 = arith.constant 1 : index
    %c0_57 = arith.constant 0 : index
    %c0_58 = arith.constant 0 : index
    %59 = vector.load %arg5[%c1_56, %c0_57, %c0_58] : memref<3x128x128xbf16, #tpu.memory_space<vmem>>, vector<1x128x128xbf16>
    %60 = vector.shape_cast %59 : vector<1x128x128xbf16> to vector<128x128xbf16>
    %cst_59 = arith.constant dense<0.000000e+00> : vector<64x128xf32>
    %61 = tpu.matmul %55, %60, %cst_59 {dimension_numbers = #tpu.dot_dimension_numbers<[1], [0], [0], [1], [0, 0, 1, 1], [], []>} : vector<64x128xbf16>, vector<128x128xbf16>, vector<64x128xf32> -> vector<64x128xf32>
    %62 = arith.addf %58, %61 : vector<64x128xf32>
    %63 = arith.addf %49, %62 : vector<64x128xf32>
    %c1_60 = arith.constant 1 : index
    %c0_61 = arith.constant 0 : index
    %c1_62 = arith.constant 1 : index
    %c0_63 = arith.constant 0 : index
    %64 = vector.load %arg8[%c1_60, %c0_61, %c1_62, %c0_63] : memref<9x2x9x256xbf16, #tpu.memory_space<vmem>>, vector<8x1x8x256xbf16>
    %65 = vector.shape_cast %64 : vector<8x1x8x256xbf16> to vector<8x8x256xbf16>
    %66 = vector.shape_cast %65 : vector<8x8x256xbf16> to vector<64x256xbf16>
    %c1_64 = arith.constant 1 : index
    %c0_65 = arith.constant 0 : index
    %c0_66 = arith.constant 0 : index
    %c128_67 = arith.constant 128 : index
    %67 = vector.load %arg8[%c1_64, %c0_65, %c0_66, %c128_67] : memref<9x2x9x256xbf16, #tpu.memory_space<vmem>>, vector<8x1x8x128xbf16>
    %68 = vector.shape_cast %67 : vector<8x1x8x128xbf16> to vector<8x8x128xbf16>
    %69 = vector.shape_cast %68 : vector<8x8x128xbf16> to vector<64x128xbf16>
    %c2 = arith.constant 2 : index
    %c0_68 = arith.constant 0 : index
    %c0_69 = arith.constant 0 : index
    %70 = vector.load %arg4[%c2, %c0_68, %c0_69] : memref<3x256x128xbf16, #tpu.memory_space<vmem>>, vector<1x256x128xbf16>
    %71 = vector.shape_cast %70 : vector<1x256x128xbf16> to vector<256x128xbf16>
    %cst_70 = arith.constant dense<0.000000e+00> : vector<64x128xf32>
    %72 = tpu.matmul %66, %71, %cst_70 {dimension_numbers = #tpu.dot_dimension_numbers<[1], [0], [0], [1], [0, 0, 1, 1], [], []>} : vector<64x256xbf16>, vector<256x128xbf16>, vector<64x128xf32> -> vector<64x128xf32>
    %c2_71 = arith.constant 2 : index
    %c0_72 = arith.constant 0 : index
    %c0_73 = arith.constant 0 : index
    %73 = vector.load %arg5[%c2_71, %c0_72, %c0_73] : memref<3x128x128xbf16, #tpu.memory_space<vmem>>, vector<1x128x128xbf16>
    %74 = vector.shape_cast %73 : vector<1x128x128xbf16> to vector<128x128xbf16>
    %cst_74 = arith.constant dense<0.000000e+00> : vector<64x128xf32>
    %75 = tpu.matmul %69, %74, %cst_74 {dimension_numbers = #tpu.dot_dimension_numbers<[1], [0], [0], [1], [0, 0, 1, 1], [], []>} : vector<64x128xbf16>, vector<128x128xbf16>, vector<64x128xf32> -> vector<64x128xf32>
    %76 = arith.addf %72, %75 : vector<64x128xf32>
    %77 = arith.addf %63, %76 : vector<64x128xf32>
    %c0_75 = arith.constant 0 : index
    %c0_76 = arith.constant 0 : index
    %78 = vector.load %arg6[%c0_75, %c0_76] : memref<1x128xf32, #tpu.memory_space<vmem>>, vector<1x128xf32>
    %79 = vector.broadcast %78 : vector<1x128xf32> to vector<64x128xf32>
    %80 = arith.addf %77, %79 : vector<64x128xf32>
    %cst_77 = arith.constant 2.000000e+01 : f32
    %81 = vector.broadcast %cst_77 : f32 to vector<64x128xf32>
    %82 = arith.minimumf %80, %81 : vector<64x128xf32>
    %83 = math.exp %82 : vector<64x128xf32>
    %cst_78 = arith.constant 2.000000e+00 : f32
    %84 = vector.broadcast %cst_78 : f32 to vector<64x128xf32>
    %85 = arith.addf %83, %84 : vector<64x128xf32>
    %86 = arith.mulf %83, %85 : vector<64x128xf32>
    %cst_79 = arith.constant 2.000000e+00 : f32
    %87 = vector.broadcast %cst_79 : f32 to vector<64x128xf32>
    %88 = arith.addf %86, %87 : vector<64x128xf32>
    %89 = tpu.reciprocal %88 {approx = true} : vector<64x128xf32> -> vector<64x128xf32>
    %90 = arith.mulf %88, %89 : vector<64x128xf32>
    %cst_80 = arith.constant 2.000000e+00 : f32
    %91 = vector.broadcast %cst_80 : f32 to vector<64x128xf32>
    %92 = arith.subf %91, %90 : vector<64x128xf32>
    %93 = arith.mulf %89, %92 : vector<64x128xf32>
    %cst_81 = arith.constant 2.000000e+01 : f32
    %94 = vector.broadcast %cst_81 : f32 to vector<64x128xf32>
    %95 = arith.cmpf ogt, %80, %94 : vector<64x128xf32>
    %96 = arith.mulf %80, %86 : vector<64x128xf32>
    %97 = arith.mulf %96, %93 : vector<64x128xf32>
    %98 = arith.select %95, %80, %97 : vector<64x128xi1>, vector<64x128xf32>
    %99 = vector.shape_cast %98 : vector<64x128xf32> to vector<1x8x8x128xf32>
    %100 = arith.truncf %99 : vector<1x8x8x128xf32> to vector<1x8x8x128xbf16>
    %c0_82 = arith.constant 0 : index
    %c0_83 = arith.constant 0 : index
    %c0_84 = arith.constant 0 : index
    %c0_85 = arith.constant 0 : index
    %101 = vector.load %arg7[%c0_82, %c0_83, %c0_84, %c0_85] : memref<1x8x8x128xbf16, #tpu.memory_space<vmem>>, vector<1x8x8x128xbf16>
    tpu.vector_store %arg7[%c0_82, %c0_83, %c0_84, %c0_85], %100 {strides = array<i32>} : memref<1x8x8x128xbf16, #tpu.memory_space<vmem>>, vector<1x8x8x128xbf16>,
    return
  }
  func.func @transform_0(%arg0: i32) -> (i32, i32, i32, i32) {
    %c0_i32 = arith.constant 0 : i32
    %c0_i32_0 = arith.constant 0 : i32
    %c0_i32_1 = arith.constant 0 : i32
    %c0_i32_2 = arith.constant 0 : i32
    return %arg0, %c0_i32, %c0_i32_0, %c0_i32_1 : i32, i32, i32, i32
  }
  func.func @transform_1(%arg0: i32) -> (i32, i32) {
    %c0_i32 = arith.constant 0 : i32
    %c0_i32_0 = arith.constant 0 : i32
    %c0_i32_1 = arith.constant 0 : i32
    return %c0_i32, %c0_i32_0 : i32, i32
  }
  func.func @transform_2(%arg0: i32) -> (i32, i32) {
    %c0_i32 = arith.constant 0 : i32
    %c0_i32_0 = arith.constant 0 : i32
    %c0_i32_1 = arith.constant 0 : i32
    return %c0_i32, %c0_i32_0 : i32, i32
  }
  func.func @transform_3(%arg0: i32) -> (i32, i32, i32) {
    %c0_i32 = arith.constant 0 : i32
    %c0_i32_0 = arith.constant 0 : i32
    %c0_i32_1 = arith.constant 0 : i32
    %c0_i32_2 = arith.constant 0 : i32
    return %c0_i32, %c0_i32_0, %c0_i32_1 : i32, i32, i32
  }
  func.func @transform_4(%arg0: i32) -> (i32, i32, i32) {
    %c0_i32 = arith.constant 0 : i32
    %c0_i32_0 = arith.constant 0 : i32
    %c0_i32_1 = arith.constant 0 : i32
    %c0_i32_2 = arith.constant 0 : i32
    return %c0_i32, %c0_i32_0, %c0_i32_1 : i32, i32, i32
  }
  func.func @transform_5(%arg0: i32) -> (i32, i32) {
    %c0_i32 = arith.constant 0 : i32
    %c0_i32_0 = arith.constant 0 : i32
    %c0_i32_1 = arith.constant 0 : i32
    return %c0_i32, %c0_i32_0 : i32, i32
  }
  func.func @transform_6(%arg0: i32) -> (i32, i32, i32, i32) {
    %c0_i32 = arith.constant 0 : i32
    %c0_i32_0 = arith.constant 0 : i32
    %c0_i32_1 = arith.constant 0 : i32
    %c0_i32_2 = arith.constant 0 : i32
    return %arg0, %c0_i32, %c0_i32_0, %c0_i32_1 : i32, i32, i32, i32
  }
}

module attributes {stable_mosaic.version = 11 : i64} {
  func.func @_mm_mish_split2_kernel(%arg0: i32, %arg1: memref<128x128xbf16, #tpu.memory_space<vmem>>, %arg2: memref<128x256xbf16, #tpu.memory_space<vmem>>, %arg3: memref<1x256xf32, #tpu.memory_space<vmem>>, %arg4: memref<128x128xbf16, #tpu.memory_space<vmem>>, %arg5: memref<128x128xbf16, #tpu.memory_space<vmem>>) attributes {dimension_semantics = [#tpu.dimension_semantics<parallel>], iteration_bounds = array<i64: 1>, scalar_prefetch = 0 : i64, scratch_operands = 0 : i64, tpu.core_type = #tpu.core_type<tc>, window_params = [{transform_indices = @transform_0, window_bounds = array<i64: 128, 128>}, {pipeline_mode = #tpu.pipeline_mode<synchronous>, transform_indices = @transform_1, window_bounds = array<i64: 128, 256>}, {pipeline_mode = #tpu.pipeline_mode<synchronous>, transform_indices = @transform_2, window_bounds = array<i64: 1, 256>}, {transform_indices = @transform_3, window_bounds = array<i64: 128, 128>}, {transform_indices = @transform_4, window_bounds = array<i64: 128, 128>}]} {
    %c0 = arith.constant 0 : index
    %c0_0 = arith.constant 0 : index
    %0 = vector.load %arg1[%c0, %c0_0] : memref<128x128xbf16, #tpu.memory_space<vmem>>, vector<128x128xbf16>
    %c0_1 = arith.constant 0 : index
    %c0_2 = arith.constant 0 : index
    %1 = vector.load %arg2[%c0_1, %c0_2] : memref<128x256xbf16, #tpu.memory_space<vmem>>, vector<128x256xbf16>
    %cst = arith.constant dense<0.000000e+00> : vector<128x256xf32>
    %2 = tpu.matmul %0, %1, %cst {dimension_numbers = #tpu.dot_dimension_numbers<[1], [0], [0], [1], [0, 0, 1, 1], [], []>} : vector<128x128xbf16>, vector<128x256xbf16>, vector<128x256xf32> -> vector<128x256xf32>
    %c0_3 = arith.constant 0 : index
    %c0_4 = arith.constant 0 : index
    %3 = vector.load %arg3[%c0_3, %c0_4] : memref<1x256xf32, #tpu.memory_space<vmem>>, vector<1x256xf32>
    %4 = vector.broadcast %3 : vector<1x256xf32> to vector<128x256xf32>
    %5 = arith.addf %2, %4 : vector<128x256xf32>
    %cst_5 = arith.constant 2.000000e+01 : f32
    %6 = vector.broadcast %cst_5 : f32 to vector<128x256xf32>
    %7 = arith.minimumf %5, %6 : vector<128x256xf32>
    %8 = math.exp %7 : vector<128x256xf32>
    %cst_6 = arith.constant 2.000000e+00 : f32
    %9 = vector.broadcast %cst_6 : f32 to vector<128x256xf32>
    %10 = arith.addf %8, %9 : vector<128x256xf32>
    %11 = arith.mulf %8, %10 : vector<128x256xf32>
    %cst_7 = arith.constant 2.000000e+00 : f32
    %12 = vector.broadcast %cst_7 : f32 to vector<128x256xf32>
    %13 = arith.addf %11, %12 : vector<128x256xf32>
    %14 = tpu.reciprocal %13 {approx = true} : vector<128x256xf32> -> vector<128x256xf32>
    %15 = arith.mulf %13, %14 : vector<128x256xf32>
    %cst_8 = arith.constant 2.000000e+00 : f32
    %16 = vector.broadcast %cst_8 : f32 to vector<128x256xf32>
    %17 = arith.subf %16, %15 : vector<128x256xf32>
    %18 = arith.mulf %14, %17 : vector<128x256xf32>
    %cst_9 = arith.constant 2.000000e+01 : f32
    %19 = vector.broadcast %cst_9 : f32 to vector<128x256xf32>
    %20 = arith.cmpf ogt, %5, %19 : vector<128x256xf32>
    %21 = arith.mulf %5, %11 : vector<128x256xf32>
    %22 = arith.mulf %21, %18 : vector<128x256xf32>
    %23 = arith.select %20, %5, %22 : vector<128x256xi1>, vector<128x256xf32>
    %24 = vector.extract_strided_slice %23 {offsets = [0, 0], sizes = [128, 128], strides = [1, 1]} : vector<128x256xf32> to vector<128x128xf32>
    %25 = arith.truncf %24 : vector<128x128xf32> to vector<128x128xbf16>
    %c0_10 = arith.constant 0 : index
    %c0_11 = arith.constant 0 : index
    %26 = vector.load %arg4[%c0_10, %c0_11] : memref<128x128xbf16, #tpu.memory_space<vmem>>, vector<128x128xbf16>
    tpu.vector_store %arg4[%c0_10, %c0_11], %25 {strides = array<i32>} : memref<128x128xbf16, #tpu.memory_space<vmem>>, vector<128x128xbf16>,
    %27 = vector.extract_strided_slice %23 {offsets = [0, 128], sizes = [128, 128], strides = [1, 1]} : vector<128x256xf32> to vector<128x128xf32>
    %28 = arith.truncf %27 : vector<128x128xf32> to vector<128x128xbf16>
    %c0_12 = arith.constant 0 : index
    %c0_13 = arith.constant 0 : index
    %29 = vector.load %arg5[%c0_12, %c0_13] : memref<128x128xbf16, #tpu.memory_space<vmem>>, vector<128x128xbf16>
    tpu.vector_store %arg5[%c0_12, %c0_13], %28 {strides = array<i32>} : memref<128x128xbf16, #tpu.memory_space<vmem>>, vector<128x128xbf16>,
    return
  }
  func.func @transform_0(%arg0: i32) -> (i32, i32) {
    %c0_i32 = arith.constant 0 : i32
    %c0_i32_0 = arith.constant 0 : i32
    return %arg0, %c0_i32 : i32, i32
  }
  func.func @transform_1(%arg0: i32) -> (i32, i32) {
    %c0_i32 = arith.constant 0 : i32
    %c0_i32_0 = arith.constant 0 : i32
    %c0_i32_1 = arith.constant 0 : i32
    return %c0_i32, %c0_i32_0 : i32, i32
  }
  func.func @transform_2(%arg0: i32) -> (i32, i32) {
    %c0_i32 = arith.constant 0 : i32
    %c0_i32_0 = arith.constant 0 : i32
    %c0_i32_1 = arith.constant 0 : i32
    return %c0_i32, %c0_i32_0 : i32, i32
  }
  func.func @transform_3(%arg0: i32) -> (i32, i32) {
    %c0_i32 = arith.constant 0 : i32
    %c0_i32_0 = arith.constant 0 : i32
    return %arg0, %c0_i32 : i32, i32
  }
  func.func @transform_4(%arg0: i32) -> (i32, i32) {
    %c0_i32 = arith.constant 0 : i32
    %c0_i32_0 = arith.constant 0 : i32
    return %arg0, %c0_i32 : i32, i32
  }
}

module attributes {stable_mosaic.version = 11 : i64} {
  func.func @_mm_mish_concat_kernel(%arg0: i32, %arg1: memref<128x128xbf16, #tpu.memory_space<vmem>>, %arg2: memref<128x128xbf16, #tpu.memory_space<vmem>>, %arg3: memref<1x128xf32, #tpu.memory_space<vmem>>, %arg4: memref<128x128xbf16, #tpu.memory_space<vmem>>, %arg5: memref<128x8xf32, #tpu.memory_space<vmem>>) attributes {dimension_semantics = [#tpu.dimension_semantics<parallel>], iteration_bounds = array<i64: 1>, scalar_prefetch = 0 : i64, scratch_operands = 0 : i64, tpu.core_type = #tpu.core_type<tc>, window_params = [{transform_indices = @transform_0, window_bounds = array<i64: 128, 128>}, {pipeline_mode = #tpu.pipeline_mode<synchronous>, transform_indices = @transform_1, window_bounds = array<i64: 128, 128>}, {pipeline_mode = #tpu.pipeline_mode<synchronous>, transform_indices = @transform_2, window_bounds = array<i64: 1, 128>}, {transform_indices = @transform_3, window_bounds = array<i64: 128, 128>}, {transform_indices = @transform_4, window_bounds = array<i64: 128, 8>}]} {
    %c0 = arith.constant 0 : index
    %c0_0 = arith.constant 0 : index
    %0 = vector.load %arg1[%c0, %c0_0] : memref<128x128xbf16, #tpu.memory_space<vmem>>, vector<128x128xbf16>
    %c0_1 = arith.constant 0 : index
    %c0_2 = arith.constant 0 : index
    %1 = vector.load %arg2[%c0_1, %c0_2] : memref<128x128xbf16, #tpu.memory_space<vmem>>, vector<128x128xbf16>
    %cst = arith.constant dense<0.000000e+00> : vector<128x128xf32>
    %2 = tpu.matmul %0, %1, %cst {dimension_numbers = #tpu.dot_dimension_numbers<[1], [0], [0], [1], [0, 0, 1, 1], [], []>} : vector<128x128xbf16>, vector<128x128xbf16>, vector<128x128xf32> -> vector<128x128xf32>
    %c0_3 = arith.constant 0 : index
    %c0_4 = arith.constant 0 : index
    %3 = vector.load %arg3[%c0_3, %c0_4] : memref<1x128xf32, #tpu.memory_space<vmem>>, vector<1x128xf32>
    %4 = vector.broadcast %3 : vector<1x128xf32> to vector<128x128xf32>
    %5 = arith.addf %2, %4 : vector<128x128xf32>
    %cst_5 = arith.constant 2.000000e+01 : f32
    %6 = vector.broadcast %cst_5 : f32 to vector<128x128xf32>
    %7 = arith.minimumf %5, %6 : vector<128x128xf32>
    %8 = math.exp %7 : vector<128x128xf32>
    %cst_6 = arith.constant 2.000000e+00 : f32
    %9 = vector.broadcast %cst_6 : f32 to vector<128x128xf32>
    %10 = arith.addf %8, %9 : vector<128x128xf32>
    %11 = arith.mulf %8, %10 : vector<128x128xf32>
    %cst_7 = arith.constant 2.000000e+00 : f32
    %12 = vector.broadcast %cst_7 : f32 to vector<128x128xf32>
    %13 = arith.addf %11, %12 : vector<128x128xf32>
    %14 = tpu.reciprocal %13 {approx = true} : vector<128x128xf32> -> vector<128x128xf32>
    %15 = arith.mulf %13, %14 : vector<128x128xf32>
    %cst_8 = arith.constant 2.000000e+00 : f32
    %16 = vector.broadcast %cst_8 : f32 to vector<128x128xf32>
    %17 = arith.subf %16, %15 : vector<128x128xf32>
    %18 = arith.mulf %14, %17 : vector<128x128xf32>
    %cst_9 = arith.constant 2.000000e+01 : f32
    %19 = vector.broadcast %cst_9 : f32 to vector<128x128xf32>
    %20 = arith.cmpf ogt, %5, %19 : vector<128x128xf32>
    %21 = arith.mulf %5, %11 : vector<128x128xf32>
    %22 = arith.mulf %21, %18 : vector<128x128xf32>
    %23 = arith.select %20, %5, %22 : vector<128x128xi1>, vector<128x128xf32>
    %c0_10 = arith.constant 0 : index
    %c0_11 = arith.constant 0 : index
    %24 = vector.load %arg4[%c0_10, %c0_11] : memref<128x128xbf16, #tpu.memory_space<vmem>>, vector<128x128xbf16>
    %25 = vector.extract_strided_slice %24 {offsets = [0, 0], sizes = [128, 4], strides = [1, 1]} : vector<128x128xbf16> to vector<128x4xbf16>
    %26 = arith.extf %25 : vector<128x4xbf16> to vector<128x4xf32>
    %27 = vector.extract_strided_slice %23 {offsets = [0, 0], sizes = [128, 4], strides = [1, 1]} : vector<128x128xf32> to vector<128x4xf32>
    %28 = tpu.concatenate %26, %27 in 1 : vector<128x4xf32>, vector<128x4xf32> -> vector<128x8xf32>
    %c0_12 = arith.constant 0 : index
    %c0_13 = arith.constant 0 : index
    %29 = vector.load %arg5[%c0_12, %c0_13] : memref<128x8xf32, #tpu.memory_space<vmem>>, vector<128x8xf32>
    tpu.vector_store %arg5[%c0_12, %c0_13], %28 {strides = array<i32>} : memref<128x8xf32, #tpu.memory_space<vmem>>, vector<128x8xf32>,
    return
  }
  func.func @transform_0(%arg0: i32) -> (i32, i32) {
    %c0_i32 = arith.constant 0 : i32
    %c0_i32_0 = arith.constant 0 : i32
    return %arg0, %c0_i32 : i32, i32
  }
  func.func @transform_1(%arg0: i32) -> (i32, i32) {
    %c0_i32 = arith.constant 0 : i32
    %c0_i32_0 = arith.constant 0 : i32
    %c0_i32_1 = arith.constant 0 : i32
    return %c0_i32, %c0_i32_0 : i32, i32
  }
  func.func @transform_2(%arg0: i32) -> (i32, i32) {
    %c0_i32 = arith.constant 0 : i32
    %c0_i32_0 = arith.constant 0 : i32
    %c0_i32_1 = arith.constant 0 : i32
    return %c0_i32, %c0_i32_0 : i32, i32
  }
  func.func @transform_3(%arg0: i32) -> (i32, i32) {
    %c0_i32 = arith.constant 0 : i32
    %c0_i32_0 = arith.constant 0 : i32
    return %arg0, %c0_i32 : i32, i32
  }
  func.func @transform_4(%arg0: i32) -> (i32, i32) {
    %c0_i32 = arith.constant 0 : i32
    %c0_i32_0 = arith.constant 0 : i32
    return %arg0, %c0_i32 : i32, i32
  }
}

</mosaic_0001>

<llo_original>
// kernel: stage3_forward.6
$region0: #{stage3_forward.6}
  #allocation0 [shape = 'u32[]', space=smem, size = 0x4, offset = 0x4, fixed_abs, tag = 'smem constant byte address 0x4 - core index']
  #allocation1 [shape = 'u32[72,128]{1,0:T(1,128)}', space=vmem, size = 0x9000, scoped, tag = 'internal scratch']
  %s0 = inlined_call_operand.vmem [shape: bf16[128,128], index: 0, kind: input, shape index: {}]
  %s1 = inlined_call_operand.vmem [shape: bf16[128,256], index: 1, kind: input, shape index: {}]
  %s2 = inlined_call_operand.vmem [shape: f32[1,256], index: 2, kind: input, shape index: {}]
  %s3 = inlined_call_operand.vmem [shape: bf16[128,128], index: 3, kind: output, shape index: {0}]
  %s4 = inlined_call_operand.vmem [shape: bf16[128,128], index: 4, kind: output, shape index: {1}]
  %5 = xla_tuple %s3, %s4
  %s6 = sld [smem:[#allocation0]]
  $region30: #{stage3_forward.6} parent=0
    _
  %s8 = ssub.s32 1, %s6
  %s9 = scalar_select 0, %s8, %s6
  // Predicated region
  $region2: #{stage3_forward.6} parent=0 // pred_check
    _
  $region3: #{stage3_forward.6} parent=0 // pred_check_branch
    %11 = sbr.rel (0) target = $region5
  $region4: #{stage3_forward.6} parent=0 // pred_region
    _
  $region5: #{stage3_forward.6} parent=0 // pred_fallthru
    _
  // Predicated region
  $region6: #{stage3_forward.6} parent=0 // pred_check
    _
  $region7: #{stage3_forward.6} parent=0 // pred_check_branch
    %13 = sbr.rel (0) target = $region9
  $region8: #{stage3_forward.6} parent=0 // pred_region
    _
  $region9: #{stage3_forward.6} parent=0 // pred_fallthru
    _
  // Predicated region
  $region10: #{stage3_forward.6} parent=0 // pred_check
    _
  $region11: #{stage3_forward.6} parent=0 // pred_check_branch
    %15 = sbr.rel (0) target = $region13
  $region12: #{stage3_forward.6} parent=0 // pred_region
    _
  $region13: #{stage3_forward.6} parent=0 // pred_fallthru
    _
  %v16 = vld [vmem:[%s0] sm:$0xf]
  %v17 = vld [vmem:[%s0 + $0x4] sm:$0xf]
  %v18 = vld [vmem:[%s0 + $0x8] sm:$0xf]
  %v19 = vld [vmem:[%s0 + $0xc] sm:$0xf]
  %v20 = vld [vmem:[%s0 + $0x10] sm:$0xf]
  %v21 = vld [vmem:[%s0 + $0x14] sm:$0xf]
  %v22 = vld [vmem:[%s0 + $0x18] sm:$0xf]
  %v23 = vld [vmem:[%s0 + $0x1c] sm:$0xf]
  %v24 = vld [vmem:[%s0 + $0x20] sm:$0xf]
  %v25 = vld [vmem:[%s0 + $0x24] sm:$0xf]
  %v26 = vld [vmem:[%s0 + $0x28] sm:$0xf]
  %v27 = vld [vmem:[%s0 + $0x2c] sm:$0xf]
  %v28 = vld [vmem:[%s0 + $0x30] sm:$0xf]
  %v29 = vld [vmem:[%s0 + $0x34] sm:$0xf]
  %v30 = vld [vmem:[%s0 + $0x38] sm:$0xf]
  %v31 = vld [vmem:[%s0 + $0x3c] sm:$0xf]
  %v32 = vld [vmem:[%s1] sm:$0xff]
  %v33 = vld [vmem:[%s1 + $0x8] sm:$0xff]
  %v34 = vld [vmem:[%s1 + $0x10] sm:$0xff]
  %v35 = vld [vmem:[%s1 + $0x18] sm:$0xff]
  %v36 = vld [vmem:[%s1 + $0x20] sm:$0xff]
  %v37 = vld [vmem:[%s1 + $0x28] sm:$0xff]
  %v38 = vld [vmem:[%s1 + $0x30] sm:$0xff]
  %v39 = vld [vmem:[%s1 + $0x38] sm:$0xff]
  %v40 = vld [vmem:[%s1 + $0x40] sm:$0xff]
  %v41 = vld [vmem:[%s1 + $0x48] sm:$0xff]
  %v42 = vld [vmem:[%s1 + $0x50] sm:$0xff]
  %v43 = vld [vmem:[%s1 + $0x58] sm:$0xff]
  %v44 = vld [vmem:[%s1 + $0x60] sm:$0xff]
  %v45 = vld [vmem:[%s1 + $0x68] sm:$0xff]
  %v46 = vld [vmem:[%s1 + $0x70] sm:$0xff]
  %v47 = vld [vmem:[%s1 + $0x78] sm:$0xff]
  %v48 = vld [vmem:[%s2] sm:$0x3]
  %v50 = vperm.slane %v48, 0
  %v51 = vperm.slane %v48, 1
  %v70 = vunpack.c.l.b16 %v16
  %v71 = vunpack.c.l.b16 %v17
  %v72 = vunpack.c.l.b16 %v18
  %v73 = vunpack.c.l.b16 %v19
  %v74 = vunpack.c.l.b16 %v20
  %v75 = vunpack.c.l.b16 %v21
  %v76 = vunpack.c.l.b16 %v22
  %v77 = vunpack.c.l.b16 %v23
  %v78 = vunpack.c.l.b16 %v24
  %v79 = vunpack.c.l.b16 %v25
  %v80 = vunpack.c.l.b16 %v26
  %v81 = vunpack.c.l.b16 %v27
  %v82 = vunpack.c.l.b16 %v28
  %v83 = vunpack.c.l.b16 %v29
  %v84 = vunpack.c.l.b16 %v30
  %v85 = vunpack.c.l.b16 %v31
  %v86 = vpack.c.b16 %v71, %v70
  %v87 = vpack.c.b16 %v73, %v72
  %v88 = vpack.c.b16 %v75, %v74
  %v89 = vpack.c.b16 %v77, %v76
  %v90 = vpack.c.b16 %v79, %v78
  %v91 = vpack.c.b16 %v81, %v80
  %v92 = vpack.c.b16 %v83, %v82
  %v93 = vpack.c.b16 %v85, %v84
  %v118 = vunpack.c.l.b16 %v32
  %v119 = vunpack.c.h.b16 %v32
  %v120 = vunpack.c.l.b16 %v33
  %v121 = vunpack.c.h.b16 %v33
  %v122 = vunpack.c.l.b16 %v34
  %v123 = vunpack.c.h.b16 %v34
  %v124 = vunpack.c.l.b16 %v35
  %v125 = vunpack.c.h.b16 %v35
  %v126 = vunpack.c.l.b16 %v36
  %v127 = vunpack.c.h.b16 %v36
  %v128 = vunpack.c.l.b16 %v37
  %v129 = vunpack.c.h.b16 %v37
  %v130 = vunpack.c.l.b16 %v38
  %v131 = vunpack.c.h.b16 %v38
  %v132 = vunpack.c.l.b16 %v39
  %v133 = vunpack.c.h.b16 %v39
  %v134 = vunpack.c.l.b16 %v40
  %v135 = vunpack.c.h.b16 %v40
  %v136 = vunpack.c.l.b16 %v41
  %v137 = vunpack.c.h.b16 %v41
  %v138 = vunpack.c.l.b16 %v42
  %v139 = vunpack.c.h.b16 %v42
  %v140 = vunpack.c.l.b16 %v43
  %v141 = vunpack.c.h.b16 %v43
  %v142 = vunpack.c.l.b16 %v44
  %v143 = vunpack.c.h.b16 %v44
  %v144 = vunpack.c.l.b16 %v45
  %v145 = vunpack.c.h.b16 %v45
  %v146 = vunpack.c.l.b16 %v46
  %v147 = vunpack.c.h.b16 %v46
  %v148 = vunpack.c.l.b16 %v47
  %v149 = vunpack.c.h.b16 %v47
  %v150 = vpack.c.b16 %v120, %v118
  %v151 = vpack.c.b16 %v121, %v119
  %v152 = vpack.c.b16 %v124, %v122
  %v153 = vpack.c.b16 %v125, %v123
  %v154 = vpack.c.b16 %v128, %v126
  %v155 = vpack.c.b16 %v129, %v127
  %v156 = vpack.c.b16 %v132, %v130
  %v157 = vpack.c.b16 %v133, %v131
  %v158 = vpack.c.b16 %v136, %v134
  %v159 = vpack.c.b16 %v137, %v135
  %v160 = vpack.c.b16 %v140, %v138
  %v161 = vpack.c.b16 %v141, %v139
  %v162 = vpack.c.b16 %v144, %v142
  %v163 = vpack.c.b16 %v145, %v143
  %v164 = vpack.c.b16 %v148, %v146
  %v165 = vpack.c.b16 %v149, %v147
  %182 = vmatpush.bf16.msra.mxu0 %v164
  %183 = vmatpush.bf16.msra.mxu0 %v162
  %184 = vmatpush.bf16.msra.mxu0 %v160
  %185 = vmatpush.bf16.msra.mxu0 %v158
  %186 = vmatpush.bf16.msra.mxu0 %v156
  %187 = vmatpush.bf16.msra.mxu0 %v154
  %188 = vmatpush.bf16.msra.mxu0 %v152
  %189 = vmatpush.bf16.msra.mxu0 %v150
  %190 = vmatmul.bf16.gmra.mxu0 %v86
  %v191 = vpop.f32.mrf.mxu0
  %v192 = vadd.f32 %v50, %v191
  %v193 = vpop.f32.mrf.mxu0
  %v194 = vadd.f32 %v50, %v193
  %195 = vmatmul.bf16.gmra.mxu0 %v87
  %v196 = vpop.f32.mrf.mxu0
  %v197 = vadd.f32 %v50, %v196
  %v198 = vpop.f32.mrf.mxu0
  %v199 = vadd.f32 %v50, %v198
  %200 = vmatmul.bf16.gmra.mxu0 %v88
  %v201 = vpop.f32.mrf.mxu0
  %v202 = vadd.f32 %v50, %v201
  %v203 = vpop.f32.mrf.mxu0
  %v204 = vadd.f32 %v50, %v203
  %205 = vmatmul.bf16.gmra.mxu0 %v89
  %v206 = vpop.f32.mrf.mxu0
  %v207 = vadd.f32 %v50, %v206
  %v208 = vpop.f32.mrf.mxu0
  %v209 = vadd.f32 %v50, %v208
  %210 = vmatmul.bf16.gmra.mxu0 %v90
  %v211 = vpop.f32.mrf.mxu0
  %v212 = vadd.f32 %v50, %v211
  %v213 = vpop.f32.mrf.mxu0
  %v214 = vadd.f32 %v50, %v213
  %215 = vmatmul.bf16.gmra.mxu0 %v91
  %v216 = vpop.f32.mrf.mxu0
  %v217 = vadd.f32 %v50, %v216
  %v218 = vpop.f32.mrf.mxu0
  %v219 = vadd.f32 %v50, %v218
  %220 = vmatmul.bf16.gmra.mxu0 %v92
  %v221 = vpop.f32.mrf.mxu0
  %v222 = vadd.f32 %v50, %v221
  %v223 = vpop.f32.mrf.mxu0
  %v224 = vadd.f32 %v50, %v223
  %225 = vmatmul.bf16.gmra.mxu0 %v93
  %v226 = vpop.f32.mrf.mxu0
  %v227 = vadd.f32 %v50, %v226
  %v228 = vpop.f32.mrf.mxu0
  %v229 = vadd.f32 %v50, %v228
  %230 = vdwg.mxu0
  %231 = vmatpush.bf16.msra.mxu0 %v165
  %232 = vmatpush.bf16.msra.mxu0 %v163
  %233 = vmatpush.bf16.msra.mxu0 %v161
  %234 = vmatpush.bf16.msra.mxu0 %v159
  %235 = vmatpush.bf16.msra.mxu0 %v157
  %236 = vmatpush.bf16.msra.mxu0 %v155
  %237 = vmatpush.bf16.msra.mxu0 %v153
  %238 = vmatpush.bf16.msra.mxu0 %v151
  %239 = vmatmul.bf16.gmra.mxu0 %v86
  %v240 = vpop.f32.mrf.mxu0
  %v241 = vadd.f32 %v51, %v240
  %v242 = vpop.f32.mrf.mxu0
  %v243 = vadd.f32 %v51, %v242
  %244 = vmatmul.bf16.gmra.mxu0 %v87
  %v245 = vpop.f32.mrf.mxu0
  %v246 = vadd.f32 %v51, %v245
  %v247 = vpop.f32.mrf.mxu0
  %v248 = vadd.f32 %v51, %v247
  %249 = vmatmul.bf16.gmra.mxu0 %v88
  %v250 = vpop.f32.mrf.mxu0
  %v251 = vadd.f32 %v51, %v250
  %v252 = vpop.f32.mrf.mxu0
  %v253 = vadd.f32 %v51, %v252
  %254 = vmatmul.bf16.gmra.mxu0 %v89
  %v255 = vpop.f32.mrf.mxu0
  %v256 = vadd.f32 %v51, %v255
  %v257 = vpop.f32.mrf.mxu0
  %v258 = vadd.f32 %v51, %v257
  %259 = vmatmul.bf16.gmra.mxu0 %v90
  %v260 = vpop.f32.mrf.mxu0
  %v261 = vadd.f32 %v51, %v260
  %v262 = vpop.f32.mrf.mxu0
  %v263 = vadd.f32 %v51, %v262
  %264 = vmatmul.bf16.gmra.mxu0 %v91
  %v265 = vpop.f32.mrf.mxu0
  %v266 = vadd.f32 %v51, %v265
  %v267 = vpop.f32.mrf.mxu0
  %v268 = vadd.f32 %v51, %v267
  %269 = vmatmul.bf16.gmra.mxu0 %v92
  %v270 = vpop.f32.mrf.mxu0
  %v271 = vadd.f32 %v51, %v270
  %v272 = vpop.f32.mrf.mxu0
  %v273 = vadd.f32 %v51, %v272
  %274 = vmatmul.bf16.gmra.mxu0 %v93
  %v275 = vpop.f32.mrf.mxu0
  %v276 = vadd.f32 %v51, %v275
  %v277 = vpop.f32.mrf.mxu0
  %v278 = vadd.f32 %v51, %v277
  %279 = vdwg.mxu0
  %v280 = vmin.f32 %v192, 20.0
  %v281 = vmin.f32 %v241, 20.0
  %v282 = vmin.f32 %v194, 20.0
  %v283 = vmin.f32 %v243, 20.0
  %v284 = vmin.f32 %v197, 20.0
  %v285 = vmin.f32 %v246, 20.0
  %v286 = vmin.f32 %v199, 20.0
  %v287 = vmin.f32 %v248, 20.0
  %v288 = vmin.f32 %v202, 20.0
  %v289 = vmin.f32 %v251, 20.0
  %v290 = vmin.f32 %v204, 20.0
  %v291 = vmin.f32 %v253, 20.0
  %v292 = vmin.f32 %v207, 20.0
  %v293 = vmin.f32 %v256, 20.0
  %v294 = vmin.f32 %v209, 20.0
  %v295 = vmin.f32 %v258, 20.0
  %v296 = vmin.f32 %v212, 20.0
  %v297 = vmin.f32 %v261, 20.0
  %v298 = vmin.f32 %v214, 20.0
  %v299 = vmin.f32 %v263, 20.0
  %v300 = vmin.f32 %v217, 20.0
  %v301 = vmin.f32 %v266, 20.0
  %v302 = vmin.f32 %v219, 20.0
  %v303 = vmin.f32 %v268, 20.0
  %v304 = vmin.f32 %v222, 20.0
  %v305 = vmin.f32 %v271, 20.0
  %v306 = vmin.f32 %v224, 20.0
  %v307 = vmin.f32 %v273, 20.0
  %v308 = vmin.f32 %v227, 20.0
  %v309 = vmin.f32 %v276, 20.0
  %v310 = vmin.f32 %v229, 20.0
  %v311 = vmin.f32 %v278, 20.0
  %v312 = vmul.f32 %v280, 1.442695
  %v313 = vpow.pop %v312
  %v314 = vmul.f32 %v281, 1.442695
  %v315 = vpow.pop %v314
  %v316 = vmul.f32 %v282, 1.442695
  %v317 = vpow.pop %v316
  %v318 = vmul.f32 %v283, 1.442695
  %v319 = vpow.pop %v318
  %v320 = vmul.f32 %v284, 1.442695
  %v321 = vpow.pop %v320
  %v322 = vmul.f32 %v285, 1.442695
  %v323 = vpow.pop %v322
  %v324 = vmul.f32 %v286, 1.442695
  %v325 = vpow.pop %v324
  %v326 = vmul.f32 %v287, 1.442695
  %v327 = vpow.pop %v326
  %v328 = vmul.f32 %v288, 1.442695
  %v329 = vpow.pop %v328
  %v330 = vmul.f32 %v289, 1.442695
  %v331 = vpow.pop %v330
  %v332 = vmul.f32 %v290, 1.442695
  %v333 = vpow.pop %v332
  %v334 = vmul.f32 %v291, 1.442695
  %v335 = vpow.pop %v334
  %v336 = vmul.f32 %v292, 1.442695
  %v337 = vpow.pop %v336
  %v338 = vmul.f32 %v293, 1.442695
  %v339 = vpow.pop %v338
  %v340 = vmul.f32 %v294, 1.442695
  %v341 = vpow.pop %v340
  %v342 = vmul.f32 %v295, 1.442695
  %v343 = vpow.pop %v342
  %v344 = vmul.f32 %v296, 1.442695
  %v345 = vpow.pop %v344
  %v346 = vmul.f32 %v297, 1.442695
  %v347 = vpow.pop %v346
  %v348 = vmul.f32 %v298, 1.442695
  %v349 = vpow.pop %v348
  %v350 = vmul.f32 %v299, 1.442695
  %v351 = vpow.pop %v350
  %v352 = vmul.f32 %v300, 1.442695
  %v353 = vpow.pop %v352
  %v354 = vmul.f32 %v301, 1.442695
  %v355 = vpow.pop %v354
  %v356 = vmul.f32 %v302, 1.442695
  %v357 = vpow.pop %v356
  %v358 = vmul.f32 %v303, 1.442695
  %v359 = vpow.pop %v358
  %v360 = vmul.f32 %v304, 1.442695
  %v361 = vpow.pop %v360
  %v362 = vmul.f32 %v305, 1.442695
  %v363 = vpow.pop %v362
  %v364 = vmul.f32 %v306, 1.442695
  %v365 = vpow.pop %v364
  %v366 = vmul.f32 %v307, 1.442695
  %v367 = vpow.pop %v366
  %v368 = vmul.f32 %v308, 1.442695
  %v369 = vpow.pop %v368
  %v370 = vmul.f32 %v309, 1.442695
  %v371 = vpow.pop %v370
  %v372 = vmul.f32 %v310, 1.442695
  %v373 = vpow.pop %v372
  %v374 = vmul.f32 %v311, 1.442695
  %v375 = vpow.pop %v374
  %v376 = vadd.f32 %v313, 2.0
  %v377 = vadd.f32 %v315, 2.0
  %v378 = vadd.f32 %v317, 2.0
  %v379 = vadd.f32 %v319, 2.0
  %v380 = vadd.f32 %v321, 2.0
  %v381 = vadd.f32 %v323, 2.0
  %v382 = vadd.f32 %v325, 2.0
  %v383 = vadd.f32 %v327, 2.0
  %v384 = vadd.f32 %v329, 2.0
  %v385 = vadd.f32 %v331, 2.0
  %v386 = vadd.f32 %v333, 2.0
  %v387 = vadd.f32 %v335, 2.0
  %v388 = vadd.f32 %v337, 2.0
  %v389 = vadd.f32 %v339, 2.0
  %v390 = vadd.f32 %v341, 2.0
  %v391 = vadd.f32 %v343, 2.0
  %v392 = vadd.f32 %v345, 2.0
  %v393 = vadd.f32 %v347, 2.0
  %v394 = vadd.f32 %v349, 2.0
  %v395 = vadd.f32 %v351, 2.0
  %v396 = vadd.f32 %v353, 2.0
  %v397 = vadd.f32 %v355, 2.0
  %v398 = vadd.f32 %v357, 2.0
  %v399 = vadd.f32 %v359, 2.0
  %v400 = vadd.f32 %v361, 2.0
  %v401 = vadd.f32 %v363, 2.0
  %v402 = vadd.f32 %v365, 2.0
  %v403 = vadd.f32 %v367, 2.0
  %v404 = vadd.f32 %v369, 2.0
  %v405 = vadd.f32 %v371, 2.0
  %v406 = vadd.f32 %v373, 2.0
  %v407 = vadd.f32 %v375, 2.0
  %v408 = vmul.f32 %v313, %v376
  %v409 = vmul.f32 %v315, %v377
  %v410 = vmul.f32 %v317, %v378
  %v411 = vmul.f32 %v319, %v379
  %v412 = vmul.f32 %v321, %v380
  %v413 = vmul.f32 %v323, %v381
  %v414 = vmul.f32 %v325, %v382
  %v415 = vmul.f32 %v327, %v383
  %v416 = vmul.f32 %v329, %v384
  %v417 = vmul.f32 %v331, %v385
  %v418 = vmul.f32 %v333, %v386
  %v419 = vmul.f32 %v335, %v387
  %v420 = vmul.f32 %v337, %v388
  %v421 = vmul.f32 %v339, %v389
  %v422 = vmul.f32 %v341, %v390
  %v423 = vmul.f32 %v343, %v391
  %v424 = vmul.f32 %v345, %v392
  %v425 = vmul.f32 %v347, %v393
  %v426 = vmul.f32 %v349, %v394
  %v427 = vmul.f32 %v351, %v395
  %v428 = vmul.f32 %v353, %v396
  %v429 = vmul.f32 %v355, %v397
  %v430 = vmul.f32 %v357, %v398
  %v431 = vmul.f32 %v359, %v399
  %v432 = vmul.f32 %v361, %v400
  %v433 = vmul.f32 %v363, %v401
  %v434 = vmul.f32 %v365, %v402
  %v435 = vmul.f32 %v367, %v403
  %v436 = vmul.f32 %v369, %v404
  %v437 = vmul.f32 %v371, %v405
  %v438 = vmul.f32 %v373, %v406
  %v439 = vmul.f32 %v375, %v407
  %v440 = vadd.f32 %v408, 2.0
  %v441 = vadd.f32 %v409, 2.0
  %v442 = vadd.f32 %v410, 2.0
  %v443 = vadd.f32 %v411, 2.0
  %v444 = vadd.f32 %v412, 2.0
  %v445 = vadd.f32 %v413, 2.0
  %v446 = vadd.f32 %v414, 2.0
  %v447 = vadd.f32 %v415, 2.0
  %v448 = vadd.f32 %v416, 2.0
  %v449 = vadd.f32 %v417, 2.0
  %v450 = vadd.f32 %v418, 2.0
  %v451 = vadd.f32 %v419, 2.0
  %v452 = vadd.f32 %v420, 2.0
  %v453 = vadd.f32 %v421, 2.0
  %v454 = vadd.f32 %v422, 2.0
  %v455 = vadd.f32 %v423, 2.0
  %v456 = vadd.f32 %v424, 2.0
  %v457 = vadd.f32 %v425, 2.0
  %v458 = vadd.f32 %v426, 2.0
  %v459 = vadd.f32 %v427, 2.0
  %v460 = vadd.f32 %v428, 2.0
  %v461 = vadd.f32 %v429, 2.0
  %v462 = vadd.f32 %v430, 2.0
  %v463 = vadd.f32 %v431, 2.0
  %v464 = vadd.f32 %v432, 2.0
  %v465 = vadd.f32 %v433, 2.0
  %v466 = vadd.f32 %v434, 2.0
  %v467 = vadd.f32 %v435, 2.0
  %v468 = vadd.f32 %v436, 2.0
  %v469 = vadd.f32 %v437, 2.0
  %v470 = vadd.f32 %v438, 2.0
  %v471 = vadd.f32 %v439, 2.0
  %v472 = vrcp.pop %v440
  %v473 = vrcp.pop %v441
  %v474 = vrcp.pop %v442
  %v475 = vrcp.pop %v443
  %v476 = vrcp.pop %v444
  %v477 = vrcp.pop %v445
  %v478 = vrcp.pop %v446
  %v479 = vrcp.pop %v447
  %v480 = vrcp.pop %v448
  %v481 = vrcp.pop %v449
  %v482 = vrcp.pop %v450
  %v483 = vrcp.pop %v451
  %v484 = vrcp.pop %v452
  %v485 = vrcp.pop %v453
  %v486 = vrcp.pop %v454
  %v487 = vrcp.pop %v455
  %v488 = vrcp.pop %v456
  %v489 = vrcp.pop %v457
  %v490 = vrcp.pop %v458
  %v491 = vrcp.pop %v459
  %v492 = vrcp.pop %v460
  %v493 = vrcp.pop %v461
  %v494 = vrcp.pop %v462
  %v495 = vrcp.pop %v463
  %v496 = vrcp.pop %v464
  %v497 = vrcp.pop %v465
  %v498 = vrcp.pop %v466
  %v499 = vrcp.pop %v467
  %v500 = vrcp.pop %v468
  %v501 = vrcp.pop %v469
  %v502 = vrcp.pop %v470
  %v503 = vrcp.pop %v471
  %v504 = vmul.f32 %v440, %v472
  %v505 = vmul.f32 %v441, %v473
  %v506 = vmul.f32 %v442, %v474
  %v507 = vmul.f32 %v443, %v475
  %v508 = vmul.f32 %v444, %v476
  %v509 = vmul.f32 %v445, %v477
  %v510 = vmul.f32 %v446, %v478
  %v511 = vmul.f32 %v447, %v479
  %v512 = vmul.f32 %v448, %v480
  %v513 = vmul.f32 %v449, %v481
  %v514 = vmul.f32 %v450, %v482
  %v515 = vmul.f32 %v451, %v483
  %v516 = vmul.f32 %v452, %v484
  %v517 = vmul.f32 %v453, %v485
  %v518 = vmul.f32 %v454, %v486
  %v519 = vmul.f32 %v455, %v487
  %v520 = vmul.f32 %v456, %v488
  %v521 = vmul.f32 %v457, %v489
  %v522 = vmul.f32 %v458, %v490
  %v523 = vmul.f32 %v459, %v491
  %v524 = vmul.f32 %v460, %v492
  %v525 = vmul.f32 %v461, %v493
  %v526 = vmul.f32 %v462, %v494
  %v527 = vmul.f32 %v463, %v495
  %v528 = vmul.f32 %v464, %v496
  %v529 = vmul.f32 %v465, %v497
  %v530 = vmul.f32 %v466, %v498
  %v531 = vmul.f32 %v467, %v499
  %v532 = vmul.f32 %v468, %v500
  %v533 = vmul.f32 %v469, %v501
  %v534 = vmul.f32 %v470, %v502
  %v535 = vmul.f32 %v471, %v503
  %v536 = vsub.f32 2.0, %v504
  %v537 = vsub.f32 2.0, %v505
  %v538 = vsub.f32 2.0, %v506
  %v539 = vsub.f32 2.0, %v507
  %v540 = vsub.f32 2.0, %v508
  %v541 = vsub.f32 2.0, %v509
  %v542 = vsub.f32 2.0, %v510
  %v543 = vsub.f32 2.0, %v511
  %v544 = vsub.f32 2.0, %v512
  %v545 = vsub.f32 2.0, %v513
  %v546 = vsub.f32 2.0, %v514
  %v547 = vsub.f32 2.0, %v515
  %v548 = vsub.f32 2.0, %v516
  %v549 = vsub.f32 2.0, %v517
  %v550 = vsub.f32 2.0, %v518
  %v551 = vsub.f32 2.0, %v519
  %v552 = vsub.f32 2.0, %v520
  %v553 = vsub.f32 2.0, %v521
  %v554 = vsub.f32 2.0, %v522
  %v555 = vsub.f32 2.0, %v523
  %v556 = vsub.f32 2.0, %v524
  %v557 = vsub.f32 2.0, %v525
  %v558 = vsub.f32 2.0, %v526
  %v559 = vsub.f32 2.0, %v527
  %v560 = vsub.f32 2.0, %v528
  %v561 = vsub.f32 2.0, %v529
  %v562 = vsub.f32 2.0, %v530
  %v563 = vsub.f32 2.0, %v531
  %v564 = vsub.f32 2.0, %v532
  %v565 = vsub.f32 2.0, %v533
  %v566 = vsub.f32 2.0, %v534
  %v567 = vsub.f32 2.0, %v535
  %v568 = vmul.f32 %v472, %v536
  %v569 = vmul.f32 %v473, %v537
  %v570 = vmul.f32 %v474, %v538
  %v571 = vmul.f32 %v475, %v539
  %v572 = vmul.f32 %v476, %v540
  %v573 = vmul.f32 %v477, %v541
  %v574 = vmul.f32 %v478, %v542
  %v575 = vmul.f32 %v479, %v543
  %v576 = vmul.f32 %v480, %v544
  %v577 = vmul.f32 %v481, %v545
  %v578 = vmul.f32 %v482, %v546
  %v579 = vmul.f32 %v483, %v547
  %v580 = vmul.f32 %v484, %v548
  %v581 = vmul.f32 %v485, %v549
  %v582 = vmul.f32 %v486, %v550
  %v583 = vmul.f32 %v487, %v551
  %v584 = vmul.f32 %v488, %v552
  %v585 = vmul.f32 %v489, %v553
  %v586 = vmul.f32 %v490, %v554
  %v587 = vmul.f32 %v491, %v555
  %v588 = vmul.f32 %v492, %v556
  %v589 = vmul.f32 %v493, %v557
  %v590 = vmul.f32 %v494, %v558
  %v591 = vmul.f32 %v495, %v559
  %v592 = vmul.f32 %v496, %v560
  %v593 = vmul.f32 %v497, %v561
  %v594 = vmul.f32 %v498, %v562
  %v595 = vmul.f32 %v499, %v563
  %v596 = vmul.f32 %v500, %v564
  %v597 = vmul.f32 %v501, %v565
  %v598 = vmul.f32 %v502, %v566
  %v599 = vmul.f32 %v503, %v567
  %vm600 = vcmp.gt.f32.partialorder %v192, 20.0
  %vm601 = vcmp.gt.f32.partialorder %v241, 20.0
  %vm602 = vcmp.gt.f32.partialorder %v194, 20.0
  %vm603 = vcmp.gt.f32.partialorder %v243, 20.0
  %vm604 = vcmp.gt.f32.partialorder %v197, 20.0
  %vm605 = vcmp.gt.f32.partialorder %v246, 20.0
  %vm606 = vcmp.gt.f32.partialorder %v199, 20.0
  %vm607 = vcmp.gt.f32.partialorder %v248, 20.0
  %vm608 = vcmp.gt.f32.partialorder %v202, 20.0
  %vm609 = vcmp.gt.f32.partialorder %v251, 20.0
  %vm610 = vcmp.gt.f32.partialorder %v204, 20.0
  %vm611 = vcmp.gt.f32.partialorder %v253, 20.0
  %vm612 = vcmp.gt.f32.partialorder %v207, 20.0
  %vm613 = vcmp.gt.f32.partialorder %v256, 20.0
  %vm614 = vcmp.gt.f32.partialorder %v209, 20.0
  %vm615 = vcmp.gt.f32.partialorder %v258, 20.0
  %vm616 = vcmp.gt.f32.partialorder %v212, 20.0
  %vm617 = vcmp.gt.f32.partialorder %v261, 20.0
  %vm618 = vcmp.gt.f32.partialorder %v214, 20.0
  %vm619 = vcmp.gt.f32.partialorder %v263, 20.0
  %vm620 = vcmp.gt.f32.partialorder %v217, 20.0
  %vm621 = vcmp.gt.f32.partialorder %v266, 20.0
  %vm622 = vcmp.gt.f32.partialorder %v219, 20.0
  %vm623 = vcmp.gt.f32.partialorder %v268, 20.0
  %vm624 = vcmp.gt.f32.partialorder %v222, 20.0
  %vm625 = vcmp.gt.f32.partialorder %v271, 20.0
  %vm626 = vcmp.gt.f32.partialorder %v224, 20.0
  %vm627 = vcmp.gt.f32.partialorder %v273, 20.0
  %vm628 = vcmp.gt.f32.partialorder %v227, 20.0
  %vm629 = vcmp.gt.f32.partialorder %v276, 20.0
  %vm630 = vcmp.gt.f32.partialorder %v229, 20.0
  %vm631 = vcmp.gt.f32.partialorder %v278, 20.0
  %v632 = vmul.f32 %v192, %v408
  %v633 = vmul.f32 %v241, %v409
  %v634 = vmul.f32 %v194, %v410
  %v635 = vmul.f32 %v243, %v411
  %v636 = vmul.f32 %v197, %v412
  %v637 = vmul.f32 %v246, %v413
  %v638 = vmul.f32 %v199, %v414
  %v639 = vmul.f32 %v248, %v415
  %v640 = vmul.f32 %v202, %v416
  %v641 = vmul.f32 %v251, %v417
  %v642 = vmul.f32 %v204, %v418
  %v643 = vmul.f32 %v253, %v419
  %v644 = vmul.f32 %v207, %v420
  %v645 = vmul.f32 %v256, %v421
  %v646 = vmul.f32 %v209, %v422
  %v647 = vmul.f32 %v258, %v423
  %v648 = vmul.f32 %v212, %v424
  %v649 = vmul.f32 %v261, %v425
  %v650 = vmul.f32 %v214, %v426
  %v651 = vmul.f32 %v263, %v427
  %v652 = vmul.f32 %v217, %v428
  %v653 = vmul.f32 %v266, %v429
  %v654 = vmul.f32 %v219, %v430
  %v655 = vmul.f32 %v268, %v431
  %v656 = vmul.f32 %v222, %v432
  %v657 = vmul.f32 %v271, %v433
  %v658 = vmul.f32 %v224, %v434
  %v659 = vmul.f32 %v273, %v435
  %v660 = vmul.f32 %v227, %v436
  %v661 = vmul.f32 %v276, %v437
  %v662 = vmul.f32 %v229, %v438
  %v663 = vmul.f32 %v278, %v439
  %v664 = vmul.f32 %v632, %v568
  %v665 = vmul.f32 %v633, %v569
  %v666 = vmul.f32 %v634, %v570
  %v667 = vmul.f32 %v635, %v571
  %v668 = vmul.f32 %v636, %v572
  %v669 = vmul.f32 %v637, %v573
  %v670 = vmul.f32 %v638, %v574
  %v671 = vmul.f32 %v639, %v575
  %v672 = vmul.f32 %v640, %v576
  %v673 = vmul.f32 %v641, %v577
  %v674 = vmul.f32 %v642, %v578
  %v675 = vmul.f32 %v643, %v579
  %v676 = vmul.f32 %v644, %v580
  %v677 = vmul.f32 %v645, %v581
  %v678 = vmul.f32 %v646, %v582
  %v679 = vmul.f32 %v647, %v583
  %v680 = vmul.f32 %v648, %v584
  %v681 = vmul.f32 %v649, %v585
  %v682 = vmul.f32 %v650, %v586
  %v683 = vmul.f32 %v651, %v587
  %v684 = vmul.f32 %v652, %v588
  %v685 = vmul.f32 %v653, %v589
  %v686 = vmul.f32 %v654, %v590
  %v687 = vmul.f32 %v655, %v591
  %v688 = vmul.f32 %v656, %v592
  %v689 = vmul.f32 %v657, %v593
  %v690 = vmul.f32 %v658, %v594
  %v691 = vmul.f32 %v659, %v595
  %v692 = vmul.f32 %v660, %v596
  %v693 = vmul.f32 %v661, %v597
  %v694 = vmul.f32 %v662, %v598
  %v695 = vmul.f32 %v663, %v599
  %v696 = vsel %vm600, %v192, %v664
  %v697 = vsel %vm601, %v241, %v665
  %v698 = vsel %vm602, %v194, %v666
  %v699 = vsel %vm603, %v243, %v667
  %v700 = vsel %vm604, %v197, %v668
  %v701 = vsel %vm605, %v246, %v669
  %v702 = vsel %vm606, %v199, %v670
  %v703 = vsel %vm607, %v248, %v671
  %v704 = vsel %vm608, %v202, %v672
  %v705 = vsel %vm609, %v251, %v673
  %v706 = vsel %vm610, %v204, %v674
  %v707 = vsel %vm611, %v253, %v675
  %v708 = vsel %vm612, %v207, %v676
  %v709 = vsel %vm613, %v256, %v677
  %v710 = vsel %vm614, %v209, %v678
  %v711 = vsel %vm615, %v258, %v679
  %v712 = vsel %vm616, %v212, %v680
  %v713 = vsel %vm617, %v261, %v681
  %v714 = vsel %vm618, %v214, %v682
  %v715 = vsel %vm619, %v263, %v683
  %v716 = vsel %vm620, %v217, %v684
  %v717 = vsel %vm621, %v266, %v685
  %v718 = vsel %vm622, %v219, %v686
  %v719 = vsel %vm623, %v268, %v687
  %v720 = vsel %vm624, %v222, %v688
  %v721 = vsel %vm625, %v271, %v689
  %v722 = vsel %vm626, %v224, %v690
  %v723 = vsel %vm627, %v273, %v691
  %v724 = vsel %vm628, %v227, %v692
  %v725 = vsel %vm629, %v276, %v693
  %v726 = vsel %vm630, %v229, %v694
  %v727 = vsel %vm631, %v278, %v695
  %v728 = vpack.c.bf16 %v696, %v696
  %v729 = vpack.c.bf16 %v698, %v698
  %v730 = vpack.c.bf16 %v700, %v700
  %v731 = vpack.c.bf16 %v702, %v702
  %v732 = vpack.c.bf16 %v704, %v704
  %v733 = vpack.c.bf16 %v706, %v706
  %v734 = vpack.c.bf16 %v708, %v708
  %v735 = vpack.c.bf16 %v710, %v710
  %v736 = vpack.c.bf16 %v712, %v712
  %v737 = vpack.c.bf16 %v714, %v714
  %v738 = vpack.c.bf16 %v716, %v716
  %v739 = vpack.c.bf16 %v718, %v718
  %v740 = vpack.c.bf16 %v720, %v720
  %v741 = vpack.c.bf16 %v722, %v722
  %v742 = vpack.c.bf16 %v724, %v724
  %v743 = vpack.c.bf16 %v726, %v726
  %744 = vst [vmem:[%s3] sm:$0xf] %v728
  %745 = vst [vmem:[%s3 + $0x4] sm:$0xf] %v729
  %746 = vst [vmem:[%s3 + $0x8] sm:$0xf] %v730
  %747 = vst [vmem:[%s3 + $0xc] sm:$0xf] %v731
  %748 = vst [vmem:[%s3 + $0x10] sm:$0xf] %v732
  %749 = vst [vmem:[%s3 + $0x14] sm:$0xf] %v733
  %750 = vst [vmem:[%s3 + $0x18] sm:$0xf] %v734
  %751 = vst [vmem:[%s3 + $0x1c] sm:$0xf] %v735
  %752 = vst [vmem:[%s3 + $0x20] sm:$0xf] %v736
  %753 = vst [vmem:[%s3 + $0x24] sm:$0xf] %v737
  %754 = vst [vmem:[%s3 + $0x28] sm:$0xf] %v738
  %755 = vst [vmem:[%s3 + $0x2c] sm:$0xf] %v739
  %756 = vst [vmem:[%s3 + $0x30] sm:$0xf] %v740
  %757 = vst [vmem:[%s3 + $0x34] sm:$0xf] %v741
  %758 = vst [vmem:[%s3 + $0x38] sm:$0xf] %v742
  %759 = vst [vmem:[%s3 + $0x3c] sm:$0xf] %v743
  %v760 = vpack.c.bf16 %v697, %v697
  %v761 = vpack.c.bf16 %v699, %v699
  %v762 = vpack.c.bf16 %v701, %v701
  %v763 = vpack.c.bf16 %v703, %v703
  %v764 = vpack.c.bf16 %v705, %v705
  %v765 = vpack.c.bf16 %v707, %v707
  %v766 = vpack.c.bf16 %v709, %v709
  %v767 = vpack.c.bf16 %v711, %v711
  %v768 = vpack.c.bf16 %v713, %v713
  %v769 = vpack.c.bf16 %v715, %v715
  %v770 = vpack.c.bf16 %v717, %v717
  %v771 = vpack.c.bf16 %v719, %v719
  %v772 = vpack.c.bf16 %v721, %v721
  %v773 = vpack.c.bf16 %v723, %v723
  %v774 = vpack.c.bf16 %v725, %v725
  %v775 = vpack.c.bf16 %v727, %v727
  %776 = vst [vmem:[%s4] sm:$0xf] %v760
  %777 = vst [vmem:[%s4 + $0x4] sm:$0xf] %v761
  %778 = vst [vmem:[%s4 + $0x8] sm:$0xf] %v762
  %779 = vst [vmem:[%s4 + $0xc] sm:$0xf] %v763
  %780 = vst [vmem:[%s4 + $0x10] sm:$0xf] %v764
  %781 = vst [vmem:[%s4 + $0x14] sm:$0xf] %v765
  %782 = vst [vmem:[%s4 + $0x18] sm:$0xf] %v766
  %783 = vst [vmem:[%s4 + $0x1c] sm:$0xf] %v767
  %784 = vst [vmem:[%s4 + $0x20] sm:$0xf] %v768
  %785 = vst [vmem:[%s4 + $0x24] sm:$0xf] %v769
  %786 = vst [vmem:[%s4 + $0x28] sm:$0xf] %v770
  %787 = vst [vmem:[%s4 + $0x2c] sm:$0xf] %v771
  %788 = vst [vmem:[%s4 + $0x30] sm:$0xf] %v772
  %789 = vst [vmem:[%s4 + $0x34] sm:$0xf] %v773
  %790 = vst [vmem:[%s4 + $0x38] sm:$0xf] %v774
  %791 = vst [vmem:[%s4 + $0x3c] sm:$0xf] %v775
  // Predicated region
  $region14: #{stage3_forward.6} parent=0 // pred_check
    _
  $region15: #{stage3_forward.6} parent=0 // pred_check_branch
    %793 = sbr.rel (0) target = $region17
  $region16: #{stage3_forward.6} parent=0 // pred_region
    _
  $region17: #{stage3_forward.6} parent=0 // pred_fallthru
    _
  // Predicated region
  $region18: #{stage3_forward.6} parent=0 // pred_check
    _
  $region19: #{stage3_forward.6} parent=0 // pred_check_branch
    %795 = sbr.rel (0) target = $region21
  $region20: #{stage3_forward.6} parent=0 // pred_region
    _
  $region21: #{stage3_forward.6} parent=0 // pred_fallthru
    _
  // Predicated region
  $region22: #{stage3_forward.6} parent=0 // pred_check
    _
  $region23: #{stage3_forward.6} parent=0 // pred_check_branch
    %797 = sbr.rel (0) target = $region25
  $region24: #{stage3_forward.6} parent=0 // pred_region
    _
  $region25: #{stage3_forward.6} parent=0 // pred_fallthru
    _
  // Predicated region
  $region26: #{stage3_forward.6} parent=0 // pred_check
    _
  $region27: #{stage3_forward.6} parent=0 // pred_check_branch
    %799 = sbr.rel (0) target = $region29
  $region28: #{stage3_forward.6} parent=0 // pred_region
    _
  $region29: #{stage3_forward.6} parent=0 // pred_fallthru
    _

// kernel: stage3_forward.9
$region0: #{stage3_forward.9}
  #allocation0 [shape = 'u32[]', space=smem, size = 0x4, offset = 0x4, fixed_abs, tag = 'smem constant byte address 0x4 - core index']
  #allocation1 [shape = 'u32[72,128]{1,0:T(1,128)}', space=vmem, size = 0x9000, scoped, tag = 'internal scratch']
  %s0 = inlined_call_operand.vmem [shape: bf16[128,128], index: 0, kind: input, shape index: {}]
  %s1 = inlined_call_operand.vmem [shape: bf16[128,128], index: 1, kind: input, shape index: {}]
  %s2 = inlined_call_operand.vmem [shape: f32[1,128], index: 2, kind: input, shape index: {}]
  %s3 = inlined_call_operand.vmem [shape: bf16[128,128], index: 3, kind: input, shape index: {}]
  %s4 = inlined_call_operand.hbm [shape: f32[128,8], index: 4, kind: output, shape index: {}]
  %s5 = sld [smem:[#allocation0]]
  $region26: #{stage3_forward.9} parent=0
    _
  %s7 = ssub.s32 1, %s5
  %s8 = scalar_select 0, %s7, %s5
  $region1: #{stage3_forward.9} parent=0
    #allocation2 [shape = 'u8[65536]{0}', space=vmem, size = 0x10000, scoped, tag = 'output window, operand 0, single buffered']
    #allocation3 [shape = 's32[1]{0}', space=sflag, size = 0x4, scoped, tag = 'scoped memory for stage3_forward.9']
    %9 = vsyncpa [#allocation3], 0
    // Predicated region
    $region2: #{stage3_forward.9} parent=1 // pred_check
      _
    $region3: #{stage3_forward.9} parent=1 // pred_check_branch
      %11 = sbr.rel (0) target = $region5
    $region4: #{stage3_forward.9} parent=1 // pred_region
      _
    $region5: #{stage3_forward.9} parent=1 // pred_fallthru
      _
    // Predicated region
    $region6: #{stage3_forward.9} parent=1 // pred_check
      _
    $region7: #{stage3_forward.9} parent=1 // pred_check_branch
      %13 = sbr.rel (0) target = $region9
    $region8: #{stage3_forward.9} parent=1 // pred_region
      _
    $region9: #{stage3_forward.9} parent=1 // pred_fallthru
      _
    // Predicated region
    $region10: #{stage3_forward.9} parent=1 // pred_check
      _
    $region11: #{stage3_forward.9} parent=1 // pred_check_branch
      %15 = sbr.rel (0) target = $region13
    $region12: #{stage3_forward.9} parent=1 // pred_region
      _
    $region13: #{stage3_forward.9} parent=1 // pred_fallthru
      _
    // Predicated region
    $region14: #{stage3_forward.9} parent=1 // pred_check
      _
    $region15: #{stage3_forward.9} parent=1 // pred_check_branch
      %17 = sbr.rel (0) target = $region17
    $region16: #{stage3_forward.9} parent=1 // pred_region
      _
    $region17: #{stage3_forward.9} parent=1 // pred_fallthru
      _
    %v18 = vld [vmem:[%s0] sm:$0xf]
    %v19 = vld [vmem:[%s0 + $0x4] sm:$0xf]
    %v20 = vld [vmem:[%s0 + $0x8] sm:$0xf]
    %v21 = vld [vmem:[%s0 + $0xc] sm:$0xf]
    %v22 = vld [vmem:[%s0 + $0x10] sm:$0xf]
    %v23 = vld [vmem:[%s0 + $0x14] sm:$0xf]
    %v24 = vld [vmem:[%s0 + $0x18] sm:$0xf]
    %v25 = vld [vmem:[%s0 + $0x1c] sm:$0xf]
    %v26 = vld [vmem:[%s0 + $0x20] sm:$0xf]
    %v27 = vld [vmem:[%s0 + $0x24] sm:$0xf]
    %v28 = vld [vmem:[%s0 + $0x28] sm:$0xf]
    %v29 = vld [vmem:[%s0 + $0x2c] sm:$0xf]
    %v30 = vld [vmem:[%s0 + $0x30] sm:$0xf]
    %v31 = vld [vmem:[%s0 + $0x34] sm:$0xf]
    %v32 = vld [vmem:[%s0 + $0x38] sm:$0xf]
    %v33 = vld [vmem:[%s0 + $0x3c] sm:$0xf]
    %v34 = vld [vmem:[%s1] sm:$0xf]
    %v35 = vld [vmem:[%s1 + $0x4] sm:$0xf]
    %v36 = vld [vmem:[%s1 + $0x8] sm:$0xf]
    %v37 = vld [vmem:[%s1 + $0xc] sm:$0xf]
    %v38 = vld [vmem:[%s1 + $0x10] sm:$0xf]
    %v39 = vld [vmem:[%s1 + $0x14] sm:$0xf]
    %v40 = vld [vmem:[%s1 + $0x18] sm:$0xf]
    %v41 = vld [vmem:[%s1 + $0x1c] sm:$0xf]
    %v42 = vld [vmem:[%s1 + $0x20] sm:$0xf]
    %v43 = vld [vmem:[%s1 + $0x24] sm:$0xf]
    %v44 = vld [vmem:[%s1 + $0x28] sm:$0xf]
    %v45 = vld [vmem:[%s1 + $0x2c] sm:$0xf]
    %v46 = vld [vmem:[%s1 + $0x30] sm:$0xf]
    %v47 = vld [vmem:[%s1 + $0x34] sm:$0xf]
    %v48 = vld [vmem:[%s1 + $0x38] sm:$0xf]
    %v49 = vld [vmem:[%s1 + $0x3c] sm:$0xf]
    %v50 = vld [vmem:[%s2] sm:$0x1]
    %v52 = vperm.slane %v50, 0
    %v70 = vunpack.c.l.b16 %v18
    %v71 = vunpack.c.l.b16 %v19
    %v72 = vunpack.c.l.b16 %v20
    %v73 = vunpack.c.l.b16 %v21
    %v74 = vunpack.c.l.b16 %v22
    %v75 = vunpack.c.l.b16 %v23
    %v76 = vunpack.c.l.b16 %v24
    %v77 = vunpack.c.l.b16 %v25
    %v78 = vunpack.c.l.b16 %v26
    %v79 = vunpack.c.l.b16 %v27
    %v80 = vunpack.c.l.b16 %v28
    %v81 = vunpack.c.l.b16 %v29
    %v82 = vunpack.c.l.b16 %v30
    %v83 = vunpack.c.l.b16 %v31
    %v84 = vunpack.c.l.b16 %v32
    %v85 = vunpack.c.l.b16 %v33
    %v86 = vpack.c.b16 %v71, %v70
    %v87 = vpack.c.b16 %v73, %v72
    %v88 = vpack.c.b16 %v75, %v74
    %v89 = vpack.c.b16 %v77, %v76
    %v90 = vpack.c.b16 %v79, %v78
    %v91 = vpack.c.b16 %v81, %v80
    %v92 = vpack.c.b16 %v83, %v82
    %v93 = vpack.c.b16 %v85, %v84
    %v118 = vunpack.c.l.b16 %v34
    %v119 = vunpack.c.l.b16 %v35
    %v120 = vunpack.c.l.b16 %v36
    %v121 = vunpack.c.l.b16 %v37
    %v122 = vunpack.c.l.b16 %v38
    %v123 = vunpack.c.l.b16 %v39
    %v124 = vunpack.c.l.b16 %v40
    %v125 = vunpack.c.l.b16 %v41
    %v126 = vunpack.c.l.b16 %v42
    %v127 = vunpack.c.l.b16 %v43
    %v128 = vunpack.c.l.b16 %v44
    %v129 = vunpack.c.l.b16 %v45
    %v130 = vunpack.c.l.b16 %v46
    %v131 = vunpack.c.l.b16 %v47
    %v132 = vunpack.c.l.b16 %v48
    %v133 = vunpack.c.l.b16 %v49
    %v134 = vpack.c.b16 %v119, %v118
    %v135 = vpack.c.b16 %v121, %v120
    %v136 = vpack.c.b16 %v123, %v122
    %v137 = vpack.c.b16 %v125, %v124
    %v138 = vpack.c.b16 %v127, %v126
    %v139 = vpack.c.b16 %v129, %v128
    %v140 = vpack.c.b16 %v131, %v130
    %v141 = vpack.c.b16 %v133, %v132
    %150 = vmatpush.bf16.msra.mxu0 %v141
    %151 = vmatpush.bf16.msra.mxu0 %v140
    %152 = vmatpush.bf16.msra.mxu0 %v139
    %153 = vmatpush.bf16.msra.mxu0 %v138
    %154 = vmatpush.bf16.msra.mxu0 %v137
    %155 = vmatpush.bf16.msra.mxu0 %v136
    %156 = vmatpush.bf16.msra.mxu0 %v135
    %157 = vmatpush.bf16.msra.mxu0 %v134
    %158 = vmatmul.bf16.gmra.mxu0 %v86
    %v159 = vpop.f32.mrf.mxu0
    %v160 = vadd.f32 %v52, %v159
    %v161 = vpop.f32.mrf.mxu0
    %v162 = vadd.f32 %v52, %v161
    %163 = vmatmul.bf16.gmra.mxu0 %v87
    %v164 = vpop.f32.mrf.mxu0
    %v165 = vadd.f32 %v52, %v164
    %v166 = vpop.f32.mrf.mxu0
    %v167 = vadd.f32 %v52, %v166
    %168 = vmatmul.bf16.gmra.mxu0 %v88
    %v169 = vpop.f32.mrf.mxu0
    %v170 = vadd.f32 %v52, %v169
    %v171 = vpop.f32.mrf.mxu0
    %v172 = vadd.f32 %v52, %v171
    %173 = vmatmul.bf16.gmra.mxu0 %v89
    %v174 = vpop.f32.mrf.mxu0
    %v175 = vadd.f32 %v52, %v174
    %v176 = vpop.f32.mrf.mxu0
    %v177 = vadd.f32 %v52, %v176
    %178 = vmatmul.bf16.gmra.mxu0 %v90
    %v179 = vpop.f32.mrf.mxu0
    %v180 = vadd.f32 %v52, %v179
    %v181 = vpop.f32.mrf.mxu0
    %v182 = vadd.f32 %v52, %v181
    %183 = vmatmul.bf16.gmra.mxu0 %v91
    %v184 = vpop.f32.mrf.mxu0
    %v185 = vadd.f32 %v52, %v184
    %v186 = vpop.f32.mrf.mxu0
    %v187 = vadd.f32 %v52, %v186
    %188 = vmatmul.bf16.gmra.mxu0 %v92
    %v189 = vpop.f32.mrf.mxu0
    %v190 = vadd.f32 %v52, %v189
    %v191 = vpop.f32.mrf.mxu0
    %v192 = vadd.f32 %v52, %v191
    %193 = vmatmul.bf16.gmra.mxu0 %v93
    %v194 = vpop.f32.mrf.mxu0
    %v195 = vadd.f32 %v52, %v194
    %v196 = vpop.f32.mrf.mxu0
    %v197 = vadd.f32 %v52, %v196
    %198 = vdwg.mxu0
    %v199 = vmin.f32 %v160, 20.0
    %v200 = vmin.f32 %v162, 20.0
    %v201 = vmin.f32 %v165, 20.0
    %v202 = vmin.f32 %v167, 20.0
    %v203 = vmin.f32 %v170, 20.0
    %v204 = vmin.f32 %v172, 20.0
    %v205 = vmin.f32 %v175, 20.0
    %v206 = vmin.f32 %v177, 20.0
    %v207 = vmin.f32 %v180, 20.0
    %v208 = vmin.f32 %v182, 20.0
    %v209 = vmin.f32 %v185, 20.0
    %v210 = vmin.f32 %v187, 20.0
    %v211 = vmin.f32 %v190, 20.0
    %v212 = vmin.f32 %v192, 20.0
    %v213 = vmin.f32 %v195, 20.0
    %v214 = vmin.f32 %v197, 20.0
    %v215 = vmul.f32 %v199, 1.442695
    %v216 = vpow.pop %v215
    %v217 = vmul.f32 %v200, 1.442695
    %v218 = vpow.pop %v217
    %v219 = vmul.f32 %v201, 1.442695
    %v220 = vpow.pop %v219
    %v221 = vmul.f32 %v202, 1.442695
    %v222 = vpow.pop %v221
    %v223 = vmul.f32 %v203, 1.442695
    %v224 = vpow.pop %v223
    %v225 = vmul.f32 %v204, 1.442695
    %v226 = vpow.pop %v225
    %v227 = vmul.f32 %v205, 1.442695
    %v228 = vpow.pop %v227
    %v229 = vmul.f32 %v206, 1.442695
    %v230 = vpow.pop %v229
    %v231 = vmul.f32 %v207, 1.442695
    %v232 = vpow.pop %v231
    %v233 = vmul.f32 %v208, 1.442695
    %v234 = vpow.pop %v233
    %v235 = vmul.f32 %v209, 1.442695
    %v236 = vpow.pop %v235
    %v237 = vmul.f32 %v210, 1.442695
    %v238 = vpow.pop %v237
    %v239 = vmul.f32 %v211, 1.442695
    %v240 = vpow.pop %v239
    %v241 = vmul.f32 %v212, 1.442695
    %v242 = vpow.pop %v241
    %v243 = vmul.f32 %v213, 1.442695
    %v244 = vpow.pop %v243
    %v245 = vmul.f32 %v214, 1.442695
    %v246 = vpow.pop %v245
    %v247 = vadd.f32 %v216, 2.0
    %v248 = vadd.f32 %v218, 2.0
    %v249 = vadd.f32 %v220, 2.0
    %v250 = vadd.f32 %v222, 2.0
    %v251 = vadd.f32 %v224, 2.0
    %v252 = vadd.f32 %v226, 2.0
    %v253 = vadd.f32 %v228, 2.0
    %v254 = vadd.f32 %v230, 2.0
    %v255 = vadd.f32 %v232, 2.0
    %v256 = vadd.f32 %v234, 2.0
    %v257 = vadd.f32 %v236, 2.0
    %v258 = vadd.f32 %v238, 2.0
    %v259 = vadd.f32 %v240, 2.0
    %v260 = vadd.f32 %v242, 2.0
    %v261 = vadd.f32 %v244, 2.0
    %v262 = vadd.f32 %v246, 2.0
    %v263 = vmul.f32 %v216, %v247
    %v264 = vmul.f32 %v218, %v248
    %v265 = vmul.f32 %v220, %v249
    %v266 = vmul.f32 %v222, %v250
    %v267 = vmul.f32 %v224, %v251
    %v268 = vmul.f32 %v226, %v252
    %v269 = vmul.f32 %v228, %v253
    %v270 = vmul.f32 %v230, %v254
    %v271 = vmul.f32 %v232, %v255
    %v272 = vmul.f32 %v234, %v256
    %v273 = vmul.f32 %v236, %v257
    %v274 = vmul.f32 %v238, %v258
    %v275 = vmul.f32 %v240, %v259
    %v276 = vmul.f32 %v242, %v260
    %v277 = vmul.f32 %v244, %v261
    %v278 = vmul.f32 %v246, %v262
    %v279 = vadd.f32 %v263, 2.0
    %v280 = vadd.f32 %v264, 2.0
    %v281 = vadd.f32 %v265, 2.0
    %v282 = vadd.f32 %v266, 2.0
    %v283 = vadd.f32 %v267, 2.0
    %v284 = vadd.f32 %v268, 2.0
    %v285 = vadd.f32 %v269, 2.0
    %v286 = vadd.f32 %v270, 2.0
    %v287 = vadd.f32 %v271, 2.0
    %v288 = vadd.f32 %v272, 2.0
    %v289 = vadd.f32 %v273, 2.0
    %v290 = vadd.f32 %v274, 2.0
    %v291 = vadd.f32 %v275, 2.0
    %v292 = vadd.f32 %v276, 2.0
    %v293 = vadd.f32 %v277, 2.0
    %v294 = vadd.f32 %v278, 2.0
    %v295 = vrcp.pop %v279
    %v296 = vrcp.pop %v280
    %v297 = vrcp.pop %v281
    %v298 = vrcp.pop %v282
    %v299 = vrcp.pop %v283
    %v300 = vrcp.pop %v284
    %v301 = vrcp.pop %v285
    %v302 = vrcp.pop %v286
    %v303 = vrcp.pop %v287
    %v304 = vrcp.pop %v288
    %v305 = vrcp.pop %v289
    %v306 = vrcp.pop %v290
    %v307 = vrcp.pop %v291
    %v308 = vrcp.pop %v292
    %v309 = vrcp.pop %v293
    %v310 = vrcp.pop %v294
    %v311 = vmul.f32 %v279, %v295
    %v312 = vmul.f32 %v280, %v296
    %v313 = vmul.f32 %v281, %v297
    %v314 = vmul.f32 %v282, %v298
    %v315 = vmul.f32 %v283, %v299
    %v316 = vmul.f32 %v284, %v300
    %v317 = vmul.f32 %v285, %v301
    %v318 = vmul.f32 %v286, %v302
    %v319 = vmul.f32 %v287, %v303
    %v320 = vmul.f32 %v288, %v304
    %v321 = vmul.f32 %v289, %v305
    %v322 = vmul.f32 %v290, %v306
    %v323 = vmul.f32 %v291, %v307
    %v324 = vmul.f32 %v292, %v308
    %v325 = vmul.f32 %v293, %v309
    %v326 = vmul.f32 %v294, %v310
    %v327 = vsub.f32 2.0, %v311
    %v328 = vsub.f32 2.0, %v312
    %v329 = vsub.f32 2.0, %v313
    %v330 = vsub.f32 2.0, %v314
    %v331 = vsub.f32 2.0, %v315
    %v332 = vsub.f32 2.0, %v316
    %v333 = vsub.f32 2.0, %v317
    %v334 = vsub.f32 2.0, %v318
    %v335 = vsub.f32 2.0, %v319
    %v336 = vsub.f32 2.0, %v320
    %v337 = vsub.f32 2.0, %v321
    %v338 = vsub.f32 2.0, %v322
    %v339 = vsub.f32 2.0, %v323
    %v340 = vsub.f32 2.0, %v324
    %v341 = vsub.f32 2.0, %v325
    %v342 = vsub.f32 2.0, %v326
    %v343 = vmul.f32 %v295, %v327
    %v344 = vmul.f32 %v296, %v328
    %v345 = vmul.f32 %v297, %v329
    %v346 = vmul.f32 %v298, %v330
    %v347 = vmul.f32 %v299, %v331
    %v348 = vmul.f32 %v300, %v332
    %v349 = vmul.f32 %v301, %v333
    %v350 = vmul.f32 %v302, %v334
    %v351 = vmul.f32 %v303, %v335
    %v352 = vmul.f32 %v304, %v336
    %v353 = vmul.f32 %v305, %v337
    %v354 = vmul.f32 %v306, %v338
    %v355 = vmul.f32 %v307, %v339
    %v356 = vmul.f32 %v308, %v340
    %v357 = vmul.f32 %v309, %v341
    %v358 = vmul.f32 %v310, %v342
    %vm359 = vcmp.gt.f32.partialorder %v160, 20.0
    %vm360 = vcmp.gt.f32.partialorder %v162, 20.0
    %vm361 = vcmp.gt.f32.partialorder %v165, 20.0
    %vm362 = vcmp.gt.f32.partialorder %v167, 20.0
    %vm363 = vcmp.gt.f32.partialorder %v170, 20.0
    %vm364 = vcmp.gt.f32.partialorder %v172, 20.0
    %vm365 = vcmp.gt.f32.partialorder %v175, 20.0
    %vm366 = vcmp.gt.f32.partialorder %v177, 20.0
    %vm367 = vcmp.gt.f32.partialorder %v180, 20.0
    %vm368 = vcmp.gt.f32.partialorder %v182, 20.0
    %vm369 = vcmp.gt.f32.partialorder %v185, 20.0
    %vm370 = vcmp.gt.f32.partialorder %v187, 20.0
    %vm371 = vcmp.gt.f32.partialorder %v190, 20.0
    %vm372 = vcmp.gt.f32.partialorder %v192, 20.0
    %vm373 = vcmp.gt.f32.partialorder %v195, 20.0
    %vm374 = vcmp.gt.f32.partialorder %v197, 20.0
    %v375 = vmul.f32 %v160, %v263
    %v376 = vmul.f32 %v162, %v264
    %v377 = vmul.f32 %v165, %v265
    %v378 = vmul.f32 %v167, %v266
    %v379 = vmul.f32 %v170, %v267
    %v380 = vmul.f32 %v172, %v268
    %v381 = vmul.f32 %v175, %v269
    %v382 = vmul.f32 %v177, %v270
    %v383 = vmul.f32 %v180, %v271
    %v384 = vmul.f32 %v182, %v272
    %v385 = vmul.f32 %v185, %v273
    %v386 = vmul.f32 %v187, %v274
    %v387 = vmul.f32 %v190, %v275
    %v388 = vmul.f32 %v192, %v276
    %v389 = vmul.f32 %v195, %v277
    %v390 = vmul.f32 %v197, %v278
    %v391 = vmul.f32 %v375, %v343
    %v392 = vmul.f32 %v376, %v344
    %v393 = vmul.f32 %v377, %v345
    %v394 = vmul.f32 %v378, %v346
    %v395 = vmul.f32 %v379, %v347
    %v396 = vmul.f32 %v380, %v348
    %v397 = vmul.f32 %v381, %v349
    %v398 = vmul.f32 %v382, %v350
    %v399 = vmul.f32 %v383, %v351
    %v400 = vmul.f32 %v384, %v352
    %v401 = vmul.f32 %v385, %v353
    %v402 = vmul.f32 %v386, %v354
    %v403 = vmul.f32 %v387, %v355
    %v404 = vmul.f32 %v388, %v356
    %v405 = vmul.f32 %v389, %v357
    %v406 = vmul.f32 %v390, %v358
    %v407 = vsel %vm359, %v160, %v391
    %v408 = vsel %vm360, %v162, %v392
    %v409 = vsel %vm361, %v165, %v393
    %v410 = vsel %vm362, %v167, %v394
    %v411 = vsel %vm363, %v170, %v395
    %v412 = vsel %vm364, %v172, %v396
    %v413 = vsel %vm365, %v175, %v397
    %v414 = vsel %vm366, %v177, %v398
    %v415 = vsel %vm367, %v180, %v399
    %v416 = vsel %vm368, %v182, %v400
    %v417 = vsel %vm369, %v185, %v401
    %v418 = vsel %vm370, %v187, %v402
    %v419 = vsel %vm371, %v190, %v403
    %v420 = vsel %vm372, %v192, %v404
    %v421 = vsel %vm373, %v195, %v405
    %v422 = vsel %vm374, %v197, %v406
    %v423 = vld [vmem:[%s3] sm:$0xf]
    %v424 = vld [vmem:[%s3 + $0x4] sm:$0xf]
    %v425 = vld [vmem:[%s3 + $0x8] sm:$0xf]
    %v426 = vld [vmem:[%s3 + $0xc] sm:$0xf]
    %v427 = vld [vmem:[%s3 + $0x10] sm:$0xf]
    %v428 = vld [vmem:[%s3 + $0x14] sm:$0xf]
    %v429 = vld [vmem:[%s3 + $0x18] sm:$0xf]
    %v430 = vld [vmem:[%s3 + $0x1c] sm:$0xf]
    %v431 = vld [vmem:[%s3 + $0x20] sm:$0xf]
    %v432 = vld [vmem:[%s3 + $0x24] sm:$0xf]
    %v433 = vld [vmem:[%s3 + $0x28] sm:$0xf]
    %v434 = vld [vmem:[%s3 + $0x2c] sm:$0xf]
    %v435 = vld [vmem:[%s3 + $0x30] sm:$0xf]
    %v436 = vld [vmem:[%s3 + $0x34] sm:$0xf]
    %v437 = vld [vmem:[%s3 + $0x38] sm:$0xf]
    %v438 = vld [vmem:[%s3 + $0x3c] sm:$0xf]
    %v439 = vunpack.c.l.bf16 %v423
    %v440 = vunpack.c.l.bf16 %v424
    %v441 = vunpack.c.l.bf16 %v425
    %v442 = vunpack.c.l.bf16 %v426
    %v443 = vunpack.c.l.bf16 %v427
    %v444 = vunpack.c.l.bf16 %v428
    %v445 = vunpack.c.l.bf16 %v429
    %v446 = vunpack.c.l.bf16 %v430
    %v447 = vunpack.c.l.bf16 %v431
    %v448 = vunpack.c.l.bf16 %v432
    %v449 = vunpack.c.l.bf16 %v433
    %v450 = vunpack.c.l.bf16 %v434
    %v451 = vunpack.c.l.bf16 %v435
    %v452 = vunpack.c.l.bf16 %v436
    %v453 = vunpack.c.l.bf16 %v437
    %v454 = vunpack.c.l.bf16 %v438
    %471 = vrot.lane.b32.xlu0 %v407, 4
    %v472 = vpop.permute.xlu0 %471
    %473 = vrot.lane.b32.xlu0 %v408, 4
    %v474 = vpop.permute.xlu0 %473
    %475 = vrot.lane.b32.xlu0 %v409, 4
    %v476 = vpop.permute.xlu0 %475
    %477 = vrot.lane.b32.xlu0 %v410, 4
    %v478 = vpop.permute.xlu0 %477
    %479 = vrot.lane.b32.xlu0 %v411, 4
    %v480 = vpop.permute.xlu0 %479
    %481 = vrot.lane.b32.xlu0 %v412, 4
    %v482 = vpop.permute.xlu0 %481
    %483 = vrot.lane.b32.xlu0 %v413, 4
    %v484 = vpop.permute.xlu0 %483
    %485 = vrot.lane.b32.xlu0 %v414, 4
    %v486 = vpop.permute.xlu0 %485
    %487 = vrot.lane.b32.xlu0 %v415, 4
    %v488 = vpop.permute.xlu0 %487
    %489 = vrot.lane.b32.xlu0 %v416, 4
    %v490 = vpop.permute.xlu0 %489
    %491 = vrot.lane.b32.xlu0 %v417, 4
    %v492 = vpop.permute.xlu0 %491
    %493 = vrot.lane.b32.xlu0 %v418, 4
    %v494 = vpop.permute.xlu0 %493
    %495 = vrot.lane.b32.xlu0 %v419, 4
    %v496 = vpop.permute.xlu0 %495
    %497 = vrot.lane.b32.xlu0 %v420, 4
    %v498 = vpop.permute.xlu0 %497
    %499 = vrot.lane.b32.xlu0 %v421, 4
    %v500 = vpop.permute.xlu0 %499
    %501 = vrot.lane.b32.xlu0 %v422, 4
    %v502 = vpop.permute.xlu0 %501
    %vm519 = vcmask 31744
    %v520 = vsel %vm519, %v439, %v472
    %v521 = vsel %vm519, %v440, %v474
    %v522 = vsel %vm519, %v441, %v476
    %v523 = vsel %vm519, %v442, %v478
    %v524 = vsel %vm519, %v443, %v480
    %v525 = vsel %vm519, %v444, %v482
    %v526 = vsel %vm519, %v445, %v484
    %v527 = vsel %vm519, %v446, %v486
    %v528 = vsel %vm519, %v447, %v488
    %v529 = vsel %vm519, %v448, %v490
    %v530 = vsel %vm519, %v449, %v492
    %v531 = vsel %vm519, %v450, %v494
    %v532 = vsel %vm519, %v451, %v496
    %v533 = vsel %vm519, %v452, %v498
    %v534 = vsel %vm519, %v453, %v500
    %v535 = vsel %vm519, %v454, %v502
    %vm536 = vcmask 64512
    %537 = vst.msk [vmem:[#allocation2] sm:$0xff] %vm536, %v520
    %538 = vst.msk [vmem:[#allocation2 + $0x8] sm:$0xff] %vm536, %v521
    %539 = vst.msk [vmem:[#allocation2 + $0x10] sm:$0xff] %vm536, %v522
    %540 = vst.msk [vmem:[#allocation2 + $0x18] sm:$0xff] %vm536, %v523
    %541 = vst.msk [vmem:[#allocation2 + $0x20] sm:$0xff] %vm536, %v524
    %542 = vst.msk [vmem:[#allocation2 + $0x28] sm:$0xff] %vm536, %v525
    %543 = vst.msk [vmem:[#allocation2 + $0x30] sm:$0xff] %vm536, %v526
    %544 = vst.msk [vmem:[#allocation2 + $0x38] sm:$0xff] %vm536, %v527
    %545 = vst.msk [vmem:[#allocation2 + $0x40] sm:$0xff] %vm536, %v528
    %546 = vst.msk [vmem:[#allocation2 + $0x48] sm:$0xff] %vm536, %v529
    %547 = vst.msk [vmem:[#allocation2 + $0x50] sm:$0xff] %vm536, %v530
    %548 = vst.msk [vmem:[#allocation2 + $0x58] sm:$0xff] %vm536, %v531
    %549 = vst.msk [vmem:[#allocation2 + $0x60] sm:$0xff] %vm536, %v532
    %550 = vst.msk [vmem:[#allocation2 + $0x68] sm:$0xff] %vm536, %v533
    %551 = vst.msk [vmem:[#allocation2 + $0x70] sm:$0xff] %vm536, %v534
    %552 = vst.msk [vmem:[#allocation2 + $0x78] sm:$0xff] %vm536, %v535
    // Predicated region
    $region18: #{stage3_forward.9} parent=1 // pred_check
      _
    $region19: #{stage3_forward.9} parent=1 // pred_check_branch
      %554 = sbr.rel (0) target = $region21
    $region20: #{stage3_forward.9} parent=1 // pred_region
      %556 = vsyncadd [#allocation3], 0
      %s557 = sshll.u32 [#allocation2], 4
      %s558 = int_to_ptr.vmem [resolvable:$true] %s557
      %s559 = sshll.u32 %s4, 4
      %s560 = int_to_ptr.hbm [resolvable:$true] %s559
      %565 = dma.vmem_to_hbm [thread:$0]  %s558, 2048, %s560, [#allocation3], 128, 128, 8
    $region21: #{stage3_forward.9} parent=1 // pred_fallthru
      _
    // Predicated region
    $region22: #{stage3_forward.9} parent=1 // pred_check
      _
    $region23: #{stage3_forward.9} parent=1 // pred_check_branch
      %567 = sbr.rel (0) target = $region25
    $region24: #{stage3_forward.9} parent=1 // pred_region
      %569 = dma.done [#allocation3], 2048
    $region25: #{stage3_forward.9} parent=1 // pred_fallthru
      _
    %570 = vsyncpa [#allocation3], 1

// kernel: stage3_forward.7
$region0: #{stage3_forward.7}
  #allocation0 [shape = 'u32[]', space=smem, size = 0x4, offset = 0x4, fixed_abs, tag = 'smem constant byte address 0x4 - core index']
  #allocation1 [shape = 'u32[72,128]{1,0:T(1,128)}', space=vmem, size = 0x9000, scoped, tag = 'internal scratch']
  #allocation2 [shape = 'bf16[10,8,384]{2,1,0:T(8,128)(2,1)}', space=vmem, size = 0xf000, scoped, tag = 'scratch operand']
  %s0 = inlined_call_operand.vmem [shape: bf16[2,8,8,128], index: 0, kind: input, shape index: {}]
  %s1 = inlined_call_operand.vmem [shape: bf16[128,128], index: 1, kind: input, shape index: {}]
  %s2 = inlined_call_operand.vmem [shape: f32[1,128], index: 2, kind: input, shape index: {}]
  %s3 = inlined_call_operand.vmem [shape: bf16[3,384,128], index: 3, kind: input, shape index: {}]
  %s4 = inlined_call_operand.vmem [shape: f32[1,128], index: 4, kind: input, shape index: {}]
  %s5 = inlined_call_operand.vmem [shape: bf16[2,8,8,128], index: 5, kind: output, shape index: {}]
  %s6 = sld [smem:[#allocation0]]
  $region53: #{stage3_forward.7} parent=0
    _
  %s8 = ssub.s32 1, %s6
  %s9 = scalar_select 0, %s8, %s6
  loop: start=0, step=1, limit=4
  $region2: #{stage3_forward.7} parent=0 // loop_pre_header
    _
  $region3: #{stage3_forward.7} parent=0 // loop_header
    %s11 = sphi 0, %s15
    %p12 = scmp.ge.s32.totalorder %s11, 4
    %s21 = sphi 0, %s23
    %s24 = sphi 0, %s21
    %s25 = sphi 0, %s24
    %s41 = sphi 0, %s25
    %s45 = sphi 0, %s45
    %s47 = sphi 0, %s45
    %s48 = sphi 0, %s47
    %s62 = sphi 0, %s48
    %s66 = sphi 0, %s66
    %s68 = sphi 0, %s66
    %s69 = sphi 0, %s68
    %s83 = sphi 0, %s69
    %s87 = sphi 0, %s87
    %s89 = sphi 0, %s87
    %s90 = sphi 0, %s89
    %s104 = sphi 0, %s90
    %s108 = sphi 0, %s108
    %s110 = sphi 0, %s108
    %s111 = sphi 0, %s110
    %s125 = sphi 0, %s111
    %s131 = sphi 0, %s133
    %s134 = sphi 0, %s131
    %s135 = sphi 0, %s134
    %s151 = sphi 0, %s135
  $region4: #{stage3_forward.7} parent=0 // loop_header_branch
    %14 = sbr.rel (%p12) target = $region8
  $region5: #{stage3_forward.7} parent=0 // loop_body
    %s16 = ssub.s32 %s11, 1
    %s17 = ssub.s32 %s11, 2
    %s18 = sadd.s32 %s11, 1
    %s19 = ssub.s32 %s11, %s18
    %p20 = scmp.eq.s32.totalorder %s19, 0
    %s22 = sadd.s32 %s21, 1
    %s23 = scalar_select %p20, %s21, %s22
    %p26 = pneg %p20
    %p27 = scmp.eq.s32.totalorder %s11, 1
    %p28 = por %p26, %p27
    %p29 = scmp.ne.s32.totalorder %s21, %s24
    %p30 = scmp.eq.s32.totalorder %s11, 0
    %p31 = por %p29, %p30
    %p32 = scmp.ne.s32.totalorder %s21, %s24
    %p33 = scmp.eq.s32.totalorder %s16, 1
    %p34 = por %p32, %p33
    %p35 = scmp.ne.s32.totalorder %s24, %s25
    %p36 = scmp.eq.s32.totalorder %s16, 0
    %p37 = por %p35, %p36
    %p38 = scmp.ne.s32.totalorder %s24, %s25
    %p39 = scmp.eq.s32.totalorder %s17, 1
    %p40 = por %p38, %p39
    %p42 = scmp.ne.s32.totalorder %s25, %s41
    %p43 = scmp.eq.s32.totalorder %s17, 0
    %p44 = por %p42, %p43
    %s46 = sadd.s32 %s45, 1
    %p49 = scmp.eq.s32.totalorder %s11, 1
    %p50 = scmp.ne.s32.totalorder %s45, %s47
    %p51 = scmp.eq.s32.totalorder %s11, 0
    %p52 = por %p50, %p51
    %p53 = scmp.ne.s32.totalorder %s45, %s47
    %p54 = scmp.eq.s32.totalorder %s16, 1
    %p55 = por %p53, %p54
    %p56 = scmp.ne.s32.totalorder %s47, %s48
    %p57 = scmp.eq.s32.totalorder %s16, 0
    %p58 = por %p56, %p57
    %p59 = scmp.ne.s32.totalorder %s47, %s48
    %p60 = scmp.eq.s32.totalorder %s17, 1
    %p61 = por %p59, %p60
    %p63 = scmp.ne.s32.totalorder %s48, %s62
    %p64 = scmp.eq.s32.totalorder %s17, 0
    %p65 = por %p63, %p64
    %s67 = sadd.s32 %s66, 1
    %p70 = scmp.eq.s32.totalorder %s11, 1
    %p71 = scmp.ne.s32.totalorder %s66, %s68
    %p72 = scmp.eq.s32.totalorder %s11, 0
    %p73 = por %p71, %p72
    %p74 = scmp.ne.s32.totalorder %s66, %s68
    %p75 = scmp.eq.s32.totalorder %s16, 1
    %p76 = por %p74, %p75
    %p77 = scmp.ne.s32.totalorder %s68, %s69
    %p78 = scmp.eq.s32.totalorder %s16, 0
    %p79 = por %p77, %p78
    %p80 = scmp.ne.s32.totalorder %s68, %s69
    %p81 = scmp.eq.s32.totalorder %s17, 1
    %p82 = por %p80, %p81
    %p84 = scmp.ne.s32.totalorder %s69, %s83
    %p85 = scmp.eq.s32.totalorder %s17, 0
    %p86 = por %p84, %p85
    %s88 = sadd.s32 %s87, 1
    %p91 = scmp.eq.s32.totalorder %s11, 1
    %p92 = scmp.ne.s32.totalorder %s87, %s89
    %p93 = scmp.eq.s32.totalorder %s11, 0
    %p94 = por %p92, %p93
    %p95 = scmp.ne.s32.totalorder %s87, %s89
    %p96 = scmp.eq.s32.totalorder %s16, 1
    %p97 = por %p95, %p96
    %p98 = scmp.ne.s32.totalorder %s89, %s90
    %p99 = scmp.eq.s32.totalorder %s16, 0
    %p100 = por %p98, %p99
    %p101 = scmp.ne.s32.totalorder %s89, %s90
    %p102 = scmp.eq.s32.totalorder %s17, 1
    %p103 = por %p101, %p102
    %p105 = scmp.ne.s32.totalorder %s90, %s104
    %p106 = scmp.eq.s32.totalorder %s17, 0
    %p107 = por %p105, %p106
    %s109 = sadd.s32 %s108, 1
    %p112 = scmp.eq.s32.totalorder %s11, 1
    %p113 = scmp.ne.s32.totalorder %s108, %s110
    %p114 = scmp.eq.s32.totalorder %s11, 0
    %p115 = por %p113, %p114
    %p116 = scmp.ne.s32.totalorder %s108, %s110
    %p117 = scmp.eq.s32.totalorder %s16, 1
    %p118 = por %p116, %p117
    %p119 = scmp.ne.s32.totalorder %s110, %s111
    %p120 = scmp.eq.s32.totalorder %s16, 0
    %p121 = por %p119, %p120
    %p122 = scmp.ne.s32.totalorder %s110, %s111
    %p123 = scmp.eq.s32.totalorder %s17, 1
    %p124 = por %p122, %p123
    %p126 = scmp.ne.s32.totalorder %s111, %s125
    %p127 = scmp.eq.s32.totalorder %s17, 0
    %p128 = por %p126, %p127
    %s129 = ssub.s32 %s11, %s18
    %p130 = scmp.eq.s32.totalorder %s129, 0
    %s132 = sadd.s32 %s131, 1
    %s133 = scalar_select %p130, %s131, %s132
    %p136 = pneg %p130
    %p137 = scmp.eq.s32.totalorder %s11, 1
    %p138 = por %p136, %p137
    %p139 = scmp.ne.s32.totalorder %s131, %s134
    %p140 = scmp.eq.s32.totalorder %s11, 0
    %p141 = por %p139, %p140
    %p142 = scmp.ne.s32.totalorder %s131, %s134
    %p143 = scmp.eq.s32.totalorder %s16, 1
    %p144 = por %p142, %p143
    %p145 = scmp.ne.s32.totalorder %s134, %s135
    %p146 = scmp.eq.s32.totalorder %s16, 0
    %p147 = por %p145, %p146
    %p148 = scmp.ne.s32.totalorder %s134, %s135
    %p149 = scmp.eq.s32.totalorder %s17, 1
    %p150 = por %p148, %p149
    %p152 = scmp.ne.s32.totalorder %s135, %s151
    %p153 = scmp.eq.s32.totalorder %s17, 0
    %p154 = por %p152, %p153
    %p155 = scmp.le.s32.totalorder 1, %s11
    %p156 = scmp.lt.s32.totalorder %s11, 3
    %p157 = pnand %p155, %p156
    %p158 = pneg %p157
    // Predicated region
    $region9: #{stage3_forward.7} parent=5 // pred_check
      _
    $region10: #{stage3_forward.7} parent=5 // pred_check_branch
      %160 = sbr.rel (%p157) target = $region12
    $region11: #{stage3_forward.7} parent=5 // pred_region
      %s161 = ssub.s32 %s11, 1
      // Predicated region
      $region13: #{stage3_forward.7} parent=11 // pred_check
        %p162 = pneg %p58
      $region14: #{stage3_forward.7} parent=11 // pred_check_branch
        %164 = sbr.rel (%p162) target = $region16
      $region15: #{stage3_forward.7} parent=11 // pred_region
        _
      $region16: #{stage3_forward.7} parent=11 // pred_fallthru
        _
      // Predicated region
      $region17: #{stage3_forward.7} parent=11 // pred_check
        %p165 = pneg %p79
      $region18: #{stage3_forward.7} parent=11 // pred_check_branch
        %167 = sbr.rel (%p165) target = $region20
      $region19: #{stage3_forward.7} parent=11 // pred_region
        _
      $region20: #{stage3_forward.7} parent=11 // pred_fallthru
        _
      // Predicated region
      $region21: #{stage3_forward.7} parent=11 // pred_check
        %p168 = pneg %p100
      $region22: #{stage3_forward.7} parent=11 // pred_check_branch
        %170 = sbr.rel (%p168) target = $region24
      $region23: #{stage3_forward.7} parent=11 // pred_region
        _
      $region24: #{stage3_forward.7} parent=11 // pred_fallthru
        _
      // Predicated region
      $region25: #{stage3_forward.7} parent=11 // pred_check
        %p171 = pneg %p121
      $region26: #{stage3_forward.7} parent=11 // pred_check_branch
        %173 = sbr.rel (%p171) target = $region28
      $region27: #{stage3_forward.7} parent=11 // pred_region
        _
      $region28: #{stage3_forward.7} parent=11 // pred_fallthru
        _
    $region12: #{stage3_forward.7} parent=5 // pred_fallthru
      _
    %p174 = scmp.lt.s32.totalorder %s11, 2
    // Predicated region
    $region29: #{stage3_forward.7} parent=5 // pred_check
      %p175 = pneg %p174
    $region30: #{stage3_forward.7} parent=5 // pred_check_branch
      %177 = sbr.rel (%p175) target = $region32
    $region31: #{stage3_forward.7} parent=5 // pred_region
      // Predicated region
      $region33: #{stage3_forward.7} parent=31 // pred_check
        %p178 = pneg %p31
      $region34: #{stage3_forward.7} parent=31 // pred_check_branch
        %180 = sbr.rel (%p178) target = $region36
      $region35: #{stage3_forward.7} parent=31 // pred_region
        %p181 = scmp.lt.s32.totalorder %s11, 1
        %s182 = scalar_select %p181, %s11, 1
        %s183 = smul.addr %s182, 8
        %s184 = smul.addr %s183, 4
        %s185 = scalar_lea.vmem %s0, %s184
      $region36: #{stage3_forward.7} parent=31 // pred_fallthru
        _
    $region32: #{stage3_forward.7} parent=5 // pred_fallthru
      _
    %p186 = scmp.le.s32.totalorder 1, %s11
    %p187 = scmp.lt.s32.totalorder %s11, 3
    %p188 = pnand %p186, %p187
    %p189 = pneg %p188
    // Predicated region
    $region37: #{stage3_forward.7} parent=5 // pred_check
      _
    $region38: #{stage3_forward.7} parent=5 // pred_check_branch
      %191 = sbr.rel (%p188) target = $region40
    $region39: #{stage3_forward.7} parent=5 // pred_region
      %s192 = ssub.s32 %s11, 1
      %p193 = scmp.lt.s32.totalorder %s16, 1
      %s194 = scalar_select %p193, %s16, 1
      %s195 = smul.addr %s194, 8
      %s196 = smul.addr %s195, 4
      %s197 = scalar_lea.vmem %s0, %s196
      %p198 = pneg %p37
      %p199 = pneg %p34
      %p200 = pneg %p58
      %p201 = pneg %p55
      %p202 = pneg %p79
      %p203 = pneg %p76
      %p204 = pneg %p100
      %p205 = pneg %p97
      %p206 = pneg %p121
      %p207 = pneg %p118
      %p208 = pneg %p147
      %p209 = pneg %p144
      %p210 = scmp.lt.s32.totalorder %s16, 1
      %s211 = scalar_select %p210, %s16, 1
      %s212 = smul.addr %s211, 8
      %s213 = smul.addr %s212, 4
      %s214 = scalar_lea.vmem %s5, %s213
      %p215 = scmp.lt.s32.totalorder %s16, 1
      %s216 = scalar_select %p215, %s16, 1
      %s217 = smul.addr %s216, 8
      %s218 = smul.addr %s217, 4
      %s219 = scalar_lea.vmem %s0, %s218
      %p220 = scmp.lt.s32.totalorder %s16, 1
      %s221 = scalar_select %p220, %s16, 1
      %s222 = smul.addr %s221, 8
      %s223 = smul.addr %s222, 4
      %s224 = scalar_lea.vmem %s5, %s223
      %v226 = vld [vmem:[%s219] sm:$0xf]
      %v227 = vld [vmem:[%s219 + $0x4] sm:$0xf]
      %v228 = vld [vmem:[%s219 + $0x8] sm:$0xf]
      %v229 = vld [vmem:[%s219 + $0xc] sm:$0xf]
      %v230 = vld [vmem:[%s219 + $0x10] sm:$0xf]
      %v231 = vld [vmem:[%s219 + $0x14] sm:$0xf]
      %v232 = vld [vmem:[%s219 + $0x18] sm:$0xf]
      %v233 = vld [vmem:[%s219 + $0x1c] sm:$0xf]
      %v234 = vld [vmem:[%s1] sm:$0xf]
      %v235 = vld [vmem:[%s1 + $0x4] sm:$0xf]
      %v236 = vld [vmem:[%s1 + $0x8] sm:$0xf]
      %v237 = vld [vmem:[%s1 + $0xc] sm:$0xf]
      %v238 = vld [vmem:[%s1 + $0x10] sm:$0xf]
      %v239 = vld [vmem:[%s1 + $0x14] sm:$0xf]
      %v240 = vld [vmem:[%s1 + $0x18] sm:$0xf]
      %v241 = vld [vmem:[%s1 + $0x1c] sm:$0xf]
      %v242 = vld [vmem:[%s1 + $0x20] sm:$0xf]
      %v243 = vld [vmem:[%s1 + $0x24] sm:$0xf]
      %v244 = vld [vmem:[%s1 + $0x28] sm:$0xf]
      %v245 = vld [vmem:[%s1 + $0x2c] sm:$0xf]
      %v246 = vld [vmem:[%s1 + $0x30] sm:$0xf]
      %v247 = vld [vmem:[%s1 + $0x34] sm:$0xf]
      %v248 = vld [vmem:[%s1 + $0x38] sm:$0xf]
      %v249 = vld [vmem:[%s1 + $0x3c] sm:$0xf]
      %v250 = vld [vmem:[%s2] sm:$0x1]
      %v252 = vperm.slane %v250, 0
      %v262 = vunpack.c.l.b16 %v226
      %v263 = vunpack.c.l.b16 %v227
      %v264 = vunpack.c.l.b16 %v228
      %v265 = vunpack.c.l.b16 %v229
      %v266 = vunpack.c.l.b16 %v230
      %v267 = vunpack.c.l.b16 %v231
      %v268 = vunpack.c.l.b16 %v232
      %v269 = vunpack.c.l.b16 %v233
      %v270 = vpack.c.b16 %v263, %v262
      %v271 = vpack.c.b16 %v265, %v264
      %v272 = vpack.c.b16 %v267, %v266
      %v273 = vpack.c.b16 %v269, %v268
      %v294 = vunpack.c.l.b16 %v234
      %v295 = vunpack.c.l.b16 %v235
      %v296 = vunpack.c.l.b16 %v236
      %v297 = vunpack.c.l.b16 %v237
      %v298 = vunpack.c.l.b16 %v238
      %v299 = vunpack.c.l.b16 %v239
      %v300 = vunpack.c.l.b16 %v240
      %v301 = vunpack.c.l.b16 %v241
      %v302 = vunpack.c.l.b16 %v242
      %v303 = vunpack.c.l.b16 %v243
      %v304 = vunpack.c.l.b16 %v244
      %v305 = vunpack.c.l.b16 %v245
      %v306 = vunpack.c.l.b16 %v246
      %v307 = vunpack.c.l.b16 %v247
      %v308 = vunpack.c.l.b16 %v248
      %v309 = vunpack.c.l.b16 %v249
      %v310 = vpack.c.b16 %v295, %v294
      %v311 = vpack.c.b16 %v297, %v296
      %v312 = vpack.c.b16 %v299, %v298
      %v313 = vpack.c.b16 %v301, %v300
      %v314 = vpack.c.b16 %v303, %v302
      %v315 = vpack.c.b16 %v305, %v304
      %v316 = vpack.c.b16 %v307, %v306
      %v317 = vpack.c.b16 %v309, %v308
      %326 = vmatpush.bf16.msra.mxu0 %v317
      %327 = vmatpush.bf16.msra.mxu0 %v316
      %328 = vmatpush.bf16.msra.mxu0 %v315
      %329 = vmatpush.bf16.msra.mxu0 %v314
      %330 = vmatpush.bf16.msra.mxu0 %v313
      %331 = vmatpush.bf16.msra.mxu0 %v312
      %332 = vmatpush.bf16.msra.mxu0 %v311
      %333 = vmatpush.bf16.msra.mxu0 %v310
      %334 = vmatmul.bf16.gmra.mxu0 %v270
      %v335 = vpop.f32.mrf.mxu0
      %v336 = vadd.f32 %v252, %v335
      %v337 = vpop.f32.mrf.mxu0
      %v338 = vadd.f32 %v252, %v337
      %339 = vmatmul.bf16.gmra.mxu0 %v271
      %v340 = vpop.f32.mrf.mxu0
      %v341 = vadd.f32 %v252, %v340
      %v342 = vpop.f32.mrf.mxu0
      %v343 = vadd.f32 %v252, %v342
      %344 = vmatmul.bf16.gmra.mxu0 %v272
      %v345 = vpop.f32.mrf.mxu0
      %v346 = vadd.f32 %v252, %v345
      %v347 = vpop.f32.mrf.mxu0
      %v348 = vadd.f32 %v252, %v347
      %349 = vmatmul.bf16.gmra.mxu0 %v273
      %v350 = vpop.f32.mrf.mxu0
      %v351 = vadd.f32 %v252, %v350
      %v352 = vpop.f32.mrf.mxu0
      %v353 = vadd.f32 %v252, %v352
      %354 = vdwg.mxu0
      %v355 = vmin.f32 %v336, 20.0
      %v356 = vmin.f32 %v338, 20.0
      %v357 = vmin.f32 %v341, 20.0
      %v358 = vmin.f32 %v343, 20.0
      %v359 = vmin.f32 %v346, 20.0
      %v360 = vmin.f32 %v348, 20.0
      %v361 = vmin.f32 %v351, 20.0
      %v362 = vmin.f32 %v353, 20.0
      %v363 = vmul.f32 %v355, 1.442695
      %v364 = vpow.pop %v363
      %v365 = vmul.f32 %v356, 1.442695
      %v366 = vpow.pop %v365
      %v367 = vmul.f32 %v357, 1.442695
      %v368 = vpow.pop %v367
      %v369 = vmul.f32 %v358, 1.442695
      %v370 = vpow.pop %v369
      %v371 = vmul.f32 %v359, 1.442695
      %v372 = vpow.pop %v371
      %v373 = vmul.f32 %v360, 1.442695
      %v374 = vpow.pop %v373
      %v375 = vmul.f32 %v361, 1.442695
      %v376 = vpow.pop %v375
      %v377 = vmul.f32 %v362, 1.442695
      %v378 = vpow.pop %v377
      %v379 = vadd.f32 %v364, 2.0
      %v380 = vadd.f32 %v366, 2.0
      %v381 = vadd.f32 %v368, 2.0
      %v382 = vadd.f32 %v370, 2.0
      %v383 = vadd.f32 %v372, 2.0
      %v384 = vadd.f32 %v374, 2.0
      %v385 = vadd.f32 %v376, 2.0
      %v386 = vadd.f32 %v378, 2.0
      %v387 = vmul.f32 %v364, %v379
      %v388 = vmul.f32 %v366, %v380
      %v389 = vmul.f32 %v368, %v381
      %v390 = vmul.f32 %v370, %v382
      %v391 = vmul.f32 %v372, %v383
      %v392 = vmul.f32 %v374, %v384
      %v393 = vmul.f32 %v376, %v385
      %v394 = vmul.f32 %v378, %v386
      %v395 = vadd.f32 %v387, 2.0
      %v396 = vadd.f32 %v388, 2.0
      %v397 = vadd.f32 %v389, 2.0
      %v398 = vadd.f32 %v390, 2.0
      %v399 = vadd.f32 %v391, 2.0
      %v400 = vadd.f32 %v392, 2.0
      %v401 = vadd.f32 %v393, 2.0
      %v402 = vadd.f32 %v394, 2.0
      %v403 = vrcp.pop %v395
      %v404 = vrcp.pop %v396
      %v405 = vrcp.pop %v397
      %v406 = vrcp.pop %v398
      %v407 = vrcp.pop %v399
      %v408 = vrcp.pop %v400
      %v409 = vrcp.pop %v401
      %v410 = vrcp.pop %v402
      %v411 = vmul.f32 %v395, %v403
      %v412 = vmul.f32 %v396, %v404
      %v413 = vmul.f32 %v397, %v405
      %v414 = vmul.f32 %v398, %v406
      %v415 = vmul.f32 %v399, %v407
      %v416 = vmul.f32 %v400, %v408
      %v417 = vmul.f32 %v401, %v409
      %v418 = vmul.f32 %v402, %v410
      %v419 = vsub.f32 2.0, %v411
      %v420 = vsub.f32 2.0, %v412
      %v421 = vsub.f32 2.0, %v413
      %v422 = vsub.f32 2.0, %v414
      %v423 = vsub.f32 2.0, %v415
      %v424 = vsub.f32 2.0, %v416
      %v425 = vsub.f32 2.0, %v417
      %v426 = vsub.f32 2.0, %v418
      %v427 = vmul.f32 %v403, %v419
      %v428 = vmul.f32 %v404, %v420
      %v429 = vmul.f32 %v405, %v421
      %v430 = vmul.f32 %v406, %v422
      %v431 = vmul.f32 %v407, %v423
      %v432 = vmul.f32 %v408, %v424
      %v433 = vmul.f32 %v409, %v425
      %v434 = vmul.f32 %v410, %v426
      %vm435 = vcmp.gt.f32.partialorder %v336, 20.0
      %vm436 = vcmp.gt.f32.partialorder %v338, 20.0
      %vm437 = vcmp.gt.f32.partialorder %v341, 20.0
      %vm438 = vcmp.gt.f32.partialorder %v343, 20.0
      %vm439 = vcmp.gt.f32.partialorder %v346, 20.0
      %vm440 = vcmp.gt.f32.partialorder %v348, 20.0
      %vm441 = vcmp.gt.f32.partialorder %v351, 20.0
      %vm442 = vcmp.gt.f32.partialorder %v353, 20.0
      %v443 = vmul.f32 %v336, %v387
      %v444 = vmul.f32 %v338, %v388
      %v445 = vmul.f32 %v341, %v389
      %v446 = vmul.f32 %v343, %v390
      %v447 = vmul.f32 %v346, %v391
      %v448 = vmul.f32 %v348, %v392
      %v449 = vmul.f32 %v351, %v393
      %v450 = vmul.f32 %v353, %v394
      %v451 = vmul.f32 %v443, %v427
      %v452 = vmul.f32 %v444, %v428
      %v453 = vmul.f32 %v445, %v429
      %v454 = vmul.f32 %v446, %v430
      %v455 = vmul.f32 %v447, %v431
      %v456 = vmul.f32 %v448, %v432
      %v457 = vmul.f32 %v449, %v433
      %v458 = vmul.f32 %v450, %v434
      %v459 = vsel %vm435, %v336, %v451
      %v460 = vsel %vm436, %v338, %v452
      %v461 = vsel %vm437, %v341, %v453
      %v462 = vsel %vm438, %v343, %v454
      %v463 = vsel %vm439, %v346, %v455
      %v464 = vsel %vm440, %v348, %v456
      %v465 = vsel %vm441, %v351, %v457
      %v466 = vsel %vm442, %v353, %v458
      %v467 = vpack.c.bf16 %v459, %v459
      %v468 = vpack.c.bf16 %v460, %v460
      %v469 = vpack.c.bf16 %v461, %v461
      %v470 = vpack.c.bf16 %v462, %v462
      %v471 = vpack.c.bf16 %v463, %v463
      %v472 = vpack.c.bf16 %v464, %v464
      %v473 = vpack.c.bf16 %v465, %v465
      %v474 = vpack.c.bf16 %v466, %v466
      %475 = vst [vmem:[#allocation2] sm:$0xff] 0
      %476 = vst [vmem:[#allocation2 + $0x8] sm:$0xf] 0
      %s477 = scalar_lea.vmem [#allocation2], 108
      %478 = vst [vmem:[%s477] sm:$0xff] 0
      %479 = vst [vmem:[%s477 + $0x8] sm:$0xf] 0
      %s480 = scalar_lea.vmem [#allocation2], 12
      %vm481 = vcmask 1040384
      %vm482 = vsmask.f32 256
      %vm483 = vmand %vm481, %vm482
      %v484 = vld [vmem:[%s480] sm:$0x1]
      %v485 = vsel %vm483, 0, %v484
      %486 = vst [vmem:[%s480] sm:$0x1] %v485
      %v487 = vld [vmem:[%s480 + $0xc] sm:$0x1]
      %v488 = vsel %vm483, 0, %v487
      %489 = vst [vmem:[%s480 + $0xc] sm:$0x1] %v488
      %v490 = vld [vmem:[%s480 + $0x18] sm:$0x1]
      %v491 = vsel %vm483, 0, %v490
      %492 = vst [vmem:[%s480 + $0x18] sm:$0x1] %v491
      %v493 = vld [vmem:[%s480 + $0x24] sm:$0x1]
      %v494 = vsel %vm483, 0, %v493
      %495 = vst [vmem:[%s480 + $0x24] sm:$0x1] %v494
      %v496 = vld [vmem:[%s480 + $0x30] sm:$0x1]
      %v497 = vsel %vm483, 0, %v496
      %498 = vst [vmem:[%s480 + $0x30] sm:$0x1] %v497
      %v499 = vld [vmem:[%s480 + $0x3c] sm:$0x1]
      %v500 = vsel %vm483, 0, %v499
      %501 = vst [vmem:[%s480 + $0x3c] sm:$0x1] %v500
      %v502 = vld [vmem:[%s480 + $0x48] sm:$0x1]
      %v503 = vsel %vm483, 0, %v502
      %504 = vst [vmem:[%s480 + $0x48] sm:$0x1] %v503
      %v505 = vld [vmem:[%s480 + $0x54] sm:$0x1]
      %v506 = vsel %vm483, 0, %v505
      %507 = vst [vmem:[%s480 + $0x54] sm:$0x1] %v506
      %vm508 = vcmask 1043459
      %vm509 = vsmask.f32 7950
      %vm510 = vmand %vm508, %vm509
      %v511 = vld [vmem:[%s480 + $0x8] sm:$0x8]
      %v512 = vsel %vm510, 0, %v511
      %513 = vst [vmem:[%s480 + $0x8] sm:$0x8] %v512
      %v514 = vld [vmem:[%s480 + $0x14] sm:$0x8]
      %v515 = vsel %vm510, 0, %v514
      %516 = vst [vmem:[%s480 + $0x14] sm:$0x8] %v515
      %v517 = vld [vmem:[%s480 + $0x20] sm:$0x8]
      %v518 = vsel %vm510, 0, %v517
      %519 = vst [vmem:[%s480 + $0x20] sm:$0x8] %v518
      %v520 = vld [vmem:[%s480 + $0x2c] sm:$0x8]
      %v521 = vsel %vm510, 0, %v520
      %522 = vst [vmem:[%s480 + $0x2c] sm:$0x8] %v521
      %v523 = vld [vmem:[%s480 + $0x38] sm:$0x8]
      %v524 = vsel %vm510, 0, %v523
      %525 = vst [vmem:[%s480 + $0x38] sm:$0x8] %v524
      %v526 = vld [vmem:[%s480 + $0x44] sm:$0x8]
      %v527 = vsel %vm510, 0, %v526
      %528 = vst [vmem:[%s480 + $0x44] sm:$0x8] %v527
      %v529 = vld [vmem:[%s480 + $0x50] sm:$0x8]
      %v530 = vsel %vm510, 0, %v529
      %531 = vst [vmem:[%s480 + $0x50] sm:$0x8] %v530
      %v532 = vld [vmem:[%s480 + $0x5c] sm:$0x8]
      %v533 = vsel %vm510, 0, %v532
      %534 = vst [vmem:[%s480 + $0x5c] sm:$0x8] %v533
      %v536 = vshrl.u32 %v467, 16
      %v538 = vrot.slane %v536, 7
      %v539 = vshll.u32 %v467, 16
      %v541 = vor.u32 %v538, %v539
      %v543 = vshrl.u32 %v468, 16
      %v545 = vrot.slane %v543, 7
      %v546 = vshll.u32 %v468, 16
      %v548 = vor.u32 %v545, %v546
      %v550 = vshrl.u32 %v469, 16
      %v552 = vrot.slane %v550, 7
      %v553 = vshll.u32 %v469, 16
      %v555 = vor.u32 %v552, %v553
      %v557 = vshrl.u32 %v470, 16
      %v559 = vrot.slane %v557, 7
      %v560 = vshll.u32 %v470, 16
      %v562 = vor.u32 %v559, %v560
      %v564 = vshrl.u32 %v471, 16
      %v566 = vrot.slane %v564, 7
      %v567 = vshll.u32 %v471, 16
      %v569 = vor.u32 %v566, %v567
      %v571 = vshrl.u32 %v472, 16
      %v573 = vrot.slane %v571, 7
      %v574 = vshll.u32 %v472, 16
      %v576 = vor.u32 %v573, %v574
      %v578 = vshrl.u32 %v473, 16
      %v580 = vrot.slane %v578, 7
      %v581 = vshll.u32 %v473, 16
      %v583 = vor.u32 %v580, %v581
      %v585 = vshrl.u32 %v474, 16
      %v587 = vrot.slane %v585, 7
      %v588 = vshll.u32 %v474, 16
      %v590 = vor.u32 %v587, %v588
      %vm599 = vcmask 1043456
      %vm600 = vsmask.f32 7938
      %vm601 = vmand %vm599, %vm600
      %v602 = vld [vmem:[%s480] sm:$0xf]
      %v603 = vsel %vm601, %v541, %v602
      %604 = vst [vmem:[%s480] sm:$0xf] %v603
      %v605 = vld [vmem:[%s480 + $0xc] sm:$0xf]
      %v606 = vsel %vm601, %v548, %v605
      %607 = vst [vmem:[%s480 + $0xc] sm:$0xf] %v606
      %v608 = vld [vmem:[%s480 + $0x18] sm:$0xf]
      %v609 = vsel %vm601, %v555, %v608
      %610 = vst [vmem:[%s480 + $0x18] sm:$0xf] %v609
      %v611 = vld [vmem:[%s480 + $0x24] sm:$0xf]
      %v612 = vsel %vm601, %v562, %v611
      %613 = vst [vmem:[%s480 + $0x24] sm:$0xf] %v612
      %v614 = vld [vmem:[%s480 + $0x30] sm:$0xf]
      %v615 = vsel %vm601, %v569, %v614
      %616 = vst [vmem:[%s480 + $0x30] sm:$0xf] %v615
      %v617 = vld [vmem:[%s480 + $0x3c] sm:$0xf]
      %v618 = vsel %vm601, %v576, %v617
      %619 = vst [vmem:[%s480 + $0x3c] sm:$0xf] %v618
      %v620 = vld [vmem:[%s480 + $0x48] sm:$0xf]
      %v621 = vsel %vm601, %v583, %v620
      %622 = vst [vmem:[%s480 + $0x48] sm:$0xf] %v621
      %v623 = vld [vmem:[%s480 + $0x54] sm:$0xf]
      %v624 = vsel %vm601, %v590, %v623
      %625 = vst [vmem:[%s480 + $0x54] sm:$0xf] %v624
      %626 = vst [vmem:[%s480 + $0x4] sm:$0xf] %v467
      %627 = vst [vmem:[%s480 + $0x10] sm:$0xf] %v468
      %628 = vst [vmem:[%s480 + $0x1c] sm:$0xf] %v469
      %629 = vst [vmem:[%s480 + $0x28] sm:$0xf] %v470
      %630 = vst [vmem:[%s480 + $0x34] sm:$0xf] %v471
      %631 = vst [vmem:[%s480 + $0x40] sm:$0xf] %v472
      %632 = vst [vmem:[%s480 + $0x4c] sm:$0xf] %v473
      %633 = vst [vmem:[%s480 + $0x58] sm:$0xf] %v474
      %v634 = vrot.slane %v536, 4
      %v635 = vrot.slane %v539, 5
      %v636 = vor.u32 %v634, %v635
      %v637 = vrot.slane %v636, 4
      %v638 = vrot.slane %v543, 4
      %v639 = vrot.slane %v546, 5
      %v640 = vor.u32 %v638, %v639
      %v641 = vrot.slane %v640, 4
      %v642 = vrot.slane %v550, 4
      %v643 = vrot.slane %v553, 5
      %v644 = vor.u32 %v642, %v643
      %v645 = vrot.slane %v644, 4
      %v646 = vrot.slane %v557, 4
      %v647 = vrot.slane %v560, 5
      %v648 = vor.u32 %v646, %v647
      %v649 = vrot.slane %v648, 4
      %v650 = vrot.slane %v564, 4
      %v651 = vrot.slane %v567, 5
      %v652 = vor.u32 %v650, %v651
      %v653 = vrot.slane %v652, 4
      %v654 = vrot.slane %v571, 4
      %v655 = vrot.slane %v574, 5
      %v656 = vor.u32 %v654, %v655
      %v657 = vrot.slane %v656, 4
      %v658 = vrot.slane %v578, 4
      %v659 = vrot.slane %v581, 5
      %v660 = vor.u32 %v658, %v659
      %v661 = vrot.slane %v660, 4
      %v662 = vrot.slane %v585, 4
      %v663 = vrot.slane %v588, 5
      %v664 = vor.u32 %v662, %v663
      %v665 = vrot.slane %v664, 4
      %vm674 = vsmask.f32 3328
      %vm675 = vmand %vm599, %vm674
      %v676 = vld [vmem:[%s480 + $0x8] sm:$0xf]
      %v677 = vsel %vm675, %v637, %v676
      %678 = vst [vmem:[%s480 + $0x8] sm:$0xf] %v677
      %v679 = vld [vmem:[%s480 + $0x14] sm:$0xf]
      %v680 = vsel %vm675, %v641, %v679
      %681 = vst [vmem:[%s480 + $0x14] sm:$0xf] %v680
      %v682 = vld [vmem:[%s480 + $0x20] sm:$0xf]
      %v683 = vsel %vm675, %v645, %v682
      %684 = vst [vmem:[%s480 + $0x20] sm:$0xf] %v683
      %v685 = vld [vmem:[%s480 + $0x2c] sm:$0xf]
      %v686 = vsel %vm675, %v649, %v685
      %687 = vst [vmem:[%s480 + $0x2c] sm:$0xf] %v686
      %v688 = vld [vmem:[%s480 + $0x38] sm:$0xf]
      %v689 = vsel %vm675, %v653, %v688
      %690 = vst [vmem:[%s480 + $0x38] sm:$0xf] %v689
      %v691 = vld [vmem:[%s480 + $0x44] sm:$0xf]
      %v692 = vsel %vm675, %v657, %v691
      %693 = vst [vmem:[%s480 + $0x44] sm:$0xf] %v692
      %v694 = vld [vmem:[%s480 + $0x50] sm:$0xf]
      %v695 = vsel %vm675, %v661, %v694
      %696 = vst [vmem:[%s480 + $0x50] sm:$0xf] %v695
      %v697 = vld [vmem:[%s480 + $0x5c] sm:$0xf]
      %v698 = vsel %vm675, %v665, %v697
      %699 = vst [vmem:[%s480 + $0x5c] sm:$0xf] %v698
      %v700 = vld [vmem:[#allocation2] sm:$0xff]
      %v701 = vld [vmem:[#allocation2 + $0x8] sm:$0xf]
      %v702 = vld [vmem:[#allocation2 + $0xc] sm:$0xff]
      %v703 = vld [vmem:[#allocation2 + $0x14] sm:$0xf]
      %v704 = vld [vmem:[#allocation2 + $0x18] sm:$0xff]
      %v705 = vld [vmem:[#allocation2 + $0x20] sm:$0xf]
      %v706 = vld [vmem:[#allocation2 + $0x24] sm:$0xff]
      %v707 = vld [vmem:[#allocation2 + $0x2c] sm:$0xf]
      %v708 = vld [vmem:[#allocation2 + $0x30] sm:$0xff]
      %v709 = vld [vmem:[#allocation2 + $0x38] sm:$0xf]
      %v710 = vld [vmem:[#allocation2 + $0x3c] sm:$0xff]
      %v711 = vld [vmem:[#allocation2 + $0x44] sm:$0xf]
      %v712 = vld [vmem:[#allocation2 + $0x48] sm:$0xff]
      %v713 = vld [vmem:[#allocation2 + $0x50] sm:$0xf]
      %v714 = vld [vmem:[#allocation2 + $0x54] sm:$0xff]
      %v715 = vld [vmem:[#allocation2 + $0x5c] sm:$0xf]
      %v716 = vld [vmem:[%s3] sm:$0xf]
      %v717 = vld [vmem:[%s3 + $0x4] sm:$0xf]
      %v718 = vld [vmem:[%s3 + $0x8] sm:$0xf]
      %v719 = vld [vmem:[%s3 + $0xc] sm:$0xf]
      %v720 = vld [vmem:[%s3 + $0x10] sm:$0xf]
      %v721 = vld [vmem:[%s3 + $0x14] sm:$0xf]
      %v722 = vld [vmem:[%s3 + $0x18] sm:$0xf]
      %v723 = vld [vmem:[%s3 + $0x1c] sm:$0xf]
      %v724 = vld [vmem:[%s3 + $0x20] sm:$0xf]
      %v725 = vld [vmem:[%s3 + $0x24] sm:$0xf]
      %v726 = vld [vmem:[%s3 + $0x28] sm:$0xf]
      %v727 = vld [vmem:[%s3 + $0x2c] sm:$0xf]
      %v728 = vld [vmem:[%s3 + $0x30] sm:$0xf]
      %v729 = vld [vmem:[%s3 + $0x34] sm:$0xf]
      %v730 = vld [vmem:[%s3 + $0x38] sm:$0xf]
      %v731 = vld [vmem:[%s3 + $0x3c] sm:$0xf]
      %v732 = vld [vmem:[%s3 + $0x40] sm:$0xf]
      %v733 = vld [vmem:[%s3 + $0x44] sm:$0xf]
      %v734 = vld [vmem:[%s3 + $0x48] sm:$0xf]
      %v735 = vld [vmem:[%s3 + $0x4c] sm:$0xf]
      %v736 = vld [vmem:[%s3 + $0x50] sm:$0xf]
      %v737 = vld [vmem:[%s3 + $0x54] sm:$0xf]
      %v738 = vld [vmem:[%s3 + $0x58] sm:$0xf]
      %v739 = vld [vmem:[%s3 + $0x5c] sm:$0xf]
      %v740 = vld [vmem:[%s3 + $0x60] sm:$0xf]
      %v741 = vld [vmem:[%s3 + $0x64] sm:$0xf]
      %v742 = vld [vmem:[%s3 + $0x68] sm:$0xf]
      %v743 = vld [vmem:[%s3 + $0x6c] sm:$0xf]
      %v744 = vld [vmem:[%s3 + $0x70] sm:$0xf]
      %v745 = vld [vmem:[%s3 + $0x74] sm:$0xf]
      %v746 = vld [vmem:[%s3 + $0x78] sm:$0xf]
      %v747 = vld [vmem:[%s3 + $0x7c] sm:$0xf]
      %v748 = vld [vmem:[%s3 + $0x80] sm:$0xf]
      %v749 = vld [vmem:[%s3 + $0x84] sm:$0xf]
      %v750 = vld [vmem:[%s3 + $0x88] sm:$0xf]
      %v751 = vld [vmem:[%s3 + $0x8c] sm:$0xf]
      %v752 = vld [vmem:[%s3 + $0x90] sm:$0xf]
      %v753 = vld [vmem:[%s3 + $0x94] sm:$0xf]
      %v754 = vld [vmem:[%s3 + $0x98] sm:$0xf]
      %v755 = vld [vmem:[%s3 + $0x9c] sm:$0xf]
      %v756 = vld [vmem:[%s3 + $0xa0] sm:$0xf]
      %v757 = vld [vmem:[%s3 + $0xa4] sm:$0xf]
      %v758 = vld [vmem:[%s3 + $0xa8] sm:$0xf]
      %v759 = vld [vmem:[%s3 + $0xac] sm:$0xf]
      %v760 = vld [vmem:[%s3 + $0xb0] sm:$0xf]
      %v761 = vld [vmem:[%s3 + $0xb4] sm:$0xf]
      %v762 = vld [vmem:[%s3 + $0xb8] sm:$0xf]
      %v763 = vld [vmem:[%s3 + $0xbc] sm:$0xf]
      %v764 = vld [vmem:[%s480] sm:$0xff]
      %v765 = vld [vmem:[%s480 + $0x8] sm:$0xf]
      %v766 = vld [vmem:[%s480 + $0xc] sm:$0xff]
      %v767 = vld [vmem:[%s480 + $0x14] sm:$0xf]
      %v768 = vld [vmem:[%s480 + $0x18] sm:$0xff]
      %v769 = vld [vmem:[%s480 + $0x20] sm:$0xf]
      %v770 = vld [vmem:[%s480 + $0x24] sm:$0xff]
      %v771 = vld [vmem:[%s480 + $0x2c] sm:$0xf]
      %v772 = vld [vmem:[%s480 + $0x30] sm:$0xff]
      %v773 = vld [vmem:[%s480 + $0x38] sm:$0xf]
      %v774 = vld [vmem:[%s480 + $0x3c] sm:$0xff]
      %v775 = vld [vmem:[%s480 + $0x44] sm:$0xf]
      %v776 = vld [vmem:[%s480 + $0x48] sm:$0xff]
      %v777 = vld [vmem:[%s480 + $0x50] sm:$0xf]
      %v778 = vld [vmem:[%s480 + $0x54] sm:$0xff]
      %v779 = vld [vmem:[%s480 + $0x5c] sm:$0xf]
      %s780 = scalar_lea.vmem %s3, 192
      %v781 = vld [vmem:[%s780] sm:$0xf]
      %v782 = vld [vmem:[%s780 + $0x4] sm:$0xf]
      %v783 = vld [vmem:[%s780 + $0x8] sm:$0xf]
      %v784 = vld [vmem:[%s780 + $0xc] sm:$0xf]
      %v785 = vld [vmem:[%s780 + $0x10] sm:$0xf]
      %v786 = vld [vmem:[%s780 + $0x14] sm:$0xf]
      %v787 = vld [vmem:[%s780 + $0x18] sm:$0xf]
      %v788 = vld [vmem:[%s780 + $0x1c] sm:$0xf]
      %v789 = vld [vmem:[%s780 + $0x20] sm:$0xf]
      %v790 = vld [vmem:[%s780 + $0x24] sm:$0xf]
      %v791 = vld [vmem:[%s780 + $0x28] sm:$0xf]
      %v792 = vld [vmem:[%s780 + $0x2c] sm:$0xf]
      %v793 = vld [vmem:[%s780 + $0x30] sm:$0xf]
      %v794 = vld [vmem:[%s780 + $0x34] sm:$0xf]
      %v795 = vld [vmem:[%s780 + $0x38] sm:$0xf]
      %v796 = vld [vmem:[%s780 + $0x3c] sm:$0xf]
      %v797 = vld [vmem:[%s780 + $0x40] sm:$0xf]
      %v798 = vld [vmem:[%s780 + $0x44] sm:$0xf]
      %v799 = vld [vmem:[%s780 + $0x48] sm:$0xf]
      %v800 = vld [vmem:[%s780 + $0x4c] sm:$0xf]
      %v801 = vld [vmem:[%s780 + $0x50] sm:$0xf]
      %v802 = vld [vmem:[%s780 + $0x54] sm:$0xf]
      %v803 = vld [vmem:[%s780 + $0x58] sm:$0xf]
      %v804 = vld [vmem:[%s780 + $0x5c] sm:$0xf]
      %v805 = vld [vmem:[%s780 + $0x60] sm:$0xf]
      %v806 = vld [vmem:[%s780 + $0x64] sm:$0xf]
      %v807 = vld [vmem:[%s780 + $0x68] sm:$0xf]
      %v808 = vld [vmem:[%s780 + $0x6c] sm:$0xf]
      %v809 = vld [vmem:[%s780 + $0x70] sm:$0xf]
      %v810 = vld [vmem:[%s780 + $0x74] sm:$0xf]
      %v811 = vld [vmem:[%s780 + $0x78] sm:$0xf]
      %v812 = vld [vmem:[%s780 + $0x7c] sm:$0xf]
      %v813 = vld [vmem:[%s780 + $0x80] sm:$0xf]
      %v814 = vld [vmem:[%s780 + $0x84] sm:$0xf]
      %v815 = vld [vmem:[%s780 + $0x88] sm:$0xf]
      %v816 = vld [vmem:[%s780 + $0x8c] sm:$0xf]
      %v817 = vld [vmem:[%s780 + $0x90] sm:$0xf]
      %v818 = vld [vmem:[%s780 + $0x94] sm:$0xf]
      %v819 = vld [vmem:[%s780 + $0x98] sm:$0xf]
      %v820 = vld [vmem:[%s780 + $0x9c] sm:$0xf]
      %v821 = vld [vmem:[%s780 + $0xa0] sm:$0xf]
      %v822 = vld [vmem:[%s780 + $0xa4] sm:$0xf]
      %v823 = vld [vmem:[%s780 + $0xa8] sm:$0xf]
      %v824 = vld [vmem:[%s780 + $0xac] sm:$0xf]
      %v825 = vld [vmem:[%s780 + $0xb0] sm:$0xf]
      %v826 = vld [vmem:[%s780 + $0xb4] sm:$0xf]
      %v827 = vld [vmem:[%s780 + $0xb8] sm:$0xf]
      %v828 = vld [vmem:[%s780 + $0xbc] sm:$0xf]
      %v845 = vunpack.c.l.b16 %v764
      %v846 = vunpack.c.h.b16 %v764
      %v847 = vunpack.c.l.b16 %v765
      %v848 = vunpack.c.l.b16 %v766
      %v849 = vunpack.c.h.b16 %v766
      %v850 = vunpack.c.l.b16 %v767
      %v851 = vunpack.c.l.b16 %v768
      %v852 = vunpack.c.h.b16 %v768
      %v853 = vunpack.c.l.b16 %v769
      %v854 = vunpack.c.l.b16 %v770
      %v855 = vunpack.c.h.b16 %v770
      %v856 = vunpack.c.l.b16 %v771
      %v857 = vunpack.c.l.b16 %v772
      %v858 = vunpack.c.h.b16 %v772
      %v859 = vunpack.c.l.b16 %v773
      %v860 = vunpack.c.l.b16 %v774
      %v861 = vunpack.c.h.b16 %v774
      %v862 = vunpack.c.l.b16 %v775
      %v863 = vunpack.c.l.b16 %v776
      %v864 = vunpack.c.h.b16 %v776
      %v865 = vunpack.c.l.b16 %v777
      %v866 = vunpack.c.l.b16 %v778
      %v867 = vunpack.c.h.b16 %v778
      %v868 = vunpack.c.l.b16 %v779
      %v869 = vpack.c.b16 %v848, %v845
      %v870 = vpack.c.b16 %v849, %v846
      %v871 = vpack.c.b16 %v850, %v847
      %v872 = vpack.c.b16 %v854, %v851
      %v873 = vpack.c.b16 %v855, %v852
      %v874 = vpack.c.b16 %v856, %v853
      %v875 = vpack.c.b16 %v860, %v857
      %v876 = vpack.c.b16 %v861, %v858
      %v877 = vpack.c.b16 %v862, %v859
      %v878 = vpack.c.b16 %v866, %v863
      %v879 = vpack.c.b16 %v867, %v864
      %v880 = vpack.c.b16 %v868, %v865
      %v941 = vunpack.c.l.b16 %v781
      %v942 = vunpack.c.l.b16 %v782
      %v943 = vunpack.c.l.b16 %v783
      %v944 = vunpack.c.l.b16 %v784
      %v945 = vunpack.c.l.b16 %v785
      %v946 = vunpack.c.l.b16 %v786
      %v947 = vunpack.c.l.b16 %v787
      %v948 = vunpack.c.l.b16 %v788
      %v949 = vunpack.c.l.b16 %v789
      %v950 = vunpack.c.l.b16 %v790
      %v951 = vunpack.c.l.b16 %v791
      %v952 = vunpack.c.l.b16 %v792
      %v953 = vunpack.c.l.b16 %v793
      %v954 = vunpack.c.l.b16 %v794
      %v955 = vunpack.c.l.b16 %v795
      %v956 = vunpack.c.l.b16 %v796
      %v957 = vunpack.c.l.b16 %v797
      %v958 = vunpack.c.l.b16 %v798
      %v959 = vunpack.c.l.b16 %v799
      %v960 = vunpack.c.l.b16 %v800
      %v961 = vunpack.c.l.b16 %v801
      %v962 = vunpack.c.l.b16 %v802
      %v963 = vunpack.c.l.b16 %v803
      %v964 = vunpack.c.l.b16 %v804
      %v965 = vunpack.c.l.b16 %v805
      %v966 = vunpack.c.l.b16 %v806
      %v967 = vunpack.c.l.b16 %v807
      %v968 = vunpack.c.l.b16 %v808
      %v969 = vunpack.c.l.b16 %v809
      %v970 = vunpack.c.l.b16 %v810
      %v971 = vunpack.c.l.b16 %v811
      %v972 = vunpack.c.l.b16 %v812
      %v973 = vunpack.c.l.b16 %v813
      %v974 = vunpack.c.l.b16 %v814
      %v975 = vunpack.c.l.b16 %v815
      %v976 = vunpack.c.l.b16 %v816
      %v977 = vunpack.c.l.b16 %v817
      %v978 = vunpack.c.l.b16 %v818
      %v979 = vunpack.c.l.b16 %v819
      %v980 = vunpack.c.l.b16 %v820
      %v981 = vunpack.c.l.b16 %v821
      %v982 = vunpack.c.l.b16 %v822
      %v983 = vunpack.c.l.b16 %v823
      %v984 = vunpack.c.l.b16 %v824
      %v985 = vunpack.c.l.b16 %v825
      %v986 = vunpack.c.l.b16 %v826
      %v987 = vunpack.c.l.b16 %v827
      %v988 = vunpack.c.l.b16 %v828
      %v989 = vpack.c.b16 %v942, %v941
      %v990 = vpack.c.b16 %v944, %v943
      %v991 = vpack.c.b16 %v946, %v945
      %v992 = vpack.c.b16 %v948, %v947
      %v993 = vpack.c.b16 %v950, %v949
      %v994 = vpack.c.b16 %v952, %v951
      %v995 = vpack.c.b16 %v954, %v953
      %v996 = vpack.c.b16 %v956, %v955
      %v997 = vpack.c.b16 %v958, %v957
      %v998 = vpack.c.b16 %v960, %v959
      %v999 = vpack.c.b16 %v962, %v961
      %v1000 = vpack.c.b16 %v964, %v963
      %v1001 = vpack.c.b16 %v966, %v965
      %v1002 = vpack.c.b16 %v968, %v967
      %v1003 = vpack.c.b16 %v970, %v969
      %v1004 = vpack.c.b16 %v972, %v971
      %v1005 = vpack.c.b16 %v974, %v973
      %v1006 = vpack.c.b16 %v976, %v975
      %v1007 = vpack.c.b16 %v978, %v977
      %v1008 = vpack.c.b16 %v980, %v979
      %v1009 = vpack.c.b16 %v982, %v981
      %v1010 = vpack.c.b16 %v984, %v983
      %v1011 = vpack.c.b16 %v986, %v985
      %v1012 = vpack.c.b16 %v988, %v987
      %1037 = vmatpush.bf16.msra.mxu0 %v996
      %1038 = vmatpush.bf16.msra.mxu0 %v995
      %1039 = vmatpush.bf16.msra.mxu0 %v994
      %1040 = vmatpush.bf16.msra.mxu0 %v993
      %1041 = vmatpush.bf16.msra.mxu0 %v992
      %1042 = vmatpush.bf16.msra.mxu0 %v991
      %1043 = vmatpush.bf16.msra.mxu0 %v990
      %1044 = vmatpush.bf16.msra.mxu0 %v989
      %1045 = vmatmul.bf16.gmra.mxu0 %v869
      %v1046 = vpop.f32.mrf.mxu0
      %v1047 = vadd.f32 0.0, %v1046
      %v1048 = vpop.f32.mrf.mxu0
      %v1049 = vadd.f32 0.0, %v1048
      %1050 = vmatmul.bf16.gmra.mxu0 %v872
      %v1051 = vpop.f32.mrf.mxu0
      %v1052 = vadd.f32 0.0, %v1051
      %v1053 = vpop.f32.mrf.mxu0
      %v1054 = vadd.f32 0.0, %v1053
      %1055 = vmatmul.bf16.gmra.mxu0 %v875
      %v1056 = vpop.f32.mrf.mxu0
      %v1057 = vadd.f32 0.0, %v1056
      %v1058 = vpop.f32.mrf.mxu0
      %v1059 = vadd.f32 0.0, %v1058
      %1060 = vmatmul.bf16.gmra.mxu0 %v878
      %v1061 = vpop.f32.mrf.mxu0
      %v1062 = vadd.f32 0.0, %v1061
      %v1063 = vpop.f32.mrf.mxu0
      %v1064 = vadd.f32 0.0, %v1063
      %1065 = vdwg.mxu0
      %1066 = vmatpush.bf16.msra.mxu0 %v1004
      %1067 = vmatpush.bf16.msra.mxu0 %v1003
      %1068 = vmatpush.bf16.msra.mxu0 %v1002
      %1069 = vmatpush.bf16.msra.mxu0 %v1001
      %1070 = vmatpush.bf16.msra.mxu0 %v1000
      %1071 = vmatpush.bf16.msra.mxu0 %v999
      %1072 = vmatpush.bf16.msra.mxu0 %v998
      %1073 = vmatpush.bf16.msra.mxu0 %v997
      %1074 = vmatmul.bf16.gmra.mxu0 %v870
      %v1075 = vpop.f32.mrf.mxu0
      %v1076 = vadd.f32 %v1047, %v1075
      %v1077 = vpop.f32.mrf.mxu0
      %v1078 = vadd.f32 %v1049, %v1077
      %1079 = vmatmul.bf16.gmra.mxu0 %v873
      %v1080 = vpop.f32.mrf.mxu0
      %v1081 = vadd.f32 %v1052, %v1080
      %v1082 = vpop.f32.mrf.mxu0
      %v1083 = vadd.f32 %v1054, %v1082
      %1084 = vmatmul.bf16.gmra.mxu0 %v876
      %v1085 = vpop.f32.mrf.mxu0
      %v1086 = vadd.f32 %v1057, %v1085
      %v1087 = vpop.f32.mrf.mxu0
      %v1088 = vadd.f32 %v1059, %v1087
      %1089 = vmatmul.bf16.gmra.mxu0 %v879
      %v1090 = vpop.f32.mrf.mxu0
      %v1091 = vadd.f32 %v1062, %v1090
      %v1092 = vpop.f32.mrf.mxu0
      %v1093 = vadd.f32 %v1064, %v1092
      %1094 = vdwg.mxu0
      %1095 = vmatpush.bf16.msra.mxu0 %v1012
      %1096 = vmatpush.bf16.msra.mxu0 %v1011
      %1097 = vmatpush.bf16.msra.mxu0 %v1010
      %1098 = vmatpush.bf16.msra.mxu0 %v1009
      %1099 = vmatpush.bf16.msra.mxu0 %v1008
      %1100 = vmatpush.bf16.msra.mxu0 %v1007
      %1101 = vmatpush.bf16.msra.mxu0 %v1006
      %1102 = vmatpush.bf16.msra.mxu0 %v1005
      %1103 = vmatmul.bf16.gmra.mxu0 %v871
      %v1104 = vpop.f32.mrf.mxu0
      %v1105 = vadd.f32 %v1076, %v1104
      %v1106 = vpop.f32.mrf.mxu0
      %v1107 = vadd.f32 %v1078, %v1106
      %1108 = vmatmul.bf16.gmra.mxu0 %v874
      %v1109 = vpop.f32.mrf.mxu0
      %v1110 = vadd.f32 %v1081, %v1109
      %v1111 = vpop.f32.mrf.mxu0
      %v1112 = vadd.f32 %v1083, %v1111
      %1113 = vmatmul.bf16.gmra.mxu0 %v877
      %v1114 = vpop.f32.mrf.mxu0
      %v1115 = vadd.f32 %v1086, %v1114
      %v1116 = vpop.f32.mrf.mxu0
      %v1117 = vadd.f32 %v1088, %v1116
      %1118 = vmatmul.bf16.gmra.mxu0 %v880
      %v1119 = vpop.f32.mrf.mxu0
      %v1120 = vadd.f32 %v1091, %v1119
      %v1121 = vpop.f32.mrf.mxu0
      %v1122 = vadd.f32 %v1093, %v1121
      %1123 = vdwg.mxu0
      %v1140 = vunpack.c.l.b16 %v700
      %v1141 = vunpack.c.h.b16 %v700
      %v1142 = vunpack.c.l.b16 %v701
      %v1143 = vunpack.c.l.b16 %v702
      %v1144 = vunpack.c.h.b16 %v702
      %v1145 = vunpack.c.l.b16 %v703
      %v1146 = vunpack.c.l.b16 %v704
      %v1147 = vunpack.c.h.b16 %v704
      %v1148 = vunpack.c.l.b16 %v705
      %v1149 = vunpack.c.l.b16 %v706
      %v1150 = vunpack.c.h.b16 %v706
      %v1151 = vunpack.c.l.b16 %v707
      %v1152 = vunpack.c.l.b16 %v708
      %v1153 = vunpack.c.h.b16 %v708
      %v1154 = vunpack.c.l.b16 %v709
      %v1155 = vunpack.c.l.b16 %v710
      %v1156 = vunpack.c.h.b16 %v710
      %v1157 = vunpack.c.l.b16 %v711
      %v1158 = vunpack.c.l.b16 %v712
      %v1159 = vunpack.c.h.b16 %v712
      %v1160 = vunpack.c.l.b16 %v713
      %v1161 = vunpack.c.l.b16 %v714
      %v1162 = vunpack.c.h.b16 %v714
      %v1163 = vunpack.c.l.b16 %v715
      %v1164 = vpack.c.b16 %v1143, %v1140
      %v1165 = vpack.c.b16 %v1144, %v1141
      %v1166 = vpack.c.b16 %v1145, %v1142
      %v1167 = vpack.c.b16 %v1149, %v1146
      %v1168 = vpack.c.b16 %v1150, %v1147
      %v1169 = vpack.c.b16 %v1151, %v1148
      %v1170 = vpack.c.b16 %v1155, %v1152
      %v1171 = vpack.c.b16 %v1156, %v1153
      %v1172 = vpack.c.b16 %v1157, %v1154
      %v1173 = vpack.c.b16 %v1161, %v1158
      %v1174 = vpack.c.b16 %v1162, %v1159
      %v1175 = vpack.c.b16 %v1163, %v1160
      %v1236 = vunpack.c.l.b16 %v716
      %v1237 = vunpack.c.l.b16 %v717
      %v1238 = vunpack.c.l.b16 %v718
      %v1239 = vunpack.c.l.b16 %v719
      %v1240 = vunpack.c.l.b16 %v720
      %v1241 = vunpack.c.l.b16 %v721
      %v1242 = vunpack.c.l.b16 %v722
      %v1243 = vunpack.c.l.b16 %v723
      %v1244 = vunpack.c.l.b16 %v724
      %v1245 = vunpack.c.l.b16 %v725
      %v1246 = vunpack.c.l.b16 %v726
      %v1247 = vunpack.c.l.b16 %v727
      %v1248 = vunpack.c.l.b16 %v728
      %v1249 = vunpack.c.l.b16 %v729
      %v1250 = vunpack.c.l.b16 %v730
      %v1251 = vunpack.c.l.b16 %v731
      %v1252 = vunpack.c.l.b16 %v732
      %v1253 = vunpack.c.l.b16 %v733
      %v1254 = vunpack.c.l.b16 %v734
      %v1255 = vunpack.c.l.b16 %v735
      %v1256 = vunpack.c.l.b16 %v736
      %v1257 = vunpack.c.l.b16 %v737
      %v1258 = vunpack.c.l.b16 %v738
      %v1259 = vunpack.c.l.b16 %v739
      %v1260 = vunpack.c.l.b16 %v740
      %v1261 = vunpack.c.l.b16 %v741
      %v1262 = vunpack.c.l.b16 %v742
      %v1263 = vunpack.c.l.b16 %v743
      %v1264 = vunpack.c.l.b16 %v744
      %v1265 = vunpack.c.l.b16 %v745
      %v1266 = vunpack.c.l.b16 %v746
      %v1267 = vunpack.c.l.b16 %v747
      %v1268 = vunpack.c.l.b16 %v748
      %v1269 = vunpack.c.l.b16 %v749
      %v1270 = vunpack.c.l.b16 %v750
      %v1271 = vunpack.c.l.b16 %v751
      %v1272 = vunpack.c.l.b16 %v752
      %v1273 = vunpack.c.l.b16 %v753
      %v1274 = vunpack.c.l.b16 %v754
      %v1275 = vunpack.c.l.b16 %v755
      %v1276 = vunpack.c.l.b16 %v756
      %v1277 = vunpack.c.l.b16 %v757
      %v1278 = vunpack.c.l.b16 %v758
      %v1279 = vunpack.c.l.b16 %v759
      %v1280 = vunpack.c.l.b16 %v760
      %v1281 = vunpack.c.l.b16 %v761
      %v1282 = vunpack.c.l.b16 %v762
      %v1283 = vunpack.c.l.b16 %v763
      %v1284 = vpack.c.b16 %v1237, %v1236
      %v1285 = vpack.c.b16 %v1239, %v1238
      %v1286 = vpack.c.b16 %v1241, %v1240
      %v1287 = vpack.c.b16 %v1243, %v1242
      %v1288 = vpack.c.b16 %v1245, %v1244
      %v1289 = vpack.c.b16 %v1247, %v1246
      %v1290 = vpack.c.b16 %v1249, %v1248
      %v1291 = vpack.c.b16 %v1251, %v1250
      %v1292 = vpack.c.b16 %v1253, %v1252
      %v1293 = vpack.c.b16 %v1255, %v1254
      %v1294 = vpack.c.b16 %v1257, %v1256
      %v1295 = vpack.c.b16 %v1259, %v1258
      %v1296 = vpack.c.b16 %v1261, %v1260
      %v1297 = vpack.c.b16 %v1263, %v1262
      %v1298 = vpack.c.b16 %v1265, %v1264
      %v1299 = vpack.c.b16 %v1267, %v1266
      %v1300 = vpack.c.b16 %v1269, %v1268
      %v1301 = vpack.c.b16 %v1271, %v1270
      %v1302 = vpack.c.b16 %v1273, %v1272
      %v1303 = vpack.c.b16 %v1275, %v1274
      %v1304 = vpack.c.b16 %v1277, %v1276
      %v1305 = vpack.c.b16 %v1279, %v1278
      %v1306 = vpack.c.b16 %v1281, %v1280
      %v1307 = vpack.c.b16 %v1283, %v1282
      %1332 = vmatpush.bf16.msra.mxu0 %v1291
      %1333 = vmatpush.bf16.msra.mxu0 %v1290
      %1334 = vmatpush.bf16.msra.mxu0 %v1289
      %1335 = vmatpush.bf16.msra.mxu0 %v1288
      %1336 = vmatpush.bf16.msra.mxu0 %v1287
      %1337 = vmatpush.bf16.msra.mxu0 %v1286
      %1338 = vmatpush.bf16.msra.mxu0 %v1285
      %1339 = vmatpush.bf16.msra.mxu0 %v1284
      %1340 = vmatmul.bf16.gmra.mxu0 %v1164
      %v1341 = vpop.f32.mrf.mxu0
      %v1342 = vadd.f32 %v1105, %v1341
      %v1343 = vpop.f32.mrf.mxu0
      %v1344 = vadd.f32 %v1107, %v1343
      %1345 = vmatmul.bf16.gmra.mxu0 %v1167
      %v1346 = vpop.f32.mrf.mxu0
      %v1347 = vadd.f32 %v1110, %v1346
      %v1348 = vpop.f32.mrf.mxu0
      %v1349 = vadd.f32 %v1112, %v1348
      %1350 = vmatmul.bf16.gmra.mxu0 %v1170
      %v1351 = vpop.f32.mrf.mxu0
      %v1352 = vadd.f32 %v1115, %v1351
      %v1353 = vpop.f32.mrf.mxu0
      %v1354 = vadd.f32 %v1117, %v1353
      %1355 = vmatmul.bf16.gmra.mxu0 %v1173
      %v1356 = vpop.f32.mrf.mxu0
      %v1357 = vadd.f32 %v1120, %v1356
      %v1358 = vpop.f32.mrf.mxu0
      %v1359 = vadd.f32 %v1122, %v1358
      %1360 = vdwg.mxu0
      %1361 = vmatpush.bf16.msra.mxu0 %v1299
      %1362 = vmatpush.bf16.msra.mxu0 %v1298
      %1363 = vmatpush.bf16.msra.mxu0 %v1297
      %1364 = vmatpush.bf16.msra.mxu0 %v1296
      %1365 = vmatpush.bf16.msra.mxu0 %v1295
      %1366 = vmatpush.bf16.msra.mxu0 %v1294
      %1367 = vmatpush.bf16.msra.mxu0 %v1293
      %1368 = vmatpush.bf16.msra.mxu0 %v1292
      %1369 = vmatmul.bf16.gmra.mxu0 %v1165
      %v1370 = vpop.f32.mrf.mxu0
      %v1371 = vadd.f32 %v1342, %v1370
      %v1372 = vpop.f32.mrf.mxu0
      %v1373 = vadd.f32 %v1344, %v1372
      %1374 = vmatmul.bf16.gmra.mxu0 %v1168
      %v1375 = vpop.f32.mrf.mxu0
      %v1376 = vadd.f32 %v1347, %v1375
      %v1377 = vpop.f32.mrf.mxu0
      %v1378 = vadd.f32 %v1349, %v1377
      %1379 = vmatmul.bf16.gmra.mxu0 %v1171
      %v1380 = vpop.f32.mrf.mxu0
      %v1381 = vadd.f32 %v1352, %v1380
      %v1382 = vpop.f32.mrf.mxu0
      %v1383 = vadd.f32 %v1354, %v1382
      %1384 = vmatmul.bf16.gmra.mxu0 %v1174
      %v1385 = vpop.f32.mrf.mxu0
      %v1386 = vadd.f32 %v1357, %v1385
      %v1387 = vpop.f32.mrf.mxu0
      %v1388 = vadd.f32 %v1359, %v1387
      %1389 = vdwg.mxu0
      %1390 = vmatpush.bf16.msra.mxu0 %v1307
      %1391 = vmatpush.bf16.msra.mxu0 %v1306
      %1392 = vmatpush.bf16.msra.mxu0 %v1305
      %1393 = vmatpush.bf16.msra.mxu0 %v1304
      %1394 = vmatpush.bf16.msra.mxu0 %v1303
      %1395 = vmatpush.bf16.msra.mxu0 %v1302
      %1396 = vmatpush.bf16.msra.mxu0 %v1301
      %1397 = vmatpush.bf16.msra.mxu0 %v1300
      %1398 = vmatmul.bf16.gmra.mxu0 %v1166
      %v1399 = vpop.f32.mrf.mxu0
      %v1400 = vadd.f32 %v1371, %v1399
      %v1401 = vpop.f32.mrf.mxu0
      %v1402 = vadd.f32 %v1373, %v1401
      %1403 = vmatmul.bf16.gmra.mxu0 %v1169
      %v1404 = vpop.f32.mrf.mxu0
      %v1405 = vadd.f32 %v1376, %v1404
      %v1406 = vpop.f32.mrf.mxu0
      %v1407 = vadd.f32 %v1378, %v1406
      %1408 = vmatmul.bf16.gmra.mxu0 %v1172
      %v1409 = vpop.f32.mrf.mxu0
      %v1410 = vadd.f32 %v1381, %v1409
      %v1411 = vpop.f32.mrf.mxu0
      %v1412 = vadd.f32 %v1383, %v1411
      %1413 = vmatmul.bf16.gmra.mxu0 %v1175
      %v1414 = vpop.f32.mrf.mxu0
      %v1415 = vadd.f32 %v1386, %v1414
      %v1416 = vpop.f32.mrf.mxu0
      %v1417 = vadd.f32 %v1388, %v1416
      %1418 = vdwg.mxu0
      %s1419 = scalar_lea.vmem [#allocation2], 24
      %v1420 = vld [vmem:[%s1419] sm:$0xff]
      %v1421 = vld [vmem:[%s1419 + $0x8] sm:$0xf]
      %v1422 = vld [vmem:[%s1419 + $0xc] sm:$0xff]
      %v1423 = vld [vmem:[%s1419 + $0x14] sm:$0xf]
      %v1424 = vld [vmem:[%s1419 + $0x18] sm:$0xff]
      %v1425 = vld [vmem:[%s1419 + $0x20] sm:$0xf]
      %v1426 = vld [vmem:[%s1419 + $0x24] sm:$0xff]
      %v1427 = vld [vmem:[%s1419 + $0x2c] sm:$0xf]
      %v1428 = vld [vmem:[%s1419 + $0x30] sm:$0xff]
      %v1429 = vld [vmem:[%s1419 + $0x38] sm:$0xf]
      %v1430 = vld [vmem:[%s1419 + $0x3c] sm:$0xff]
      %v1431 = vld [vmem:[%s1419 + $0x44] sm:$0xf]
      %v1432 = vld [vmem:[%s1419 + $0x48] sm:$0xff]
      %v1433 = vld [vmem:[%s1419 + $0x50] sm:$0xf]
      %v1434 = vld [vmem:[%s1419 + $0x54] sm:$0xff]
      %v1435 = vld [vmem:[%s1419 + $0x5c] sm:$0xf]
      %s1436 = scalar_lea.vmem %s3, 384
      %v1437 = vld [vmem:[%s1436] sm:$0xf]
      %v1438 = vld [vmem:[%s1436 + $0x4] sm:$0xf]
      %v1439 = vld [vmem:[%s1436 + $0x8] sm:$0xf]
      %v1440 = vld [vmem:[%s1436 + $0xc] sm:$0xf]
      %v1441 = vld [vmem:[%s1436 + $0x10] sm:$0xf]
      %v1442 = vld [vmem:[%s1436 + $0x14] sm:$0xf]
      %v1443 = vld [vmem:[%s1436 + $0x18] sm:$0xf]
      %v1444 = vld [vmem:[%s1436 + $0x1c] sm:$0xf]
      %v1445 = vld [vmem:[%s1436 + $0x20] sm:$0xf]
      %v1446 = vld [vmem:[%s1436 + $0x24] sm:$0xf]
      %v1447 = vld [vmem:[%s1436 + $0x28] sm:$0xf]
      %v1448 = vld [vmem:[%s1436 + $0x2c] sm:$0xf]
      %v1449 = vld [vmem:[%s1436 + $0x30] sm:$0xf]
      %v1450 = vld [vmem:[%s1436 + $0x34] sm:$0xf]
      %v1451 = vld [vmem:[%s1436 + $0x38] sm:$0xf]
      %v1452 = vld [vmem:[%s1436 + $0x3c] sm:$0xf]
      %v1453 = vld [vmem:[%s1436 + $0x40] sm:$0xf]
      %v1454 = vld [vmem:[%s1436 + $0x44] sm:$0xf]
      %v1455 = vld [vmem:[%s1436 + $0x48] sm:$0xf]
      %v1456 = vld [vmem:[%s1436 + $0x4c] sm:$0xf]
      %v1457 = vld [vmem:[%s1436 + $0x50] sm:$0xf]
      %v1458 = vld [vmem:[%s1436 + $0x54] sm:$0xf]
      %v1459 = vld [vmem:[%s1436 + $0x58] sm:$0xf]
      %v1460 = vld [vmem:[%s1436 + $0x5c] sm:$0xf]
      %v1461 = vld [vmem:[%s1436 + $0x60] sm:$0xf]
      %v1462 = vld [vmem:[%s1436 + $0x64] sm:$0xf]
      %v1463 = vld [vmem:[%s1436 + $0x68] sm:$0xf]
      %v1464 = vld [vmem:[%s1436 + $0x6c] sm:$0xf]
      %v1465 = vld [vmem:[%s1436 + $0x70] sm:$0xf]
      %v1466 = vld [vmem:[%s1436 + $0x74] sm:$0xf]
      %v1467 = vld [vmem:[%s1436 + $0x78] sm:$0xf]
      %v1468 = vld [vmem:[%s1436 + $0x7c] sm:$0xf]
      %v1469 = vld [vmem:[%s1436 + $0x80] sm:$0xf]
      %v1470 = vld [vmem:[%s1436 + $0x84] sm:$0xf]
      %v1471 = vld [vmem:[%s1436 + $0x88] sm:$0xf]
      %v1472 = vld [vmem:[%s1436 + $0x8c] sm:$0xf]
      %v1473 = vld [vmem:[%s1436 + $0x90] sm:$0xf]
      %v1474 = vld [vmem:[%s1436 + $0x94] sm:$0xf]
      %v1475 = vld [vmem:[%s1436 + $0x98] sm:$0xf]
      %v1476 = vld [vmem:[%s1436 + $0x9c] sm:$0xf]
      %v1477 = vld [vmem:[%s1436 + $0xa0] sm:$0xf]
      %v1478 = vld [vmem:[%s1436 + $0xa4] sm:$0xf]
      %v1479 = vld [vmem:[%s1436 + $0xa8] sm:$0xf]
      %v1480 = vld [vmem:[%s1436 + $0xac] sm:$0xf]
      %v1481 = vld [vmem:[%s1436 + $0xb0] sm:$0xf]
      %v1482 = vld [vmem:[%s1436 + $0xb4] sm:$0xf]
      %v1483 = vld [vmem:[%s1436 + $0xb8] sm:$0xf]
      %v1484 = vld [vmem:[%s1436 + $0xbc] sm:$0xf]
      %v1501 = vunpack.c.l.b16 %v1420
      %v1502 = vunpack.c.h.b16 %v1420
      %v1503 = vunpack.c.l.b16 %v1421
      %v1504 = vunpack.c.l.b16 %v1422
      %v1505 = vunpack.c.h.b16 %v1422
      %v1506 = vunpack.c.l.b16 %v1423
      %v1507 = vunpack.c.l.b16 %v1424
      %v1508 = vunpack.c.h.b16 %v1424
      %v1509 = vunpack.c.l.b16 %v1425
      %v1510 = vunpack.c.l.b16 %v1426
      %v1511 = vunpack.c.h.b16 %v1426
      %v1512 = vunpack.c.l.b16 %v1427
      %v1513 = vunpack.c.l.b16 %v1428
      %v1514 = vunpack.c.h.b16 %v1428
      %v1515 = vunpack.c.l.b16 %v1429
      %v1516 = vunpack.c.l.b16 %v1430
      %v1517 = vunpack.c.h.b16 %v1430
      %v1518 = vunpack.c.l.b16 %v1431
      %v1519 = vunpack.c.l.b16 %v1432
      %v1520 = vunpack.c.h.b16 %v1432
      %v1521 = vunpack.c.l.b16 %v1433
      %v1522 = vunpack.c.l.b16 %v1434
      %v1523 = vunpack.c.h.b16 %v1434
      %v1524 = vunpack.c.l.b16 %v1435
      %v1525 = vpack.c.b16 %v1504, %v1501
      %v1526 = vpack.c.b16 %v1505, %v1502
      %v1527 = vpack.c.b16 %v1506, %v1503
      %v1528 = vpack.c.b16 %v1510, %v1507
      %v1529 = vpack.c.b16 %v1511, %v1508
      %v1530 = vpack.c.b16 %v1512, %v1509
      %v1531 = vpack.c.b16 %v1516, %v1513
      %v1532 = vpack.c.b16 %v1517, %v1514
      %v1533 = vpack.c.b16 %v1518, %v1515
      %v1534 = vpack.c.b16 %v1522, %v1519
      %v1535 = vpack.c.b16 %v1523, %v1520
      %v1536 = vpack.c.b16 %v1524, %v1521
      %v1597 = vunpack.c.l.b16 %v1437
      %v1598 = vunpack.c.l.b16 %v1438
      %v1599 = vunpack.c.l.b16 %v1439
      %v1600 = vunpack.c.l.b16 %v1440
      %v1601 = vunpack.c.l.b16 %v1441
      %v1602 = vunpack.c.l.b16 %v1442
      %v1603 = vunpack.c.l.b16 %v1443
      %v1604 = vunpack.c.l.b16 %v1444
      %v1605 = vunpack.c.l.b16 %v1445
      %v1606 = vunpack.c.l.b16 %v1446
      %v1607 = vunpack.c.l.b16 %v1447
      %v1608 = vunpack.c.l.b16 %v1448
      %v1609 = vunpack.c.l.b16 %v1449
      %v1610 = vunpack.c.l.b16 %v1450
      %v1611 = vunpack.c.l.b16 %v1451
      %v1612 = vunpack.c.l.b16 %v1452
      %v1613 = vunpack.c.l.b16 %v1453
      %v1614 = vunpack.c.l.b16 %v1454
      %v1615 = vunpack.c.l.b16 %v1455
      %v1616 = vunpack.c.l.b16 %v1456
      %v1617 = vunpack.c.l.b16 %v1457
      %v1618 = vunpack.c.l.b16 %v1458
      %v1619 = vunpack.c.l.b16 %v1459
      %v1620 = vunpack.c.l.b16 %v1460
      %v1621 = vunpack.c.l.b16 %v1461
      %v1622 = vunpack.c.l.b16 %v1462
      %v1623 = vunpack.c.l.b16 %v1463
      %v1624 = vunpack.c.l.b16 %v1464
      %v1625 = vunpack.c.l.b16 %v1465
      %v1626 = vunpack.c.l.b16 %v1466
      %v1627 = vunpack.c.l.b16 %v1467
      %v1628 = vunpack.c.l.b16 %v1468
      %v1629 = vunpack.c.l.b16 %v1469
      %v1630 = vunpack.c.l.b16 %v1470
      %v1631 = vunpack.c.l.b16 %v1471
      %v1632 = vunpack.c.l.b16 %v1472
      %v1633 = vunpack.c.l.b16 %v1473
      %v1634 = vunpack.c.l.b16 %v1474
      %v1635 = vunpack.c.l.b16 %v1475
      %v1636 = vunpack.c.l.b16 %v1476
      %v1637 = vunpack.c.l.b16 %v1477
      %v1638 = vunpack.c.l.b16 %v1478
      %v1639 = vunpack.c.l.b16 %v1479
      %v1640 = vunpack.c.l.b16 %v1480
      %v1641 = vunpack.c.l.b16 %v1481
      %v1642 = vunpack.c.l.b16 %v1482
      %v1643 = vunpack.c.l.b16 %v1483
      %v1644 = vunpack.c.l.b16 %v1484
      %v1645 = vpack.c.b16 %v1598, %v1597
      %v1646 = vpack.c.b16 %v1600, %v1599
      %v1647 = vpack.c.b16 %v1602, %v1601
      %v1648 = vpack.c.b16 %v1604, %v1603
      %v1649 = vpack.c.b16 %v1606, %v1605
      %v1650 = vpack.c.b16 %v1608, %v1607
      %v1651 = vpack.c.b16 %v1610, %v1609
      %v1652 = vpack.c.b16 %v1612, %v1611
      %v1653 = vpack.c.b16 %v1614, %v1613
      %v1654 = vpack.c.b16 %v1616, %v1615
      %v1655 = vpack.c.b16 %v1618, %v1617
      %v1656 = vpack.c.b16 %v1620, %v1619
      %v1657 = vpack.c.b16 %v1622, %v1621
      %v1658 = vpack.c.b16 %v1624, %v1623
      %v1659 = vpack.c.b16 %v1626, %v1625
      %v1660 = vpack.c.b16 %v1628, %v1627
      %v1661 = vpack.c.b16 %v1630, %v1629
      %v1662 = vpack.c.b16 %v1632, %v1631
      %v1663 = vpack.c.b16 %v1634, %v1633
      %v1664 = vpack.c.b16 %v1636, %v1635
      %v1665 = vpack.c.b16 %v1638, %v1637
      %v1666 = vpack.c.b16 %v1640, %v1639
      %v1667 = vpack.c.b16 %v1642, %v1641
      %v1668 = vpack.c.b16 %v1644, %v1643
      %1693 = vmatpush.bf16.msra.mxu0 %v1652
      %1694 = vmatpush.bf16.msra.mxu0 %v1651
      %1695 = vmatpush.bf16.msra.mxu0 %v1650
      %1696 = vmatpush.bf16.msra.mxu0 %v1649
      %1697 = vmatpush.bf16.msra.mxu0 %v1648
      %1698 = vmatpush.bf16.msra.mxu0 %v1647
      %1699 = vmatpush.bf16.msra.mxu0 %v1646
      %1700 = vmatpush.bf16.msra.mxu0 %v1645
      %1701 = vmatmul.bf16.gmra.mxu0 %v1525
      %v1702 = vpop.f32.mrf.mxu0
      %v1703 = vadd.f32 0.0, %v1702
      %v1704 = vpop.f32.mrf.mxu0
      %v1705 = vadd.f32 0.0, %v1704
      %1706 = vmatmul.bf16.gmra.mxu0 %v1528
      %v1707 = vpop.f32.mrf.mxu0
      %v1708 = vadd.f32 0.0, %v1707
      %v1709 = vpop.f32.mrf.mxu0
      %v1710 = vadd.f32 0.0, %v1709
      %1711 = vmatmul.bf16.gmra.mxu0 %v1531
      %v1712 = vpop.f32.mrf.mxu0
      %v1713 = vadd.f32 0.0, %v1712
      %v1714 = vpop.f32.mrf.mxu0
      %v1715 = vadd.f32 0.0, %v1714
      %1716 = vmatmul.bf16.gmra.mxu0 %v1534
      %v1717 = vpop.f32.mrf.mxu0
      %v1718 = vadd.f32 0.0, %v1717
      %v1719 = vpop.f32.mrf.mxu0
      %v1720 = vadd.f32 0.0, %v1719
      %1721 = vdwg.mxu0
      %1722 = vmatpush.bf16.msra.mxu0 %v1660
      %1723 = vmatpush.bf16.msra.mxu0 %v1659
      %1724 = vmatpush.bf16.msra.mxu0 %v1658
      %1725 = vmatpush.bf16.msra.mxu0 %v1657
      %1726 = vmatpush.bf16.msra.mxu0 %v1656
      %1727 = vmatpush.bf16.msra.mxu0 %v1655
      %1728 = vmatpush.bf16.msra.mxu0 %v1654
      %1729 = vmatpush.bf16.msra.mxu0 %v1653
      %1730 = vmatmul.bf16.gmra.mxu0 %v1526
      %v1731 = vpop.f32.mrf.mxu0
      %v1732 = vadd.f32 %v1703, %v1731
      %v1733 = vpop.f32.mrf.mxu0
      %v1734 = vadd.f32 %v1705, %v1733
      %1735 = vmatmul.bf16.gmra.mxu0 %v1529
      %v1736 = vpop.f32.mrf.mxu0
      %v1737 = vadd.f32 %v1708, %v1736
      %v1738 = vpop.f32.mrf.mxu0
      %v1739 = vadd.f32 %v1710, %v1738
      %1740 = vmatmul.bf16.gmra.mxu0 %v1532
      %v1741 = vpop.f32.mrf.mxu0
      %v1742 = vadd.f32 %v1713, %v1741
      %v1743 = vpop.f32.mrf.mxu0
      %v1744 = vadd.f32 %v1715, %v1743
      %1745 = vmatmul.bf16.gmra.mxu0 %v1535
      %v1746 = vpop.f32.mrf.mxu0
      %v1747 = vadd.f32 %v1718, %v1746
      %v1748 = vpop.f32.mrf.mxu0
      %v1749 = vadd.f32 %v1720, %v1748
      %1750 = vdwg.mxu0
      %1751 = vmatpush.bf16.msra.mxu0 %v1668
      %1752 = vmatpush.bf16.msra.mxu0 %v1667
      %1753 = vmatpush.bf16.msra.mxu0 %v1666
      %1754 = vmatpush.bf16.msra.mxu0 %v1665
      %1755 = vmatpush.bf16.msra.mxu0 %v1664
      %1756 = vmatpush.bf16.msra.mxu0 %v1663
      %1757 = vmatpush.bf16.msra.mxu0 %v1662
      %1758 = vmatpush.bf16.msra.mxu0 %v1661
      %1759 = vmatmul.bf16.gmra.mxu0 %v1527
      %v1760 = vpop.f32.mrf.mxu0
      %v1761 = vadd.f32 %v1732, %v1760
      %v1762 = vpop.f32.mrf.mxu0
      %v1763 = vadd.f32 %v1734, %v1762
      %1764 = vmatmul.bf16.gmra.mxu0 %v1530
      %v1765 = vpop.f32.mrf.mxu0
      %v1766 = vadd.f32 %v1737, %v1765
      %v1767 = vpop.f32.mrf.mxu0
      %v1768 = vadd.f32 %v1739, %v1767
      %1769 = vmatmul.bf16.gmra.mxu0 %v1533
      %v1770 = vpop.f32.mrf.mxu0
      %v1771 = vadd.f32 %v1742, %v1770
      %v1772 = vpop.f32.mrf.mxu0
      %v1773 = vadd.f32 %v1744, %v1772
      %1774 = vmatmul.bf16.gmra.mxu0 %v1536
      %v1775 = vpop.f32.mrf.mxu0
      %v1776 = vadd.f32 %v1747, %v1775
      %v1777 = vpop.f32.mrf.mxu0
      %v1778 = vadd.f32 %v1749, %v1777
      %1779 = vdwg.mxu0
      %v1780 = vadd.f32 %v1400, %v1761
      %v1781 = vadd.f32 %v1402, %v1763
      %v1782 = vadd.f32 %v1405, %v1766
      %v1783 = vadd.f32 %v1407, %v1768
      %v1784 = vadd.f32 %v1410, %v1771
      %v1785 = vadd.f32 %v1412, %v1773
      %v1786 = vadd.f32 %v1415, %v1776
      %v1787 = vadd.f32 %v1417, %v1778
      %v1788 = vld [vmem:[%s4] sm:$0x1]
      %v1790 = vperm.slane %v1788, 0
      %v1792 = vadd.f32 %v1780, %v1790
      %v1793 = vadd.f32 %v1781, %v1790
      %v1794 = vadd.f32 %v1782, %v1790
      %v1795 = vadd.f32 %v1783, %v1790
      %v1796 = vadd.f32 %v1784, %v1790
      %v1797 = vadd.f32 %v1785, %v1790
      %v1798 = vadd.f32 %v1786, %v1790
      %v1799 = vadd.f32 %v1787, %v1790
      %v1800 = vmin.f32 %v1792, 20.0
      %v1801 = vmin.f32 %v1793, 20.0
      %v1802 = vmin.f32 %v1794, 20.0
      %v1803 = vmin.f32 %v1795, 20.0
      %v1804 = vmin.f32 %v1796, 20.0
      %v1805 = vmin.f32 %v1797, 20.0
      %v1806 = vmin.f32 %v1798, 20.0
      %v1807 = vmin.f32 %v1799, 20.0
      %v1808 = vmul.f32 %v1800, 1.442695
      %v1809 = vpow.pop %v1808
      %v1810 = vmul.f32 %v1801, 1.442695
      %v1811 = vpow.pop %v1810
      %v1812 = vmul.f32 %v1802, 1.442695
      %v1813 = vpow.pop %v1812
      %v1814 = vmul.f32 %v1803, 1.442695
      %v1815 = vpow.pop %v1814
      %v1816 = vmul.f32 %v1804, 1.442695
      %v1817 = vpow.pop %v1816
      %v1818 = vmul.f32 %v1805, 1.442695
      %v1819 = vpow.pop %v1818
      %v1820 = vmul.f32 %v1806, 1.442695
      %v1821 = vpow.pop %v1820
      %v1822 = vmul.f32 %v1807, 1.442695
      %v1823 = vpow.pop %v1822
      %v1824 = vadd.f32 %v1809, 2.0
      %v1825 = vadd.f32 %v1811, 2.0
      %v1826 = vadd.f32 %v1813, 2.0
      %v1827 = vadd.f32 %v1815, 2.0
      %v1828 = vadd.f32 %v1817, 2.0
      %v1829 = vadd.f32 %v1819, 2.0
      %v1830 = vadd.f32 %v1821, 2.0
      %v1831 = vadd.f32 %v1823, 2.0
      %v1832 = vmul.f32 %v1809, %v1824
      %v1833 = vmul.f32 %v1811, %v1825
      %v1834 = vmul.f32 %v1813, %v1826
      %v1835 = vmul.f32 %v1815, %v1827
      %v1836 = vmul.f32 %v1817, %v1828
      %v1837 = vmul.f32 %v1819, %v1829
      %v1838 = vmul.f32 %v1821, %v1830
      %v1839 = vmul.f32 %v1823, %v1831
      %v1840 = vadd.f32 %v1832, 2.0
      %v1841 = vadd.f32 %v1833, 2.0
      %v1842 = vadd.f32 %v1834, 2.0
      %v1843 = vadd.f32 %v1835, 2.0
      %v1844 = vadd.f32 %v1836, 2.0
      %v1845 = vadd.f32 %v1837, 2.0
      %v1846 = vadd.f32 %v1838, 2.0
      %v1847 = vadd.f32 %v1839, 2.0
      %v1848 = vrcp.pop %v1840
      %v1849 = vrcp.pop %v1841
      %v1850 = vrcp.pop %v1842
      %v1851 = vrcp.pop %v1843
      %v1852 = vrcp.pop %v1844
      %v1853 = vrcp.pop %v1845
      %v1854 = vrcp.pop %v1846
      %v1855 = vrcp.pop %v1847
      %v1856 = vmul.f32 %v1840, %v1848
      %v1857 = vmul.f32 %v1841, %v1849
      %v1858 = vmul.f32 %v1842, %v1850
      %v1859 = vmul.f32 %v1843, %v1851
      %v1860 = vmul.f32 %v1844, %v1852
      %v1861 = vmul.f32 %v1845, %v1853
      %v1862 = vmul.f32 %v1846, %v1854
      %v1863 = vmul.f32 %v1847, %v1855
      %v1864 = vsub.f32 2.0, %v1856
      %v1865 = vsub.f32 2.0, %v1857
      %v1866 = vsub.f32 2.0, %v1858
      %v1867 = vsub.f32 2.0, %v1859
      %v1868 = vsub.f32 2.0, %v1860
      %v1869 = vsub.f32 2.0, %v1861
      %v1870 = vsub.f32 2.0, %v1862
      %v1871 = vsub.f32 2.0, %v1863
      %v1872 = vmul.f32 %v1848, %v1864
      %v1873 = vmul.f32 %v1849, %v1865
      %v1874 = vmul.f32 %v1850, %v1866
      %v1875 = vmul.f32 %v1851, %v1867
      %v1876 = vmul.f32 %v1852, %v1868
      %v1877 = vmul.f32 %v1853, %v1869
      %v1878 = vmul.f32 %v1854, %v1870
      %v1879 = vmul.f32 %v1855, %v1871
      %vm1880 = vcmp.gt.f32.partialorder %v1792, 20.0
      %vm1881 = vcmp.gt.f32.partialorder %v1793, 20.0
      %vm1882 = vcmp.gt.f32.partialorder %v1794, 20.0
      %vm1883 = vcmp.gt.f32.partialorder %v1795, 20.0
      %vm1884 = vcmp.gt.f32.partialorder %v1796, 20.0
      %vm1885 = vcmp.gt.f32.partialorder %v1797, 20.0
      %vm1886 = vcmp.gt.f32.partialorder %v1798, 20.0
      %vm1887 = vcmp.gt.f32.partialorder %v1799, 20.0
      %v1888 = vmul.f32 %v1792, %v1832
      %v1889 = vmul.f32 %v1793, %v1833
      %v1890 = vmul.f32 %v1794, %v1834
      %v1891 = vmul.f32 %v1795, %v1835
      %v1892 = vmul.f32 %v1796, %v1836
      %v1893 = vmul.f32 %v1797, %v1837
      %v1894 = vmul.f32 %v1798, %v1838
      %v1895 = vmul.f32 %v1799, %v1839
      %v1896 = vmul.f32 %v1888, %v1872
      %v1897 = vmul.f32 %v1889, %v1873
      %v1898 = vmul.f32 %v1890, %v1874
      %v1899 = vmul.f32 %v1891, %v1875
      %v1900 = vmul.f32 %v1892, %v1876
      %v1901 = vmul.f32 %v1893, %v1877
      %v1902 = vmul.f32 %v1894, %v1878
      %v1903 = vmul.f32 %v1895, %v1879
      %v1904 = vsel %vm1880, %v1792, %v1896
      %v1905 = vsel %vm1881, %v1793, %v1897
      %v1906 = vsel %vm1882, %v1794, %v1898
      %v1907 = vsel %vm1883, %v1795, %v1899
      %v1908 = vsel %vm1884, %v1796, %v1900
      %v1909 = vsel %vm1885, %v1797, %v1901
      %v1910 = vsel %vm1886, %v1798, %v1902
      %v1911 = vsel %vm1887, %v1799, %v1903
      %v1912 = vld [vmem:[%s219] sm:$0xf]
      %v1913 = vld [vmem:[%s219 + $0x4] sm:$0xf]
      %v1914 = vld [vmem:[%s219 + $0x8] sm:$0xf]
      %v1915 = vld [vmem:[%s219 + $0xc] sm:$0xf]
      %v1916 = vld [vmem:[%s219 + $0x10] sm:$0xf]
      %v1917 = vld [vmem:[%s219 + $0x14] sm:$0xf]
      %v1918 = vld [vmem:[%s219 + $0x18] sm:$0xf]
      %v1919 = vld [vmem:[%s219 + $0x1c] sm:$0xf]
      %v1920 = vunpack.c.l.bf16 %v1912
      %v1921 = vunpack.c.l.bf16 %v1913
      %v1922 = vunpack.c.l.bf16 %v1914
      %v1923 = vunpack.c.l.bf16 %v1915
      %v1924 = vunpack.c.l.bf16 %v1916
      %v1925 = vunpack.c.l.bf16 %v1917
      %v1926 = vunpack.c.l.bf16 %v1918
      %v1927 = vunpack.c.l.bf16 %v1919
      %v1928 = vadd.f32 %v1904, %v1920
      %v1929 = vadd.f32 %v1905, %v1921
      %v1930 = vadd.f32 %v1906, %v1922
      %v1931 = vadd.f32 %v1907, %v1923
      %v1932 = vadd.f32 %v1908, %v1924
      %v1933 = vadd.f32 %v1909, %v1925
      %v1934 = vadd.f32 %v1910, %v1926
      %v1935 = vadd.f32 %v1911, %v1927
      %v1936 = vpack.c.bf16 %v1928, %v1928
      %v1937 = vpack.c.bf16 %v1929, %v1929
      %v1938 = vpack.c.bf16 %v1930, %v1930
      %v1939 = vpack.c.bf16 %v1931, %v1931
      %v1940 = vpack.c.bf16 %v1932, %v1932
      %v1941 = vpack.c.bf16 %v1933, %v1933
      %v1942 = vpack.c.bf16 %v1934, %v1934
      %v1943 = vpack.c.bf16 %v1935, %v1935
      %1944 = vst [vmem:[%s224] sm:$0xf] %v1936
      %1945 = vst [vmem:[%s224 + $0x4] sm:$0xf] %v1937
      %1946 = vst [vmem:[%s224 + $0x8] sm:$0xf] %v1938
      %1947 = vst [vmem:[%s224 + $0xc] sm:$0xf] %v1939
      %1948 = vst [vmem:[%s224 + $0x10] sm:$0xf] %v1940
      %1949 = vst [vmem:[%s224 + $0x14] sm:$0xf] %v1941
      %1950 = vst [vmem:[%s224 + $0x18] sm:$0xf] %v1942
      %1951 = vst [vmem:[%s224 + $0x1c] sm:$0xf] %v1943
      %p1952 = scmp.lt.s32.totalorder %s16, 1
      %s1953 = scalar_select %p1952, %s16, 1
      %s1954 = smul.addr %s1953, 8
      %s1955 = smul.addr %s1954, 4
      %s1956 = scalar_lea.vmem %s5, %s1955
      // Predicated region
      $region41: #{stage3_forward.7} parent=39 // pred_check
        %p1957 = pneg %p144
      $region42: #{stage3_forward.7} parent=39 // pred_check_branch
        %1959 = sbr.rel (%p1957) target = $region44
      $region43: #{stage3_forward.7} parent=39 // pred_region
        _
      $region44: #{stage3_forward.7} parent=39 // pred_fallthru
        _
    $region40: #{stage3_forward.7} parent=5 // pred_fallthru
      _
    %p1960 = scmp.le.s32.totalorder 2, %s11
    // Predicated region
    $region45: #{stage3_forward.7} parent=5 // pred_check
      %p1961 = pneg %p1960
    $region46: #{stage3_forward.7} parent=5 // pred_check_branch
      %1963 = sbr.rel (%p1961) target = $region48
    $region47: #{stage3_forward.7} parent=5 // pred_region
      %s1964 = ssub.s32 %s11, 2
      // Predicated region
      $region49: #{stage3_forward.7} parent=47 // pred_check
        %p1965 = pneg %p150
      $region50: #{stage3_forward.7} parent=47 // pred_check_branch
        %1967 = sbr.rel (%p1965) target = $region52
      $region51: #{stage3_forward.7} parent=47 // pred_region
        %p1968 = scmp.lt.s32.totalorder %s17, 1
        %s1969 = scalar_select %p1968, %s17, 1
        %s1970 = smul.addr %s1969, 8
        %s1971 = smul.addr %s1970, 4
        %s1972 = scalar_lea.vmem %s5, %s1971
      $region52: #{stage3_forward.7} parent=47 // pred_fallthru
        _
    $region48: #{stage3_forward.7} parent=5 // pred_fallthru
      _
  $region6: #{stage3_forward.7} parent=0 // loop_footer
    %s15 = sadd.s32 1, %s11
  $region7: #{stage3_forward.7} parent=0 // loop_footer_branch
    %10 = sbr.rel target = $region3
  $region8: #{stage3_forward.7} parent=0 // loop_exit
    _

// kernel: stage3_forward.5
$region0: #{stage3_forward.5}
  #allocation0 [shape = 'u32[]', space=smem, size = 0x4, offset = 0x4, fixed_abs, tag = 'smem constant byte address 0x4 - core index']
  #allocation1 [shape = 'u32[72,128]{1,0:T(1,128)}', space=vmem, size = 0x9000, scoped, tag = 'internal scratch']
  #allocation2 [shape = 'bf16[9,2,9,256]{3,2,1,0:T(8,128)(2,1)}', space=vmem, size = 0x24000, scoped, tag = 'scratch operand']
  %s0 = inlined_call_operand.vmem [shape: f32[2,16,16,8], index: 0, kind: input, shape index: {}]
  %s1 = inlined_call_operand.vmem [shape: bf16[8,128], index: 1, kind: input, shape index: {}]
  %s2 = inlined_call_operand.vmem [shape: f32[1,128], index: 2, kind: input, shape index: {}]
  %s3 = inlined_call_operand.vmem [shape: bf16[3,256,128], index: 3, kind: input, shape index: {}]
  %s4 = inlined_call_operand.vmem [shape: bf16[3,128,128], index: 4, kind: input, shape index: {}]
  %s5 = inlined_call_operand.vmem [shape: f32[1,128], index: 5, kind: input, shape index: {}]
  %s6 = inlined_call_operand.vmem [shape: bf16[2,8,8,128], index: 6, kind: output, shape index: {}]
  %s7 = sld [smem:[#allocation0]]
  $region57: #{stage3_forward.5} parent=0
    _
  %s9 = ssub.s32 1, %s7
  %s10 = scalar_select 0, %s9, %s7
  loop: start=0, step=1, limit=4
  $region2: #{stage3_forward.5} parent=0 // loop_pre_header
    _
  $region3: #{stage3_forward.5} parent=0 // loop_header
    %s12 = sphi 0, %s16
    %p13 = scmp.ge.s32.totalorder %s12, 4
    %s22 = sphi 0, %s24
    %s25 = sphi 0, %s22
    %s26 = sphi 0, %s25
    %s42 = sphi 0, %s26
    %s46 = sphi 0, %s46
    %s48 = sphi 0, %s46
    %s49 = sphi 0, %s48
    %s63 = sphi 0, %s49
    %s67 = sphi 0, %s67
    %s69 = sphi 0, %s67
    %s70 = sphi 0, %s69
    %s84 = sphi 0, %s70
    %s88 = sphi 0, %s88
    %s90 = sphi 0, %s88
    %s91 = sphi 0, %s90
    %s105 = sphi 0, %s91
    %s109 = sphi 0, %s109
    %s111 = sphi 0, %s109
    %s112 = sphi 0, %s111
    %s126 = sphi 0, %s112
    %s130 = sphi 0, %s130
    %s132 = sphi 0, %s130
    %s133 = sphi 0, %s132
    %s147 = sphi 0, %s133
    %s153 = sphi 0, %s155
    %s156 = sphi 0, %s153
    %s157 = sphi 0, %s156
    %s173 = sphi 0, %s157
  $region4: #{stage3_forward.5} parent=0 // loop_header_branch
    %15 = sbr.rel (%p13) target = $region8
  $region5: #{stage3_forward.5} parent=0 // loop_body
    %s17 = ssub.s32 %s12, 1
    %s18 = ssub.s32 %s12, 2
    %s19 = sadd.s32 %s12, 1
    %s20 = ssub.s32 %s12, %s19
    %p21 = scmp.eq.s32.totalorder %s20, 0
    %s23 = sadd.s32 %s22, 1
    %s24 = scalar_select %p21, %s22, %s23
    %p27 = pneg %p21
    %p28 = scmp.eq.s32.totalorder %s12, 1
    %p29 = por %p27, %p28
    %p30 = scmp.ne.s32.totalorder %s22, %s25
    %p31 = scmp.eq.s32.totalorder %s12, 0
    %p32 = por %p30, %p31
    %p33 = scmp.ne.s32.totalorder %s22, %s25
    %p34 = scmp.eq.s32.totalorder %s17, 1
    %p35 = por %p33, %p34
    %p36 = scmp.ne.s32.totalorder %s25, %s26
    %p37 = scmp.eq.s32.totalorder %s17, 0
    %p38 = por %p36, %p37
    %p39 = scmp.ne.s32.totalorder %s25, %s26
    %p40 = scmp.eq.s32.totalorder %s18, 1
    %p41 = por %p39, %p40
    %p43 = scmp.ne.s32.totalorder %s26, %s42
    %p44 = scmp.eq.s32.totalorder %s18, 0
    %p45 = por %p43, %p44
    %s47 = sadd.s32 %s46, 1
    %p50 = scmp.eq.s32.totalorder %s12, 1
    %p51 = scmp.ne.s32.totalorder %s46, %s48
    %p52 = scmp.eq.s32.totalorder %s12, 0
    %p53 = por %p51, %p52
    %p54 = scmp.ne.s32.totalorder %s46, %s48
    %p55 = scmp.eq.s32.totalorder %s17, 1
    %p56 = por %p54, %p55
    %p57 = scmp.ne.s32.totalorder %s48, %s49
    %p58 = scmp.eq.s32.totalorder %s17, 0
    %p59 = por %p57, %p58
    %p60 = scmp.ne.s32.totalorder %s48, %s49
    %p61 = scmp.eq.s32.totalorder %s18, 1
    %p62 = por %p60, %p61
    %p64 = scmp.ne.s32.totalorder %s49, %s63
    %p65 = scmp.eq.s32.totalorder %s18, 0
    %p66 = por %p64, %p65
    %s68 = sadd.s32 %s67, 1
    %p71 = scmp.eq.s32.totalorder %s12, 1
    %p72 = scmp.ne.s32.totalorder %s67, %s69
    %p73 = scmp.eq.s32.totalorder %s12, 0
    %p74 = por %p72, %p73
    %p75 = scmp.ne.s32.totalorder %s67, %s69
    %p76 = scmp.eq.s32.totalorder %s17, 1
    %p77 = por %p75, %p76
    %p78 = scmp.ne.s32.totalorder %s69, %s70
    %p79 = scmp.eq.s32.totalorder %s17, 0
    %p80 = por %p78, %p79
    %p81 = scmp.ne.s32.totalorder %s69, %s70
    %p82 = scmp.eq.s32.totalorder %s18, 1
    %p83 = por %p81, %p82
    %p85 = scmp.ne.s32.totalorder %s70, %s84
    %p86 = scmp.eq.s32.totalorder %s18, 0
    %p87 = por %p85, %p86
    %s89 = sadd.s32 %s88, 1
    %p92 = scmp.eq.s32.totalorder %s12, 1
    %p93 = scmp.ne.s32.totalorder %s88, %s90
    %p94 = scmp.eq.s32.totalorder %s12, 0
    %p95 = por %p93, %p94
    %p96 = scmp.ne.s32.totalorder %s88, %s90
    %p97 = scmp.eq.s32.totalorder %s17, 1
    %p98 = por %p96, %p97
    %p99 = scmp.ne.s32.totalorder %s90, %s91
    %p100 = scmp.eq.s32.totalorder %s17, 0
    %p101 = por %p99, %p100
    %p102 = scmp.ne.s32.totalorder %s90, %s91
    %p103 = scmp.eq.s32.totalorder %s18, 1
    %p104 = por %p102, %p103
    %p106 = scmp.ne.s32.totalorder %s91, %s105
    %p107 = scmp.eq.s32.totalorder %s18, 0
    %p108 = por %p106, %p107
    %s110 = sadd.s32 %s109, 1
    %p113 = scmp.eq.s32.totalorder %s12, 1
    %p114 = scmp.ne.s32.totalorder %s109, %s111
    %p115 = scmp.eq.s32.totalorder %s12, 0
    %p116 = por %p114, %p115
    %p117 = scmp.ne.s32.totalorder %s109, %s111
    %p118 = scmp.eq.s32.totalorder %s17, 1
    %p119 = por %p117, %p118
    %p120 = scmp.ne.s32.totalorder %s111, %s112
    %p121 = scmp.eq.s32.totalorder %s17, 0
    %p122 = por %p120, %p121
    %p123 = scmp.ne.s32.totalorder %s111, %s112
    %p124 = scmp.eq.s32.totalorder %s18, 1
    %p125 = por %p123, %p124
    %p127 = scmp.ne.s32.totalorder %s112, %s126
    %p128 = scmp.eq.s32.totalorder %s18, 0
    %p129 = por %p127, %p128
    %s131 = sadd.s32 %s130, 1
    %p134 = scmp.eq.s32.totalorder %s12, 1
    %p135 = scmp.ne.s32.totalorder %s130, %s132
    %p136 = scmp.eq.s32.totalorder %s12, 0
    %p137 = por %p135, %p136
    %p138 = scmp.ne.s32.totalorder %s130, %s132
    %p139 = scmp.eq.s32.totalorder %s17, 1
    %p140 = por %p138, %p139
    %p141 = scmp.ne.s32.totalorder %s132, %s133
    %p142 = scmp.eq.s32.totalorder %s17, 0
    %p143 = por %p141, %p142
    %p144 = scmp.ne.s32.totalorder %s132, %s133
    %p145 = scmp.eq.s32.totalorder %s18, 1
    %p146 = por %p144, %p145
    %p148 = scmp.ne.s32.totalorder %s133, %s147
    %p149 = scmp.eq.s32.totalorder %s18, 0
    %p150 = por %p148, %p149
    %s151 = ssub.s32 %s12, %s19
    %p152 = scmp.eq.s32.totalorder %s151, 0
    %s154 = sadd.s32 %s153, 1
    %s155 = scalar_select %p152, %s153, %s154
    %p158 = pneg %p152
    %p159 = scmp.eq.s32.totalorder %s12, 1
    %p160 = por %p158, %p159
    %p161 = scmp.ne.s32.totalorder %s153, %s156
    %p162 = scmp.eq.s32.totalorder %s12, 0
    %p163 = por %p161, %p162
    %p164 = scmp.ne.s32.totalorder %s153, %s156
    %p165 = scmp.eq.s32.totalorder %s17, 1
    %p166 = por %p164, %p165
    %p167 = scmp.ne.s32.totalorder %s156, %s157
    %p168 = scmp.eq.s32.totalorder %s17, 0
    %p169 = por %p167, %p168
    %p170 = scmp.ne.s32.totalorder %s156, %s157
    %p171 = scmp.eq.s32.totalorder %s18, 1
    %p172 = por %p170, %p171
    %p174 = scmp.ne.s32.totalorder %s157, %s173
    %p175 = scmp.eq.s32.totalorder %s18, 0
    %p176 = por %p174, %p175
    %p177 = scmp.le.s32.totalorder 1, %s12
    %p178 = scmp.lt.s32.totalorder %s12, 3
    %p179 = pnand %p177, %p178
    %p180 = pneg %p179
    // Predicated region
    $region9: #{stage3_forward.5} parent=5 // pred_check
      _
    $region10: #{stage3_forward.5} parent=5 // pred_check_branch
      %182 = sbr.rel (%p179) target = $region12
    $region11: #{stage3_forward.5} parent=5 // pred_region
      %s183 = ssub.s32 %s12, 1
      // Predicated region
      $region13: #{stage3_forward.5} parent=11 // pred_check
        %p184 = pneg %p59
      $region14: #{stage3_forward.5} parent=11 // pred_check_branch
        %186 = sbr.rel (%p184) target = $region16
      $region15: #{stage3_forward.5} parent=11 // pred_region
        _
      $region16: #{stage3_forward.5} parent=11 // pred_fallthru
        _
      // Predicated region
      $region17: #{stage3_forward.5} parent=11 // pred_check
        %p187 = pneg %p80
      $region18: #{stage3_forward.5} parent=11 // pred_check_branch
        %189 = sbr.rel (%p187) target = $region20
      $region19: #{stage3_forward.5} parent=11 // pred_region
        _
      $region20: #{stage3_forward.5} parent=11 // pred_fallthru
        _
      // Predicated region
      $region21: #{stage3_forward.5} parent=11 // pred_check
        %p190 = pneg %p101
      $region22: #{stage3_forward.5} parent=11 // pred_check_branch
        %192 = sbr.rel (%p190) target = $region24
      $region23: #{stage3_forward.5} parent=11 // pred_region
        _
      $region24: #{stage3_forward.5} parent=11 // pred_fallthru
        _
      // Predicated region
      $region25: #{stage3_forward.5} parent=11 // pred_check
        %p193 = pneg %p122
      $region26: #{stage3_forward.5} parent=11 // pred_check_branch
        %195 = sbr.rel (%p193) target = $region28
      $region27: #{stage3_forward.5} parent=11 // pred_region
        _
      $region28: #{stage3_forward.5} parent=11 // pred_fallthru
        _
      // Predicated region
      $region29: #{stage3_forward.5} parent=11 // pred_check
        %p196 = pneg %p143
      $region30: #{stage3_forward.5} parent=11 // pred_check_branch
        %198 = sbr.rel (%p196) target = $region32
      $region31: #{stage3_forward.5} parent=11 // pred_region
        _
      $region32: #{stage3_forward.5} parent=11 // pred_fallthru
        _
    $region12: #{stage3_forward.5} parent=5 // pred_fallthru
      _
    %p199 = scmp.lt.s32.totalorder %s12, 2
    // Predicated region
    $region33: #{stage3_forward.5} parent=5 // pred_check
      %p200 = pneg %p199
    $region34: #{stage3_forward.5} parent=5 // pred_check_branch
      %202 = sbr.rel (%p200) target = $region36
    $region35: #{stage3_forward.5} parent=5 // pred_region
      // Predicated region
      $region37: #{stage3_forward.5} parent=35 // pred_check
        %p203 = pneg %p32
      $region38: #{stage3_forward.5} parent=35 // pred_check_branch
        %205 = sbr.rel (%p203) target = $region40
      $region39: #{stage3_forward.5} parent=35 // pred_region
        %p206 = scmp.lt.s32.totalorder %s12, 1
        %s207 = scalar_select %p206, %s12, 1
        %s208 = smul.addr %s207, 32
        %s209 = smul.addr %s208, 8
        %s210 = scalar_lea.vmem %s0, %s209
      $region40: #{stage3_forward.5} parent=35 // pred_fallthru
        _
    $region36: #{stage3_forward.5} parent=5 // pred_fallthru
      _
    %p211 = scmp.le.s32.totalorder 1, %s12
    %p212 = scmp.lt.s32.totalorder %s12, 3
    %p213 = pnand %p211, %p212
    %p214 = pneg %p213
    // Predicated region
    $region41: #{stage3_forward.5} parent=5 // pred_check
      _
    $region42: #{stage3_forward.5} parent=5 // pred_check_branch
      %216 = sbr.rel (%p213) target = $region44
    $region43: #{stage3_forward.5} parent=5 // pred_region
      %s217 = ssub.s32 %s12, 1
      %p218 = scmp.lt.s32.totalorder %s17, 1
      %s219 = scalar_select %p218, %s17, 1
      %s220 = smul.addr %s219, 32
      %s221 = smul.addr %s220, 8
      %s222 = scalar_lea.vmem %s0, %s221
      %p223 = pneg %p38
      %p224 = pneg %p35
      %p225 = pneg %p59
      %p226 = pneg %p56
      %p227 = pneg %p80
      %p228 = pneg %p77
      %p229 = pneg %p101
      %p230 = pneg %p98
      %p231 = pneg %p122
      %p232 = pneg %p119
      %p233 = pneg %p143
      %p234 = pneg %p140
      %p235 = pneg %p169
      %p236 = pneg %p166
      %p237 = scmp.lt.s32.totalorder %s17, 1
      %s238 = scalar_select %p237, %s17, 1
      %s239 = smul.addr %s238, 8
      %s240 = smul.addr %s239, 4
      %s241 = scalar_lea.vmem %s6, %s240
      %p242 = scmp.lt.s32.totalorder %s17, 1
      %s243 = scalar_select %p242, %s17, 1
      %s244 = smul.addr %s243, 32
      %s245 = smul.addr %s244, 8
      %s246 = scalar_lea.vmem %s0, %s245
      %p247 = scmp.lt.s32.totalorder %s17, 1
      %s248 = scalar_select %p247, %s17, 1
      %s249 = smul.addr %s248, 8
      %s250 = smul.addr %s249, 4
      %s251 = scalar_lea.vmem %s6, %s250
      %v253 = vld [vmem:[%s246] sm:$0xff]
      %v254 = vld [vmem:[%s246 + $0x8] sm:$0xff]
      %v255 = vld [vmem:[%s246 + $0x10] sm:$0xff]
      %v256 = vld [vmem:[%s246 + $0x18] sm:$0xff]
      %v257 = vld [vmem:[%s246 + $0x20] sm:$0xff]
      %v258 = vld [vmem:[%s246 + $0x28] sm:$0xff]
      %v259 = vld [vmem:[%s246 + $0x30] sm:$0xff]
      %v260 = vld [vmem:[%s246 + $0x38] sm:$0xff]
      %v261 = vld [vmem:[%s246 + $0x40] sm:$0xff]
      %v262 = vld [vmem:[%s246 + $0x48] sm:$0xff]
      %v263 = vld [vmem:[%s246 + $0x50] sm:$0xff]
      %v264 = vld [vmem:[%s246 + $0x58] sm:$0xff]
      %v265 = vld [vmem:[%s246 + $0x60] sm:$0xff]
      %v266 = vld [vmem:[%s246 + $0x68] sm:$0xff]
      %v267 = vld [vmem:[%s246 + $0x70] sm:$0xff]
      %v268 = vld [vmem:[%s246 + $0x78] sm:$0xff]
      %v269 = vld [vmem:[%s246 + $0x80] sm:$0xff]
      %v270 = vld [vmem:[%s246 + $0x88] sm:$0xff]
      %v271 = vld [vmem:[%s246 + $0x90] sm:$0xff]
      %v272 = vld [vmem:[%s246 + $0x98] sm:$0xff]
      %v273 = vld [vmem:[%s246 + $0xa0] sm:$0xff]
      %v274 = vld [vmem:[%s246 + $0xa8] sm:$0xff]
      %v275 = vld [vmem:[%s246 + $0xb0] sm:$0xff]
      %v276 = vld [vmem:[%s246 + $0xb8] sm:$0xff]
      %v277 = vld [vmem:[%s246 + $0xc0] sm:$0xff]
      %v278 = vld [vmem:[%s246 + $0xc8] sm:$0xff]
      %v279 = vld [vmem:[%s246 + $0xd0] sm:$0xff]
      %v280 = vld [vmem:[%s246 + $0xd8] sm:$0xff]
      %v281 = vld [vmem:[%s246 + $0xe0] sm:$0xff]
      %v282 = vld [vmem:[%s246 + $0xe8] sm:$0xff]
      %v283 = vld [vmem:[%s246 + $0xf0] sm:$0xff]
      %v284 = vld [vmem:[%s246 + $0xf8] sm:$0xff]
      %v285 = vpack.c.bf16 %v253, %v253
      %v286 = vpack.c.bf16 %v254, %v254
      %v287 = vpack.c.bf16 %v255, %v255
      %v288 = vpack.c.bf16 %v256, %v256
      %v289 = vpack.c.bf16 %v257, %v257
      %v290 = vpack.c.bf16 %v258, %v258
      %v291 = vpack.c.bf16 %v259, %v259
      %v292 = vpack.c.bf16 %v260, %v260
      %v293 = vpack.c.bf16 %v261, %v261
      %v294 = vpack.c.bf16 %v262, %v262
      %v295 = vpack.c.bf16 %v263, %v263
      %v296 = vpack.c.bf16 %v264, %v264
      %v297 = vpack.c.bf16 %v265, %v265
      %v298 = vpack.c.bf16 %v266, %v266
      %v299 = vpack.c.bf16 %v267, %v267
      %v300 = vpack.c.bf16 %v268, %v268
      %v301 = vpack.c.bf16 %v269, %v269
      %v302 = vpack.c.bf16 %v270, %v270
      %v303 = vpack.c.bf16 %v271, %v271
      %v304 = vpack.c.bf16 %v272, %v272
      %v305 = vpack.c.bf16 %v273, %v273
      %v306 = vpack.c.bf16 %v274, %v274
      %v307 = vpack.c.bf16 %v275, %v275
      %v308 = vpack.c.bf16 %v276, %v276
      %v309 = vpack.c.bf16 %v277, %v277
      %v310 = vpack.c.bf16 %v278, %v278
      %v311 = vpack.c.bf16 %v279, %v279
      %v312 = vpack.c.bf16 %v280, %v280
      %v313 = vpack.c.bf16 %v281, %v281
      %v314 = vpack.c.bf16 %v282, %v282
      %v315 = vpack.c.bf16 %v283, %v283
      %v316 = vpack.c.bf16 %v284, %v284
      %v317 = vld [vmem:[%s1] sm:$0xf]
      %v318 = vld [vmem:[%s2] sm:$0x1]
      %v320 = vperm.slane %v318, 0
      %v354 = vunpack.c.l.b16 %v285
      %v355 = vunpack.c.l.b16 %v286
      %v356 = vunpack.c.l.b16 %v287
      %v357 = vunpack.c.l.b16 %v288
      %v358 = vunpack.c.l.b16 %v289
      %v359 = vunpack.c.l.b16 %v290
      %v360 = vunpack.c.l.b16 %v291
      %v361 = vunpack.c.l.b16 %v292
      %v362 = vunpack.c.l.b16 %v293
      %v363 = vunpack.c.l.b16 %v294
      %v364 = vunpack.c.l.b16 %v295
      %v365 = vunpack.c.l.b16 %v296
      %v366 = vunpack.c.l.b16 %v297
      %v367 = vunpack.c.l.b16 %v298
      %v368 = vunpack.c.l.b16 %v299
      %v369 = vunpack.c.l.b16 %v300
      %v370 = vunpack.c.l.b16 %v301
      %v371 = vunpack.c.l.b16 %v302
      %v372 = vunpack.c.l.b16 %v303
      %v373 = vunpack.c.l.b16 %v304
      %v374 = vunpack.c.l.b16 %v305
      %v375 = vunpack.c.l.b16 %v306
      %v376 = vunpack.c.l.b16 %v307
      %v377 = vunpack.c.l.b16 %v308
      %v378 = vunpack.c.l.b16 %v309
      %v379 = vunpack.c.l.b16 %v310
      %v380 = vunpack.c.l.b16 %v311
      %v381 = vunpack.c.l.b16 %v312
      %v382 = vunpack.c.l.b16 %v313
      %v383 = vunpack.c.l.b16 %v314
      %v384 = vunpack.c.l.b16 %v315
      %v385 = vunpack.c.l.b16 %v316
      %v386 = vpack.c.b16 %v355, %v354
      %v387 = vpack.c.b16 %v357, %v356
      %v388 = vpack.c.b16 %v359, %v358
      %v389 = vpack.c.b16 %v361, %v360
      %v390 = vpack.c.b16 %v363, %v362
      %v391 = vpack.c.b16 %v365, %v364
      %v392 = vpack.c.b16 %v367, %v366
      %v393 = vpack.c.b16 %v369, %v368
      %v394 = vpack.c.b16 %v371, %v370
      %v395 = vpack.c.b16 %v373, %v372
      %v396 = vpack.c.b16 %v375, %v374
      %v397 = vpack.c.b16 %v377, %v376
      %v398 = vpack.c.b16 %v379, %v378
      %v399 = vpack.c.b16 %v381, %v380
      %v400 = vpack.c.b16 %v383, %v382
      %v401 = vpack.c.b16 %v385, %v384
      %vm402 = vcmask 64512
      %v404 = vsel %vm402, %v386, 0
      %v407 = vsel %vm402, %v387, 0
      %v410 = vsel %vm402, %v388, 0
      %v413 = vsel %vm402, %v389, 0
      %v416 = vsel %vm402, %v390, 0
      %v419 = vsel %vm402, %v391, 0
      %v422 = vsel %vm402, %v392, 0
      %v425 = vsel %vm402, %v393, 0
      %v428 = vsel %vm402, %v394, 0
      %v431 = vsel %vm402, %v395, 0
      %v434 = vsel %vm402, %v396, 0
      %v437 = vsel %vm402, %v397, 0
      %v440 = vsel %vm402, %v398, 0
      %v443 = vsel %vm402, %v399, 0
      %v446 = vsel %vm402, %v400, 0
      %v449 = vsel %vm402, %v401, 0
      %vm451 = vcmask 1043456
      %v453 = vsel %vm451, %v317, 0
      %455 = vmatpush.bf16.msra.mxu0 0
      %456 = vmatpush.bf16.msra.mxu0 0
      %457 = vmatpush.bf16.msra.mxu0 0
      %458 = vmatpush.bf16.msra.mxu0 0
      %459 = vmatpush.bf16.msra.mxu0 0
      %460 = vmatpush.bf16.msra.mxu0 0
      %461 = vmatpush.bf16.msra.mxu0 0
      %462 = vmatpush.bf16.msra.mxu0 %v453
      %463 = vmatmul.bf16.gmra.mxu0 %v404
      %v464 = vpop.f32.mrf.mxu0
      %v465 = vadd.f32 %v320, %v464
      %v466 = vpop.f32.mrf.mxu0
      %v467 = vadd.f32 %v320, %v466
      %468 = vmatmul.bf16.gmra.mxu0 %v407
      %v469 = vpop.f32.mrf.mxu0
      %v470 = vadd.f32 %v320, %v469
      %v471 = vpop.f32.mrf.mxu0
      %v472 = vadd.f32 %v320, %v471
      %473 = vmatmul.bf16.gmra.mxu0 %v410
      %v474 = vpop.f32.mrf.mxu0
      %v475 = vadd.f32 %v320, %v474
      %v476 = vpop.f32.mrf.mxu0
      %v477 = vadd.f32 %v320, %v476
      %478 = vmatmul.bf16.gmra.mxu0 %v413
      %v479 = vpop.f32.mrf.mxu0
      %v480 = vadd.f32 %v320, %v479
      %v481 = vpop.f32.mrf.mxu0
      %v482 = vadd.f32 %v320, %v481
      %483 = vmatmul.bf16.gmra.mxu0 %v416
      %v484 = vpop.f32.mrf.mxu0
      %v485 = vadd.f32 %v320, %v484
      %v486 = vpop.f32.mrf.mxu0
      %v487 = vadd.f32 %v320, %v486
      %488 = vmatmul.bf16.gmra.mxu0 %v419
      %v489 = vpop.f32.mrf.mxu0
      %v490 = vadd.f32 %v320, %v489
      %v491 = vpop.f32.mrf.mxu0
      %v492 = vadd.f32 %v320, %v491
      %493 = vmatmul.bf16.gmra.mxu0 %v422
      %v494 = vpop.f32.mrf.mxu0
      %v495 = vadd.f32 %v320, %v494
      %v496 = vpop.f32.mrf.mxu0
      %v497 = vadd.f32 %v320, %v496
      %498 = vmatmul.bf16.gmra.mxu0 %v425
      %v499 = vpop.f32.mrf.mxu0
      %v500 = vadd.f32 %v320, %v499
      %v501 = vpop.f32.mrf.mxu0
      %v502 = vadd.f32 %v320, %v501
      %503 = vmatmul.bf16.gmra.mxu0 %v428
      %v504 = vpop.f32.mrf.mxu0
      %v505 = vadd.f32 %v320, %v504
      %v506 = vpop.f32.mrf.mxu0
      %v507 = vadd.f32 %v320, %v506
      %508 = vmatmul.bf16.gmra.mxu0 %v431
      %v509 = vpop.f32.mrf.mxu0
      %v510 = vadd.f32 %v320, %v509
      %v511 = vpop.f32.mrf.mxu0
      %v512 = vadd.f32 %v320, %v511
      %513 = vmatmul.bf16.gmra.mxu0 %v434
      %v514 = vpop.f32.mrf.mxu0
      %v515 = vadd.f32 %v320, %v514
      %v516 = vpop.f32.mrf.mxu0
      %v517 = vadd.f32 %v320, %v516
      %518 = vmatmul.bf16.gmra.mxu0 %v437
      %v519 = vpop.f32.mrf.mxu0
      %v520 = vadd.f32 %v320, %v519
      %v521 = vpop.f32.mrf.mxu0
      %v522 = vadd.f32 %v320, %v521
      %523 = vmatmul.bf16.gmra.mxu0 %v440
      %v524 = vpop.f32.mrf.mxu0
      %v525 = vadd.f32 %v320, %v524
      %v526 = vpop.f32.mrf.mxu0
      %v527 = vadd.f32 %v320, %v526
      %528 = vmatmul.bf16.gmra.mxu0 %v443
      %v529 = vpop.f32.mrf.mxu0
      %v530 = vadd.f32 %v320, %v529
      %v531 = vpop.f32.mrf.mxu0
      %v532 = vadd.f32 %v320, %v531
      %533 = vmatmul.bf16.gmra.mxu0 %v446
      %v534 = vpop.f32.mrf.mxu0
      %v535 = vadd.f32 %v320, %v534
      %v536 = vpop.f32.mrf.mxu0
      %v537 = vadd.f32 %v320, %v536
      %538 = vmatmul.bf16.gmra.mxu0 %v449
      %v539 = vpop.f32.mrf.mxu0
      %v540 = vadd.f32 %v320, %v539
      %v541 = vpop.f32.mrf.mxu0
      %v542 = vadd.f32 %v320, %v541
      %543 = vdwg.mxu0
      %v544 = vmin.f32 %v465, 20.0
      %v545 = vmin.f32 %v467, 20.0
      %v546 = vmin.f32 %v470, 20.0
      %v547 = vmin.f32 %v472, 20.0
      %v548 = vmin.f32 %v475, 20.0
      %v549 = vmin.f32 %v477, 20.0
      %v550 = vmin.f32 %v480, 20.0
      %v551 = vmin.f32 %v482, 20.0
      %v552 = vmin.f32 %v485, 20.0
      %v553 = vmin.f32 %v487, 20.0
      %v554 = vmin.f32 %v490, 20.0
      %v555 = vmin.f32 %v492, 20.0
      %v556 = vmin.f32 %v495, 20.0
      %v557 = vmin.f32 %v497, 20.0
      %v558 = vmin.f32 %v500, 20.0
      %v559 = vmin.f32 %v502, 20.0
      %v560 = vmin.f32 %v505, 20.0
      %v561 = vmin.f32 %v507, 20.0
      %v562 = vmin.f32 %v510, 20.0
      %v563 = vmin.f32 %v512, 20.0
      %v564 = vmin.f32 %v515, 20.0
      %v565 = vmin.f32 %v517, 20.0
      %v566 = vmin.f32 %v520, 20.0
      %v567 = vmin.f32 %v522, 20.0
      %v568 = vmin.f32 %v525, 20.0
      %v569 = vmin.f32 %v527, 20.0
      %v570 = vmin.f32 %v530, 20.0
      %v571 = vmin.f32 %v532, 20.0
      %v572 = vmin.f32 %v535, 20.0
      %v573 = vmin.f32 %v537, 20.0
      %v574 = vmin.f32 %v540, 20.0
      %v575 = vmin.f32 %v542, 20.0
      %v576 = vmul.f32 %v544, 1.442695
      %v577 = vpow.pop %v576
      %v578 = vmul.f32 %v545, 1.442695
      %v579 = vpow.pop %v578
      %v580 = vmul.f32 %v546, 1.442695
      %v581 = vpow.pop %v580
      %v582 = vmul.f32 %v547, 1.442695
      %v583 = vpow.pop %v582
      %v584 = vmul.f32 %v548, 1.442695
      %v585 = vpow.pop %v584
      %v586 = vmul.f32 %v549, 1.442695
      %v587 = vpow.pop %v586
      %v588 = vmul.f32 %v550, 1.442695
      %v589 = vpow.pop %v588
      %v590 = vmul.f32 %v551, 1.442695
      %v591 = vpow.pop %v590
      %v592 = vmul.f32 %v552, 1.442695
      %v593 = vpow.pop %v592
      %v594 = vmul.f32 %v553, 1.442695
      %v595 = vpow.pop %v594
      %v596 = vmul.f32 %v554, 1.442695
      %v597 = vpow.pop %v596
      %v598 = vmul.f32 %v555, 1.442695
      %v599 = vpow.pop %v598
      %v600 = vmul.f32 %v556, 1.442695
      %v601 = vpow.pop %v600
      %v602 = vmul.f32 %v557, 1.442695
      %v603 = vpow.pop %v602
      %v604 = vmul.f32 %v558, 1.442695
      %v605 = vpow.pop %v604
      %v606 = vmul.f32 %v559, 1.442695
      %v607 = vpow.pop %v606
      %v608 = vmul.f32 %v560, 1.442695
      %v609 = vpow.pop %v608
      %v610 = vmul.f32 %v561, 1.442695
      %v611 = vpow.pop %v610
      %v612 = vmul.f32 %v562, 1.442695
      %v613 = vpow.pop %v612
      %v614 = vmul.f32 %v563, 1.442695
      %v615 = vpow.pop %v614
      %v616 = vmul.f32 %v564, 1.442695
      %v617 = vpow.pop %v616
      %v618 = vmul.f32 %v565, 1.442695
      %v619 = vpow.pop %v618
      %v620 = vmul.f32 %v566, 1.442695
      %v621 = vpow.pop %v620
      %v622 = vmul.f32 %v567, 1.442695
      %v623 = vpow.pop %v622
      %v624 = vmul.f32 %v568, 1.442695
      %v625 = vpow.pop %v624
      %v626 = vmul.f32 %v569, 1.442695
      %v627 = vpow.pop %v626
      %v628 = vmul.f32 %v570, 1.442695
      %v629 = vpow.pop %v628
      %v630 = vmul.f32 %v571, 1.442695
      %v631 = vpow.pop %v630
      %v632 = vmul.f32 %v572, 1.442695
      %v633 = vpow.pop %v632
      %v634 = vmul.f32 %v573, 1.442695
      %v635 = vpow.pop %v634
      %v636 = vmul.f32 %v574, 1.442695
      %v637 = vpow.pop %v636
      %v638 = vmul.f32 %v575, 1.442695
      %v639 = vpow.pop %v638
      %v640 = vadd.f32 %v577, 2.0
      %v641 = vadd.f32 %v579, 2.0
      %v642 = vadd.f32 %v581, 2.0
      %v643 = vadd.f32 %v583, 2.0
      %v644 = vadd.f32 %v585, 2.0
      %v645 = vadd.f32 %v587, 2.0
      %v646 = vadd.f32 %v589, 2.0
      %v647 = vadd.f32 %v591, 2.0
      %v648 = vadd.f32 %v593, 2.0
      %v649 = vadd.f32 %v595, 2.0
      %v650 = vadd.f32 %v597, 2.0
      %v651 = vadd.f32 %v599, 2.0
      %v652 = vadd.f32 %v601, 2.0
      %v653 = vadd.f32 %v603, 2.0
      %v654 = vadd.f32 %v605, 2.0
      %v655 = vadd.f32 %v607, 2.0
      %v656 = vadd.f32 %v609, 2.0
      %v657 = vadd.f32 %v611, 2.0
      %v658 = vadd.f32 %v613, 2.0
      %v659 = vadd.f32 %v615, 2.0
      %v660 = vadd.f32 %v617, 2.0
      %v661 = vadd.f32 %v619, 2.0
      %v662 = vadd.f32 %v621, 2.0
      %v663 = vadd.f32 %v623, 2.0
      %v664 = vadd.f32 %v625, 2.0
      %v665 = vadd.f32 %v627, 2.0
      %v666 = vadd.f32 %v629, 2.0
      %v667 = vadd.f32 %v631, 2.0
      %v668 = vadd.f32 %v633, 2.0
      %v669 = vadd.f32 %v635, 2.0
      %v670 = vadd.f32 %v637, 2.0
      %v671 = vadd.f32 %v639, 2.0
      %v672 = vmul.f32 %v577, %v640
      %v673 = vmul.f32 %v579, %v641
      %v674 = vmul.f32 %v581, %v642
      %v675 = vmul.f32 %v583, %v643
      %v676 = vmul.f32 %v585, %v644
      %v677 = vmul.f32 %v587, %v645
      %v678 = vmul.f32 %v589, %v646
      %v679 = vmul.f32 %v591, %v647
      %v680 = vmul.f32 %v593, %v648
      %v681 = vmul.f32 %v595, %v649
      %v682 = vmul.f32 %v597, %v650
      %v683 = vmul.f32 %v599, %v651
      %v684 = vmul.f32 %v601, %v652
      %v685 = vmul.f32 %v603, %v653
      %v686 = vmul.f32 %v605, %v654
      %v687 = vmul.f32 %v607, %v655
      %v688 = vmul.f32 %v609, %v656
      %v689 = vmul.f32 %v611, %v657
      %v690 = vmul.f32 %v613, %v658
      %v691 = vmul.f32 %v615, %v659
      %v692 = vmul.f32 %v617, %v660
      %v693 = vmul.f32 %v619, %v661
      %v694 = vmul.f32 %v621, %v662
      %v695 = vmul.f32 %v623, %v663
      %v696 = vmul.f32 %v625, %v664
      %v697 = vmul.f32 %v627, %v665
      %v698 = vmul.f32 %v629, %v666
      %v699 = vmul.f32 %v631, %v667
      %v700 = vmul.f32 %v633, %v668
      %v701 = vmul.f32 %v635, %v669
      %v702 = vmul.f32 %v637, %v670
      %v703 = vmul.f32 %v639, %v671
      %v704 = vadd.f32 %v672, 2.0
      %v705 = vadd.f32 %v673, 2.0
      %v706 = vadd.f32 %v674, 2.0
      %v707 = vadd.f32 %v675, 2.0
      %v708 = vadd.f32 %v676, 2.0
      %v709 = vadd.f32 %v677, 2.0
      %v710 = vadd.f32 %v678, 2.0
      %v711 = vadd.f32 %v679, 2.0
      %v712 = vadd.f32 %v680, 2.0
      %v713 = vadd.f32 %v681, 2.0
      %v714 = vadd.f32 %v682, 2.0
      %v715 = vadd.f32 %v683, 2.0
      %v716 = vadd.f32 %v684, 2.0
      %v717 = vadd.f32 %v685, 2.0
      %v718 = vadd.f32 %v686, 2.0
      %v719 = vadd.f32 %v687, 2.0
      %v720 = vadd.f32 %v688, 2.0
      %v721 = vadd.f32 %v689, 2.0
      %v722 = vadd.f32 %v690, 2.0
      %v723 = vadd.f32 %v691, 2.0
      %v724 = vadd.f32 %v692, 2.0
      %v725 = vadd.f32 %v693, 2.0
      %v726 = vadd.f32 %v694, 2.0
      %v727 = vadd.f32 %v695, 2.0
      %v728 = vadd.f32 %v696, 2.0
      %v729 = vadd.f32 %v697, 2.0
      %v730 = vadd.f32 %v698, 2.0
      %v731 = vadd.f32 %v699, 2.0
      %v732 = vadd.f32 %v700, 2.0
      %v733 = vadd.f32 %v701, 2.0
      %v734 = vadd.f32 %v702, 2.0
      %v735 = vadd.f32 %v703, 2.0
      %v736 = vrcp.pop %v704
      %v737 = vrcp.pop %v705
      %v738 = vrcp.pop %v706
      %v739 = vrcp.pop %v707
      %v740 = vrcp.pop %v708
      %v741 = vrcp.pop %v709
      %v742 = vrcp.pop %v710
      %v743 = vrcp.pop %v711
      %v744 = vrcp.pop %v712
      %v745 = vrcp.pop %v713
      %v746 = vrcp.pop %v714
      %v747 = vrcp.pop %v715
      %v748 = vrcp.pop %v716
      %v749 = vrcp.pop %v717
      %v750 = vrcp.pop %v718
      %v751 = vrcp.pop %v719
      %v752 = vrcp.pop %v720
      %v753 = vrcp.pop %v721
      %v754 = vrcp.pop %v722
      %v755 = vrcp.pop %v723
      %v756 = vrcp.pop %v724
      %v757 = vrcp.pop %v725
      %v758 = vrcp.pop %v726
      %v759 = vrcp.pop %v727
      %v760 = vrcp.pop %v728
      %v761 = vrcp.pop %v729
      %v762 = vrcp.pop %v730
      %v763 = vrcp.pop %v731
      %v764 = vrcp.pop %v732
      %v765 = vrcp.pop %v733
      %v766 = vrcp.pop %v734
      %v767 = vrcp.pop %v735
      %v768 = vmul.f32 %v704, %v736
      %v769 = vmul.f32 %v705, %v737
      %v770 = vmul.f32 %v706, %v738
      %v771 = vmul.f32 %v707, %v739
      %v772 = vmul.f32 %v708, %v740
      %v773 = vmul.f32 %v709, %v741
      %v774 = vmul.f32 %v710, %v742
      %v775 = vmul.f32 %v711, %v743
      %v776 = vmul.f32 %v712, %v744
      %v777 = vmul.f32 %v713, %v745
      %v778 = vmul.f32 %v714, %v746
      %v779 = vmul.f32 %v715, %v747
      %v780 = vmul.f32 %v716, %v748
      %v781 = vmul.f32 %v717, %v749
      %v782 = vmul.f32 %v718, %v750
      %v783 = vmul.f32 %v719, %v751
      %v784 = vmul.f32 %v720, %v752
      %v785 = vmul.f32 %v721, %v753
      %v786 = vmul.f32 %v722, %v754
      %v787 = vmul.f32 %v723, %v755
      %v788 = vmul.f32 %v724, %v756
      %v789 = vmul.f32 %v725, %v757
      %v790 = vmul.f32 %v726, %v758
      %v791 = vmul.f32 %v727, %v759
      %v792 = vmul.f32 %v728, %v760
      %v793 = vmul.f32 %v729, %v761
      %v794 = vmul.f32 %v730, %v762
      %v795 = vmul.f32 %v731, %v763
      %v796 = vmul.f32 %v732, %v764
      %v797 = vmul.f32 %v733, %v765
      %v798 = vmul.f32 %v734, %v766
      %v799 = vmul.f32 %v735, %v767
      %v800 = vsub.f32 2.0, %v768
      %v801 = vsub.f32 2.0, %v769
      %v802 = vsub.f32 2.0, %v770
      %v803 = vsub.f32 2.0, %v771
      %v804 = vsub.f32 2.0, %v772
      %v805 = vsub.f32 2.0, %v773
      %v806 = vsub.f32 2.0, %v774
      %v807 = vsub.f32 2.0, %v775
      %v808 = vsub.f32 2.0, %v776
      %v809 = vsub.f32 2.0, %v777
      %v810 = vsub.f32 2.0, %v778
      %v811 = vsub.f32 2.0, %v779
      %v812 = vsub.f32 2.0, %v780
      %v813 = vsub.f32 2.0, %v781
      %v814 = vsub.f32 2.0, %v782
      %v815 = vsub.f32 2.0, %v783
      %v816 = vsub.f32 2.0, %v784
      %v817 = vsub.f32 2.0, %v785
      %v818 = vsub.f32 2.0, %v786
      %v819 = vsub.f32 2.0, %v787
      %v820 = vsub.f32 2.0, %v788
      %v821 = vsub.f32 2.0, %v789
      %v822 = vsub.f32 2.0, %v790
      %v823 = vsub.f32 2.0, %v791
      %v824 = vsub.f32 2.0, %v792
      %v825 = vsub.f32 2.0, %v793
      %v826 = vsub.f32 2.0, %v794
      %v827 = vsub.f32 2.0, %v795
      %v828 = vsub.f32 2.0, %v796
      %v829 = vsub.f32 2.0, %v797
      %v830 = vsub.f32 2.0, %v798
      %v831 = vsub.f32 2.0, %v799
      %v832 = vmul.f32 %v736, %v800
      %v833 = vmul.f32 %v737, %v801
      %v834 = vmul.f32 %v738, %v802
      %v835 = vmul.f32 %v739, %v803
      %v836 = vmul.f32 %v740, %v804
      %v837 = vmul.f32 %v741, %v805
      %v838 = vmul.f32 %v742, %v806
      %v839 = vmul.f32 %v743, %v807
      %v840 = vmul.f32 %v744, %v808
      %v841 = vmul.f32 %v745, %v809
      %v842 = vmul.f32 %v746, %v810
      %v843 = vmul.f32 %v747, %v811
      %v844 = vmul.f32 %v748, %v812
      %v845 = vmul.f32 %v749, %v813
      %v846 = vmul.f32 %v750, %v814
      %v847 = vmul.f32 %v751, %v815
      %v848 = vmul.f32 %v752, %v816
      %v849 = vmul.f32 %v753, %v817
      %v850 = vmul.f32 %v754, %v818
      %v851 = vmul.f32 %v755, %v819
      %v852 = vmul.f32 %v756, %v820
      %v853 = vmul.f32 %v757, %v821
      %v854 = vmul.f32 %v758, %v822
      %v855 = vmul.f32 %v759, %v823
      %v856 = vmul.f32 %v760, %v824
      %v857 = vmul.f32 %v761, %v825
      %v858 = vmul.f32 %v762, %v826
      %v859 = vmul.f32 %v763, %v827
      %v860 = vmul.f32 %v764, %v828
      %v861 = vmul.f32 %v765, %v829
      %v862 = vmul.f32 %v766, %v830
      %v863 = vmul.f32 %v767, %v831
      %vm864 = vcmp.gt.f32.partialorder %v465, 20.0
      %vm865 = vcmp.gt.f32.partialorder %v467, 20.0
      %vm866 = vcmp.gt.f32.partialorder %v470, 20.0
      %vm867 = vcmp.gt.f32.partialorder %v472, 20.0
      %vm868 = vcmp.gt.f32.partialorder %v475, 20.0
      %vm869 = vcmp.gt.f32.partialorder %v477, 20.0
      %vm870 = vcmp.gt.f32.partialorder %v480, 20.0
      %vm871 = vcmp.gt.f32.partialorder %v482, 20.0
      %vm872 = vcmp.gt.f32.partialorder %v485, 20.0
      %vm873 = vcmp.gt.f32.partialorder %v487, 20.0
      %vm874 = vcmp.gt.f32.partialorder %v490, 20.0
      %vm875 = vcmp.gt.f32.partialorder %v492, 20.0
      %vm876 = vcmp.gt.f32.partialorder %v495, 20.0
      %vm877 = vcmp.gt.f32.partialorder %v497, 20.0
      %vm878 = vcmp.gt.f32.partialorder %v500, 20.0
      %vm879 = vcmp.gt.f32.partialorder %v502, 20.0
      %vm880 = vcmp.gt.f32.partialorder %v505, 20.0
      %vm881 = vcmp.gt.f32.partialorder %v507, 20.0
      %vm882 = vcmp.gt.f32.partialorder %v510, 20.0
      %vm883 = vcmp.gt.f32.partialorder %v512, 20.0
      %vm884 = vcmp.gt.f32.partialorder %v515, 20.0
      %vm885 = vcmp.gt.f32.partialorder %v517, 20.0
      %vm886 = vcmp.gt.f32.partialorder %v520, 20.0
      %vm887 = vcmp.gt.f32.partialorder %v522, 20.0
      %vm888 = vcmp.gt.f32.partialorder %v525, 20.0
      %vm889 = vcmp.gt.f32.partialorder %v527, 20.0
      %vm890 = vcmp.gt.f32.partialorder %v530, 20.0
      %vm891 = vcmp.gt.f32.partialorder %v532, 20.0
      %vm892 = vcmp.gt.f32.partialorder %v535, 20.0
      %vm893 = vcmp.gt.f32.partialorder %v537, 20.0
      %vm894 = vcmp.gt.f32.partialorder %v540, 20.0
      %vm895 = vcmp.gt.f32.partialorder %v542, 20.0
      %v896 = vmul.f32 %v465, %v672
      %v897 = vmul.f32 %v467, %v673
      %v898 = vmul.f32 %v470, %v674
      %v899 = vmul.f32 %v472, %v675
      %v900 = vmul.f32 %v475, %v676
      %v901 = vmul.f32 %v477, %v677
      %v902 = vmul.f32 %v480, %v678
      %v903 = vmul.f32 %v482, %v679
      %v904 = vmul.f32 %v485, %v680
      %v905 = vmul.f32 %v487, %v681
      %v906 = vmul.f32 %v490, %v682
      %v907 = vmul.f32 %v492, %v683
      %v908 = vmul.f32 %v495, %v684
      %v909 = vmul.f32 %v497, %v685
      %v910 = vmul.f32 %v500, %v686
      %v911 = vmul.f32 %v502, %v687
      %v912 = vmul.f32 %v505, %v688
      %v913 = vmul.f32 %v507, %v689
      %v914 = vmul.f32 %v510, %v690
      %v915 = vmul.f32 %v512, %v691
      %v916 = vmul.f32 %v515, %v692
      %v917 = vmul.f32 %v517, %v693
      %v918 = vmul.f32 %v520, %v694
      %v919 = vmul.f32 %v522, %v695
      %v920 = vmul.f32 %v525, %v696
      %v921 = vmul.f32 %v527, %v697
      %v922 = vmul.f32 %v530, %v698
      %v923 = vmul.f32 %v532, %v699
      %v924 = vmul.f32 %v535, %v700
      %v925 = vmul.f32 %v537, %v701
      %v926 = vmul.f32 %v540, %v702
      %v927 = vmul.f32 %v542, %v703
      %v928 = vmul.f32 %v896, %v832
      %v929 = vmul.f32 %v897, %v833
      %v930 = vmul.f32 %v898, %v834
      %v931 = vmul.f32 %v899, %v835
      %v932 = vmul.f32 %v900, %v836
      %v933 = vmul.f32 %v901, %v837
      %v934 = vmul.f32 %v902, %v838
      %v935 = vmul.f32 %v903, %v839
      %v936 = vmul.f32 %v904, %v840
      %v937 = vmul.f32 %v905, %v841
      %v938 = vmul.f32 %v906, %v842
      %v939 = vmul.f32 %v907, %v843
      %v940 = vmul.f32 %v908, %v844
      %v941 = vmul.f32 %v909, %v845
      %v942 = vmul.f32 %v910, %v846
      %v943 = vmul.f32 %v911, %v847
      %v944 = vmul.f32 %v912, %v848
      %v945 = vmul.f32 %v913, %v849
      %v946 = vmul.f32 %v914, %v850
      %v947 = vmul.f32 %v915, %v851
      %v948 = vmul.f32 %v916, %v852
      %v949 = vmul.f32 %v917, %v853
      %v950 = vmul.f32 %v918, %v854
      %v951 = vmul.f32 %v919, %v855
      %v952 = vmul.f32 %v920, %v856
      %v953 = vmul.f32 %v921, %v857
      %v954 = vmul.f32 %v922, %v858
      %v955 = vmul.f32 %v923, %v859
      %v956 = vmul.f32 %v924, %v860
      %v957 = vmul.f32 %v925, %v861
      %v958 = vmul.f32 %v926, %v862
      %v959 = vmul.f32 %v927, %v863
      %v960 = vsel %vm864, %v465, %v928
      %v961 = vsel %vm865, %v467, %v929
      %v962 = vsel %vm866, %v470, %v930
      %v963 = vsel %vm867, %v472, %v931
      %v964 = vsel %vm868, %v475, %v932
      %v965 = vsel %vm869, %v477, %v933
      %v966 = vsel %vm870, %v480, %v934
      %v967 = vsel %vm871, %v482, %v935
      %v968 = vsel %vm872, %v485, %v936
      %v969 = vsel %vm873, %v487, %v937
      %v970 = vsel %vm874, %v490, %v938
      %v971 = vsel %vm875, %v492, %v939
      %v972 = vsel %vm876, %v495, %v940
      %v973 = vsel %vm877, %v497, %v941
      %v974 = vsel %vm878, %v500, %v942
      %v975 = vsel %vm879, %v502, %v943
      %v976 = vsel %vm880, %v505, %v944
      %v977 = vsel %vm881, %v507, %v945
      %v978 = vsel %vm882, %v510, %v946
      %v979 = vsel %vm883, %v512, %v947
      %v980 = vsel %vm884, %v515, %v948
      %v981 = vsel %vm885, %v517, %v949
      %v982 = vsel %vm886, %v520, %v950
      %v983 = vsel %vm887, %v522, %v951
      %v984 = vsel %vm888, %v525, %v952
      %v985 = vsel %vm889, %v527, %v953
      %v986 = vsel %vm890, %v530, %v954
      %v987 = vsel %vm891, %v532, %v955
      %v988 = vsel %vm892, %v535, %v956
      %v989 = vsel %vm893, %v537, %v957
      %v990 = vsel %vm894, %v540, %v958
      %v991 = vsel %vm895, %v542, %v959
      %v993 = vunpack.c.l.s4 1966171168
      %v994 = vunpack.c.0.s8 %v993
      %v995 = vperm.slane %v960, %v994
      %v997 = vunpack.c.l.s4 1966171168
      %v998 = vunpack.c.0.s8 %v997
      %v999 = vperm.slane %v961, %v998
      %v1001 = vunpack.c.l.s4 1966171168
      %v1002 = vunpack.c.0.s8 %v1001
      %v1003 = vperm.slane %v962, %v1002
      %v1005 = vunpack.c.l.s4 1966171168
      %v1006 = vunpack.c.0.s8 %v1005
      %v1007 = vperm.slane %v963, %v1006
      %v1009 = vunpack.c.l.s4 1966171168
      %v1010 = vunpack.c.0.s8 %v1009
      %v1011 = vperm.slane %v964, %v1010
      %v1013 = vunpack.c.l.s4 1966171168
      %v1014 = vunpack.c.0.s8 %v1013
      %v1015 = vperm.slane %v965, %v1014
      %v1017 = vunpack.c.l.s4 1966171168
      %v1018 = vunpack.c.0.s8 %v1017
      %v1019 = vperm.slane %v966, %v1018
      %v1021 = vunpack.c.l.s4 1966171168
      %v1022 = vunpack.c.0.s8 %v1021
      %v1023 = vperm.slane %v967, %v1022
      %v1025 = vunpack.c.l.s4 1966171168
      %v1026 = vunpack.c.0.s8 %v1025
      %v1027 = vperm.slane %v968, %v1026
      %v1029 = vunpack.c.l.s4 1966171168
      %v1030 = vunpack.c.0.s8 %v1029
      %v1031 = vperm.slane %v969, %v1030
      %v1033 = vunpack.c.l.s4 1966171168
      %v1034 = vunpack.c.0.s8 %v1033
      %v1035 = vperm.slane %v970, %v1034
      %v1037 = vunpack.c.l.s4 1966171168
      %v1038 = vunpack.c.0.s8 %v1037
      %v1039 = vperm.slane %v971, %v1038
      %v1041 = vunpack.c.l.s4 1966171168
      %v1042 = vunpack.c.0.s8 %v1041
      %v1043 = vperm.slane %v972, %v1042
      %v1045 = vunpack.c.l.s4 1966171168
      %v1046 = vunpack.c.0.s8 %v1045
      %v1047 = vperm.slane %v973, %v1046
      %v1049 = vunpack.c.l.s4 1966171168
      %v1050 = vunpack.c.0.s8 %v1049
      %v1051 = vperm.slane %v974, %v1050
      %v1053 = vunpack.c.l.s4 1966171168
      %v1054 = vunpack.c.0.s8 %v1053
      %v1055 = vperm.slane %v975, %v1054
      %v1057 = vunpack.c.l.s4 1966171168
      %v1058 = vunpack.c.0.s8 %v1057
      %v1059 = vperm.slane %v976, %v1058
      %v1061 = vunpack.c.l.s4 1966171168
      %v1062 = vunpack.c.0.s8 %v1061
      %v1063 = vperm.slane %v977, %v1062
      %v1065 = vunpack.c.l.s4 1966171168
      %v1066 = vunpack.c.0.s8 %v1065
      %v1067 = vperm.slane %v978, %v1066
      %v1069 = vunpack.c.l.s4 1966171168
      %v1070 = vunpack.c.0.s8 %v1069
      %v1071 = vperm.slane %v979, %v1070
      %v1073 = vunpack.c.l.s4 1966171168
      %v1074 = vunpack.c.0.s8 %v1073
      %v1075 = vperm.slane %v980, %v1074
      %v1077 = vunpack.c.l.s4 1966171168
      %v1078 = vunpack.c.0.s8 %v1077
      %v1079 = vperm.slane %v981, %v1078
      %v1081 = vunpack.c.l.s4 1966171168
      %v1082 = vunpack.c.0.s8 %v1081
      %v1083 = vperm.slane %v982, %v1082
      %v1085 = vunpack.c.l.s4 1966171168
      %v1086 = vunpack.c.0.s8 %v1085
      %v1087 = vperm.slane %v983, %v1086
      %v1089 = vunpack.c.l.s4 1966171168
      %v1090 = vunpack.c.0.s8 %v1089
      %v1091 = vperm.slane %v984, %v1090
      %v1093 = vunpack.c.l.s4 1966171168
      %v1094 = vunpack.c.0.s8 %v1093
      %v1095 = vperm.slane %v985, %v1094
      %v1097 = vunpack.c.l.s4 1966171168
      %v1098 = vunpack.c.0.s8 %v1097
      %v1099 = vperm.slane %v986, %v1098
      %v1101 = vunpack.c.l.s4 1966171168
      %v1102 = vunpack.c.0.s8 %v1101
      %v1103 = vperm.slane %v987, %v1102
      %v1105 = vunpack.c.l.s4 1966171168
      %v1106 = vunpack.c.0.s8 %v1105
      %v1107 = vperm.slane %v988, %v1106
      %v1109 = vunpack.c.l.s4 1966171168
      %v1110 = vunpack.c.0.s8 %v1109
      %v1111 = vperm.slane %v989, %v1110
      %v1113 = vunpack.c.l.s4 1966171168
      %v1114 = vunpack.c.0.s8 %v1113
      %v1115 = vperm.slane %v990, %v1114
      %v1117 = vunpack.c.l.s4 1966171168
      %v1118 = vunpack.c.0.s8 %v1117
      %v1119 = vperm.slane %v991, %v1118
      %1152 = vst [vmem:[#allocation1] ss:$2 sm:$0xff] %v995
      %s1153 = scalar_lea.vmem [#allocation1], 1
      %1154 = vst [vmem:[%s1153] ss:$2 sm:$0xff] %v999
      %v1155 = vld.sshfl [vmem:[#allocation1] sm:$0xff pattern:$0x75316420]
      %v1156 = vld.sshfl [vmem:[#allocation1 + $0x8] sm:$0xff pattern:$0x75316420]
      %s1157 = scalar_lea.vmem [#allocation1], 16
      %1158 = vst [vmem:[%s1157] ss:$2 sm:$0xff] %v1003
      %s1159 = scalar_lea.vmem [#allocation1], 17
      %1160 = vst [vmem:[%s1159] ss:$2 sm:$0xff] %v1007
      %v1161 = vld.sshfl [vmem:[#allocation1 + $0x10] sm:$0xff pattern:$0x75316420]
      %v1162 = vld.sshfl [vmem:[#allocation1 + $0x18] sm:$0xff pattern:$0x75316420]
      %s1163 = scalar_lea.vmem [#allocation1], 32
      %1164 = vst [vmem:[%s1163] ss:$2 sm:$0xff] %v1011
      %s1165 = scalar_lea.vmem [#allocation1], 33
      %1166 = vst [vmem:[%s1165] ss:$2 sm:$0xff] %v1015
      %v1167 = vld.sshfl [vmem:[#allocation1 + $0x20] sm:$0xff pattern:$0x75316420]
      %v1168 = vld.sshfl [vmem:[#allocation1 + $0x28] sm:$0xff pattern:$0x75316420]
      %s1169 = scalar_lea.vmem [#allocation1], 48
      %1170 = vst [vmem:[%s1169] ss:$2 sm:$0xff] %v1019
      %s1171 = scalar_lea.vmem [#allocation1], 49
      %1172 = vst [vmem:[%s1171] ss:$2 sm:$0xff] %v1023
      %v1173 = vld.sshfl [vmem:[#allocation1 + $0x30] sm:$0xff pattern:$0x75316420]
      %v1174 = vld.sshfl [vmem:[#allocation1 + $0x38] sm:$0xff pattern:$0x75316420]
      %1175 = vst [vmem:[#allocation1] ss:$2 sm:$0xff] %v1027
      %1176 = vst [vmem:[%s1153] ss:$2 sm:$0xff] %v1031
      %v1177 = vld.sshfl [vmem:[#allocation1] sm:$0xff pattern:$0x75316420]
      %v1178 = vld.sshfl [vmem:[#allocation1 + $0x8] sm:$0xff pattern:$0x75316420]
      %1179 = vst [vmem:[%s1157] ss:$2 sm:$0xff] %v1035
      %1180 = vst [vmem:[%s1159] ss:$2 sm:$0xff] %v1039
      %v1181 = vld.sshfl [vmem:[#allocation1 + $0x10] sm:$0xff pattern:$0x75316420]
      %v1182 = vld.sshfl [vmem:[#allocation1 + $0x18] sm:$0xff pattern:$0x75316420]
      %1183 = vst [vmem:[%s1163] ss:$2 sm:$0xff] %v1043
      %1184 = vst [vmem:[%s1165] ss:$2 sm:$0xff] %v1047
      %v1185 = vld.sshfl [vmem:[#allocation1 + $0x20] sm:$0xff pattern:$0x75316420]
      %v1186 = vld.sshfl [vmem:[#allocation1 + $0x28] sm:$0xff pattern:$0x75316420]
      %1187 = vst [vmem:[%s1169] ss:$2 sm:$0xff] %v1051
      %1188 = vst [vmem:[%s1171] ss:$2 sm:$0xff] %v1055
      %v1189 = vld.sshfl [vmem:[#allocation1 + $0x30] sm:$0xff pattern:$0x75316420]
      %v1190 = vld.sshfl [vmem:[#allocation1 + $0x38] sm:$0xff pattern:$0x75316420]
      %1191 = vst [vmem:[#allocation1] ss:$2 sm:$0xff] %v1059
      %1192 = vst [vmem:[%s1153] ss:$2 sm:$0xff] %v1063
      %v1193 = vld.sshfl [vmem:[#allocation1] sm:$0xff pattern:$0x75316420]
      %v1194 = vld.sshfl [vmem:[#allocation1 + $0x8] sm:$0xff pattern:$0x75316420]
      %1195 = vst [vmem:[%s1157] ss:$2 sm:$0xff] %v1067
      %1196 = vst [vmem:[%s1159] ss:$2 sm:$0xff] %v1071
      %v1197 = vld.sshfl [vmem:[#allocation1 + $0x10] sm:$0xff pattern:$0x75316420]
      %v1198 = vld.sshfl [vmem:[#allocation1 + $0x18] sm:$0xff pattern:$0x75316420]
      %1199 = vst [vmem:[%s1163] ss:$2 sm:$0xff] %v1075
      %1200 = vst [vmem:[%s1165] ss:$2 sm:$0xff] %v1079
      %v1201 = vld.sshfl [vmem:[#allocation1 + $0x20] sm:$0xff pattern:$0x75316420]
      %v1202 = vld.sshfl [vmem:[#allocation1 + $0x28] sm:$0xff pattern:$0x75316420]
      %1203 = vst [vmem:[%s1169] ss:$2 sm:$0xff] %v1083
      %1204 = vst [vmem:[%s1171] ss:$2 sm:$0xff] %v1087
      %v1205 = vld.sshfl [vmem:[#allocation1 + $0x30] sm:$0xff pattern:$0x75316420]
      %v1206 = vld.sshfl [vmem:[#allocation1 + $0x38] sm:$0xff pattern:$0x75316420]
      %1207 = vst [vmem:[#allocation1] ss:$2 sm:$0xff] %v1091
      %1208 = vst [vmem:[%s1153] ss:$2 sm:$0xff] %v1095
      %v1209 = vld.sshfl [vmem:[#allocation1] sm:$0xff pattern:$0x75316420]
      %v1210 = vld.sshfl [vmem:[#allocation1 + $0x8] sm:$0xff pattern:$0x75316420]
      %1211 = vst [vmem:[%s1157] ss:$2 sm:$0xff] %v1099
      %1212 = vst [vmem:[%s1159] ss:$2 sm:$0xff] %v1103
      %v1213 = vld.sshfl [vmem:[#allocation1 + $0x10] sm:$0xff pattern:$0x75316420]
      %v1214 = vld.sshfl [vmem:[#allocation1 + $0x18] sm:$0xff pattern:$0x75316420]
      %1215 = vst [vmem:[%s1163] ss:$2 sm:$0xff] %v1107
      %1216 = vst [vmem:[%s1165] ss:$2 sm:$0xff] %v1111
      %v1217 = vld.sshfl [vmem:[#allocation1 + $0x20] sm:$0xff pattern:$0x75316420]
      %v1218 = vld.sshfl [vmem:[#allocation1 + $0x28] sm:$0xff pattern:$0x75316420]
      %1219 = vst [vmem:[%s1169] ss:$2 sm:$0xff] %v1115
      %1220 = vst [vmem:[%s1171] ss:$2 sm:$0xff] %v1119
      %v1221 = vld.sshfl [vmem:[#allocation1 + $0x30] sm:$0xff pattern:$0x75316420]
      %v1222 = vld.sshfl [vmem:[#allocation1 + $0x38] sm:$0xff pattern:$0x75316420]
      %v1255 = vpack.c.bf16 %v1156, %v1155
      %v1256 = vpack.c.bf16 %v1162, %v1161
      %v1257 = vpack.c.bf16 %v1168, %v1167
      %v1258 = vpack.c.bf16 %v1174, %v1173
      %v1259 = vpack.c.bf16 %v1178, %v1177
      %v1260 = vpack.c.bf16 %v1182, %v1181
      %v1261 = vpack.c.bf16 %v1186, %v1185
      %v1262 = vpack.c.bf16 %v1190, %v1189
      %v1263 = vpack.c.bf16 %v1194, %v1193
      %v1264 = vpack.c.bf16 %v1198, %v1197
      %v1265 = vpack.c.bf16 %v1202, %v1201
      %v1266 = vpack.c.bf16 %v1206, %v1205
      %v1267 = vpack.c.bf16 %v1210, %v1209
      %v1268 = vpack.c.bf16 %v1214, %v1213
      %v1269 = vpack.c.bf16 %v1218, %v1217
      %v1270 = vpack.c.bf16 %v1222, %v1221
      %1271 = vst [vmem:[#allocation2] sm:$0xff] 0
      %vm1272 = vcmask 1040384
      %vm1273 = vsmask.f32 256
      %vm1274 = vmand %vm1272, %vm1273
      %vm1275 = vcmask 1044484
      %vm1276 = vsmask.f32 4352
      %vm1277 = vmand %vm1275, %vm1276
      %vm1278 = vmor %vm1277, %vm1274
      %v1279 = vld [vmem:[#allocation2 + $0x8] sm:$0x11]
      %v1280 = vsel %vm1278, 0, %v1279
      %1281 = vst [vmem:[#allocation2 + $0x8] sm:$0x11] %v1280
      %v1282 = vld [vmem:[#allocation2] sm:$0x11]
      %v1283 = vsel %vm1278, 0, %v1282
      %1284 = vst [vmem:[#allocation2] sm:$0x11] %v1283
      %v1285 = vld [vmem:[#allocation2 + $0x10] sm:$0x11]
      %v1286 = vsel %vm1278, 0, %v1285
      %1287 = vst [vmem:[#allocation2 + $0x10] sm:$0x11] %v1286
      %v1288 = vld [vmem:[#allocation2 + $0x20] sm:$0x11]
      %v1289 = vsel %vm1278, 0, %v1288
      %1290 = vst [vmem:[#allocation2 + $0x20] sm:$0x11] %v1289
      %v1291 = vld [vmem:[#allocation2 + $0x30] sm:$0x11]
      %v1292 = vsel %vm1278, 0, %v1291
      %1293 = vst [vmem:[#allocation2 + $0x30] sm:$0x11] %v1292
      %v1294 = vld [vmem:[#allocation2 + $0x40] sm:$0x11]
      %v1295 = vsel %vm1278, 0, %v1294
      %1296 = vst [vmem:[#allocation2 + $0x40] sm:$0x11] %v1295
      %v1297 = vld [vmem:[#allocation2 + $0x50] sm:$0x11]
      %v1298 = vsel %vm1278, 0, %v1297
      %1299 = vst [vmem:[#allocation2 + $0x50] sm:$0x11] %v1298
      %v1300 = vld [vmem:[#allocation2 + $0x60] sm:$0x11]
      %v1301 = vsel %vm1278, 0, %v1300
      %1302 = vst [vmem:[#allocation2 + $0x60] sm:$0x11] %v1301
      %v1303 = vld [vmem:[#allocation2 + $0x70] sm:$0x11]
      %v1304 = vsel %vm1278, 0, %v1303
      %1305 = vst [vmem:[#allocation2 + $0x70] sm:$0x11] %v1304
      %v1306 = vld [vmem:[#allocation2 + $0x80] sm:$0x11]
      %v1307 = vsel %vm1278, 0, %v1306
      %1308 = vst [vmem:[#allocation2 + $0x80] sm:$0x11] %v1307
      %v1309 = vld [vmem:[#allocation2 + $0x90] sm:$0x11]
      %v1310 = vsel %vm1278, 0, %v1309
      %1311 = vst [vmem:[#allocation2 + $0x90] sm:$0x11] %v1310
      %v1312 = vld [vmem:[#allocation2 + $0xa0] sm:$0x11]
      %v1313 = vsel %vm1278, 0, %v1312
      %1314 = vst [vmem:[#allocation2 + $0xa0] sm:$0x11] %v1313
      %v1315 = vld [vmem:[#allocation2 + $0xb0] sm:$0x11]
      %v1316 = vsel %vm1278, 0, %v1315
      %1317 = vst [vmem:[#allocation2 + $0xb0] sm:$0x11] %v1316
      %v1318 = vld [vmem:[#allocation2 + $0xc0] sm:$0x11]
      %v1319 = vsel %vm1278, 0, %v1318
      %1320 = vst [vmem:[#allocation2 + $0xc0] sm:$0x11] %v1319
      %v1321 = vld [vmem:[#allocation2 + $0xd0] sm:$0x11]
      %v1322 = vsel %vm1278, 0, %v1321
      %1323 = vst [vmem:[#allocation2 + $0xd0] sm:$0x11] %v1322
      %v1324 = vld [vmem:[#allocation2 + $0xe0] sm:$0x11]
      %v1325 = vsel %vm1278, 0, %v1324
      %1326 = vst [vmem:[#allocation2 + $0xe0] sm:$0x11] %v1325
      %v1327 = vld [vmem:[#allocation2 + $0xf0] sm:$0x11]
      %v1328 = vsel %vm1278, 0, %v1327
      %1329 = vst [vmem:[#allocation2 + $0xf0] sm:$0x11] %v1328
      %v1330 = vld [vmem:[#allocation2 + $0x100] sm:$0x11]
      %v1331 = vsel %vm1278, 0, %v1330
      %1332 = vst [vmem:[#allocation2 + $0x100] sm:$0x11] %v1331
      %v1333 = vld [vmem:[#allocation2 + $0x110] sm:$0x11]
      %v1334 = vsel %vm1278, 0, %v1333
      %1335 = vst [vmem:[#allocation2 + $0x110] sm:$0x11] %v1334
      %v1337 = vshrl.u32 %v1255, 16
      %v1339 = vrot.slane %v1337, 7
      %v1340 = vshll.u32 %v1255, 16
      %v1342 = vor.u32 %v1339, %v1340
      %v1343 = vrot.slane %v1339, 4
      %v1345 = vshrl.u32 %v1257, 16
      %v1347 = vrot.slane %v1345, 7
      %v1348 = vshll.u32 %v1257, 16
      %v1350 = vor.u32 %v1347, %v1348
      %v1351 = vrot.slane %v1347, 4
      %v1353 = vshrl.u32 %v1259, 16
      %v1355 = vrot.slane %v1353, 7
      %v1356 = vshll.u32 %v1259, 16
      %v1358 = vor.u32 %v1355, %v1356
      %v1359 = vrot.slane %v1355, 4
      %v1361 = vshrl.u32 %v1261, 16
      %v1363 = vrot.slane %v1361, 7
      %v1364 = vshll.u32 %v1261, 16
      %v1366 = vor.u32 %v1363, %v1364
      %v1367 = vrot.slane %v1363, 4
      %v1369 = vshrl.u32 %v1263, 16
      %v1371 = vrot.slane %v1369, 7
      %v1372 = vshll.u32 %v1263, 16
      %v1374 = vor.u32 %v1371, %v1372
      %v1375 = vrot.slane %v1371, 4
      %v1377 = vshrl.u32 %v1265, 16
      %v1379 = vrot.slane %v1377, 7
      %v1380 = vshll.u32 %v1265, 16
      %v1382 = vor.u32 %v1379, %v1380
      %v1383 = vrot.slane %v1379, 4
      %v1385 = vshrl.u32 %v1267, 16
      %v1387 = vrot.slane %v1385, 7
      %v1388 = vshll.u32 %v1267, 16
      %v1390 = vor.u32 %v1387, %v1388
      %v1391 = vrot.slane %v1387, 4
      %v1393 = vshrl.u32 %v1269, 16
      %v1395 = vrot.slane %v1393, 7
      %v1396 = vshll.u32 %v1269, 16
      %v1398 = vor.u32 %v1395, %v1396
      %v1399 = vrot.slane %v1395, 4
      %s1416 = scalar_lea.vmem [#allocation2], 16
      %vm1417 = vcmask 1043456
      %vm1418 = vsmask.f32 7938
      %vm1419 = vmand %vm1417, %vm1418
      %vm1420 = vcmask 1047556
      %vm1421 = vsmask.f32 7954
      %vm1422 = vmand %vm1420, %vm1421
      %vm1423 = vmor %vm1422, %vm1419
      %v1424 = vld [vmem:[%s1416] sm:$0xff]
      %v1425 = vsel %vm1423, %v1342, %v1424
      %1426 = vst [vmem:[%s1416] sm:$0xff] %v1425
      %v1427 = vld [vmem:[%s1416 + $0x8] sm:$0x11]
      %v1428 = vsel %vm1278, %v1343, %v1427
      %1429 = vst [vmem:[%s1416 + $0x8] sm:$0x11] %v1428
      %v1430 = vld [vmem:[%s1416 + $0x20] sm:$0xff]
      %v1431 = vsel %vm1423, %v1350, %v1430
      %1432 = vst [vmem:[%s1416 + $0x20] sm:$0xff] %v1431
      %v1433 = vld [vmem:[%s1416 + $0x28] sm:$0x11]
      %v1434 = vsel %vm1278, %v1351, %v1433
      %1435 = vst [vmem:[%s1416 + $0x28] sm:$0x11] %v1434
      %v1436 = vld [vmem:[%s1416 + $0x40] sm:$0xff]
      %v1437 = vsel %vm1423, %v1358, %v1436
      %1438 = vst [vmem:[%s1416 + $0x40] sm:$0xff] %v1437
      %v1439 = vld [vmem:[%s1416 + $0x48] sm:$0x11]
      %v1440 = vsel %vm1278, %v1359, %v1439
      %1441 = vst [vmem:[%s1416 + $0x48] sm:$0x11] %v1440
      %v1442 = vld [vmem:[%s1416 + $0x60] sm:$0xff]
      %v1443 = vsel %vm1423, %v1366, %v1442
      %1444 = vst [vmem:[%s1416 + $0x60] sm:$0xff] %v1443
      %v1445 = vld [vmem:[%s1416 + $0x68] sm:$0x11]
      %v1446 = vsel %vm1278, %v1367, %v1445
      %1447 = vst [vmem:[%s1416 + $0x68] sm:$0x11] %v1446
      %v1448 = vld [vmem:[%s1416 + $0x80] sm:$0xff]
      %v1449 = vsel %vm1423, %v1374, %v1448
      %1450 = vst [vmem:[%s1416 + $0x80] sm:$0xff] %v1449
      %v1451 = vld [vmem:[%s1416 + $0x88] sm:$0x11]
      %v1452 = vsel %vm1278, %v1375, %v1451
      %1453 = vst [vmem:[%s1416 + $0x88] sm:$0x11] %v1452
      %v1454 = vld [vmem:[%s1416 + $0xa0] sm:$0xff]
      %v1455 = vsel %vm1423, %v1382, %v1454
      %1456 = vst [vmem:[%s1416 + $0xa0] sm:$0xff] %v1455
      %v1457 = vld [vmem:[%s1416 + $0xa8] sm:$0x11]
      %v1458 = vsel %vm1278, %v1383, %v1457
      %1459 = vst [vmem:[%s1416 + $0xa8] sm:$0x11] %v1458
      %v1460 = vld [vmem:[%s1416 + $0xc0] sm:$0xff]
      %v1461 = vsel %vm1423, %v1390, %v1460
      %1462 = vst [vmem:[%s1416 + $0xc0] sm:$0xff] %v1461
      %v1463 = vld [vmem:[%s1416 + $0xc8] sm:$0x11]
      %v1464 = vsel %vm1278, %v1391, %v1463
      %1465 = vst [vmem:[%s1416 + $0xc8] sm:$0x11] %v1464
      %v1466 = vld [vmem:[%s1416 + $0xe0] sm:$0xff]
      %v1467 = vsel %vm1423, %v1398, %v1466
      %1468 = vst [vmem:[%s1416 + $0xe0] sm:$0xff] %v1467
      %v1469 = vld [vmem:[%s1416 + $0xe8] sm:$0x11]
      %v1470 = vsel %vm1278, %v1399, %v1469
      %1471 = vst [vmem:[%s1416 + $0xe8] sm:$0x11] %v1470
      %v1473 = vshrl.u32 %v1256, 16
      %v1475 = vrot.slane %v1473, 7
      %v1476 = vshll.u32 %v1256, 16
      %v1478 = vor.u32 %v1475, %v1476
      %v1479 = vrot.slane %v1475, 4
      %v1481 = vshrl.u32 %v1258, 16
      %v1483 = vrot.slane %v1481, 7
      %v1484 = vshll.u32 %v1258, 16
      %v1486 = vor.u32 %v1483, %v1484
      %v1487 = vrot.slane %v1483, 4
      %v1489 = vshrl.u32 %v1260, 16
      %v1491 = vrot.slane %v1489, 7
      %v1492 = vshll.u32 %v1260, 16
      %v1494 = vor.u32 %v1491, %v1492
      %v1495 = vrot.slane %v1491, 4
      %v1497 = vshrl.u32 %v1262, 16
      %v1499 = vrot.slane %v1497, 7
      %v1500 = vshll.u32 %v1262, 16
      %v1502 = vor.u32 %v1499, %v1500
      %v1503 = vrot.slane %v1499, 4
      %v1505 = vshrl.u32 %v1264, 16
      %v1507 = vrot.slane %v1505, 7
      %v1508 = vshll.u32 %v1264, 16
      %v1510 = vor.u32 %v1507, %v1508
      %v1511 = vrot.slane %v1507, 4
      %v1513 = vshrl.u32 %v1266, 16
      %v1515 = vrot.slane %v1513, 7
      %v1516 = vshll.u32 %v1266, 16
      %v1518 = vor.u32 %v1515, %v1516
      %v1519 = vrot.slane %v1515, 4
      %v1521 = vshrl.u32 %v1268, 16
      %v1523 = vrot.slane %v1521, 7
      %v1524 = vshll.u32 %v1268, 16
      %v1526 = vor.u32 %v1523, %v1524
      %v1527 = vrot.slane %v1523, 4
      %v1529 = vshrl.u32 %v1270, 16
      %v1531 = vrot.slane %v1529, 7
      %v1532 = vshll.u32 %v1270, 16
      %v1534 = vor.u32 %v1531, %v1532
      %v1535 = vrot.slane %v1531, 4
      %s1552 = scalar_lea.vmem [#allocation2], 32
      %v1553 = vld [vmem:[%s1552] sm:$0xff]
      %v1554 = vsel %vm1423, %v1478, %v1553
      %1555 = vst [vmem:[%s1552] sm:$0xff] %v1554
      %v1556 = vld [vmem:[%s1552 + $0x8] sm:$0x11]
      %v1557 = vsel %vm1278, %v1479, %v1556
      %1558 = vst [vmem:[%s1552 + $0x8] sm:$0x11] %v1557
      %v1559 = vld [vmem:[%s1552 + $0x20] sm:$0xff]
      %v1560 = vsel %vm1423, %v1486, %v1559
      %1561 = vst [vmem:[%s1552 + $0x20] sm:$0xff] %v1560
      %v1562 = vld [vmem:[%s1552 + $0x28] sm:$0x11]
      %v1563 = vsel %vm1278, %v1487, %v1562
      %1564 = vst [vmem:[%s1552 + $0x28] sm:$0x11] %v1563
      %v1565 = vld [vmem:[%s1552 + $0x40] sm:$0xff]
      %v1566 = vsel %vm1423, %v1494, %v1565
      %1567 = vst [vmem:[%s1552 + $0x40] sm:$0xff] %v1566
      %v1568 = vld [vmem:[%s1552 + $0x48] sm:$0x11]
      %v1569 = vsel %vm1278, %v1495, %v1568
      %1570 = vst [vmem:[%s1552 + $0x48] sm:$0x11] %v1569
      %v1571 = vld [vmem:[%s1552 + $0x60] sm:$0xff]
      %v1572 = vsel %vm1423, %v1502, %v1571
      %1573 = vst [vmem:[%s1552 + $0x60] sm:$0xff] %v1572
      %v1574 = vld [vmem:[%s1552 + $0x68] sm:$0x11]
      %v1575 = vsel %vm1278, %v1503, %v1574
      %1576 = vst [vmem:[%s1552 + $0x68] sm:$0x11] %v1575
      %v1577 = vld [vmem:[%s1552 + $0x80] sm:$0xff]
      %v1578 = vsel %vm1423, %v1510, %v1577
      %1579 = vst [vmem:[%s1552 + $0x80] sm:$0xff] %v1578
      %v1580 = vld [vmem:[%s1552 + $0x88] sm:$0x11]
      %v1581 = vsel %vm1278, %v1511, %v1580
      %1582 = vst [vmem:[%s1552 + $0x88] sm:$0x11] %v1581
      %v1583 = vld [vmem:[%s1552 + $0xa0] sm:$0xff]
      %v1584 = vsel %vm1423, %v1518, %v1583
      %1585 = vst [vmem:[%s1552 + $0xa0] sm:$0xff] %v1584
      %v1586 = vld [vmem:[%s1552 + $0xa8] sm:$0x11]
      %v1587 = vsel %vm1278, %v1519, %v1586
      %1588 = vst [vmem:[%s1552 + $0xa8] sm:$0x11] %v1587
      %v1589 = vld [vmem:[%s1552 + $0xc0] sm:$0xff]
      %v1590 = vsel %vm1423, %v1526, %v1589
      %1591 = vst [vmem:[%s1552 + $0xc0] sm:$0xff] %v1590
      %v1592 = vld [vmem:[%s1552 + $0xc8] sm:$0x11]
      %v1593 = vsel %vm1278, %v1527, %v1592
      %1594 = vst [vmem:[%s1552 + $0xc8] sm:$0x11] %v1593
      %v1595 = vld [vmem:[%s1552 + $0xe0] sm:$0xff]
      %v1596 = vsel %vm1423, %v1534, %v1595
      %1597 = vst [vmem:[%s1552 + $0xe0] sm:$0xff] %v1596
      %v1598 = vld [vmem:[%s1552 + $0xe8] sm:$0x11]
      %v1599 = vsel %vm1278, %v1535, %v1598
      %1600 = vst [vmem:[%s1552 + $0xe8] sm:$0x11] %v1599
      %v1601 = vld [vmem:[#allocation2] sm:$0xff]
      %v1602 = vld [vmem:[#allocation2 + $0x8] sm:$0x11]
      %v1603 = vld [vmem:[#allocation2 + $0x20] sm:$0xff]
      %v1604 = vld [vmem:[#allocation2 + $0x28] sm:$0x11]
      %v1605 = vld [vmem:[#allocation2 + $0x40] sm:$0xff]
      %v1606 = vld [vmem:[#allocation2 + $0x48] sm:$0x11]
      %v1607 = vld [vmem:[#allocation2 + $0x60] sm:$0xff]
      %v1608 = vld [vmem:[#allocation2 + $0x68] sm:$0x11]
      %v1609 = vld [vmem:[#allocation2 + $0x80] sm:$0xff]
      %v1610 = vld [vmem:[#allocation2 + $0x88] sm:$0x11]
      %v1611 = vld [vmem:[#allocation2 + $0xa0] sm:$0xff]
      %v1612 = vld [vmem:[#allocation2 + $0xa8] sm:$0x11]
      %v1613 = vld [vmem:[#allocation2 + $0xc0] sm:$0xff]
      %v1614 = vld [vmem:[#allocation2 + $0xc8] sm:$0x11]
      %v1615 = vld [vmem:[#allocation2 + $0xe0] sm:$0xff]
      %v1616 = vld [vmem:[#allocation2 + $0xe8] sm:$0x11]
      %vm1617 = vsmask.f32 3328
      %vm1618 = vsmask.f32 7440
      %vm1619 = vmor %vm1617, %vm1618
      %v1621 = vshrl.u32 %v1601, 16
      %v1623 = vrot.slane %v1621, 4
      %v1624 = vshll.u32 %v1601, 16
      %v1626 = vrot.slane %v1624, 5
      %v1627 = vor.u32 %v1623, %v1626
      %v1628 = vrot.slane %v1627, 4
      %v1630 = vshll.u32 %v1602, 16
      %v1632 = vrot.slane %v1630, 5
      %v1633 = vsel %vm1619, %v1628, %v1632
      %v1635 = vshrl.u32 %v1603, 16
      %v1637 = vrot.slane %v1635, 4
      %v1638 = vshll.u32 %v1603, 16
      %v1640 = vrot.slane %v1638, 5
      %v1641 = vor.u32 %v1637, %v1640
      %v1642 = vrot.slane %v1641, 4
      %v1644 = vshll.u32 %v1604, 16
      %v1646 = vrot.slane %v1644, 5
      %v1647 = vsel %vm1619, %v1642, %v1646
      %v1649 = vshrl.u32 %v1605, 16
      %v1651 = vrot.slane %v1649, 4
      %v1652 = vshll.u32 %v1605, 16
      %v1654 = vrot.slane %v1652, 5
      %v1655 = vor.u32 %v1651, %v1654
      %v1656 = vrot.slane %v1655, 4
      %v1658 = vshll.u32 %v1606, 16
      %v1660 = vrot.slane %v1658, 5
      %v1661 = vsel %vm1619, %v1656, %v1660
      %v1663 = vshrl.u32 %v1607, 16
      %v1665 = vrot.slane %v1663, 4
      %v1666 = vshll.u32 %v1607, 16
      %v1668 = vrot.slane %v1666, 5
      %v1669 = vor.u32 %v1665, %v1668
      %v1670 = vrot.slane %v1669, 4
      %v1672 = vshll.u32 %v1608, 16
      %v1674 = vrot.slane %v1672, 5
      %v1675 = vsel %vm1619, %v1670, %v1674
      %v1677 = vshrl.u32 %v1609, 16
      %v1679 = vrot.slane %v1677, 4
      %v1680 = vshll.u32 %v1609, 16
      %v1682 = vrot.slane %v1680, 5
      %v1683 = vor.u32 %v1679, %v1682
      %v1684 = vrot.slane %v1683, 4
      %v1686 = vshll.u32 %v1610, 16
      %v1688 = vrot.slane %v1686, 5
      %v1689 = vsel %vm1619, %v1684, %v1688
      %v1691 = vshrl.u32 %v1611, 16
      %v1693 = vrot.slane %v1691, 4
      %v1694 = vshll.u32 %v1611, 16
      %v1696 = vrot.slane %v1694, 5
      %v1697 = vor.u32 %v1693, %v1696
      %v1698 = vrot.slane %v1697, 4
      %v1700 = vshll.u32 %v1612, 16
      %v1702 = vrot.slane %v1700, 5
      %v1703 = vsel %vm1619, %v1698, %v1702
      %v1705 = vshrl.u32 %v1613, 16
      %v1707 = vrot.slane %v1705, 4
      %v1708 = vshll.u32 %v1613, 16
      %v1710 = vrot.slane %v1708, 5
      %v1711 = vor.u32 %v1707, %v1710
      %v1712 = vrot.slane %v1711, 4
      %v1714 = vshll.u32 %v1614, 16
      %v1716 = vrot.slane %v1714, 5
      %v1717 = vsel %vm1619, %v1712, %v1716
      %v1719 = vshrl.u32 %v1615, 16
      %v1721 = vrot.slane %v1719, 4
      %v1722 = vshll.u32 %v1615, 16
      %v1724 = vrot.slane %v1722, 5
      %v1725 = vor.u32 %v1721, %v1724
      %v1726 = vrot.slane %v1725, 4
      %v1728 = vshll.u32 %v1616, 16
      %v1730 = vrot.slane %v1728, 5
      %v1731 = vsel %vm1619, %v1726, %v1730
      %v1732 = vld [vmem:[#allocation2 + $0x4] sm:$0xf]
      %v1733 = vld [vmem:[#allocation2 + $0x24] sm:$0xf]
      %v1734 = vld [vmem:[#allocation2 + $0x44] sm:$0xf]
      %v1735 = vld [vmem:[#allocation2 + $0x64] sm:$0xf]
      %v1736 = vld [vmem:[#allocation2 + $0x84] sm:$0xf]
      %v1737 = vld [vmem:[#allocation2 + $0xa4] sm:$0xf]
      %v1738 = vld [vmem:[#allocation2 + $0xc4] sm:$0xf]
      %v1739 = vld [vmem:[#allocation2 + $0xe4] sm:$0xf]
      %v1740 = vld [vmem:[%s3] sm:$0xf]
      %v1741 = vld [vmem:[%s3 + $0x4] sm:$0xf]
      %v1742 = vld [vmem:[%s3 + $0x8] sm:$0xf]
      %v1743 = vld [vmem:[%s3 + $0xc] sm:$0xf]
      %v1744 = vld [vmem:[%s3 + $0x10] sm:$0xf]
      %v1745 = vld [vmem:[%s3 + $0x14] sm:$0xf]
      %v1746 = vld [vmem:[%s3 + $0x18] sm:$0xf]
      %v1747 = vld [vmem:[%s3 + $0x1c] sm:$0xf]
      %v1748 = vld [vmem:[%s3 + $0x20] sm:$0xf]
      %v1749 = vld [vmem:[%s3 + $0x24] sm:$0xf]
      %v1750 = vld [vmem:[%s3 + $0x28] sm:$0xf]
      %v1751 = vld [vmem:[%s3 + $0x2c] sm:$0xf]
      %v1752 = vld [vmem:[%s3 + $0x30] sm:$0xf]
      %v1753 = vld [vmem:[%s3 + $0x34] sm:$0xf]
      %v1754 = vld [vmem:[%s3 + $0x38] sm:$0xf]
      %v1755 = vld [vmem:[%s3 + $0x3c] sm:$0xf]
      %v1756 = vld [vmem:[%s3 + $0x40] sm:$0xf]
      %v1757 = vld [vmem:[%s3 + $0x44] sm:$0xf]
      %v1758 = vld [vmem:[%s3 + $0x48] sm:$0xf]
      %v1759 = vld [vmem:[%s3 + $0x4c] sm:$0xf]
      %v1760 = vld [vmem:[%s3 + $0x50] sm:$0xf]
      %v1761 = vld [vmem:[%s3 + $0x54] sm:$0xf]
      %v1762 = vld [vmem:[%s3 + $0x58] sm:$0xf]
      %v1763 = vld [vmem:[%s3 + $0x5c] sm:$0xf]
      %v1764 = vld [vmem:[%s3 + $0x60] sm:$0xf]
      %v1765 = vld [vmem:[%s3 + $0x64] sm:$0xf]
      %v1766 = vld [vmem:[%s3 + $0x68] sm:$0xf]
      %v1767 = vld [vmem:[%s3 + $0x6c] sm:$0xf]
      %v1768 = vld [vmem:[%s3 + $0x70] sm:$0xf]
      %v1769 = vld [vmem:[%s3 + $0x74] sm:$0xf]
      %v1770 = vld [vmem:[%s3 + $0x78] sm:$0xf]
      %v1771 = vld [vmem:[%s3 + $0x7c] sm:$0xf]
      %v1772 = vld [vmem:[%s4] sm:$0xf]
      %v1773 = vld [vmem:[%s4 + $0x4] sm:$0xf]
      %v1774 = vld [vmem:[%s4 + $0x8] sm:$0xf]
      %v1775 = vld [vmem:[%s4 + $0xc] sm:$0xf]
      %v1776 = vld [vmem:[%s4 + $0x10] sm:$0xf]
      %v1777 = vld [vmem:[%s4 + $0x14] sm:$0xf]
      %v1778 = vld [vmem:[%s4 + $0x18] sm:$0xf]
      %v1779 = vld [vmem:[%s4 + $0x1c] sm:$0xf]
      %v1780 = vld [vmem:[%s4 + $0x20] sm:$0xf]
      %v1781 = vld [vmem:[%s4 + $0x24] sm:$0xf]
      %v1782 = vld [vmem:[%s4 + $0x28] sm:$0xf]
      %v1783 = vld [vmem:[%s4 + $0x2c] sm:$0xf]
      %v1784 = vld [vmem:[%s4 + $0x30] sm:$0xf]
      %v1785 = vld [vmem:[%s4 + $0x34] sm:$0xf]
      %v1786 = vld [vmem:[%s4 + $0x38] sm:$0xf]
      %v1787 = vld [vmem:[%s4 + $0x3c] sm:$0xf]
      %v1796 = vunpack.c.l.b16 %v1732
      %v1797 = vunpack.c.l.b16 %v1733
      %v1798 = vunpack.c.l.b16 %v1734
      %v1799 = vunpack.c.l.b16 %v1735
      %v1800 = vunpack.c.l.b16 %v1736
      %v1801 = vunpack.c.l.b16 %v1737
      %v1802 = vunpack.c.l.b16 %v1738
      %v1803 = vunpack.c.l.b16 %v1739
      %v1804 = vpack.c.b16 %v1797, %v1796
      %v1805 = vpack.c.b16 %v1799, %v1798
      %v1806 = vpack.c.b16 %v1801, %v1800
      %v1807 = vpack.c.b16 %v1803, %v1802
      %v1828 = vunpack.c.l.b16 %v1772
      %v1829 = vunpack.c.l.b16 %v1773
      %v1830 = vunpack.c.l.b16 %v1774
      %v1831 = vunpack.c.l.b16 %v1775
      %v1832 = vunpack.c.l.b16 %v1776
      %v1833 = vunpack.c.l.b16 %v1777
      %v1834 = vunpack.c.l.b16 %v1778
      %v1835 = vunpack.c.l.b16 %v1779
      %v1836 = vunpack.c.l.b16 %v1780
      %v1837 = vunpack.c.l.b16 %v1781
      %v1838 = vunpack.c.l.b16 %v1782
      %v1839 = vunpack.c.l.b16 %v1783
      %v1840 = vunpack.c.l.b16 %v1784
      %v1841 = vunpack.c.l.b16 %v1785
      %v1842 = vunpack.c.l.b16 %v1786
      %v1843 = vunpack.c.l.b16 %v1787
      %v1844 = vpack.c.b16 %v1829, %v1828
      %v1845 = vpack.c.b16 %v1831, %v1830
      %v1846 = vpack.c.b16 %v1833, %v1832
      %v1847 = vpack.c.b16 %v1835, %v1834
      %v1848 = vpack.c.b16 %v1837, %v1836
      %v1849 = vpack.c.b16 %v1839, %v1838
      %v1850 = vpack.c.b16 %v1841, %v1840
      %v1851 = vpack.c.b16 %v1843, %v1842
      %1860 = vmatpush.bf16.msra.mxu0 %v1851
      %1861 = vmatpush.bf16.msra.mxu0 %v1850
      %1862 = vmatpush.bf16.msra.mxu0 %v1849
      %1863 = vmatpush.bf16.msra.mxu0 %v1848
      %1864 = vmatpush.bf16.msra.mxu0 %v1847
      %1865 = vmatpush.bf16.msra.mxu0 %v1846
      %1866 = vmatpush.bf16.msra.mxu0 %v1845
      %1867 = vmatpush.bf16.msra.mxu0 %v1844
      %1868 = vmatmul.bf16.gmra.mxu0 %v1804
      %v1869 = vpop.f32.mrf.mxu0
      %v1870 = vadd.f32 0.0, %v1869
      %v1871 = vpop.f32.mrf.mxu0
      %v1872 = vadd.f32 0.0, %v1871
      %1873 = vmatmul.bf16.gmra.mxu0 %v1805
      %v1874 = vpop.f32.mrf.mxu0
      %v1875 = vadd.f32 0.0, %v1874
      %v1876 = vpop.f32.mrf.mxu0
      %v1877 = vadd.f32 0.0, %v1876
      %1878 = vmatmul.bf16.gmra.mxu0 %v1806
      %v1879 = vpop.f32.mrf.mxu0
      %v1880 = vadd.f32 0.0, %v1879
      %v1881 = vpop.f32.mrf.mxu0
      %v1882 = vadd.f32 0.0, %v1881
      %1883 = vmatmul.bf16.gmra.mxu0 %v1807
      %v1884 = vpop.f32.mrf.mxu0
      %v1885 = vadd.f32 0.0, %v1884
      %v1886 = vpop.f32.mrf.mxu0
      %v1887 = vadd.f32 0.0, %v1886
      %1888 = vdwg.mxu0
      %v1889 = vunpack.c.l.b16 %v1633
      %v1890 = vunpack.c.h.b16 %v1633
      %v1891 = vunpack.c.l.b16 %v1647
      %v1892 = vunpack.c.h.b16 %v1647
      %v1893 = vunpack.c.l.b16 %v1661
      %v1894 = vunpack.c.h.b16 %v1661
      %v1895 = vunpack.c.l.b16 %v1675
      %v1896 = vunpack.c.h.b16 %v1675
      %v1897 = vunpack.c.l.b16 %v1689
      %v1898 = vunpack.c.h.b16 %v1689
      %v1899 = vunpack.c.l.b16 %v1703
      %v1900 = vunpack.c.h.b16 %v1703
      %v1901 = vunpack.c.l.b16 %v1717
      %v1902 = vunpack.c.h.b16 %v1717
      %v1903 = vunpack.c.l.b16 %v1731
      %v1904 = vunpack.c.h.b16 %v1731
      %v1905 = vpack.c.b16 %v1891, %v1889
      %v1906 = vpack.c.b16 %v1892, %v1890
      %v1907 = vpack.c.b16 %v1895, %v1893
      %v1908 = vpack.c.b16 %v1896, %v1894
      %v1909 = vpack.c.b16 %v1899, %v1897
      %v1910 = vpack.c.b16 %v1900, %v1898
      %v1911 = vpack.c.b16 %v1903, %v1901
      %v1912 = vpack.c.b16 %v1904, %v1902
      %v1953 = vunpack.c.l.b16 %v1740
      %v1954 = vunpack.c.l.b16 %v1741
      %v1955 = vunpack.c.l.b16 %v1742
      %v1956 = vunpack.c.l.b16 %v1743
      %v1957 = vunpack.c.l.b16 %v1744
      %v1958 = vunpack.c.l.b16 %v1745
      %v1959 = vunpack.c.l.b16 %v1746
      %v1960 = vunpack.c.l.b16 %v1747
      %v1961 = vunpack.c.l.b16 %v1748
      %v1962 = vunpack.c.l.b16 %v1749
      %v1963 = vunpack.c.l.b16 %v1750
      %v1964 = vunpack.c.l.b16 %v1751
      %v1965 = vunpack.c.l.b16 %v1752
      %v1966 = vunpack.c.l.b16 %v1753
      %v1967 = vunpack.c.l.b16 %v1754
      %v1968 = vunpack.c.l.b16 %v1755
      %v1969 = vunpack.c.l.b16 %v1756
      %v1970 = vunpack.c.l.b16 %v1757
      %v1971 = vunpack.c.l.b16 %v1758
      %v1972 = vunpack.c.l.b16 %v1759
      %v1973 = vunpack.c.l.b16 %v1760
      %v1974 = vunpack.c.l.b16 %v1761
      %v1975 = vunpack.c.l.b16 %v1762
      %v1976 = vunpack.c.l.b16 %v1763
      %v1977 = vunpack.c.l.b16 %v1764
      %v1978 = vunpack.c.l.b16 %v1765
      %v1979 = vunpack.c.l.b16 %v1766
      %v1980 = vunpack.c.l.b16 %v1767
      %v1981 = vunpack.c.l.b16 %v1768
      %v1982 = vunpack.c.l.b16 %v1769
      %v1983 = vunpack.c.l.b16 %v1770
      %v1984 = vunpack.c.l.b16 %v1771
      %v1985 = vpack.c.b16 %v1954, %v1953
      %v1986 = vpack.c.b16 %v1956, %v1955
      %v1987 = vpack.c.b16 %v1958, %v1957
      %v1988 = vpack.c.b16 %v1960, %v1959
      %v1989 = vpack.c.b16 %v1962, %v1961
      %v1990 = vpack.c.b16 %v1964, %v1963
      %v1991 = vpack.c.b16 %v1966, %v1965
      %v1992 = vpack.c.b16 %v1968, %v1967
      %v1993 = vpack.c.b16 %v1970, %v1969
      %v1994 = vpack.c.b16 %v1972, %v1971
      %v1995 = vpack.c.b16 %v1974, %v1973
      %v1996 = vpack.c.b16 %v1976, %v1975
      %v1997 = vpack.c.b16 %v1978, %v1977
      %v1998 = vpack.c.b16 %v1980, %v1979
      %v1999 = vpack.c.b16 %v1982, %v1981
      %v2000 = vpack.c.b16 %v1984, %v1983
      %2017 = vmatpush.bf16.msra.mxu0 %v1992
      %2018 = vmatpush.bf16.msra.mxu0 %v1991
      %2019 = vmatpush.bf16.msra.mxu0 %v1990
      %2020 = vmatpush.bf16.msra.mxu0 %v1989
      %2021 = vmatpush.bf16.msra.mxu0 %v1988
      %2022 = vmatpush.bf16.msra.mxu0 %v1987
      %2023 = vmatpush.bf16.msra.mxu0 %v1986
      %2024 = vmatpush.bf16.msra.mxu0 %v1985
      %2025 = vmatmul.bf16.gmra.mxu0 %v1905
      %v2026 = vpop.f32.mrf.mxu0
      %v2027 = vadd.f32 %v1870, %v2026
      %v2028 = vpop.f32.mrf.mxu0
      %v2029 = vadd.f32 %v1872, %v2028
      %2030 = vmatmul.bf16.gmra.mxu0 %v1907
      %v2031 = vpop.f32.mrf.mxu0
      %v2032 = vadd.f32 %v1875, %v2031
      %v2033 = vpop.f32.mrf.mxu0
      %v2034 = vadd.f32 %v1877, %v2033
      %2035 = vmatmul.bf16.gmra.mxu0 %v1909
      %v2036 = vpop.f32.mrf.mxu0
      %v2037 = vadd.f32 %v1880, %v2036
      %v2038 = vpop.f32.mrf.mxu0
      %v2039 = vadd.f32 %v1882, %v2038
      %2040 = vmatmul.bf16.gmra.mxu0 %v1911
      %v2041 = vpop.f32.mrf.mxu0
      %v2042 = vadd.f32 %v1885, %v2041
      %v2043 = vpop.f32.mrf.mxu0
      %v2044 = vadd.f32 %v1887, %v2043
      %2045 = vdwg.mxu0
      %2046 = vmatpush.bf16.msra.mxu0 %v2000
      %2047 = vmatpush.bf16.msra.mxu0 %v1999
      %2048 = vmatpush.bf16.msra.mxu0 %v1998
      %2049 = vmatpush.bf16.msra.mxu0 %v1997
      %2050 = vmatpush.bf16.msra.mxu0 %v1996
      %2051 = vmatpush.bf16.msra.mxu0 %v1995
      %2052 = vmatpush.bf16.msra.mxu0 %v1994
      %2053 = vmatpush.bf16.msra.mxu0 %v1993
      %2054 = vmatmul.bf16.gmra.mxu0 %v1906
      %v2055 = vpop.f32.mrf.mxu0
      %v2056 = vadd.f32 %v2027, %v2055
      %v2057 = vpop.f32.mrf.mxu0
      %v2058 = vadd.f32 %v2029, %v2057
      %2059 = vmatmul.bf16.gmra.mxu0 %v1908
      %v2060 = vpop.f32.mrf.mxu0
      %v2061 = vadd.f32 %v2032, %v2060
      %v2062 = vpop.f32.mrf.mxu0
      %v2063 = vadd.f32 %v2034, %v2062
      %2064 = vmatmul.bf16.gmra.mxu0 %v1910
      %v2065 = vpop.f32.mrf.mxu0
      %v2066 = vadd.f32 %v2037, %v2065
      %v2067 = vpop.f32.mrf.mxu0
      %v2068 = vadd.f32 %v2039, %v2067
      %2069 = vmatmul.bf16.gmra.mxu0 %v1912
      %v2070 = vpop.f32.mrf.mxu0
      %v2071 = vadd.f32 %v2042, %v2070
      %v2072 = vpop.f32.mrf.mxu0
      %v2073 = vadd.f32 %v2044, %v2072
      %2074 = vdwg.mxu0
      %v2075 = vld [vmem:[%s1416] sm:$0xff]
      %v2076 = vld [vmem:[%s1416 + $0x8] sm:$0x11]
      %v2077 = vld [vmem:[%s1416 + $0x20] sm:$0xff]
      %v2078 = vld [vmem:[%s1416 + $0x28] sm:$0x11]
      %v2079 = vld [vmem:[%s1416 + $0x40] sm:$0xff]
      %v2080 = vld [vmem:[%s1416 + $0x48] sm:$0x11]
      %v2081 = vld [vmem:[%s1416 + $0x60] sm:$0xff]
      %v2082 = vld [vmem:[%s1416 + $0x68] sm:$0x11]
      %v2083 = vld [vmem:[%s1416 + $0x80] sm:$0xff]
      %v2084 = vld [vmem:[%s1416 + $0x88] sm:$0x11]
      %v2085 = vld [vmem:[%s1416 + $0xa0] sm:$0xff]
      %v2086 = vld [vmem:[%s1416 + $0xa8] sm:$0x11]
      %v2087 = vld [vmem:[%s1416 + $0xc0] sm:$0xff]
      %v2088 = vld [vmem:[%s1416 + $0xc8] sm:$0x11]
      %v2089 = vld [vmem:[%s1416 + $0xe0] sm:$0xff]
      %v2090 = vld [vmem:[%s1416 + $0xe8] sm:$0x11]
      %v2092 = vshrl.u32 %v2075, 16
      %v2094 = vrot.slane %v2092, 4
      %v2095 = vshll.u32 %v2075, 16
      %v2097 = vrot.slane %v2095, 5
      %v2098 = vor.u32 %v2094, %v2097
      %v2099 = vrot.slane %v2098, 4
      %v2101 = vshll.u32 %v2076, 16
      %v2103 = vrot.slane %v2101, 5
      %v2104 = vsel %vm1619, %v2099, %v2103
      %v2106 = vshrl.u32 %v2077, 16
      %v2108 = vrot.slane %v2106, 4
      %v2109 = vshll.u32 %v2077, 16
      %v2111 = vrot.slane %v2109, 5
      %v2112 = vor.u32 %v2108, %v2111
      %v2113 = vrot.slane %v2112, 4
      %v2115 = vshll.u32 %v2078, 16
      %v2117 = vrot.slane %v2115, 5
      %v2118 = vsel %vm1619, %v2113, %v2117
      %v2120 = vshrl.u32 %v2079, 16
      %v2122 = vrot.slane %v2120, 4
      %v2123 = vshll.u32 %v2079, 16
      %v2125 = vrot.slane %v2123, 5
      %v2126 = vor.u32 %v2122, %v2125
      %v2127 = vrot.slane %v2126, 4
      %v2129 = vshll.u32 %v2080, 16
      %v2131 = vrot.slane %v2129, 5
      %v2132 = vsel %vm1619, %v2127, %v2131
      %v2134 = vshrl.u32 %v2081, 16
      %v2136 = vrot.slane %v2134, 4
      %v2137 = vshll.u32 %v2081, 16
      %v2139 = vrot.slane %v2137, 5
      %v2140 = vor.u32 %v2136, %v2139
      %v2141 = vrot.slane %v2140, 4
      %v2143 = vshll.u32 %v2082, 16
      %v2145 = vrot.slane %v2143, 5
      %v2146 = vsel %vm1619, %v2141, %v2145
      %v2148 = vshrl.u32 %v2083, 16
      %v2150 = vrot.slane %v2148, 4
      %v2151 = vshll.u32 %v2083, 16
      %v2153 = vrot.slane %v2151, 5
      %v2154 = vor.u32 %v2150, %v2153
      %v2155 = vrot.slane %v2154, 4
      %v2157 = vshll.u32 %v2084, 16
      %v2159 = vrot.slane %v2157, 5
      %v2160 = vsel %vm1619, %v2155, %v2159
      %v2162 = vshrl.u32 %v2085, 16
      %v2164 = vrot.slane %v2162, 4
      %v2165 = vshll.u32 %v2085, 16
      %v2167 = vrot.slane %v2165, 5
      %v2168 = vor.u32 %v2164, %v2167
      %v2169 = vrot.slane %v2168, 4
      %v2171 = vshll.u32 %v2086, 16
      %v2173 = vrot.slane %v2171, 5
      %v2174 = vsel %vm1619, %v2169, %v2173
      %v2176 = vshrl.u32 %v2087, 16
      %v2178 = vrot.slane %v2176, 4
      %v2179 = vshll.u32 %v2087, 16
      %v2181 = vrot.slane %v2179, 5
      %v2182 = vor.u32 %v2178, %v2181
      %v2183 = vrot.slane %v2182, 4
      %v2185 = vshll.u32 %v2088, 16
      %v2187 = vrot.slane %v2185, 5
      %v2188 = vsel %vm1619, %v2183, %v2187
      %v2190 = vshrl.u32 %v2089, 16
      %v2192 = vrot.slane %v2190, 4
      %v2193 = vshll.u32 %v2089, 16
      %v2195 = vrot.slane %v2193, 5
      %v2196 = vor.u32 %v2192, %v2195
      %v2197 = vrot.slane %v2196, 4
      %v2199 = vshll.u32 %v2090, 16
      %v2201 = vrot.slane %v2199, 5
      %v2202 = vsel %vm1619, %v2197, %v2201
      %v2203 = vld [vmem:[%s1416 + $0x4] sm:$0xf]
      %v2204 = vld [vmem:[%s1416 + $0x24] sm:$0xf]
      %v2205 = vld [vmem:[%s1416 + $0x44] sm:$0xf]
      %v2206 = vld [vmem:[%s1416 + $0x64] sm:$0xf]
      %v2207 = vld [vmem:[%s1416 + $0x84] sm:$0xf]
      %v2208 = vld [vmem:[%s1416 + $0xa4] sm:$0xf]
      %v2209 = vld [vmem:[%s1416 + $0xc4] sm:$0xf]
      %v2210 = vld [vmem:[%s1416 + $0xe4] sm:$0xf]
      %s2211 = scalar_lea.vmem %s3, 128
      %v2212 = vld [vmem:[%s2211] sm:$0xf]
      %v2213 = vld [vmem:[%s2211 + $0x4] sm:$0xf]
      %v2214 = vld [vmem:[%s2211 + $0x8] sm:$0xf]
      %v2215 = vld [vmem:[%s2211 + $0xc] sm:$0xf]
      %v2216 = vld [vmem:[%s2211 + $0x10] sm:$0xf]
      %v2217 = vld [vmem:[%s2211 + $0x14] sm:$0xf]
      %v2218 = vld [vmem:[%s2211 + $0x18] sm:$0xf]
      %v2219 = vld [vmem:[%s2211 + $0x1c] sm:$0xf]
      %v2220 = vld [vmem:[%s2211 + $0x20] sm:$0xf]
      %v2221 = vld [vmem:[%s2211 + $0x24] sm:$0xf]
      %v2222 = vld [vmem:[%s2211 + $0x28] sm:$0xf]
      %v2223 = vld [vmem:[%s2211 + $0x2c] sm:$0xf]
      %v2224 = vld [vmem:[%s2211 + $0x30] sm:$0xf]
      %v2225 = vld [vmem:[%s2211 + $0x34] sm:$0xf]
      %v2226 = vld [vmem:[%s2211 + $0x38] sm:$0xf]
      %v2227 = vld [vmem:[%s2211 + $0x3c] sm:$0xf]
      %v2228 = vld [vmem:[%s2211 + $0x40] sm:$0xf]
      %v2229 = vld [vmem:[%s2211 + $0x44] sm:$0xf]
      %v2230 = vld [vmem:[%s2211 + $0x48] sm:$0xf]
      %v2231 = vld [vmem:[%s2211 + $0x4c] sm:$0xf]
      %v2232 = vld [vmem:[%s2211 + $0x50] sm:$0xf]
      %v2233 = vld [vmem:[%s2211 + $0x54] sm:$0xf]
      %v2234 = vld [vmem:[%s2211 + $0x58] sm:$0xf]
      %v2235 = vld [vmem:[%s2211 + $0x5c] sm:$0xf]
      %v2236 = vld [vmem:[%s2211 + $0x60] sm:$0xf]
      %v2237 = vld [vmem:[%s2211 + $0x64] sm:$0xf]
      %v2238 = vld [vmem:[%s2211 + $0x68] sm:$0xf]
      %v2239 = vld [vmem:[%s2211 + $0x6c] sm:$0xf]
      %v2240 = vld [vmem:[%s2211 + $0x70] sm:$0xf]
      %v2241 = vld [vmem:[%s2211 + $0x74] sm:$0xf]
      %v2242 = vld [vmem:[%s2211 + $0x78] sm:$0xf]
      %v2243 = vld [vmem:[%s2211 + $0x7c] sm:$0xf]
      %s2244 = scalar_lea.vmem %s4, 64
      %v2245 = vld [vmem:[%s2244] sm:$0xf]
      %v2246 = vld [vmem:[%s2244 + $0x4] sm:$0xf]
      %v2247 = vld [vmem:[%s2244 + $0x8] sm:$0xf]
      %v2248 = vld [vmem:[%s2244 + $0xc] sm:$0xf]
      %v2249 = vld [vmem:[%s2244 + $0x10] sm:$0xf]
      %v2250 = vld [vmem:[%s2244 + $0x14] sm:$0xf]
      %v2251 = vld [vmem:[%s2244 + $0x18] sm:$0xf]
      %v2252 = vld [vmem:[%s2244 + $0x1c] sm:$0xf]
      %v2253 = vld [vmem:[%s2244 + $0x20] sm:$0xf]
      %v2254 = vld [vmem:[%s2244 + $0x24] sm:$0xf]
      %v2255 = vld [vmem:[%s2244 + $0x28] sm:$0xf]
      %v2256 = vld [vmem:[%s2244 + $0x2c] sm:$0xf]
      %v2257 = vld [vmem:[%s2244 + $0x30] sm:$0xf]
      %v2258 = vld [vmem:[%s2244 + $0x34] sm:$0xf]
      %v2259 = vld [vmem:[%s2244 + $0x38] sm:$0xf]
      %v2260 = vld [vmem:[%s2244 + $0x3c] sm:$0xf]
      %v2269 = vunpack.c.l.b16 %v2203
      %v2270 = vunpack.c.l.b16 %v2204
      %v2271 = vunpack.c.l.b16 %v2205
      %v2272 = vunpack.c.l.b16 %v2206
      %v2273 = vunpack.c.l.b16 %v2207
      %v2274 = vunpack.c.l.b16 %v2208
      %v2275 = vunpack.c.l.b16 %v2209
      %v2276 = vunpack.c.l.b16 %v2210
      %v2277 = vpack.c.b16 %v2270, %v2269
      %v2278 = vpack.c.b16 %v2272, %v2271
      %v2279 = vpack.c.b16 %v2274, %v2273
      %v2280 = vpack.c.b16 %v2276, %v2275
      %v2301 = vunpack.c.l.b16 %v2245
      %v2302 = vunpack.c.l.b16 %v2246
      %v2303 = vunpack.c.l.b16 %v2247
      %v2304 = vunpack.c.l.b16 %v2248
      %v2305 = vunpack.c.l.b16 %v2249
      %v2306 = vunpack.c.l.b16 %v2250
      %v2307 = vunpack.c.l.b16 %v2251
      %v2308 = vunpack.c.l.b16 %v2252
      %v2309 = vunpack.c.l.b16 %v2253
      %v2310 = vunpack.c.l.b16 %v2254
      %v2311 = vunpack.c.l.b16 %v2255
      %v2312 = vunpack.c.l.b16 %v2256
      %v2313 = vunpack.c.l.b16 %v2257
      %v2314 = vunpack.c.l.b16 %v2258
      %v2315 = vunpack.c.l.b16 %v2259
      %v2316 = vunpack.c.l.b16 %v2260
      %v2317 = vpack.c.b16 %v2302, %v2301
      %v2318 = vpack.c.b16 %v2304, %v2303
      %v2319 = vpack.c.b16 %v2306, %v2305
      %v2320 = vpack.c.b16 %v2308, %v2307
      %v2321 = vpack.c.b16 %v2310, %v2309
      %v2322 = vpack.c.b16 %v2312, %v2311
      %v2323 = vpack.c.b16 %v2314, %v2313
      %v2324 = vpack.c.b16 %v2316, %v2315
      %2333 = vmatpush.bf16.msra.mxu0 %v2324
      %2334 = vmatpush.bf16.msra.mxu0 %v2323
      %2335 = vmatpush.bf16.msra.mxu0 %v2322
      %2336 = vmatpush.bf16.msra.mxu0 %v2321
      %2337 = vmatpush.bf16.msra.mxu0 %v2320
      %2338 = vmatpush.bf16.msra.mxu0 %v2319
      %2339 = vmatpush.bf16.msra.mxu0 %v2318
      %2340 = vmatpush.bf16.msra.mxu0 %v2317
      %2341 = vmatmul.bf16.gmra.mxu0 %v2277
      %v2342 = vpop.f32.mrf.mxu0
      %v2343 = vadd.f32 0.0, %v2342
      %v2344 = vpop.f32.mrf.mxu0
      %v2345 = vadd.f32 0.0, %v2344
      %2346 = vmatmul.bf16.gmra.mxu0 %v2278
      %v2347 = vpop.f32.mrf.mxu0
      %v2348 = vadd.f32 0.0, %v2347
      %v2349 = vpop.f32.mrf.mxu0
      %v2350 = vadd.f32 0.0, %v2349
      %2351 = vmatmul.bf16.gmra.mxu0 %v2279
      %v2352 = vpop.f32.mrf.mxu0
      %v2353 = vadd.f32 0.0, %v2352
      %v2354 = vpop.f32.mrf.mxu0
      %v2355 = vadd.f32 0.0, %v2354
      %2356 = vmatmul.bf16.gmra.mxu0 %v2280
      %v2357 = vpop.f32.mrf.mxu0
      %v2358 = vadd.f32 0.0, %v2357
      %v2359 = vpop.f32.mrf.mxu0
      %v2360 = vadd.f32 0.0, %v2359
      %2361 = vdwg.mxu0
      %v2362 = vunpack.c.l.b16 %v2104
      %v2363 = vunpack.c.h.b16 %v2104
      %v2364 = vunpack.c.l.b16 %v2118
      %v2365 = vunpack.c.h.b16 %v2118
      %v2366 = vunpack.c.l.b16 %v2132
      %v2367 = vunpack.c.h.b16 %v2132
      %v2368 = vunpack.c.l.b16 %v2146
      %v2369 = vunpack.c.h.b16 %v2146
      %v2370 = vunpack.c.l.b16 %v2160
      %v2371 = vunpack.c.h.b16 %v2160
      %v2372 = vunpack.c.l.b16 %v2174
      %v2373 = vunpack.c.h.b16 %v2174
      %v2374 = vunpack.c.l.b16 %v2188
      %v2375 = vunpack.c.h.b16 %v2188
      %v2376 = vunpack.c.l.b16 %v2202
      %v2377 = vunpack.c.h.b16 %v2202
      %v2378 = vpack.c.b16 %v2364, %v2362
      %v2379 = vpack.c.b16 %v2365, %v2363
      %v2380 = vpack.c.b16 %v2368, %v2366
      %v2381 = vpack.c.b16 %v2369, %v2367
      %v2382 = vpack.c.b16 %v2372, %v2370
      %v2383 = vpack.c.b16 %v2373, %v2371
      %v2384 = vpack.c.b16 %v2376, %v2374
      %v2385 = vpack.c.b16 %v2377, %v2375
      %v2426 = vunpack.c.l.b16 %v2212
      %v2427 = vunpack.c.l.b16 %v2213
      %v2428 = vunpack.c.l.b16 %v2214
      %v2429 = vunpack.c.l.b16 %v2215
      %v2430 = vunpack.c.l.b16 %v2216
      %v2431 = vunpack.c.l.b16 %v2217
      %v2432 = vunpack.c.l.b16 %v2218
      %v2433 = vunpack.c.l.b16 %v2219
      %v2434 = vunpack.c.l.b16 %v2220
      %v2435 = vunpack.c.l.b16 %v2221
      %v2436 = vunpack.c.l.b16 %v2222
      %v2437 = vunpack.c.l.b16 %v2223
      %v2438 = vunpack.c.l.b16 %v2224
      %v2439 = vunpack.c.l.b16 %v2225
      %v2440 = vunpack.c.l.b16 %v2226
      %v2441 = vunpack.c.l.b16 %v2227
      %v2442 = vunpack.c.l.b16 %v2228
      %v2443 = vunpack.c.l.b16 %v2229
      %v2444 = vunpack.c.l.b16 %v2230
      %v2445 = vunpack.c.l.b16 %v2231
      %v2446 = vunpack.c.l.b16 %v2232
      %v2447 = vunpack.c.l.b16 %v2233
      %v2448 = vunpack.c.l.b16 %v2234
      %v2449 = vunpack.c.l.b16 %v2235
      %v2450 = vunpack.c.l.b16 %v2236
      %v2451 = vunpack.c.l.b16 %v2237
      %v2452 = vunpack.c.l.b16 %v2238
      %v2453 = vunpack.c.l.b16 %v2239
      %v2454 = vunpack.c.l.b16 %v2240
      %v2455 = vunpack.c.l.b16 %v2241
      %v2456 = vunpack.c.l.b16 %v2242
      %v2457 = vunpack.c.l.b16 %v2243
      %v2458 = vpack.c.b16 %v2427, %v2426
      %v2459 = vpack.c.b16 %v2429, %v2428
      %v2460 = vpack.c.b16 %v2431, %v2430
      %v2461 = vpack.c.b16 %v2433, %v2432
      %v2462 = vpack.c.b16 %v2435, %v2434
      %v2463 = vpack.c.b16 %v2437, %v2436
      %v2464 = vpack.c.b16 %v2439, %v2438
      %v2465 = vpack.c.b16 %v2441, %v2440
      %v2466 = vpack.c.b16 %v2443, %v2442
      %v2467 = vpack.c.b16 %v2445, %v2444
      %v2468 = vpack.c.b16 %v2447, %v2446
      %v2469 = vpack.c.b16 %v2449, %v2448
      %v2470 = vpack.c.b16 %v2451, %v2450
      %v2471 = vpack.c.b16 %v2453, %v2452
      %v2472 = vpack.c.b16 %v2455, %v2454
      %v2473 = vpack.c.b16 %v2457, %v2456
      %2490 = vmatpush.bf16.msra.mxu0 %v2465
      %2491 = vmatpush.bf16.msra.mxu0 %v2464
      %2492 = vmatpush.bf16.msra.mxu0 %v2463
      %2493 = vmatpush.bf16.msra.mxu0 %v2462
      %2494 = vmatpush.bf16.msra.mxu0 %v2461
      %2495 = vmatpush.bf16.msra.mxu0 %v2460
      %2496 = vmatpush.bf16.msra.mxu0 %v2459
      %2497 = vmatpush.bf16.msra.mxu0 %v2458
      %2498 = vmatmul.bf16.gmra.mxu0 %v2378
      %v2499 = vpop.f32.mrf.mxu0
      %v2500 = vadd.f32 %v2343, %v2499
      %v2501 = vpop.f32.mrf.mxu0
      %v2502 = vadd.f32 %v2345, %v2501
      %2503 = vmatmul.bf16.gmra.mxu0 %v2380
      %v2504 = vpop.f32.mrf.mxu0
      %v2505 = vadd.f32 %v2348, %v2504
      %v2506 = vpop.f32.mrf.mxu0
      %v2507 = vadd.f32 %v2350, %v2506
      %2508 = vmatmul.bf16.gmra.mxu0 %v2382
      %v2509 = vpop.f32.mrf.mxu0
      %v2510 = vadd.f32 %v2353, %v2509
      %v2511 = vpop.f32.mrf.mxu0
      %v2512 = vadd.f32 %v2355, %v2511
      %2513 = vmatmul.bf16.gmra.mxu0 %v2384
      %v2514 = vpop.f32.mrf.mxu0
      %v2515 = vadd.f32 %v2358, %v2514
      %v2516 = vpop.f32.mrf.mxu0
      %v2517 = vadd.f32 %v2360, %v2516
      %2518 = vdwg.mxu0
      %2519 = vmatpush.bf16.msra.mxu0 %v2473
      %2520 = vmatpush.bf16.msra.mxu0 %v2472
      %2521 = vmatpush.bf16.msra.mxu0 %v2471
      %2522 = vmatpush.bf16.msra.mxu0 %v2470
      %2523 = vmatpush.bf16.msra.mxu0 %v2469
      %2524 = vmatpush.bf16.msra.mxu0 %v2468
      %2525 = vmatpush.bf16.msra.mxu0 %v2467
      %2526 = vmatpush.bf16.msra.mxu0 %v2466
      %2527 = vmatmul.bf16.gmra.mxu0 %v2379
      %v2528 = vpop.f32.mrf.mxu0
      %v2529 = vadd.f32 %v2500, %v2528
      %v2530 = vpop.f32.mrf.mxu0
      %v2531 = vadd.f32 %v2502, %v2530
      %2532 = vmatmul.bf16.gmra.mxu0 %v2381
      %v2533 = vpop.f32.mrf.mxu0
      %v2534 = vadd.f32 %v2505, %v2533
      %v2535 = vpop.f32.mrf.mxu0
      %v2536 = vadd.f32 %v2507, %v2535
      %2537 = vmatmul.bf16.gmra.mxu0 %v2383
      %v2538 = vpop.f32.mrf.mxu0
      %v2539 = vadd.f32 %v2510, %v2538
      %v2540 = vpop.f32.mrf.mxu0
      %v2541 = vadd.f32 %v2512, %v2540
      %2542 = vmatmul.bf16.gmra.mxu0 %v2385
      %v2543 = vpop.f32.mrf.mxu0
      %v2544 = vadd.f32 %v2515, %v2543
      %v2545 = vpop.f32.mrf.mxu0
      %v2546 = vadd.f32 %v2517, %v2545
      %2547 = vdwg.mxu0
      %v2548 = vadd.f32 %v2056, %v2529
      %v2549 = vadd.f32 %v2058, %v2531
      %v2550 = vadd.f32 %v2061, %v2534
      %v2551 = vadd.f32 %v2063, %v2536
      %v2552 = vadd.f32 %v2066, %v2539
      %v2553 = vadd.f32 %v2068, %v2541
      %v2554 = vadd.f32 %v2071, %v2544
      %v2555 = vadd.f32 %v2073, %v2546
      %v2556 = vld [vmem:[%s1552] sm:$0xff]
      %v2557 = vld [vmem:[%s1552 + $0x8] sm:$0x11]
      %v2558 = vld [vmem:[%s1552 + $0x20] sm:$0xff]
      %v2559 = vld [vmem:[%s1552 + $0x28] sm:$0x11]
      %v2560 = vld [vmem:[%s1552 + $0x40] sm:$0xff]
      %v2561 = vld [vmem:[%s1552 + $0x48] sm:$0x11]
      %v2562 = vld [vmem:[%s1552 + $0x60] sm:$0xff]
      %v2563 = vld [vmem:[%s1552 + $0x68] sm:$0x11]
      %v2564 = vld [vmem:[%s1552 + $0x80] sm:$0xff]
      %v2565 = vld [vmem:[%s1552 + $0x88] sm:$0x11]
      %v2566 = vld [vmem:[%s1552 + $0xa0] sm:$0xff]
      %v2567 = vld [vmem:[%s1552 + $0xa8] sm:$0x11]
      %v2568 = vld [vmem:[%s1552 + $0xc0] sm:$0xff]
      %v2569 = vld [vmem:[%s1552 + $0xc8] sm:$0x11]
      %v2570 = vld [vmem:[%s1552 + $0xe0] sm:$0xff]
      %v2571 = vld [vmem:[%s1552 + $0xe8] sm:$0x11]
      %v2573 = vshrl.u32 %v2556, 16
      %v2575 = vrot.slane %v2573, 4
      %v2576 = vshll.u32 %v2556, 16
      %v2578 = vrot.slane %v2576, 5
      %v2579 = vor.u32 %v2575, %v2578
      %v2580 = vrot.slane %v2579, 4
      %v2582 = vshll.u32 %v2557, 16
      %v2584 = vrot.slane %v2582, 5
      %v2585 = vsel %vm1619, %v2580, %v2584
      %v2587 = vshrl.u32 %v2558, 16
      %v2589 = vrot.slane %v2587, 4
      %v2590 = vshll.u32 %v2558, 16
      %v2592 = vrot.slane %v2590, 5
      %v2593 = vor.u32 %v2589, %v2592
      %v2594 = vrot.slane %v2593, 4
      %v2596 = vshll.u32 %v2559, 16
      %v2598 = vrot.slane %v2596, 5
      %v2599 = vsel %vm1619, %v2594, %v2598
      %v2601 = vshrl.u32 %v2560, 16
      %v2603 = vrot.slane %v2601, 4
      %v2604 = vshll.u32 %v2560, 16
      %v2606 = vrot.slane %v2604, 5
      %v2607 = vor.u32 %v2603, %v2606
      %v2608 = vrot.slane %v2607, 4
      %v2610 = vshll.u32 %v2561, 16
      %v2612 = vrot.slane %v2610, 5
      %v2613 = vsel %vm1619, %v2608, %v2612
      %v2615 = vshrl.u32 %v2562, 16
      %v2617 = vrot.slane %v2615, 4
      %v2618 = vshll.u32 %v2562, 16
      %v2620 = vrot.slane %v2618, 5
      %v2621 = vor.u32 %v2617, %v2620
      %v2622 = vrot.slane %v2621, 4
      %v2624 = vshll.u32 %v2563, 16
      %v2626 = vrot.slane %v2624, 5
      %v2627 = vsel %vm1619, %v2622, %v2626
      %v2629 = vshrl.u32 %v2564, 16
      %v2631 = vrot.slane %v2629, 4
      %v2632 = vshll.u32 %v2564, 16
      %v2634 = vrot.slane %v2632, 5
      %v2635 = vor.u32 %v2631, %v2634
      %v2636 = vrot.slane %v2635, 4
      %v2638 = vshll.u32 %v2565, 16
      %v2640 = vrot.slane %v2638, 5
      %v2641 = vsel %vm1619, %v2636, %v2640
      %v2643 = vshrl.u32 %v2566, 16
      %v2645 = vrot.slane %v2643, 4
      %v2646 = vshll.u32 %v2566, 16
      %v2648 = vrot.slane %v2646, 5
      %v2649 = vor.u32 %v2645, %v2648
      %v2650 = vrot.slane %v2649, 4
      %v2652 = vshll.u32 %v2567, 16
      %v2654 = vrot.slane %v2652, 5
      %v2655 = vsel %vm1619, %v2650, %v2654
      %v2657 = vshrl.u32 %v2568, 16
      %v2659 = vrot.slane %v2657, 4
      %v2660 = vshll.u32 %v2568, 16
      %v2662 = vrot.slane %v2660, 5
      %v2663 = vor.u32 %v2659, %v2662
      %v2664 = vrot.slane %v2663, 4
      %v2666 = vshll.u32 %v2569, 16
      %v2668 = vrot.slane %v2666, 5
      %v2669 = vsel %vm1619, %v2664, %v2668
      %v2671 = vshrl.u32 %v2570, 16
      %v2673 = vrot.slane %v2671, 4
      %v2674 = vshll.u32 %v2570, 16
      %v2676 = vrot.slane %v2674, 5
      %v2677 = vor.u32 %v2673, %v2676
      %v2678 = vrot.slane %v2677, 4
      %v2680 = vshll.u32 %v2571, 16
      %v2682 = vrot.slane %v2680, 5
      %v2683 = vsel %vm1619, %v2678, %v2682
      %v2684 = vld [vmem:[%s1552 + $0x4] sm:$0xf]
      %v2685 = vld [vmem:[%s1552 + $0x24] sm:$0xf]
      %v2686 = vld [vmem:[%s1552 + $0x44] sm:$0xf]
      %v2687 = vld [vmem:[%s1552 + $0x64] sm:$0xf]
      %v2688 = vld [vmem:[%s1552 + $0x84] sm:$0xf]
      %v2689 = vld [vmem:[%s1552 + $0xa4] sm:$0xf]
      %v2690 = vld [vmem:[%s1552 + $0xc4] sm:$0xf]
      %v2691 = vld [vmem:[%s1552 + $0xe4] sm:$0xf]
      %s2692 = scalar_lea.vmem %s3, 256
      %v2693 = vld [vmem:[%s2692] sm:$0xf]
      %v2694 = vld [vmem:[%s2692 + $0x4] sm:$0xf]
      %v2695 = vld [vmem:[%s2692 + $0x8] sm:$0xf]
      %v2696 = vld [vmem:[%s2692 + $0xc] sm:$0xf]
      %v2697 = vld [vmem:[%s2692 + $0x10] sm:$0xf]
      %v2698 = vld [vmem:[%s2692 + $0x14] sm:$0xf]
      %v2699 = vld [vmem:[%s2692 + $0x18] sm:$0xf]
      %v2700 = vld [vmem:[%s2692 + $0x1c] sm:$0xf]
      %v2701 = vld [vmem:[%s2692 + $0x20] sm:$0xf]
      %v2702 = vld [vmem:[%s2692 + $0x24] sm:$0xf]
      %v2703 = vld [vmem:[%s2692 + $0x28] sm:$0xf]
      %v2704 = vld [vmem:[%s2692 + $0x2c] sm:$0xf]
      %v2705 = vld [vmem:[%s2692 + $0x30] sm:$0xf]
      %v2706 = vld [vmem:[%s2692 + $0x34] sm:$0xf]
      %v2707 = vld [vmem:[%s2692 + $0x38] sm:$0xf]
      %v2708 = vld [vmem:[%s2692 + $0x3c] sm:$0xf]
      %v2709 = vld [vmem:[%s2692 + $0x40] sm:$0xf]
      %v2710 = vld [vmem:[%s2692 + $0x44] sm:$0xf]
      %v2711 = vld [vmem:[%s2692 + $0x48] sm:$0xf]
      %v2712 = vld [vmem:[%s2692 + $0x4c] sm:$0xf]
      %v2713 = vld [vmem:[%s2692 + $0x50] sm:$0xf]
      %v2714 = vld [vmem:[%s2692 + $0x54] sm:$0xf]
      %v2715 = vld [vmem:[%s2692 + $0x58] sm:$0xf]
      %v2716 = vld [vmem:[%s2692 + $0x5c] sm:$0xf]
      %v2717 = vld [vmem:[%s2692 + $0x60] sm:$0xf]
      %v2718 = vld [vmem:[%s2692 + $0x64] sm:$0xf]
      %v2719 = vld [vmem:[%s2692 + $0x68] sm:$0xf]
      %v2720 = vld [vmem:[%s2692 + $0x6c] sm:$0xf]
      %v2721 = vld [vmem:[%s2692 + $0x70] sm:$0xf]
      %v2722 = vld [vmem:[%s2692 + $0x74] sm:$0xf]
      %v2723 = vld [vmem:[%s2692 + $0x78] sm:$0xf]
      %v2724 = vld [vmem:[%s2692 + $0x7c] sm:$0xf]
      %s2725 = scalar_lea.vmem %s4, 128
      %v2726 = vld [vmem:[%s2725] sm:$0xf]
      %v2727 = vld [vmem:[%s2725 + $0x4] sm:$0xf]
      %v2728 = vld [vmem:[%s2725 + $0x8] sm:$0xf]
      %v2729 = vld [vmem:[%s2725 + $0xc] sm:$0xf]
      %v2730 = vld [vmem:[%s2725 + $0x10] sm:$0xf]
      %v2731 = vld [vmem:[%s2725 + $0x14] sm:$0xf]
      %v2732 = vld [vmem:[%s2725 + $0x18] sm:$0xf]
      %v2733 = vld [vmem:[%s2725 + $0x1c] sm:$0xf]
      %v2734 = vld [vmem:[%s2725 + $0x20] sm:$0xf]
      %v2735 = vld [vmem:[%s2725 + $0x24] sm:$0xf]
      %v2736 = vld [vmem:[%s2725 + $0x28] sm:$0xf]
      %v2737 = vld [vmem:[%s2725 + $0x2c] sm:$0xf]
      %v2738 = vld [vmem:[%s2725 + $0x30] sm:$0xf]
      %v2739 = vld [vmem:[%s2725 + $0x34] sm:$0xf]
      %v2740 = vld [vmem:[%s2725 + $0x38] sm:$0xf]
      %v2741 = vld [vmem:[%s2725 + $0x3c] sm:$0xf]
      %v2750 = vunpack.c.l.b16 %v2684
      %v2751 = vunpack.c.l.b16 %v2685
      %v2752 = vunpack.c.l.b16 %v2686
      %v2753 = vunpack.c.l.b16 %v2687
      %v2754 = vunpack.c.l.b16 %v2688
      %v2755 = vunpack.c.l.b16 %v2689
      %v2756 = vunpack.c.l.b16 %v2690
      %v2757 = vunpack.c.l.b16 %v2691
      %v2758 = vpack.c.b16 %v2751, %v2750
      %v2759 = vpack.c.b16 %v2753, %v2752
      %v2760 = vpack.c.b16 %v2755, %v2754
      %v2761 = vpack.c.b16 %v2757, %v2756
      %v2782 = vunpack.c.l.b16 %v2726
      %v2783 = vunpack.c.l.b16 %v2727
      %v2784 = vunpack.c.l.b16 %v2728
      %v2785 = vunpack.c.l.b16 %v2729
      %v2786 = vunpack.c.l.b16 %v2730
      %v2787 = vunpack.c.l.b16 %v2731
      %v2788 = vunpack.c.l.b16 %v2732
      %v2789 = vunpack.c.l.b16 %v2733
      %v2790 = vunpack.c.l.b16 %v2734
      %v2791 = vunpack.c.l.b16 %v2735
      %v2792 = vunpack.c.l.b16 %v2736
      %v2793 = vunpack.c.l.b16 %v2737
      %v2794 = vunpack.c.l.b16 %v2738
      %v2795 = vunpack.c.l.b16 %v2739
      %v2796 = vunpack.c.l.b16 %v2740
      %v2797 = vunpack.c.l.b16 %v2741
      %v2798 = vpack.c.b16 %v2783, %v2782
      %v2799 = vpack.c.b16 %v2785, %v2784
      %v2800 = vpack.c.b16 %v2787, %v2786
      %v2801 = vpack.c.b16 %v2789, %v2788
      %v2802 = vpack.c.b16 %v2791, %v2790
      %v2803 = vpack.c.b16 %v2793, %v2792
      %v2804 = vpack.c.b16 %v2795, %v2794
      %v2805 = vpack.c.b16 %v2797, %v2796
      %2814 = vmatpush.bf16.msra.mxu0 %v2805
      %2815 = vmatpush.bf16.msra.mxu0 %v2804
      %2816 = vmatpush.bf16.msra.mxu0 %v2803
      %2817 = vmatpush.bf16.msra.mxu0 %v2802
      %2818 = vmatpush.bf16.msra.mxu0 %v2801
      %2819 = vmatpush.bf16.msra.mxu0 %v2800
      %2820 = vmatpush.bf16.msra.mxu0 %v2799
      %2821 = vmatpush.bf16.msra.mxu0 %v2798
      %2822 = vmatmul.bf16.gmra.mxu0 %v2758
      %v2823 = vpop.f32.mrf.mxu0
      %v2824 = vadd.f32 0.0, %v2823
      %v2825 = vpop.f32.mrf.mxu0
      %v2826 = vadd.f32 0.0, %v2825
      %2827 = vmatmul.bf16.gmra.mxu0 %v2759
      %v2828 = vpop.f32.mrf.mxu0
      %v2829 = vadd.f32 0.0, %v2828
      %v2830 = vpop.f32.mrf.mxu0
      %v2831 = vadd.f32 0.0, %v2830
      %2832 = vmatmul.bf16.gmra.mxu0 %v2760
      %v2833 = vpop.f32.mrf.mxu0
      %v2834 = vadd.f32 0.0, %v2833
      %v2835 = vpop.f32.mrf.mxu0
      %v2836 = vadd.f32 0.0, %v2835
      %2837 = vmatmul.bf16.gmra.mxu0 %v2761
      %v2838 = vpop.f32.mrf.mxu0
      %v2839 = vadd.f32 0.0, %v2838
      %v2840 = vpop.f32.mrf.mxu0
      %v2841 = vadd.f32 0.0, %v2840
      %2842 = vdwg.mxu0
      %v2843 = vunpack.c.l.b16 %v2585
      %v2844 = vunpack.c.h.b16 %v2585
      %v2845 = vunpack.c.l.b16 %v2599
      %v2846 = vunpack.c.h.b16 %v2599
      %v2847 = vunpack.c.l.b16 %v2613
      %v2848 = vunpack.c.h.b16 %v2613
      %v2849 = vunpack.c.l.b16 %v2627
      %v2850 = vunpack.c.h.b16 %v2627
      %v2851 = vunpack.c.l.b16 %v2641
      %v2852 = vunpack.c.h.b16 %v2641
      %v2853 = vunpack.c.l.b16 %v2655
      %v2854 = vunpack.c.h.b16 %v2655
      %v2855 = vunpack.c.l.b16 %v2669
      %v2856 = vunpack.c.h.b16 %v2669
      %v2857 = vunpack.c.l.b16 %v2683
      %v2858 = vunpack.c.h.b16 %v2683
      %v2859 = vpack.c.b16 %v2845, %v2843
      %v2860 = vpack.c.b16 %v2846, %v2844
      %v2861 = vpack.c.b16 %v2849, %v2847
      %v2862 = vpack.c.b16 %v2850, %v2848
      %v2863 = vpack.c.b16 %v2853, %v2851
      %v2864 = vpack.c.b16 %v2854, %v2852
      %v2865 = vpack.c.b16 %v2857, %v2855
      %v2866 = vpack.c.b16 %v2858, %v2856
      %v2907 = vunpack.c.l.b16 %v2693
      %v2908 = vunpack.c.l.b16 %v2694
      %v2909 = vunpack.c.l.b16 %v2695
      %v2910 = vunpack.c.l.b16 %v2696
      %v2911 = vunpack.c.l.b16 %v2697
      %v2912 = vunpack.c.l.b16 %v2698
      %v2913 = vunpack.c.l.b16 %v2699
      %v2914 = vunpack.c.l.b16 %v2700
      %v2915 = vunpack.c.l.b16 %v2701
      %v2916 = vunpack.c.l.b16 %v2702
      %v2917 = vunpack.c.l.b16 %v2703
      %v2918 = vunpack.c.l.b16 %v2704
      %v2919 = vunpack.c.l.b16 %v2705
      %v2920 = vunpack.c.l.b16 %v2706
      %v2921 = vunpack.c.l.b16 %v2707
      %v2922 = vunpack.c.l.b16 %v2708
      %v2923 = vunpack.c.l.b16 %v2709
      %v2924 = vunpack.c.l.b16 %v2710
      %v2925 = vunpack.c.l.b16 %v2711
      %v2926 = vunpack.c.l.b16 %v2712
      %v2927 = vunpack.c.l.b16 %v2713
      %v2928 = vunpack.c.l.b16 %v2714
      %v2929 = vunpack.c.l.b16 %v2715
      %v2930 = vunpack.c.l.b16 %v2716
      %v2931 = vunpack.c.l.b16 %v2717
      %v2932 = vunpack.c.l.b16 %v2718
      %v2933 = vunpack.c.l.b16 %v2719
      %v2934 = vunpack.c.l.b16 %v2720
      %v2935 = vunpack.c.l.b16 %v2721
      %v2936 = vunpack.c.l.b16 %v2722
      %v2937 = vunpack.c.l.b16 %v2723
      %v2938 = vunpack.c.l.b16 %v2724
      %v2939 = vpack.c.b16 %v2908, %v2907
      %v2940 = vpack.c.b16 %v2910, %v2909
      %v2941 = vpack.c.b16 %v2912, %v2911
      %v2942 = vpack.c.b16 %v2914, %v2913
      %v2943 = vpack.c.b16 %v2916, %v2915
      %v2944 = vpack.c.b16 %v2918, %v2917
      %v2945 = vpack.c.b16 %v2920, %v2919
      %v2946 = vpack.c.b16 %v2922, %v2921
      %v2947 = vpack.c.b16 %v2924, %v2923
      %v2948 = vpack.c.b16 %v2926, %v2925
      %v2949 = vpack.c.b16 %v2928, %v2927
      %v2950 = vpack.c.b16 %v2930, %v2929
      %v2951 = vpack.c.b16 %v2932, %v2931
      %v2952 = vpack.c.b16 %v2934, %v2933
      %v2953 = vpack.c.b16 %v2936, %v2935
      %v2954 = vpack.c.b16 %v2938, %v2937
      %2971 = vmatpush.bf16.msra.mxu0 %v2946
      %2972 = vmatpush.bf16.msra.mxu0 %v2945
      %2973 = vmatpush.bf16.msra.mxu0 %v2944
      %2974 = vmatpush.bf16.msra.mxu0 %v2943
      %2975 = vmatpush.bf16.msra.mxu0 %v2942
      %2976 = vmatpush.bf16.msra.mxu0 %v2941
      %2977 = vmatpush.bf16.msra.mxu0 %v2940
      %2978 = vmatpush.bf16.msra.mxu0 %v2939
      %2979 = vmatmul.bf16.gmra.mxu0 %v2859
      %v2980 = vpop.f32.mrf.mxu0
      %v2981 = vadd.f32 %v2824, %v2980
      %v2982 = vpop.f32.mrf.mxu0
      %v2983 = vadd.f32 %v2826, %v2982
      %2984 = vmatmul.bf16.gmra.mxu0 %v2861
      %v2985 = vpop.f32.mrf.mxu0
      %v2986 = vadd.f32 %v2829, %v2985
      %v2987 = vpop.f32.mrf.mxu0
      %v2988 = vadd.f32 %v2831, %v2987
      %2989 = vmatmul.bf16.gmra.mxu0 %v2863
      %v2990 = vpop.f32.mrf.mxu0
      %v2991 = vadd.f32 %v2834, %v2990
      %v2992 = vpop.f32.mrf.mxu0
      %v2993 = vadd.f32 %v2836, %v2992
      %2994 = vmatmul.bf16.gmra.mxu0 %v2865
      %v2995 = vpop.f32.mrf.mxu0
      %v2996 = vadd.f32 %v2839, %v2995
      %v2997 = vpop.f32.mrf.mxu0
      %v2998 = vadd.f32 %v2841, %v2997
      %2999 = vdwg.mxu0
      %3000 = vmatpush.bf16.msra.mxu0 %v2954
      %3001 = vmatpush.bf16.msra.mxu0 %v2953
      %3002 = vmatpush.bf16.msra.mxu0 %v2952
      %3003 = vmatpush.bf16.msra.mxu0 %v2951
      %3004 = vmatpush.bf16.msra.mxu0 %v2950
      %3005 = vmatpush.bf16.msra.mxu0 %v2949
      %3006 = vmatpush.bf16.msra.mxu0 %v2948
      %3007 = vmatpush.bf16.msra.mxu0 %v2947
      %3008 = vmatmul.bf16.gmra.mxu0 %v2860
      %v3009 = vpop.f32.mrf.mxu0
      %v3010 = vadd.f32 %v2981, %v3009
      %v3011 = vpop.f32.mrf.mxu0
      %v3012 = vadd.f32 %v2983, %v3011
      %3013 = vmatmul.bf16.gmra.mxu0 %v2862
      %v3014 = vpop.f32.mrf.mxu0
      %v3015 = vadd.f32 %v2986, %v3014
      %v3016 = vpop.f32.mrf.mxu0
      %v3017 = vadd.f32 %v2988, %v3016
      %3018 = vmatmul.bf16.gmra.mxu0 %v2864
      %v3019 = vpop.f32.mrf.mxu0
      %v3020 = vadd.f32 %v2991, %v3019
      %v3021 = vpop.f32.mrf.mxu0
      %v3022 = vadd.f32 %v2993, %v3021
      %3023 = vmatmul.bf16.gmra.mxu0 %v2866
      %v3024 = vpop.f32.mrf.mxu0
      %v3025 = vadd.f32 %v2996, %v3024
      %v3026 = vpop.f32.mrf.mxu0
      %v3027 = vadd.f32 %v2998, %v3026
      %3028 = vdwg.mxu0
      %v3029 = vadd.f32 %v2548, %v3010
      %v3030 = vadd.f32 %v2549, %v3012
      %v3031 = vadd.f32 %v2550, %v3015
      %v3032 = vadd.f32 %v2551, %v3017
      %v3033 = vadd.f32 %v2552, %v3020
      %v3034 = vadd.f32 %v2553, %v3022
      %v3035 = vadd.f32 %v2554, %v3025
      %v3036 = vadd.f32 %v2555, %v3027
      %v3037 = vld [vmem:[%s5] sm:$0x1]
      %v3039 = vperm.slane %v3037, 0
      %v3041 = vadd.f32 %v3029, %v3039
      %v3042 = vadd.f32 %v3030, %v3039
      %v3043 = vadd.f32 %v3031, %v3039
      %v3044 = vadd.f32 %v3032, %v3039
      %v3045 = vadd.f32 %v3033, %v3039
      %v3046 = vadd.f32 %v3034, %v3039
      %v3047 = vadd.f32 %v3035, %v3039
      %v3048 = vadd.f32 %v3036, %v3039
      %v3049 = vmin.f32 %v3041, 20.0
      %v3050 = vmin.f32 %v3042, 20.0
      %v3051 = vmin.f32 %v3043, 20.0
      %v3052 = vmin.f32 %v3044, 20.0
      %v3053 = vmin.f32 %v3045, 20.0
      %v3054 = vmin.f32 %v3046, 20.0
      %v3055 = vmin.f32 %v3047, 20.0
      %v3056 = vmin.f32 %v3048, 20.0
      %v3057 = vmul.f32 %v3049, 1.442695
      %v3058 = vpow.pop %v3057
      %v3059 = vmul.f32 %v3050, 1.442695
      %v3060 = vpow.pop %v3059
      %v3061 = vmul.f32 %v3051, 1.442695
      %v3062 = vpow.pop %v3061
      %v3063 = vmul.f32 %v3052, 1.442695
      %v3064 = vpow.pop %v3063
      %v3065 = vmul.f32 %v3053, 1.442695
      %v3066 = vpow.pop %v3065
      %v3067 = vmul.f32 %v3054, 1.442695
      %v3068 = vpow.pop %v3067
      %v3069 = vmul.f32 %v3055, 1.442695
      %v3070 = vpow.pop %v3069
      %v3071 = vmul.f32 %v3056, 1.442695
      %v3072 = vpow.pop %v3071
      %v3073 = vadd.f32 %v3058, 2.0
      %v3074 = vadd.f32 %v3060, 2.0
      %v3075 = vadd.f32 %v3062, 2.0
      %v3076 = vadd.f32 %v3064, 2.0
      %v3077 = vadd.f32 %v3066, 2.0
      %v3078 = vadd.f32 %v3068, 2.0
      %v3079 = vadd.f32 %v3070, 2.0
      %v3080 = vadd.f32 %v3072, 2.0
      %v3081 = vmul.f32 %v3058, %v3073
      %v3082 = vmul.f32 %v3060, %v3074
      %v3083 = vmul.f32 %v3062, %v3075
      %v3084 = vmul.f32 %v3064, %v3076
      %v3085 = vmul.f32 %v3066, %v3077
      %v3086 = vmul.f32 %v3068, %v3078
      %v3087 = vmul.f32 %v3070, %v3079
      %v3088 = vmul.f32 %v3072, %v3080
      %v3089 = vadd.f32 %v3081, 2.0
      %v3090 = vadd.f32 %v3082, 2.0
      %v3091 = vadd.f32 %v3083, 2.0
      %v3092 = vadd.f32 %v3084, 2.0
      %v3093 = vadd.f32 %v3085, 2.0
      %v3094 = vadd.f32 %v3086, 2.0
      %v3095 = vadd.f32 %v3087, 2.0
      %v3096 = vadd.f32 %v3088, 2.0
      %v3097 = vrcp.pop %v3089
      %v3098 = vrcp.pop %v3090
      %v3099 = vrcp.pop %v3091
      %v3100 = vrcp.pop %v3092
      %v3101 = vrcp.pop %v3093
      %v3102 = vrcp.pop %v3094
      %v3103 = vrcp.pop %v3095
      %v3104 = vrcp.pop %v3096
      %v3105 = vmul.f32 %v3089, %v3097
      %v3106 = vmul.f32 %v3090, %v3098
      %v3107 = vmul.f32 %v3091, %v3099
      %v3108 = vmul.f32 %v3092, %v3100
      %v3109 = vmul.f32 %v3093, %v3101
      %v3110 = vmul.f32 %v3094, %v3102
      %v3111 = vmul.f32 %v3095, %v3103
      %v3112 = vmul.f32 %v3096, %v3104
      %v3113 = vsub.f32 2.0, %v3105
      %v3114 = vsub.f32 2.0, %v3106
      %v3115 = vsub.f32 2.0, %v3107
      %v3116 = vsub.f32 2.0, %v3108
      %v3117 = vsub.f32 2.0, %v3109
      %v3118 = vsub.f32 2.0, %v3110
      %v3119 = vsub.f32 2.0, %v3111
      %v3120 = vsub.f32 2.0, %v3112
      %v3121 = vmul.f32 %v3097, %v3113
      %v3122 = vmul.f32 %v3098, %v3114
      %v3123 = vmul.f32 %v3099, %v3115
      %v3124 = vmul.f32 %v3100, %v3116
      %v3125 = vmul.f32 %v3101, %v3117
      %v3126 = vmul.f32 %v3102, %v3118
      %v3127 = vmul.f32 %v3103, %v3119
      %v3128 = vmul.f32 %v3104, %v3120
      %vm3129 = vcmp.gt.f32.partialorder %v3041, 20.0
      %vm3130 = vcmp.gt.f32.partialorder %v3042, 20.0
      %vm3131 = vcmp.gt.f32.partialorder %v3043, 20.0
      %vm3132 = vcmp.gt.f32.partialorder %v3044, 20.0
      %vm3133 = vcmp.gt.f32.partialorder %v3045, 20.0
      %vm3134 = vcmp.gt.f32.partialorder %v3046, 20.0
      %vm3135 = vcmp.gt.f32.partialorder %v3047, 20.0
      %vm3136 = vcmp.gt.f32.partialorder %v3048, 20.0
      %v3137 = vmul.f32 %v3041, %v3081
      %v3138 = vmul.f32 %v3042, %v3082
      %v3139 = vmul.f32 %v3043, %v3083
      %v3140 = vmul.f32 %v3044, %v3084
      %v3141 = vmul.f32 %v3045, %v3085
      %v3142 = vmul.f32 %v3046, %v3086
      %v3143 = vmul.f32 %v3047, %v3087
      %v3144 = vmul.f32 %v3048, %v3088
      %v3145 = vmul.f32 %v3137, %v3121
      %v3146 = vmul.f32 %v3138, %v3122
      %v3147 = vmul.f32 %v3139, %v3123
      %v3148 = vmul.f32 %v3140, %v3124
      %v3149 = vmul.f32 %v3141, %v3125
      %v3150 = vmul.f32 %v3142, %v3126
      %v3151 = vmul.f32 %v3143, %v3127
      %v3152 = vmul.f32 %v3144, %v3128
      %v3153 = vsel %vm3129, %v3041, %v3145
      %v3154 = vsel %vm3130, %v3042, %v3146
      %v3155 = vsel %vm3131, %v3043, %v3147
      %v3156 = vsel %vm3132, %v3044, %v3148
      %v3157 = vsel %vm3133, %v3045, %v3149
      %v3158 = vsel %vm3134, %v3046, %v3150
      %v3159 = vsel %vm3135, %v3047, %v3151
      %v3160 = vsel %vm3136, %v3048, %v3152
      %v3161 = vpack.c.bf16 %v3153, %v3153
      %v3162 = vpack.c.bf16 %v3154, %v3154
      %v3163 = vpack.c.bf16 %v3155, %v3155
      %v3164 = vpack.c.bf16 %v3156, %v3156
      %v3165 = vpack.c.bf16 %v3157, %v3157
      %v3166 = vpack.c.bf16 %v3158, %v3158
      %v3167 = vpack.c.bf16 %v3159, %v3159
      %v3168 = vpack.c.bf16 %v3160, %v3160
      %3169 = vst [vmem:[%s251] sm:$0xf] %v3161
      %3170 = vst [vmem:[%s251 + $0x4] sm:$0xf] %v3162
      %3171 = vst [vmem:[%s251 + $0x8] sm:$0xf] %v3163
      %3172 = vst [vmem:[%s251 + $0xc] sm:$0xf] %v3164
      %3173 = vst [vmem:[%s251 + $0x10] sm:$0xf] %v3165
      %3174 = vst [vmem:[%s251 + $0x14] sm:$0xf] %v3166
      %3175 = vst [vmem:[%s251 + $0x18] sm:$0xf] %v3167
      %3176 = vst [vmem:[%s251 + $0x1c] sm:$0xf] %v3168
      %p3177 = scmp.lt.s32.totalorder %s17, 1
      %s3178 = scalar_select %p3177, %s17, 1
      %s3179 = smul.addr %s3178, 8
      %s3180 = smul.addr %s3179, 4
      %s3181 = scalar_lea.vmem %s6, %s3180
      // Predicated region
      $region45: #{stage3_forward.5} parent=43 // pred_check
        %p3182 = pneg %p166
      $region46: #{stage3_forward.5} parent=43 // pred_check_branch
        %3184 = sbr.rel (%p3182) target = $region48
      $region47: #{stage3_forward.5} parent=43 // pred_region
        _
      $region48: #{stage3_forward.5} parent=43 // pred_fallthru
        _
    $region44: #{stage3_forward.5} parent=5 // pred_fallthru
      _
    %p3185 = scmp.le.s32.totalorder 2, %s12
    // Predicated region
    $region49: #{stage3_forward.5} parent=5 // pred_check
      %p3186 = pneg %p3185
    $region50: #{stage3_forward.5} parent=5 // pred_check_branch
      %3188 = sbr.rel (%p3186) target = $region52
    $region51: #{stage3_forward.5} parent=5 // pred_region
      %s3189 = ssub.s32 %s12, 2
      // Predicated region
      $region53: #{stage3_forward.5} parent=51 // pred_check
        %p3190 = pneg %p172
      $region54: #{stage3_forward.5} parent=51 // pred_check_branch
        %3192 = sbr.rel (%p3190) target = $region56
      $region55: #{stage3_forward.5} parent=51 // pred_region
        %p3193 = scmp.lt.s32.totalorder %s18, 1
        %s3194 = scalar_select %p3193, %s18, 1
        %s3195 = smul.addr %s3194, 8
        %s3196 = smul.addr %s3195, 4
        %s3197 = scalar_lea.vmem %s6, %s3196
      $region56: #{stage3_forward.5} parent=51 // pred_fallthru
        _
    $region52: #{stage3_forward.5} parent=5 // pred_fallthru
      _
  $region6: #{stage3_forward.5} parent=0 // loop_footer
    %s16 = sadd.s32 1, %s12
  $region7: #{stage3_forward.5} parent=0 // loop_footer_branch
    %11 = sbr.rel target = $region3
  $region8: #{stage3_forward.5} parent=0 // loop_exit
    _

</llo_original>
